<compile_context>
chip_gen: v7x
topology: tpu7x:2x2x1
jax: 0.10.0
libtpu: 0.0.40
codegen_flags: <defaults>
</compile_context>

<pallas_src>
import functools

import jax
import jax.numpy as jnp
from jax import lax
from jax.experimental import pallas as pl
from jax.experimental.pallas import tpu as pltpu

NEG_SLOPE = 0.01
BN_EPS = 1e-5


def _leaky(x):
    return jnp.where(x > 0, x, NEG_SLOPE * x)


# ----------------------------- Pallas kernels -----------------------------

def _dual_deconv_kernel(p_ref, w_ref, b_ref, o_ref):
    """Sub-pixel dual ConvTranspose3d: (tm, 8*Cin) @ (8*Cin, 16*Cout).

    Output columns: [main parities*Cout | res parities*Cout]. LeakyReLU is applied
    to the main half only (the residual branch feeds its BatchNorm un-activated).
    """
    y = jnp.dot(p_ref[...], w_ref[...], preferred_element_type=jnp.float32) + b_ref[...]
    half = w_ref.shape[1] // 2
    col = lax.broadcasted_iota(jnp.int32, y.shape, 1)
    o_ref[...] = jnp.where((col < half) & (y < 0), NEG_SLOPE * y, y)


def _conv_bn_fuse_kernel(s_ref, wb_ref, bc_ref, res_ref, g_ref, gt_ref, bn_ref, o_ref):
    """Fused Conv3d(k3,s1,p1) + BN(main) + BN(res) + residual add + LeakyReLU.

    s_ref  : (N, Do+2, Ho+2, Wo*C)  h1 (post-LeakyReLU), zero-padded in d/h, (w,c) packed in lanes
    wb_ref : (9, Wo*C, Wo*C)        block-banded conv weights, one per (kd, kh) tap (kw folded in)
    bc_ref : (1, Wo*C)              conv bias tiled over w
    res_ref: (N*Do*Ho, Wo*C)        residual deconv output (pre-BN), same row/lane layout
    g_ref  : (Wo*C, C), gt_ref: (C, Wo*C)   lane<->channel selector matrices for BN stats
    bn_ref : (4, C)                 [gamma_main, beta_main, gamma_res, beta_res]
    """
    n, dp, hp, lane = s_ref.shape
    do, ho = dp - 2, hp - 2
    c = bn_ref.shape[1]
    wo = lane // c
    rows = n * do * ho
    inv_cnt = 1.0 / float(rows * wo)

    # --- implicit-im2col Conv3d: 9 shifted slices x block-banded matmuls (MXU) ---
    acc = jnp.zeros((rows, lane), jnp.float32)
    for kd in range(3):
        for kh in range(3):
            tap = s_ref[:, kd:kd + do, kh:kh + ho, :].reshape(rows, lane)
            acc += jnp.dot(tap, wb_ref[kd * 3 + kh],
                           preferred_element_type=jnp.float32)
    h2 = acc + bc_ref[...]
    res = res_ref[...]

    g = g_ref[...]
    gt = gt_ref[...]

    def bn_affine(v, gamma, beta):
        s1 = jnp.dot(jnp.sum(v, axis=0, keepdims=True), g,
                     preferred_element_type=jnp.float32)            # (1, C)
        s2 = jnp.dot(jnp.sum(v * v, axis=0, keepdims=True), g,
                     preferred_element_type=jnp.float32)            # (1, C)
        mean = s1 * inv_cnt
        var = jnp.maximum(s2 * inv_cnt - mean * mean, 0.0)          # clamp (review concern)
        scale = gamma * lax.rsqrt(var + BN_EPS)
        shift = beta - mean * scale
        # broadcast per-channel affine back onto the (w, c)-packed lanes
        return (jnp.dot(scale, gt, preferred_element_type=jnp.float32),
                jnp.dot(shift, gt, preferred_element_type=jnp.float32))

    sc_m, sh_m = bn_affine(h2, bn_ref[0:1, :], bn_ref[1:2, :])
    sc_r, sh_r = bn_affine(res, bn_ref[2:3, :], bn_ref[3:4, :])

    y = h2 * sc_m + res * sc_r + (sh_m + sh_r)                      # pre-combined shifts
    o_ref[...] = jnp.where(y > 0, y, NEG_SLOPE * y)


# ----------------------------- weight packing (wrapper-side) ----------------

def _subpixel_deconv_weight(wt):
    """ConvTranspose3d weight (Cin, Cout, 3,3,3) -> (8*Cin, 8*Cout) sub-pixel matrix.

    Row index : (ad*4 + ah*2 + aw)*Cin + ci   (neighbour offsets in {0,1}^3)
    Col index : (pd*4 + ph*2 + pw)*Cout + co  (output parities in {0,1}^3)
    For k=3, s=2, p=1, op=1:   even parity <- tap a=0 with kernel index 1;
                               odd parity  <- taps a=0 (index 2) and a=1 (index 0).
    """
    cin, cout = wt.shape[0], wt.shape[1]
    kidx = {(0, 0): 1, (1, 0): 2, (1, 1): 0}
    zero = jnp.zeros((cin, cout), wt.dtype)
    row_list = []
    for ad in (0, 1):
        for ah in (0, 1):
            for aw in (0, 1):
                col_list = []
                for pd in (0, 1):
                    for ph in (0, 1):
                        for pw in (0, 1):
                            keys = ((pd, ad), (ph, ah), (pw, aw))
                            if all(k in kidx for k in keys):
                                col_list.append(wt[:, :, kidx[(pd, ad)],
                                                   kidx[(ph, ah)], kidx[(pw, aw)]])
                            else:
                                col_list.append(zero)
                row_list.append(jnp.concatenate(col_list, axis=1))
    return jnp.concatenate(row_list, axis=0)


def _banded_conv_weight(w, wo):
    """Conv3d weight (Cout, Cin, 3,3,3) -> (9, wo*Cin, wo*Cout) block-banded matrices.

    For tap (kd, kh): entry [(wi*Cin+ci), (wj*Cout+co)] = w[co, ci, kd, kh, wi-wj+1]
    when 0 <= wi-wj+1 <= 2, else 0.  This folds the kw taps and the zero padding at
    the w edges directly into a lane-dense matmul.
    """
    cin, cout = w.shape[1], w.shape[0]
    wt = jnp.transpose(w, (2, 3, 4, 1, 0))                       # (kd, kh, kw, ci, co)
    wi = jnp.arange(wo)[:, None]
    wj = jnp.arange(wo)[None, :]
    kw = wi - wj + 1
    valid = ((kw >= 0) & (kw <= 2)).astype(w.dtype)
    kw_c = jnp.clip(kw, 0, 2)
    full = wt[:, :, kw_c, :, :]                                  # (3, 3, wo, wo, ci, co)
    full = full * valid[None, None, :, :, None, None]
    full = jnp.transpose(full, (0, 1, 2, 4, 3, 5))               # (3, 3, wi, ci, wj, co)
    return full.reshape(9, wo * cin, wo * cout)


# ----------------------------- forward wrapper -----------------------------

def deconv_res_block_forward(x_ncdhw, params, *, tm=1024):
    f32 = jnp.float32
    x = jnp.transpose(x_ncdhw, (0, 2, 3, 4, 1)).astype(f32)      # N, D, H, W, Cin
    n, d, h, w, cin = x.shape
    cout = params["b_main"].shape[0]
    do, ho, wo = 2 * d, 2 * h, 2 * w
    mc = n * d * h * w                                           # coarse rows
    lane = wo * cout                                             # 128 for the test shapes

    # ---- stage A: sub-pixel dual deconv (shared LHS, concatenated weights) ----
    xp = jnp.pad(x, ((0, 0), (0, 1), (0, 1), (0, 1), (0, 0)))
    slabs = [xp[:, ad:ad + d, ah:ah + h, aw:aw + w, :]
             for ad in (0, 1) for ah in (0, 1) for aw in (0, 1)]
    patches = jnp.stack(slabs, axis=-2).reshape(mc, 8 * cin)     # compact (8x not 27x) neighbours

    w_cat = jnp.concatenate(
        [_subpixel_deconv_weight(params["wt_main"].astype(f32)),
         _subpixel_deconv_weight(params["wt_res"].astype(f32))], axis=1)   # (8*Cin, 16*Cout)
    b_cat = jnp.concatenate(
        [jnp.tile(params["b_main"].astype(f32), 8),
         jnp.tile(params["b_res"].astype(f32), 8)]).reshape(1, 16 * cout)

    tma = tm if (mc % tm == 0 and tm % 8 == 0) else mc
    y = pl.pallas_call(
        _dual_deconv_kernel,
        out_shape=jax.ShapeDtypeStruct((mc, 16 * cout), f32),
        grid_spec=pltpu.PrefetchScalarGridSpec(
            num_scalar_prefetch=0,
            grid=(mc // tma,),
            in_specs=[
                pl.BlockSpec((tma, 8 * cin), lambda i: (i, 0)),
                pl.BlockSpec((8 * cin, 16 * cout), lambda i: (0, 0)),
                pl.BlockSpec((1, 16 * cout), lambda i: (0, 0)),
            ],
            out_specs=pl.BlockSpec((tma, 16 * cout), lambda i: (i, 0)),
        ),
        compiler_params=pltpu.CompilerParams(dimension_semantics=("parallel",)),
    )(patches, w_cat, b_cat)

    # ---- un-shuffle parities to the fine grid (small XLA reorder, ~1 MB) ------
    def to_fine(v):
        v = v.reshape(n, d, h, w, 2, 2, 2, cout)
        v = jnp.transpose(v, (0, 1, 4, 2, 5, 3, 6, 7))
        return v.reshape(n, do, ho, wo, cout)

    h1 = to_fine(y[:, :8 * cout])          # main branch, LeakyReLU already applied
    res = to_fine(y[:, 8 * cout:])         # residual branch, pre-BN

    # ---- stage B: fused conv3d + both BNs + add + LeakyReLU (grid=(1,)) -------
    s = jnp.pad(h1, ((0, 0), (1, 1), (1, 1), (0, 0), (0, 0)))    # pad d, h only
    s = s.reshape(n, do + 2, ho + 2, lane)
    res2 = res.reshape(n * do * ho, lane)

    wb = _banded_conv_weight(params["w_conv"].astype(f32), wo)   # (9, lane, lane)
    bc = jnp.tile(params["b_conv"].astype(f32), wo).reshape(1, lane)

    lane_idx = jnp.arange(lane) % cout
    g = (lane_idx[:, None] == jnp.arange(cout)[None, :]).astype(f32)   # (lane, C)
    gt = jnp.transpose(g)                                              # (C, lane)
    bn = jnp.stack([params["g_main"], params["be_main"],
                    params["g_res"], params["be_res"]]).astype(f32)    # (4, C)

    rows = n * do * ho
    out2 = pl.pallas_call(
        _conv_bn_fuse_kernel,
        out_shape=jax.ShapeDtypeStruct((rows, lane), f32),
        grid_spec=pltpu.PrefetchScalarGridSpec(
            num_scalar_prefetch=0,
            grid=(1,),
            in_specs=[
                pl.BlockSpec((n, do + 2, ho + 2, lane), lambda i: (0, 0, 0, 0)),
                pl.BlockSpec((9, lane, lane), lambda i: (0, 0, 0)),
                pl.BlockSpec((1, lane), lambda i: (0, 0)),
                pl.BlockSpec((rows, lane), lambda i: (0, 0)),
                pl.BlockSpec((lane, cout), lambda i: (0, 0)),
                pl.BlockSpec((cout, lane), lambda i: (0, 0)),
                pl.BlockSpec((4, cout), lambda i: (0, 0)),
            ],
            out_specs=pl.BlockSpec((rows, lane), lambda i: (0, 0)),
        ),
        compiler_params=pltpu.CompilerParams(dimension_semantics=("arbitrary",)),
    )(s, wb, bc, res2, g, gt, bn)

    out = out2.reshape(n, do, ho, wo, cout)
    return jnp.transpose(out, (0, 4, 1, 2, 3))                   # back to NCDHW


# ----------------------------- pure-JAX reference ---------------------------

def reference_forward(x, p):
    def deconv(x, wt, b):
        w = jnp.transpose(jnp.flip(wt, axis=(2, 3, 4)), (1, 0, 2, 3, 4))
        y = lax.conv_general_dilated(
            x, w, window_strides=(1, 1, 1), padding=[(1, 2)] * 3,
            lhs_dilation=(2, 2, 2),
            dimension_numbers=("NCDHW", "OIDHW", "NCDHW"),
            precision=lax.Precision.HIGHEST)
        return y + b.reshape(1, -1, 1, 1, 1)

    def conv(x, w, b):
        y = lax.conv_general_dilated(
            x, w, window_strides=(1, 1, 1), padding=[(1, 1)] * 3,
            dimension_numbers=("NCDHW", "OIDHW", "NCDHW"),
            precision=lax.Precision.HIGHEST)
        return y + b.reshape(1, -1, 1, 1, 1)

    def bn(x, gamma, beta):
        mean = jnp.mean(x, axis=(0, 2, 3, 4), keepdims=True)
        var = jnp.var(x, axis=(0, 2, 3, 4), keepdims=True)
        return ((x - mean) / jnp.sqrt(var + BN_EPS)
                * gamma.reshape(1, -1, 1, 1, 1) + beta.reshape(1, -1, 1, 1, 1))

    hmain = bn(conv(_leaky(deconv(x, p["wt_main"], p["b_main"])),
                    p["w_conv"], p["b_conv"]), p["g_main"], p["be_main"])
    hres = bn(deconv(x, p["wt_res"], p["b_res"]), p["g_res"], p["be_res"])
    return _leaky(hmain + hres)


# ----------------------------- main ----------------------------------------

if __name__ == "__main__":
    key = jax.random.PRNGKey(0)
    cin, cout = 4, 8
    n, d, h, w = 2, 8, 8, 8
    ks = jax.random.split(key, 11)
    s1 = 1.0 / (cin * 27) ** 0.5
    s2 = 1.0 / (cout * 27) ** 0.5

    x = jax.random.normal(ks[0], (n, cin, d, h, w), jnp.float32)
    params = dict(
        wt_main=jax.random.normal(ks[1], (cin, cout, 3, 3, 3), jnp.float32) * s1,
        b_main=jax.random.normal(ks[2], (cout,), jnp.float32) * s1,
        w_conv=jax.random.normal(ks[3], (cout, cout, 3, 3, 3), jnp.float32) * s2,
        b_conv=jax.random.normal(ks[4], (cout,), jnp.float32) * s2,
        g_main=1.0 + 0.1 * jax.random.normal(ks[5], (cout,), jnp.float32),
        be_main=0.1 * jax.random.normal(ks[6], (cout,), jnp.float32),
        wt_res=jax.random.normal(ks[7], (cin, cout, 3, 3, 3), jnp.float32) * s1,
        b_res=jax.random.normal(ks[8], (cout,), jnp.float32) * s1,
        g_res=1.0 + 0.1 * jax.random.normal(ks[9], (cout,), jnp.float32),
        be_res=0.1 * jax.random.normal(ks[10], (cout,), jnp.float32),
    )

    fwd = jax.jit(functools.partial(deconv_res_block_forward, tm=1024))
    out = fwd(x, params)
    jax.block_until_ready(out)

    assert out.shape == (n, cout, 2 * d, 2 * h, 2 * w), out.shape

    ref = reference_forward(x, params)
    err = float(jnp.max(jnp.abs(out - ref)))
    if err > 5e-3:
        raise SystemExit(f"mismatch vs reference: max abs err {err}")

    print("KERNEL_OK")
</pallas_src>

<mosaic_0001>
module attributes {stable_mosaic.version = 11 : i64} {
  func.func @_dual_deconv_kernel(%arg0: i32, %arg1: memref<1024x32xf32, #tpu.memory_space<vmem>>, %arg2: memref<32x128xf32, #tpu.memory_space<vmem>>, %arg3: memref<1x128xf32, #tpu.memory_space<vmem>>, %arg4: memref<1024x128xf32, #tpu.memory_space<vmem>>) attributes {dimension_semantics = [#tpu.dimension_semantics<parallel>], iteration_bounds = array<i64: 1>, scalar_prefetch = 0 : i64, scratch_operands = 0 : i64, tpu.core_type = #tpu.core_type<tc>, window_params = [{transform_indices = @transform_0, window_bounds = array<i64: 1024, 32>}, {pipeline_mode = #tpu.pipeline_mode<synchronous>, transform_indices = @transform_1, window_bounds = array<i64: 32, 128>}, {pipeline_mode = #tpu.pipeline_mode<synchronous>, transform_indices = @transform_2, window_bounds = array<i64: 1, 128>}, {transform_indices = @transform_3, window_bounds = array<i64: 1024, 128>}]} {
    %c0 = arith.constant 0 : index
    %c0_0 = arith.constant 0 : index
    %0 = vector.load %arg1[%c0, %c0_0] : memref<1024x32xf32, #tpu.memory_space<vmem>>, vector<1024x32xf32>
    %c0_1 = arith.constant 0 : index
    %c0_2 = arith.constant 0 : index
    %1 = vector.load %arg2[%c0_1, %c0_2] : memref<32x128xf32, #tpu.memory_space<vmem>>, vector<32x128xf32>
    %cst = arith.constant dense<0.000000e+00> : vector<1024x128xf32>
    %2 = tpu.matmul %0, %1, %cst {dimension_numbers = #tpu.dot_dimension_numbers<[1], [0], [0], [1], [0, 0, 1, 1], [], []>} : vector<1024x32xf32>, vector<32x128xf32>, vector<1024x128xf32> -> vector<1024x128xf32>
    %c0_3 = arith.constant 0 : index
    %c0_4 = arith.constant 0 : index
    %3 = vector.load %arg3[%c0_3, %c0_4] : memref<1x128xf32, #tpu.memory_space<vmem>>, vector<1x128xf32>
    %4 = vector.broadcast %3 : vector<1x128xf32> to vector<1024x128xf32>
    %5 = arith.addf %2, %4 : vector<1024x128xf32>
    %6 = tpu.iota {dimensions = array<i32: 1>} : vector<1024x128xi32>
    %c64_i32 = arith.constant 64 : i32
    %7 = vector.broadcast %c64_i32 : i32 to vector<1024x128xi32>
    %8 = arith.cmpi slt, %6, %7 : vector<1024x128xi32>
    %cst_5 = arith.constant 0.000000e+00 : f32
    %9 = vector.broadcast %cst_5 : f32 to vector<1024x128xf32>
    %10 = arith.cmpf olt, %5, %9 : vector<1024x128xf32>
    %11 = arith.andi %8, %10 : vector<1024x128xi1>
    %cst_6 = arith.constant 0.00999999977 : f32
    %12 = vector.broadcast %cst_6 : f32 to vector<1024x128xf32>
    %13 = arith.mulf %12, %5 : vector<1024x128xf32>
    %14 = arith.select %11, %13, %5 : vector<1024x128xi1>, vector<1024x128xf32>
    %c0_7 = arith.constant 0 : index
    %c0_8 = arith.constant 0 : index
    %15 = vector.load %arg4[%c0_7, %c0_8] : memref<1024x128xf32, #tpu.memory_space<vmem>>, vector<1024x128xf32>
    tpu.vector_store %arg4[%c0_7, %c0_8], %14 {strides = array<i32>} : memref<1024x128xf32, #tpu.memory_space<vmem>>, vector<1024x128xf32>,
    return
  }
  func.func @transform_0(%arg0: i32) -> (i32, i32) {
    %c0_i32 = arith.constant 0 : i32
    %c0_i32_0 = arith.constant 0 : i32
    return %arg0, %c0_i32 : i32, i32
  }
  func.func @transform_1(%arg0: i32) -> (i32, i32) {
    %c0_i32 = arith.constant 0 : i32
    %c0_i32_0 = arith.constant 0 : i32
    %c0_i32_1 = arith.constant 0 : i32
    return %c0_i32, %c0_i32_0 : i32, i32
  }
  func.func @transform_2(%arg0: i32) -> (i32, i32) {
    %c0_i32 = arith.constant 0 : i32
    %c0_i32_0 = arith.constant 0 : i32
    %c0_i32_1 = arith.constant 0 : i32
    return %c0_i32, %c0_i32_0 : i32, i32
  }
  func.func @transform_3(%arg0: i32) -> (i32, i32) {
    %c0_i32 = arith.constant 0 : i32
    %c0_i32_0 = arith.constant 0 : i32
    return %arg0, %c0_i32 : i32, i32
  }
}

module attributes {stable_mosaic.version = 11 : i64} {
  func.func @_conv_bn_fuse_kernel(%arg0: i32, %arg1: memref<2x18x18x128xf32, #tpu.memory_space<vmem>>, %arg2: memref<9x128x128xf32, #tpu.memory_space<vmem>>, %arg3: memref<1x128xf32, #tpu.memory_space<vmem>>, %arg4: memref<512x128xf32, #tpu.memory_space<vmem>>, %arg5: memref<128x8xf32, #tpu.memory_space<vmem>>, %arg6: memref<8x128xf32, #tpu.memory_space<vmem>>, %arg7: memref<4x8xf32, #tpu.memory_space<vmem>>, %arg8: memref<512x128xf32, #tpu.memory_space<vmem>>) attributes {dimension_semantics = [#tpu.dimension_semantics<arbitrary>], iteration_bounds = array<i64: 1>, scalar_prefetch = 0 : i64, scratch_operands = 0 : i64, tpu.core_type = #tpu.core_type<tc>, window_params = [{pipeline_mode = #tpu.pipeline_mode<synchronous>, transform_indices = @transform_0, window_bounds = array<i64: 2, 18, 18, 128>}, {pipeline_mode = #tpu.pipeline_mode<synchronous>, transform_indices = @transform_1, window_bounds = array<i64: 9, 128, 128>}, {pipeline_mode = #tpu.pipeline_mode<synchronous>, transform_indices = @transform_2, window_bounds = array<i64: 1, 128>}, {pipeline_mode = #tpu.pipeline_mode<synchronous>, transform_indices = @transform_3, window_bounds = array<i64: 512, 128>}, {pipeline_mode = #tpu.pipeline_mode<synchronous>, transform_indices = @transform_4, window_bounds = array<i64: 128, 8>}, {pipeline_mode = #tpu.pipeline_mode<synchronous>, transform_indices = @transform_5, window_bounds = array<i64: 8, 128>}, {pipeline_mode = #tpu.pipeline_mode<synchronous>, transform_indices = @transform_6, window_bounds = array<i64: 4, 8>}, {pipeline_mode = #tpu.pipeline_mode<synchronous>, transform_indices = @transform_7, window_bounds = array<i64: 512, 128>}]} {
    %cst = arith.constant 0.000000e+00 : f32
    %0 = vector.broadcast %cst : f32 to vector<512x128xf32>
    %c0 = arith.constant 0 : index
    %c0_0 = arith.constant 0 : index
    %c0_1 = arith.constant 0 : index
    %c0_2 = arith.constant 0 : index
    %1 = vector.load %arg1[%c0, %c0_0, %c0_1, %c0_2] : memref<2x18x18x128xf32, #tpu.memory_space<vmem>>, vector<2x16x16x128xf32>
    %2 = vector.shape_cast %1 : vector<2x16x16x128xf32> to vector<512x128xf32>
    %c0_3 = arith.constant 0 : index
    %c0_4 = arith.constant 0 : index
    %c0_5 = arith.constant 0 : index
    %3 = vector.load %arg2[%c0_3, %c0_4, %c0_5] : memref<9x128x128xf32, #tpu.memory_space<vmem>>, vector<1x128x128xf32>
    %4 = vector.shape_cast %3 : vector<1x128x128xf32> to vector<128x128xf32>
    %cst_6 = arith.constant dense<0.000000e+00> : vector<512x128xf32>
    %5 = tpu.matmul %2, %4, %cst_6 {dimension_numbers = #tpu.dot_dimension_numbers<[1], [0], [0], [1], [0, 0, 1, 1], [], []>} : vector<512x128xf32>, vector<128x128xf32>, vector<512x128xf32> -> vector<512x128xf32>
    %6 = arith.addf %0, %5 : vector<512x128xf32>
    %c0_7 = arith.constant 0 : index
    %c0_8 = arith.constant 0 : index
    %c1 = arith.constant 1 : index
    %c0_9 = arith.constant 0 : index
    %7 = vector.load %arg1[%c0_7, %c0_8, %c1, %c0_9] : memref<2x18x18x128xf32, #tpu.memory_space<vmem>>, vector<2x16x16x128xf32>
    %8 = vector.shape_cast %7 : vector<2x16x16x128xf32> to vector<512x128xf32>
    %c1_10 = arith.constant 1 : index
    %c0_11 = arith.constant 0 : index
    %c0_12 = arith.constant 0 : index
    %9 = vector.load %arg2[%c1_10, %c0_11, %c0_12] : memref<9x128x128xf32, #tpu.memory_space<vmem>>, vector<1x128x128xf32>
    %10 = vector.shape_cast %9 : vector<1x128x128xf32> to vector<128x128xf32>
    %cst_13 = arith.constant dense<0.000000e+00> : vector<512x128xf32>
    %11 = tpu.matmul %8, %10, %cst_13 {dimension_numbers = #tpu.dot_dimension_numbers<[1], [0], [0], [1], [0, 0, 1, 1], [], []>} : vector<512x128xf32>, vector<128x128xf32>, vector<512x128xf32> -> vector<512x128xf32>
    %12 = arith.addf %6, %11 : vector<512x128xf32>
    %c0_14 = arith.constant 0 : index
    %c0_15 = arith.constant 0 : index
    %c2 = arith.constant 2 : index
    %c0_16 = arith.constant 0 : index
    %13 = vector.load %arg1[%c0_14, %c0_15, %c2, %c0_16] : memref<2x18x18x128xf32, #tpu.memory_space<vmem>>, vector<2x16x16x128xf32>
    %14 = vector.shape_cast %13 : vector<2x16x16x128xf32> to vector<512x128xf32>
    %c2_17 = arith.constant 2 : index
    %c0_18 = arith.constant 0 : index
    %c0_19 = arith.constant 0 : index
    %15 = vector.load %arg2[%c2_17, %c0_18, %c0_19] : memref<9x128x128xf32, #tpu.memory_space<vmem>>, vector<1x128x128xf32>
    %16 = vector.shape_cast %15 : vector<1x128x128xf32> to vector<128x128xf32>
    %cst_20 = arith.constant dense<0.000000e+00> : vector<512x128xf32>
    %17 = tpu.matmul %14, %16, %cst_20 {dimension_numbers = #tpu.dot_dimension_numbers<[1], [0], [0], [1], [0, 0, 1, 1], [], []>} : vector<512x128xf32>, vector<128x128xf32>, vector<512x128xf32> -> vector<512x128xf32>
    %18 = arith.addf %12, %17 : vector<512x128xf32>
    %c0_21 = arith.constant 0 : index
    %c1_22 = arith.constant 1 : index
    %c0_23 = arith.constant 0 : index
    %c0_24 = arith.constant 0 : index
    %19 = vector.load %arg1[%c0_21, %c1_22, %c0_23, %c0_24] : memref<2x18x18x128xf32, #tpu.memory_space<vmem>>, vector<2x16x16x128xf32>
    %20 = vector.shape_cast %19 : vector<2x16x16x128xf32> to vector<512x128xf32>
    %c3 = arith.constant 3 : index
    %c0_25 = arith.constant 0 : index
    %c0_26 = arith.constant 0 : index
    %21 = vector.load %arg2[%c3, %c0_25, %c0_26] : memref<9x128x128xf32, #tpu.memory_space<vmem>>, vector<1x128x128xf32>
    %22 = vector.shape_cast %21 : vector<1x128x128xf32> to vector<128x128xf32>
    %cst_27 = arith.constant dense<0.000000e+00> : vector<512x128xf32>
    %23 = tpu.matmul %20, %22, %cst_27 {dimension_numbers = #tpu.dot_dimension_numbers<[1], [0], [0], [1], [0, 0, 1, 1], [], []>} : vector<512x128xf32>, vector<128x128xf32>, vector<512x128xf32> -> vector<512x128xf32>
    %24 = arith.addf %18, %23 : vector<512x128xf32>
    %c0_28 = arith.constant 0 : index
    %c1_29 = arith.constant 1 : index
    %c1_30 = arith.constant 1 : index
    %c0_31 = arith.constant 0 : index
    %25 = vector.load %arg1[%c0_28, %c1_29, %c1_30, %c0_31] : memref<2x18x18x128xf32, #tpu.memory_space<vmem>>, vector<2x16x16x128xf32>
    %26 = vector.shape_cast %25 : vector<2x16x16x128xf32> to vector<512x128xf32>
    %c4 = arith.constant 4 : index
    %c0_32 = arith.constant 0 : index
    %c0_33 = arith.constant 0 : index
    %27 = vector.load %arg2[%c4, %c0_32, %c0_33] : memref<9x128x128xf32, #tpu.memory_space<vmem>>, vector<1x128x128xf32>
    %28 = vector.shape_cast %27 : vector<1x128x128xf32> to vector<128x128xf32>
    %cst_34 = arith.constant dense<0.000000e+00> : vector<512x128xf32>
    %29 = tpu.matmul %26, %28, %cst_34 {dimension_numbers = #tpu.dot_dimension_numbers<[1], [0], [0], [1], [0, 0, 1, 1], [], []>} : vector<512x128xf32>, vector<128x128xf32>, vector<512x128xf32> -> vector<512x128xf32>
    %30 = arith.addf %24, %29 : vector<512x128xf32>
    %c0_35 = arith.constant 0 : index
    %c1_36 = arith.constant 1 : index
    %c2_37 = arith.constant 2 : index
    %c0_38 = arith.constant 0 : index
    %31 = vector.load %arg1[%c0_35, %c1_36, %c2_37, %c0_38] : memref<2x18x18x128xf32, #tpu.memory_space<vmem>>, vector<2x16x16x128xf32>
    %32 = vector.shape_cast %31 : vector<2x16x16x128xf32> to vector<512x128xf32>
    %c5 = arith.constant 5 : index
    %c0_39 = arith.constant 0 : index
    %c0_40 = arith.constant 0 : index
    %33 = vector.load %arg2[%c5, %c0_39, %c0_40] : memref<9x128x128xf32, #tpu.memory_space<vmem>>, vector<1x128x128xf32>
    %34 = vector.shape_cast %33 : vector<1x128x128xf32> to vector<128x128xf32>
    %cst_41 = arith.constant dense<0.000000e+00> : vector<512x128xf32>
    %35 = tpu.matmul %32, %34, %cst_41 {dimension_numbers = #tpu.dot_dimension_numbers<[1], [0], [0], [1], [0, 0, 1, 1], [], []>} : vector<512x128xf32>, vector<128x128xf32>, vector<512x128xf32> -> vector<512x128xf32>
    %36 = arith.addf %30, %35 : vector<512x128xf32>
    %c0_42 = arith.constant 0 : index
    %c2_43 = arith.constant 2 : index
    %c0_44 = arith.constant 0 : index
    %c0_45 = arith.constant 0 : index
    %37 = vector.load %arg1[%c0_42, %c2_43, %c0_44, %c0_45] : memref<2x18x18x128xf32, #tpu.memory_space<vmem>>, vector<2x16x16x128xf32>
    %38 = vector.shape_cast %37 : vector<2x16x16x128xf32> to vector<512x128xf32>
    %c6 = arith.constant 6 : index
    %c0_46 = arith.constant 0 : index
    %c0_47 = arith.constant 0 : index
    %39 = vector.load %arg2[%c6, %c0_46, %c0_47] : memref<9x128x128xf32, #tpu.memory_space<vmem>>, vector<1x128x128xf32>
    %40 = vector.shape_cast %39 : vector<1x128x128xf32> to vector<128x128xf32>
    %cst_48 = arith.constant dense<0.000000e+00> : vector<512x128xf32>
    %41 = tpu.matmul %38, %40, %cst_48 {dimension_numbers = #tpu.dot_dimension_numbers<[1], [0], [0], [1], [0, 0, 1, 1], [], []>} : vector<512x128xf32>, vector<128x128xf32>, vector<512x128xf32> -> vector<512x128xf32>
    %42 = arith.addf %36, %41 : vector<512x128xf32>
    %c0_49 = arith.constant 0 : index
    %c2_50 = arith.constant 2 : index
    %c1_51 = arith.constant 1 : index
    %c0_52 = arith.constant 0 : index
    %43 = vector.load %arg1[%c0_49, %c2_50, %c1_51, %c0_52] : memref<2x18x18x128xf32, #tpu.memory_space<vmem>>, vector<2x16x16x128xf32>
    %44 = vector.shape_cast %43 : vector<2x16x16x128xf32> to vector<512x128xf32>
    %c7 = arith.constant 7 : index
    %c0_53 = arith.constant 0 : index
    %c0_54 = arith.constant 0 : index
    %45 = vector.load %arg2[%c7, %c0_53, %c0_54] : memref<9x128x128xf32, #tpu.memory_space<vmem>>, vector<1x128x128xf32>
    %46 = vector.shape_cast %45 : vector<1x128x128xf32> to vector<128x128xf32>
    %cst_55 = arith.constant dense<0.000000e+00> : vector<512x128xf32>
    %47 = tpu.matmul %44, %46, %cst_55 {dimension_numbers = #tpu.dot_dimension_numbers<[1], [0], [0], [1], [0, 0, 1, 1], [], []>} : vector<512x128xf32>, vector<128x128xf32>, vector<512x128xf32> -> vector<512x128xf32>
    %48 = arith.addf %42, %47 : vector<512x128xf32>
    %c0_56 = arith.constant 0 : index
    %c2_57 = arith.constant 2 : index
    %c2_58 = arith.constant 2 : index
    %c0_59 = arith.constant 0 : index
    %49 = vector.load %arg1[%c0_56, %c2_57, %c2_58, %c0_59] : memref<2x18x18x128xf32, #tpu.memory_space<vmem>>, vector<2x16x16x128xf32>
    %50 = vector.shape_cast %49 : vector<2x16x16x128xf32> to vector<512x128xf32>
    %c8 = arith.constant 8 : index
    %c0_60 = arith.constant 0 : index
    %c0_61 = arith.constant 0 : index
    %51 = vector.load %arg2[%c8, %c0_60, %c0_61] : memref<9x128x128xf32, #tpu.memory_space<vmem>>, vector<1x128x128xf32>
    %52 = vector.shape_cast %51 : vector<1x128x128xf32> to vector<128x128xf32>
    %cst_62 = arith.constant dense<0.000000e+00> : vector<512x128xf32>
    %53 = tpu.matmul %50, %52, %cst_62 {dimension_numbers = #tpu.dot_dimension_numbers<[1], [0], [0], [1], [0, 0, 1, 1], [], []>} : vector<512x128xf32>, vector<128x128xf32>, vector<512x128xf32> -> vector<512x128xf32>
    %54 = arith.addf %48, %53 : vector<512x128xf32>
    %c0_63 = arith.constant 0 : index
    %c0_64 = arith.constant 0 : index
    %55 = vector.load %arg3[%c0_63, %c0_64] : memref<1x128xf32, #tpu.memory_space<vmem>>, vector<1x128xf32>
    %56 = vector.broadcast %55 : vector<1x128xf32> to vector<512x128xf32>
    %57 = arith.addf %54, %56 : vector<512x128xf32>
    %c0_65 = arith.constant 0 : index
    %c0_66 = arith.constant 0 : index
    %58 = vector.load %arg4[%c0_65, %c0_66] : memref<512x128xf32, #tpu.memory_space<vmem>>, vector<512x128xf32>
    %c0_67 = arith.constant 0 : index
    %c0_68 = arith.constant 0 : index
    %59 = vector.load %arg5[%c0_67, %c0_68] : memref<128x8xf32, #tpu.memory_space<vmem>>, vector<128x8xf32>
    %c0_69 = arith.constant 0 : index
    %c0_70 = arith.constant 0 : index
    %60 = vector.load %arg6[%c0_69, %c0_70] : memref<8x128xf32, #tpu.memory_space<vmem>>, vector<8x128xf32>
    %c0_71 = arith.constant 0 : index
    %c0_72 = arith.constant 0 : index
    %61 = vector.load %arg7[%c0_71, %c0_72] : memref<4x8xf32, #tpu.memory_space<vmem>>, vector<1x8xf32>
    %c1_73 = arith.constant 1 : index
    %c0_74 = arith.constant 0 : index
    %62 = vector.load %arg7[%c1_73, %c0_74] : memref<4x8xf32, #tpu.memory_space<vmem>>, vector<1x8xf32>
    %cst_75 = arith.constant dense<0.000000e+00> : vector<128xf32>
    %63 = vector.multi_reduction <add>, %57, %cst_75 [0] : vector<512x128xf32> to vector<128xf32>
    %64 = vector.shape_cast %63 : vector<128xf32> to vector<1x128xf32>
    %cst_76 = arith.constant dense<0.000000e+00> : vector<1x8xf32>
    %65 = tpu.matmul %64, %59, %cst_76 {dimension_numbers = #tpu.dot_dimension_numbers<[1], [0], [0], [1], [0, 0, 1, 1], [], []>} : vector<1x128xf32>, vector<128x8xf32>, vector<1x8xf32> -> vector<1x8xf32>
    %66 = arith.mulf %57, %57 : vector<512x128xf32>
    %cst_77 = arith.constant dense<0.000000e+00> : vector<128xf32>
    %67 = vector.multi_reduction <add>, %66, %cst_77 [0] : vector<512x128xf32> to vector<128xf32>
    %68 = vector.shape_cast %67 : vector<128xf32> to vector<1x128xf32>
    %cst_78 = arith.constant dense<0.000000e+00> : vector<1x8xf32>
    %69 = tpu.matmul %68, %59, %cst_78 {dimension_numbers = #tpu.dot_dimension_numbers<[1], [0], [0], [1], [0, 0, 1, 1], [], []>} : vector<1x128xf32>, vector<128x8xf32>, vector<1x8xf32> -> vector<1x8xf32>
    %cst_79 = arith.constant 1.22070313E-4 : f32
    %70 = vector.broadcast %cst_79 : f32 to vector<1x8xf32>
    %71 = arith.mulf %65, %70 : vector<1x8xf32>
    %cst_80 = arith.constant 1.22070313E-4 : f32
    %72 = vector.broadcast %cst_80 : f32 to vector<1x8xf32>
    %73 = arith.mulf %69, %72 : vector<1x8xf32>
    %74 = arith.mulf %71, %71 : vector<1x8xf32>
    %75 = arith.subf %73, %74 : vector<1x8xf32>
    %cst_81 = arith.constant 0.000000e+00 : f32
    %76 = vector.broadcast %cst_81 : f32 to vector<1x8xf32>
    %77 = arith.maximumf %75, %76 : vector<1x8xf32>
    %cst_82 = arith.constant 9.99999974E-6 : f32
    %78 = vector.broadcast %cst_82 : f32 to vector<1x8xf32>
    %79 = arith.addf %77, %78 : vector<1x8xf32>
    %80 = math.rsqrt %79 : vector<1x8xf32>
    %81 = arith.mulf %61, %80 : vector<1x8xf32>
    %82 = arith.mulf %71, %81 : vector<1x8xf32>
    %83 = arith.subf %62, %82 : vector<1x8xf32>
    %cst_83 = arith.constant dense<0.000000e+00> : vector<1x128xf32>
    %84 = tpu.matmul %81, %60, %cst_83 {dimension_numbers = #tpu.dot_dimension_numbers<[1], [0], [0], [1], [0, 0, 1, 1], [], []>} : vector<1x8xf32>, vector<8x128xf32>, vector<1x128xf32> -> vector<1x128xf32>
    %cst_84 = arith.constant dense<0.000000e+00> : vector<1x128xf32>
    %85 = tpu.matmul %83, %60, %cst_84 {dimension_numbers = #tpu.dot_dimension_numbers<[1], [0], [0], [1], [0, 0, 1, 1], [], []>} : vector<1x8xf32>, vector<8x128xf32>, vector<1x128xf32> -> vector<1x128xf32>
    %c2_85 = arith.constant 2 : index
    %c0_86 = arith.constant 0 : index
    %86 = vector.load %arg7[%c2_85, %c0_86] : memref<4x8xf32, #tpu.memory_space<vmem>>, vector<1x8xf32>
    %c3_87 = arith.constant 3 : index
    %c0_88 = arith.constant 0 : index
    %87 = vector.load %arg7[%c3_87, %c0_88] : memref<4x8xf32, #tpu.memory_space<vmem>>, vector<1x8xf32>
    %cst_89 = arith.constant dense<0.000000e+00> : vector<128xf32>
    %88 = vector.multi_reduction <add>, %58, %cst_89 [0] : vector<512x128xf32> to vector<128xf32>
    %89 = vector.shape_cast %88 : vector<128xf32> to vector<1x128xf32>
    %cst_90 = arith.constant dense<0.000000e+00> : vector<1x8xf32>
    %90 = tpu.matmul %89, %59, %cst_90 {dimension_numbers = #tpu.dot_dimension_numbers<[1], [0], [0], [1], [0, 0, 1, 1], [], []>} : vector<1x128xf32>, vector<128x8xf32>, vector<1x8xf32> -> vector<1x8xf32>
    %91 = arith.mulf %58, %58 : vector<512x128xf32>
    %cst_91 = arith.constant dense<0.000000e+00> : vector<128xf32>
    %92 = vector.multi_reduction <add>, %91, %cst_91 [0] : vector<512x128xf32> to vector<128xf32>
    %93 = vector.shape_cast %92 : vector<128xf32> to vector<1x128xf32>
    %cst_92 = arith.constant dense<0.000000e+00> : vector<1x8xf32>
    %94 = tpu.matmul %93, %59, %cst_92 {dimension_numbers = #tpu.dot_dimension_numbers<[1], [0], [0], [1], [0, 0, 1, 1], [], []>} : vector<1x128xf32>, vector<128x8xf32>, vector<1x8xf32> -> vector<1x8xf32>
    %cst_93 = arith.constant 1.22070313E-4 : f32
    %95 = vector.broadcast %cst_93 : f32 to vector<1x8xf32>
    %96 = arith.mulf %90, %95 : vector<1x8xf32>
    %cst_94 = arith.constant 1.22070313E-4 : f32
    %97 = vector.broadcast %cst_94 : f32 to vector<1x8xf32>
    %98 = arith.mulf %94, %97 : vector<1x8xf32>
    %99 = arith.mulf %96, %96 : vector<1x8xf32>
    %100 = arith.subf %98, %99 : vector<1x8xf32>
    %cst_95 = arith.constant 0.000000e+00 : f32
    %101 = vector.broadcast %cst_95 : f32 to vector<1x8xf32>
    %102 = arith.maximumf %100, %101 : vector<1x8xf32>
    %cst_96 = arith.constant 9.99999974E-6 : f32
    %103 = vector.broadcast %cst_96 : f32 to vector<1x8xf32>
    %104 = arith.addf %102, %103 : vector<1x8xf32>
    %105 = math.rsqrt %104 : vector<1x8xf32>
    %106 = arith.mulf %86, %105 : vector<1x8xf32>
    %107 = arith.mulf %96, %106 : vector<1x8xf32>
    %108 = arith.subf %87, %107 : vector<1x8xf32>
    %cst_97 = arith.constant dense<0.000000e+00> : vector<1x128xf32>
    %109 = tpu.matmul %106, %60, %cst_97 {dimension_numbers = #tpu.dot_dimension_numbers<[1], [0], [0], [1], [0, 0, 1, 1], [], []>} : vector<1x8xf32>, vector<8x128xf32>, vector<1x128xf32> -> vector<1x128xf32>
    %cst_98 = arith.constant dense<0.000000e+00> : vector<1x128xf32>
    %110 = tpu.matmul %108, %60, %cst_98 {dimension_numbers = #tpu.dot_dimension_numbers<[1], [0], [0], [1], [0, 0, 1, 1], [], []>} : vector<1x8xf32>, vector<8x128xf32>, vector<1x128xf32> -> vector<1x128xf32>
    %111 = vector.broadcast %84 : vector<1x128xf32> to vector<512x128xf32>
    %112 = arith.mulf %57, %111 : vector<512x128xf32>
    %113 = vector.broadcast %109 : vector<1x128xf32> to vector<512x128xf32>
    %114 = arith.mulf %58, %113 : vector<512x128xf32>
    %115 = arith.addf %112, %114 : vector<512x128xf32>
    %116 = arith.addf %85, %110 : vector<1x128xf32>
    %117 = vector.broadcast %116 : vector<1x128xf32> to vector<512x128xf32>
    %118 = arith.addf %115, %117 : vector<512x128xf32>
    %cst_99 = arith.constant 0.000000e+00 : f32
    %119 = vector.broadcast %cst_99 : f32 to vector<512x128xf32>
    %120 = arith.cmpf ogt, %118, %119 : vector<512x128xf32>
    %cst_100 = arith.constant 0.00999999977 : f32
    %121 = vector.broadcast %cst_100 : f32 to vector<512x128xf32>
    %122 = arith.mulf %121, %118 : vector<512x128xf32>
    %123 = arith.select %120, %118, %122 : vector<512x128xi1>, vector<512x128xf32>
    %c0_101 = arith.constant 0 : index
    %c0_102 = arith.constant 0 : index
    %124 = vector.load %arg8[%c0_101, %c0_102] : memref<512x128xf32, #tpu.memory_space<vmem>>, vector<512x128xf32>
    tpu.vector_store %arg8[%c0_101, %c0_102], %123 {strides = array<i32>} : memref<512x128xf32, #tpu.memory_space<vmem>>, vector<512x128xf32>,
    return
  }
  func.func @transform_0(%arg0: i32) -> (i32, i32, i32, i32) {
    %c0_i32 = arith.constant 0 : i32
    %c0_i32_0 = arith.constant 0 : i32
    %c0_i32_1 = arith.constant 0 : i32
    %c0_i32_2 = arith.constant 0 : i32
    %c0_i32_3 = arith.constant 0 : i32
    return %c0_i32, %c0_i32_0, %c0_i32_1, %c0_i32_2 : i32, i32, i32, i32
  }
  func.func @transform_1(%arg0: i32) -> (i32, i32, i32) {
    %c0_i32 = arith.constant 0 : i32
    %c0_i32_0 = arith.constant 0 : i32
    %c0_i32_1 = arith.constant 0 : i32
    %c0_i32_2 = arith.constant 0 : i32
    return %c0_i32, %c0_i32_0, %c0_i32_1 : i32, i32, i32
  }
  func.func @transform_2(%arg0: i32) -> (i32, i32) {
    %c0_i32 = arith.constant 0 : i32
    %c0_i32_0 = arith.constant 0 : i32
    %c0_i32_1 = arith.constant 0 : i32
    return %c0_i32, %c0_i32_0 : i32, i32
  }
  func.func @transform_3(%arg0: i32) -> (i32, i32) {
    %c0_i32 = arith.constant 0 : i32
    %c0_i32_0 = arith.constant 0 : i32
    %c0_i32_1 = arith.constant 0 : i32
    return %c0_i32, %c0_i32_0 : i32, i32
  }
  func.func @transform_4(%arg0: i32) -> (i32, i32) {
    %c0_i32 = arith.constant 0 : i32
    %c0_i32_0 = arith.constant 0 : i32
    %c0_i32_1 = arith.constant 0 : i32
    return %c0_i32, %c0_i32_0 : i32, i32
  }
  func.func @transform_5(%arg0: i32) -> (i32, i32) {
    %c0_i32 = arith.constant 0 : i32
    %c0_i32_0 = arith.constant 0 : i32
    %c0_i32_1 = arith.constant 0 : i32
    return %c0_i32, %c0_i32_0 : i32, i32
  }
  func.func @transform_6(%arg0: i32) -> (i32, i32) {
    %c0_i32 = arith.constant 0 : i32
    %c0_i32_0 = arith.constant 0 : i32
    %c0_i32_1 = arith.constant 0 : i32
    return %c0_i32, %c0_i32_0 : i32, i32
  }
  func.func @transform_7(%arg0: i32) -> (i32, i32) {
    %c0_i32 = arith.constant 0 : i32
    %c0_i32_0 = arith.constant 0 : i32
    %c0_i32_1 = arith.constant 0 : i32
    return %c0_i32, %c0_i32_0 : i32, i32
  }
}

</mosaic_0001>

<llo_original>
// kernel: tile.18
$region0: #{tile.18}
  #allocation0 [shape = 's32[1]{0}', space=sflag, size = 0x4, scoped, tag = 'scoped memory for tile.18']
  %s0 = inlined_call_operand.vmem [shape: f32[8], index: 0, kind: input, shape index: {}]
  %s1 = inlined_call_operand.vmem [shape: f32[8,8], index: 1, kind: output, shape index: {}]
  // Predicated region
  $region2: #{tile.18} parent=0 // pred_check
    _
  $region3: #{tile.18} parent=0 // pred_check_branch
    %3 = sbr.rel (0) target = $region5
  $region4: #{tile.18} parent=0 // pred_region
    _
  $region5: #{tile.18} parent=0 // pred_fallthru
    _
  %v4 = vld [vmem:[%s0] ss:$0 sm:$0xff]
  %5 = vst [vmem:[%s1] sm:$0xff] %v4

// kernel: tile.19
$region0: #{tile.19}
  %s0 = inlined_call_operand.vmem [shape: f32[8,8], index: 0, kind: input, shape index: {}]
  %s1 = inlined_call_operand.vmem [shape: f32[64], index: 1, kind: output, shape index: {}]
  $region1: #{tile.19} parent=0
    #allocation0 [shape = 'u8[4096]{0}', space=vmem, size = 0x1000, scoped, tag = 'scoped mem for output reshape']
    %v2 = vld [vmem:[%s0] sm:$0x1]
    %vm3 = vcmask 64512
    %4 = vst.msk [vmem:[#allocation0] sm:$0x1] %vm3, %v2
    %s5 = scalar_lea.vmem %s0, 7
    %v6 = vld [vmem:[%s5] sm:$0x1]
    %7 = vrot.lane.b32.xlu0 %v6, 56
    %v8 = vpop.permute.xlu0 %7
    %vm9 = vcmask 523712
    %10 = vst.msk [vmem:[#allocation0] sm:$0x1] %vm9, %v8
    %s11 = scalar_lea.vmem %s0, 6
    %v12 = vld [vmem:[%s11] sm:$0x1]
    %13 = vrot.lane.b32.xlu0 %v12, 48
    %v14 = vpop.permute.xlu0 %13
    %vm15 = vcmask 458112
    %16 = vst.msk [vmem:[#allocation0] sm:$0x1] %vm15, %v14
    %s17 = scalar_lea.vmem %s0, 5
    %v18 = vld [vmem:[%s17] sm:$0x1]
    %19 = vrot.lane.b32.xlu0 %v18, 40
    %v20 = vpop.permute.xlu0 %19
    %vm21 = vcmask 392512
    %22 = vst.msk [vmem:[#allocation0] sm:$0x1] %vm21, %v20
    %s23 = scalar_lea.vmem %s0, 4
    %v24 = vld [vmem:[%s23] sm:$0x1]
    %25 = vrot.lane.b32.xlu0 %v24, 32
    %v26 = vpop.permute.xlu0 %25
    %vm27 = vcmask 326912
    %28 = vst.msk [vmem:[#allocation0] sm:$0x1] %vm27, %v26
    %s29 = scalar_lea.vmem %s0, 3
    %v30 = vld [vmem:[%s29] sm:$0x1]
    %31 = vrot.lane.b32.xlu0 %v30, 24
    %v32 = vpop.permute.xlu0 %31
    %vm33 = vcmask 261312
    %34 = vst.msk [vmem:[#allocation0] sm:$0x1] %vm33, %v32
    %s35 = scalar_lea.vmem %s0, 2
    %v36 = vld [vmem:[%s35] sm:$0x1]
    %37 = vrot.lane.b32.xlu0 %v36, 16
    %v38 = vpop.permute.xlu0 %37
    %vm39 = vcmask 195712
    %40 = vst.msk [vmem:[#allocation0] sm:$0x1] %vm39, %v38
    %s41 = scalar_lea.vmem %s0, 1
    %v42 = vld [vmem:[%s41] sm:$0x1]
    %43 = vrot.lane.b32.xlu0 %v42, 8
    %v44 = vpop.permute.xlu0 %43
    %vm45 = vcmask 130112
    %46 = vst.msk [vmem:[#allocation0] sm:$0x1] %vm45, %v44
    %s48 = sshllo.u32 0, 1
    %v50 = vld [vmem:[#allocation0] sm:%s48]
    %s51 = sshllo.u32 0, 1
    %52 = vst [vmem:[%s1] sm:%s51] %v50

// kernel: deconv_res_block_forward.2
$region0: #{deconv_res_block_forward.2}
  #allocation0 [shape = 'u32[]', space=smem, size = 0x4, offset = 0x4, fixed_abs, tag = 'smem constant byte address 0x4 - core index']
  #allocation1 [shape = 'u32[144,128]{1,0:T(1,128)}', space=vmem, size = 0x12000, scoped, tag = 'internal scratch']
  %s0 = inlined_call_operand.vmem [shape: f32[1024,32], index: 0, kind: input, shape index: {}]
  %s1 = inlined_call_operand.vmem [shape: f32[32,128], index: 1, kind: input, shape index: {}]
  %s2 = inlined_call_operand.vmem [shape: f32[1,128], index: 2, kind: input, shape index: {}]
  %s3 = inlined_call_operand.vmem [shape: f32[1024,128], index: 3, kind: output, shape index: {}]
  %s4 = sld [smem:[#allocation0]]
  $region22: #{deconv_res_block_forward.2} parent=0
    _
  %s6 = ssub.s32 1, %s4
  %s7 = scalar_select 0, %s6, %s4
  // Predicated region
  $region2: #{deconv_res_block_forward.2} parent=0 // pred_check
    _
  $region3: #{deconv_res_block_forward.2} parent=0 // pred_check_branch
    %9 = sbr.rel (0) target = $region5
  $region4: #{deconv_res_block_forward.2} parent=0 // pred_region
    _
  $region5: #{deconv_res_block_forward.2} parent=0 // pred_fallthru
    _
  // Predicated region
  $region6: #{deconv_res_block_forward.2} parent=0 // pred_check
    _
  $region7: #{deconv_res_block_forward.2} parent=0 // pred_check_branch
    %11 = sbr.rel (0) target = $region9
  $region8: #{deconv_res_block_forward.2} parent=0 // pred_region
    _
  $region9: #{deconv_res_block_forward.2} parent=0 // pred_fallthru
    _
  // Predicated region
  $region10: #{deconv_res_block_forward.2} parent=0 // pred_check
    _
  $region11: #{deconv_res_block_forward.2} parent=0 // pred_check_branch
    %13 = sbr.rel (0) target = $region13
  $region12: #{deconv_res_block_forward.2} parent=0 // pred_region
    _
  $region13: #{deconv_res_block_forward.2} parent=0 // pred_fallthru
    _
  %v14 = vld [vmem:[%s0] sm:$0xff]
  %v15 = vld [vmem:[%s0 + $0x8] sm:$0xff]
  %v16 = vld [vmem:[%s0 + $0x10] sm:$0xff]
  %v17 = vld [vmem:[%s0 + $0x18] sm:$0xff]
  %v18 = vld [vmem:[%s0 + $0x20] sm:$0xff]
  %v19 = vld [vmem:[%s0 + $0x28] sm:$0xff]
  %v20 = vld [vmem:[%s0 + $0x30] sm:$0xff]
  %v21 = vld [vmem:[%s0 + $0x38] sm:$0xff]
  %v22 = vld [vmem:[%s0 + $0x40] sm:$0xff]
  %v23 = vld [vmem:[%s0 + $0x48] sm:$0xff]
  %v24 = vld [vmem:[%s0 + $0x50] sm:$0xff]
  %v25 = vld [vmem:[%s0 + $0x58] sm:$0xff]
  %v26 = vld [vmem:[%s0 + $0x60] sm:$0xff]
  %v27 = vld [vmem:[%s0 + $0x68] sm:$0xff]
  %v28 = vld [vmem:[%s0 + $0x70] sm:$0xff]
  %v29 = vld [vmem:[%s0 + $0x78] sm:$0xff]
  %v30 = vld [vmem:[%s0 + $0x80] sm:$0xff]
  %v31 = vld [vmem:[%s0 + $0x88] sm:$0xff]
  %v32 = vld [vmem:[%s0 + $0x90] sm:$0xff]
  %v33 = vld [vmem:[%s0 + $0x98] sm:$0xff]
  %v34 = vld [vmem:[%s0 + $0xa0] sm:$0xff]
  %v35 = vld [vmem:[%s0 + $0xa8] sm:$0xff]
  %v36 = vld [vmem:[%s0 + $0xb0] sm:$0xff]
  %v37 = vld [vmem:[%s0 + $0xb8] sm:$0xff]
  %v38 = vld [vmem:[%s0 + $0xc0] sm:$0xff]
  %v39 = vld [vmem:[%s0 + $0xc8] sm:$0xff]
  %v40 = vld [vmem:[%s0 + $0xd0] sm:$0xff]
  %v41 = vld [vmem:[%s0 + $0xd8] sm:$0xff]
  %v42 = vld [vmem:[%s0 + $0xe0] sm:$0xff]
  %v43 = vld [vmem:[%s0 + $0xe8] sm:$0xff]
  %v44 = vld [vmem:[%s0 + $0xf0] sm:$0xff]
  %v45 = vld [vmem:[%s0 + $0xf8] sm:$0xff]
  %v46 = vld [vmem:[%s0 + $0x100] sm:$0xff]
  %v47 = vld [vmem:[%s0 + $0x108] sm:$0xff]
  %v48 = vld [vmem:[%s0 + $0x110] sm:$0xff]
  %v49 = vld [vmem:[%s0 + $0x118] sm:$0xff]
  %v50 = vld [vmem:[%s0 + $0x120] sm:$0xff]
  %v51 = vld [vmem:[%s0 + $0x128] sm:$0xff]
  %v52 = vld [vmem:[%s0 + $0x130] sm:$0xff]
  %v53 = vld [vmem:[%s0 + $0x138] sm:$0xff]
  %v54 = vld [vmem:[%s0 + $0x140] sm:$0xff]
  %v55 = vld [vmem:[%s0 + $0x148] sm:$0xff]
  %v56 = vld [vmem:[%s0 + $0x150] sm:$0xff]
  %v57 = vld [vmem:[%s0 + $0x158] sm:$0xff]
  %v58 = vld [vmem:[%s0 + $0x160] sm:$0xff]
  %v59 = vld [vmem:[%s0 + $0x168] sm:$0xff]
  %v60 = vld [vmem:[%s0 + $0x170] sm:$0xff]
  %v61 = vld [vmem:[%s0 + $0x178] sm:$0xff]
  %v62 = vld [vmem:[%s0 + $0x180] sm:$0xff]
  %v63 = vld [vmem:[%s0 + $0x188] sm:$0xff]
  %v64 = vld [vmem:[%s0 + $0x190] sm:$0xff]
  %v65 = vld [vmem:[%s0 + $0x198] sm:$0xff]
  %v66 = vld [vmem:[%s0 + $0x1a0] sm:$0xff]
  %v67 = vld [vmem:[%s0 + $0x1a8] sm:$0xff]
  %v68 = vld [vmem:[%s0 + $0x1b0] sm:$0xff]
  %v69 = vld [vmem:[%s0 + $0x1b8] sm:$0xff]
  %v70 = vld [vmem:[%s0 + $0x1c0] sm:$0xff]
  %v71 = vld [vmem:[%s0 + $0x1c8] sm:$0xff]
  %v72 = vld [vmem:[%s0 + $0x1d0] sm:$0xff]
  %v73 = vld [vmem:[%s0 + $0x1d8] sm:$0xff]
  %v74 = vld [vmem:[%s0 + $0x1e0] sm:$0xff]
  %v75 = vld [vmem:[%s0 + $0x1e8] sm:$0xff]
  %v76 = vld [vmem:[%s0 + $0x1f0] sm:$0xff]
  %v77 = vld [vmem:[%s0 + $0x1f8] sm:$0xff]
  %v78 = vld [vmem:[%s0 + $0x200] sm:$0xff]
  %v79 = vld [vmem:[%s0 + $0x208] sm:$0xff]
  %v80 = vld [vmem:[%s0 + $0x210] sm:$0xff]
  %v81 = vld [vmem:[%s0 + $0x218] sm:$0xff]
  %v82 = vld [vmem:[%s0 + $0x220] sm:$0xff]
  %v83 = vld [vmem:[%s0 + $0x228] sm:$0xff]
  %v84 = vld [vmem:[%s0 + $0x230] sm:$0xff]
  %v85 = vld [vmem:[%s0 + $0x238] sm:$0xff]
  %v86 = vld [vmem:[%s0 + $0x240] sm:$0xff]
  %v87 = vld [vmem:[%s0 + $0x248] sm:$0xff]
  %v88 = vld [vmem:[%s0 + $0x250] sm:$0xff]
  %v89 = vld [vmem:[%s0 + $0x258] sm:$0xff]
  %v90 = vld [vmem:[%s0 + $0x260] sm:$0xff]
  %v91 = vld [vmem:[%s0 + $0x268] sm:$0xff]
  %v92 = vld [vmem:[%s0 + $0x270] sm:$0xff]
  %v93 = vld [vmem:[%s0 + $0x278] sm:$0xff]
  %v94 = vld [vmem:[%s0 + $0x280] sm:$0xff]
  %v95 = vld [vmem:[%s0 + $0x288] sm:$0xff]
  %v96 = vld [vmem:[%s0 + $0x290] sm:$0xff]
  %v97 = vld [vmem:[%s0 + $0x298] sm:$0xff]
  %v98 = vld [vmem:[%s0 + $0x2a0] sm:$0xff]
  %v99 = vld [vmem:[%s0 + $0x2a8] sm:$0xff]
  %v100 = vld [vmem:[%s0 + $0x2b0] sm:$0xff]
  %v101 = vld [vmem:[%s0 + $0x2b8] sm:$0xff]
  %v102 = vld [vmem:[%s0 + $0x2c0] sm:$0xff]
  %v103 = vld [vmem:[%s0 + $0x2c8] sm:$0xff]
  %v104 = vld [vmem:[%s0 + $0x2d0] sm:$0xff]
  %v105 = vld [vmem:[%s0 + $0x2d8] sm:$0xff]
  %v106 = vld [vmem:[%s0 + $0x2e0] sm:$0xff]
  %v107 = vld [vmem:[%s0 + $0x2e8] sm:$0xff]
  %v108 = vld [vmem:[%s0 + $0x2f0] sm:$0xff]
  %v109 = vld [vmem:[%s0 + $0x2f8] sm:$0xff]
  %v110 = vld [vmem:[%s0 + $0x300] sm:$0xff]
  %v111 = vld [vmem:[%s0 + $0x308] sm:$0xff]
  %v112 = vld [vmem:[%s0 + $0x310] sm:$0xff]
  %v113 = vld [vmem:[%s0 + $0x318] sm:$0xff]
  %v114 = vld [vmem:[%s0 + $0x320] sm:$0xff]
  %v115 = vld [vmem:[%s0 + $0x328] sm:$0xff]
  %v116 = vld [vmem:[%s0 + $0x330] sm:$0xff]
  %v117 = vld [vmem:[%s0 + $0x338] sm:$0xff]
  %v118 = vld [vmem:[%s0 + $0x340] sm:$0xff]
  %v119 = vld [vmem:[%s0 + $0x348] sm:$0xff]
  %v120 = vld [vmem:[%s0 + $0x350] sm:$0xff]
  %v121 = vld [vmem:[%s0 + $0x358] sm:$0xff]
  %v122 = vld [vmem:[%s0 + $0x360] sm:$0xff]
  %v123 = vld [vmem:[%s0 + $0x368] sm:$0xff]
  %v124 = vld [vmem:[%s0 + $0x370] sm:$0xff]
  %v125 = vld [vmem:[%s0 + $0x378] sm:$0xff]
  %v126 = vld [vmem:[%s0 + $0x380] sm:$0xff]
  %v127 = vld [vmem:[%s0 + $0x388] sm:$0xff]
  %v128 = vld [vmem:[%s0 + $0x390] sm:$0xff]
  %v129 = vld [vmem:[%s0 + $0x398] sm:$0xff]
  %v130 = vld [vmem:[%s0 + $0x3a0] sm:$0xff]
  %v131 = vld [vmem:[%s0 + $0x3a8] sm:$0xff]
  %v132 = vld [vmem:[%s0 + $0x3b0] sm:$0xff]
  %v133 = vld [vmem:[%s0 + $0x3b8] sm:$0xff]
  %v134 = vld [vmem:[%s0 + $0x3c0] sm:$0xff]
  %v135 = vld [vmem:[%s0 + $0x3c8] sm:$0xff]
  %v136 = vld [vmem:[%s0 + $0x3d0] sm:$0xff]
  %v137 = vld [vmem:[%s0 + $0x3d8] sm:$0xff]
  %v138 = vld [vmem:[%s0 + $0x3e0] sm:$0xff]
  %v139 = vld [vmem:[%s0 + $0x3e8] sm:$0xff]
  %v140 = vld [vmem:[%s0 + $0x3f0] sm:$0xff]
  %v141 = vld [vmem:[%s0 + $0x3f8] sm:$0xff]
  %v142 = vld [vmem:[%s1] sm:$0xff]
  %v143 = vld [vmem:[%s1 + $0x8] sm:$0xff]
  %v144 = vld [vmem:[%s1 + $0x10] sm:$0xff]
  %v145 = vld [vmem:[%s1 + $0x18] sm:$0xff]
  %v146 = vld [vmem:[%s2] sm:$0x1]
  %v148 = vlaneseq
  %v149 = vshrl.u32 %v148, 7
  %v150 = vsub.s32 0, %v149
  %v151 = vrot.slane %v146, %v150
  %vm153 = vcmask 261120
  %v155 = vsel %vm153, %v14, 0
  %v158 = vsel %vm153, %v15, 0
  %v161 = vsel %vm153, %v16, 0
  %v164 = vsel %vm153, %v17, 0
  %v167 = vsel %vm153, %v18, 0
  %v170 = vsel %vm153, %v19, 0
  %v173 = vsel %vm153, %v20, 0
  %v176 = vsel %vm153, %v21, 0
  %v179 = vsel %vm153, %v22, 0
  %v182 = vsel %vm153, %v23, 0
  %v185 = vsel %vm153, %v24, 0
  %v188 = vsel %vm153, %v25, 0
  %v191 = vsel %vm153, %v26, 0
  %v194 = vsel %vm153, %v27, 0
  %v197 = vsel %vm153, %v28, 0
  %v200 = vsel %vm153, %v29, 0
  %v203 = vsel %vm153, %v30, 0
  %v206 = vsel %vm153, %v31, 0
  %v209 = vsel %vm153, %v32, 0
  %v212 = vsel %vm153, %v33, 0
  %v215 = vsel %vm153, %v34, 0
  %v218 = vsel %vm153, %v35, 0
  %v221 = vsel %vm153, %v36, 0
  %v224 = vsel %vm153, %v37, 0
  %v227 = vsel %vm153, %v38, 0
  %v230 = vsel %vm153, %v39, 0
  %v233 = vsel %vm153, %v40, 0
  %v236 = vsel %vm153, %v41, 0
  %v239 = vsel %vm153, %v42, 0
  %v242 = vsel %vm153, %v43, 0
  %v245 = vsel %vm153, %v44, 0
  %v248 = vsel %vm153, %v45, 0
  %v251 = vsel %vm153, %v46, 0
  %v254 = vsel %vm153, %v47, 0
  %v257 = vsel %vm153, %v48, 0
  %v260 = vsel %vm153, %v49, 0
  %v263 = vsel %vm153, %v50, 0
  %v266 = vsel %vm153, %v51, 0
  %v269 = vsel %vm153, %v52, 0
  %v272 = vsel %vm153, %v53, 0
  %v275 = vsel %vm153, %v54, 0
  %v278 = vsel %vm153, %v55, 0
  %v281 = vsel %vm153, %v56, 0
  %v284 = vsel %vm153, %v57, 0
  %v287 = vsel %vm153, %v58, 0
  %v290 = vsel %vm153, %v59, 0
  %v293 = vsel %vm153, %v60, 0
  %v296 = vsel %vm153, %v61, 0
  %v299 = vsel %vm153, %v62, 0
  %v302 = vsel %vm153, %v63, 0
  %v305 = vsel %vm153, %v64, 0
  %v308 = vsel %vm153, %v65, 0
  %v311 = vsel %vm153, %v66, 0
  %v314 = vsel %vm153, %v67, 0
  %v317 = vsel %vm153, %v68, 0
  %v320 = vsel %vm153, %v69, 0
  %v323 = vsel %vm153, %v70, 0
  %v326 = vsel %vm153, %v71, 0
  %v329 = vsel %vm153, %v72, 0
  %v332 = vsel %vm153, %v73, 0
  %v335 = vsel %vm153, %v74, 0
  %v338 = vsel %vm153, %v75, 0
  %v341 = vsel %vm153, %v76, 0
  %v344 = vsel %vm153, %v77, 0
  %v347 = vsel %vm153, %v78, 0
  %v350 = vsel %vm153, %v79, 0
  %v353 = vsel %vm153, %v80, 0
  %v356 = vsel %vm153, %v81, 0
  %v359 = vsel %vm153, %v82, 0
  %v362 = vsel %vm153, %v83, 0
  %v365 = vsel %vm153, %v84, 0
  %v368 = vsel %vm153, %v85, 0
  %v371 = vsel %vm153, %v86, 0
  %v374 = vsel %vm153, %v87, 0
  %v377 = vsel %vm153, %v88, 0
  %v380 = vsel %vm153, %v89, 0
  %v383 = vsel %vm153, %v90, 0
  %v386 = vsel %vm153, %v91, 0
  %v389 = vsel %vm153, %v92, 0
  %v392 = vsel %vm153, %v93, 0
  %v395 = vsel %vm153, %v94, 0
  %v398 = vsel %vm153, %v95, 0
  %v401 = vsel %vm153, %v96, 0
  %v404 = vsel %vm153, %v97, 0
  %v407 = vsel %vm153, %v98, 0
  %v410 = vsel %vm153, %v99, 0
  %v413 = vsel %vm153, %v100, 0
  %v416 = vsel %vm153, %v101, 0
  %v419 = vsel %vm153, %v102, 0
  %v422 = vsel %vm153, %v103, 0
  %v425 = vsel %vm153, %v104, 0
  %v428 = vsel %vm153, %v105, 0
  %v431 = vsel %vm153, %v106, 0
  %v434 = vsel %vm153, %v107, 0
  %v437 = vsel %vm153, %v108, 0
  %v440 = vsel %vm153, %v109, 0
  %v443 = vsel %vm153, %v110, 0
  %v446 = vsel %vm153, %v111, 0
  %v449 = vsel %vm153, %v112, 0
  %v452 = vsel %vm153, %v113, 0
  %v455 = vsel %vm153, %v114, 0
  %v458 = vsel %vm153, %v115, 0
  %v461 = vsel %vm153, %v116, 0
  %v464 = vsel %vm153, %v117, 0
  %v467 = vsel %vm153, %v118, 0
  %v470 = vsel %vm153, %v119, 0
  %v473 = vsel %vm153, %v120, 0
  %v476 = vsel %vm153, %v121, 0
  %v479 = vsel %vm153, %v122, 0
  %v482 = vsel %vm153, %v123, 0
  %v485 = vsel %vm153, %v124, 0
  %v488 = vsel %vm153, %v125, 0
  %v491 = vsel %vm153, %v126, 0
  %v494 = vsel %vm153, %v127, 0
  %v497 = vsel %vm153, %v128, 0
  %v500 = vsel %vm153, %v129, 0
  %v503 = vsel %vm153, %v130, 0
  %v506 = vsel %vm153, %v131, 0
  %v509 = vsel %vm153, %v132, 0
  %v512 = vsel %vm153, %v133, 0
  %v515 = vsel %vm153, %v134, 0
  %v518 = vsel %vm153, %v135, 0
  %v521 = vsel %vm153, %v136, 0
  %v524 = vsel %vm153, %v137, 0
  %v527 = vsel %vm153, %v138, 0
  %v530 = vsel %vm153, %v139, 0
  %v533 = vsel %vm153, %v140, 0
  %v536 = vsel %vm153, %v141, 0
  %538 = vmatprep.subr.mxu0 0.0
  %539 = vmatpush1.msra.mxu0 %v142
  %540 = vmatprep.subr.mxu0 0.0
  %541 = vmatpush1.msra.mxu0 %v143
  %542 = vmatprep.subr.mxu0 0.0
  %543 = vmatpush1.msra.mxu0 %v144
  %544 = vmatprep.subr.mxu0 0.0
  %545 = vmatpush1.msra.mxu0 %v145
  %546 = vmatprep.subr.mxu0 0.0
  %547 = vmatpush1.msra.mxu0 0.0
  %548 = vmatprep.subr.mxu0 0.0
  %549 = vmatpush1.msra.mxu0 0.0
  %550 = vmatprep.subr.mxu0 0.0
  %551 = vmatpush1.msra.mxu0 0.0
  %552 = vmatprep.subr.mxu0 0.0
  %553 = vmatpush1.msra.mxu0 0.0
  %554 = vmatprep.subr.mxu0 0.0
  %555 = vmatpush1.msra.mxu0 0.0
  %556 = vmatprep.subr.mxu0 0.0
  %557 = vmatpush1.msra.mxu0 0.0
  %558 = vmatprep.subr.mxu0 0.0
  %559 = vmatpush1.msra.mxu0 0.0
  %560 = vmatprep.subr.mxu0 0.0
  %561 = vmatpush1.msra.mxu0 0.0
  %562 = vmatprep.subr.mxu0 0.0
  %563 = vmatpush1.msra.mxu0 0.0
  %564 = vmatprep.subr.mxu0 0.0
  %565 = vmatpush1.msra.mxu0 0.0
  %566 = vmatprep.subr.mxu0 0.0
  %567 = vmatpush1.msra.mxu0 0.0
  %568 = vmatprep.subr.mxu0 0.0
  %569 = vmatpush1.msra.mxu0 0.0
  %570 = vmatprep.subr.mxu0 0.0
  %571 = vmatpush1.msra.mxu0 0.0
  %572 = vmatprep.subr.mxu0 0.0
  %573 = vmatpush1.msra.mxu0 0.0
  %574 = vmatprep.subr.mxu0 0.0
  %575 = vmatpush1.msra.mxu0 0.0
  %576 = vmatprep.subr.mxu0 0.0
  %577 = vmatpush1.msra.mxu0 0.0
  %578 = vmatprep.subr.mxu0 0.0
  %579 = vmatpush1.msra.mxu0 0.0
  %580 = vmatprep.subr.mxu0 0.0
  %581 = vmatpush1.msra.mxu0 0.0
  %582 = vmatprep.subr.mxu0 0.0
  %583 = vmatpush1.msra.mxu0 0.0
  %584 = vmatprep.subr.mxu0 0.0
  %585 = vmatpush1.msra.mxu0 0.0
  %586 = vmatprep.subr.mxu0 0.0
  %587 = vmatpush1.msra.mxu0 0.0
  %588 = vmatprep.subr.mxu0 0.0
  %589 = vmatpush1.msra.mxu0 0.0
  %590 = vmatprep.subr.mxu0 0.0
  %591 = vmatpush1.msra.mxu0 0.0
  %592 = vmatprep.subr.mxu0 0.0
  %593 = vmatpush1.msra.mxu0 0.0
  %594 = vmatprep.subr.mxu0 0.0
  %595 = vmatpush1.msra.mxu0 0.0
  %596 = vmatprep.subr.mxu0 0.0
  %597 = vmatpush1.msra.mxu0 0.0
  %598 = vmatprep.subr.mxu0 0.0
  %599 = vmatpush1.msra.mxu0 0.0
  %600 = vmatprep.subr.mxu0 0.0
  %601 = vmatpush1.msra.mxu0 0.0
  %602 = vmatprep.mubr.f32.mxu0 0.0
  %603 = vmatmul.mubr.f32.gmra.mrb[0].mxu0 %v155
  %v604 = vpop.f32.mrb[0].mxu0
  %v605 = vadd.f32 %v151, %v604
  %v606 = vpop.f32.mrb[0].mxu0
  %607 = vmatprep.mubr.f32.mxu0 0.0
  %608 = vmatmul.mubr.f32.gmra.mrb[0].mxu0 %v158
  %v609 = vpop.f32.mrb[0].mxu0
  %v610 = vadd.f32 %v151, %v609
  %v611 = vpop.f32.mrb[0].mxu0
  %612 = vmatprep.mubr.f32.mxu0 0.0
  %613 = vmatmul.mubr.f32.gmra.mrb[0].mxu0 %v161
  %v614 = vpop.f32.mrb[0].mxu0
  %v615 = vadd.f32 %v151, %v614
  %v616 = vpop.f32.mrb[0].mxu0
  %617 = vmatprep.mubr.f32.mxu0 0.0
  %618 = vmatmul.mubr.f32.gmra.mrb[0].mxu0 %v164
  %v619 = vpop.f32.mrb[0].mxu0
  %v620 = vadd.f32 %v151, %v619
  %v621 = vpop.f32.mrb[0].mxu0
  %622 = vmatprep.mubr.f32.mxu0 0.0
  %623 = vmatmul.mubr.f32.gmra.mrb[0].mxu0 %v167
  %v624 = vpop.f32.mrb[0].mxu0
  %v625 = vadd.f32 %v151, %v624
  %v626 = vpop.f32.mrb[0].mxu0
  %627 = vmatprep.mubr.f32.mxu0 0.0
  %628 = vmatmul.mubr.f32.gmra.mrb[0].mxu0 %v170
  %v629 = vpop.f32.mrb[0].mxu0
  %v630 = vadd.f32 %v151, %v629
  %v631 = vpop.f32.mrb[0].mxu0
  %632 = vmatprep.mubr.f32.mxu0 0.0
  %633 = vmatmul.mubr.f32.gmra.mrb[0].mxu0 %v173
  %v634 = vpop.f32.mrb[0].mxu0
  %v635 = vadd.f32 %v151, %v634
  %v636 = vpop.f32.mrb[0].mxu0
  %637 = vmatprep.mubr.f32.mxu0 0.0
  %638 = vmatmul.mubr.f32.gmra.mrb[0].mxu0 %v176
  %v639 = vpop.f32.mrb[0].mxu0
  %v640 = vadd.f32 %v151, %v639
  %v641 = vpop.f32.mrb[0].mxu0
  %642 = vmatprep.mubr.f32.mxu0 0.0
  %643 = vmatmul.mubr.f32.gmra.mrb[0].mxu0 %v179
  %v644 = vpop.f32.mrb[0].mxu0
  %v645 = vadd.f32 %v151, %v644
  %v646 = vpop.f32.mrb[0].mxu0
  %647 = vmatprep.mubr.f32.mxu0 0.0
  %648 = vmatmul.mubr.f32.gmra.mrb[0].mxu0 %v182
  %v649 = vpop.f32.mrb[0].mxu0
  %v650 = vadd.f32 %v151, %v649
  %v651 = vpop.f32.mrb[0].mxu0
  %652 = vmatprep.mubr.f32.mxu0 0.0
  %653 = vmatmul.mubr.f32.gmra.mrb[0].mxu0 %v185
  %v654 = vpop.f32.mrb[0].mxu0
  %v655 = vadd.f32 %v151, %v654
  %v656 = vpop.f32.mrb[0].mxu0
  %657 = vmatprep.mubr.f32.mxu0 0.0
  %658 = vmatmul.mubr.f32.gmra.mrb[0].mxu0 %v188
  %v659 = vpop.f32.mrb[0].mxu0
  %v660 = vadd.f32 %v151, %v659
  %v661 = vpop.f32.mrb[0].mxu0
  %662 = vmatprep.mubr.f32.mxu0 0.0
  %663 = vmatmul.mubr.f32.gmra.mrb[0].mxu0 %v191
  %v664 = vpop.f32.mrb[0].mxu0
  %v665 = vadd.f32 %v151, %v664
  %v666 = vpop.f32.mrb[0].mxu0
  %667 = vmatprep.mubr.f32.mxu0 0.0
  %668 = vmatmul.mubr.f32.gmra.mrb[0].mxu0 %v194
  %v669 = vpop.f32.mrb[0].mxu0
  %v670 = vadd.f32 %v151, %v669
  %v671 = vpop.f32.mrb[0].mxu0
  %672 = vmatprep.mubr.f32.mxu0 0.0
  %673 = vmatmul.mubr.f32.gmra.mrb[0].mxu0 %v197
  %v674 = vpop.f32.mrb[0].mxu0
  %v675 = vadd.f32 %v151, %v674
  %v676 = vpop.f32.mrb[0].mxu0
  %677 = vmatprep.mubr.f32.mxu0 0.0
  %678 = vmatmul.mubr.f32.gmra.mrb[0].mxu0 %v200
  %v679 = vpop.f32.mrb[0].mxu0
  %v680 = vadd.f32 %v151, %v679
  %v681 = vpop.f32.mrb[0].mxu0
  %682 = vmatprep.mubr.f32.mxu0 0.0
  %683 = vmatmul.mubr.f32.gmra.mrb[0].mxu0 %v203
  %v684 = vpop.f32.mrb[0].mxu0
  %v685 = vadd.f32 %v151, %v684
  %v686 = vpop.f32.mrb[0].mxu0
  %687 = vmatprep.mubr.f32.mxu0 0.0
  %688 = vmatmul.mubr.f32.gmra.mrb[0].mxu0 %v206
  %v689 = vpop.f32.mrb[0].mxu0
  %v690 = vadd.f32 %v151, %v689
  %v691 = vpop.f32.mrb[0].mxu0
  %692 = vmatprep.mubr.f32.mxu0 0.0
  %693 = vmatmul.mubr.f32.gmra.mrb[0].mxu0 %v209
  %v694 = vpop.f32.mrb[0].mxu0
  %v695 = vadd.f32 %v151, %v694
  %v696 = vpop.f32.mrb[0].mxu0
  %697 = vmatprep.mubr.f32.mxu0 0.0
  %698 = vmatmul.mubr.f32.gmra.mrb[0].mxu0 %v212
  %v699 = vpop.f32.mrb[0].mxu0
  %v700 = vadd.f32 %v151, %v699
  %v701 = vpop.f32.mrb[0].mxu0
  %702 = vmatprep.mubr.f32.mxu0 0.0
  %703 = vmatmul.mubr.f32.gmra.mrb[0].mxu0 %v215
  %v704 = vpop.f32.mrb[0].mxu0
  %v705 = vadd.f32 %v151, %v704
  %v706 = vpop.f32.mrb[0].mxu0
  %707 = vmatprep.mubr.f32.mxu0 0.0
  %708 = vmatmul.mubr.f32.gmra.mrb[0].mxu0 %v218
  %v709 = vpop.f32.mrb[0].mxu0
  %v710 = vadd.f32 %v151, %v709
  %v711 = vpop.f32.mrb[0].mxu0
  %712 = vmatprep.mubr.f32.mxu0 0.0
  %713 = vmatmul.mubr.f32.gmra.mrb[0].mxu0 %v221
  %v714 = vpop.f32.mrb[0].mxu0
  %v715 = vadd.f32 %v151, %v714
  %v716 = vpop.f32.mrb[0].mxu0
  %717 = vmatprep.mubr.f32.mxu0 0.0
  %718 = vmatmul.mubr.f32.gmra.mrb[0].mxu0 %v224
  %v719 = vpop.f32.mrb[0].mxu0
  %v720 = vadd.f32 %v151, %v719
  %v721 = vpop.f32.mrb[0].mxu0
  %722 = vmatprep.mubr.f32.mxu0 0.0
  %723 = vmatmul.mubr.f32.gmra.mrb[0].mxu0 %v227
  %v724 = vpop.f32.mrb[0].mxu0
  %v725 = vadd.f32 %v151, %v724
  %v726 = vpop.f32.mrb[0].mxu0
  %727 = vmatprep.mubr.f32.mxu0 0.0
  %728 = vmatmul.mubr.f32.gmra.mrb[0].mxu0 %v230
  %v729 = vpop.f32.mrb[0].mxu0
  %v730 = vadd.f32 %v151, %v729
  %v731 = vpop.f32.mrb[0].mxu0
  %732 = vmatprep.mubr.f32.mxu0 0.0
  %733 = vmatmul.mubr.f32.gmra.mrb[0].mxu0 %v233
  %v734 = vpop.f32.mrb[0].mxu0
  %v735 = vadd.f32 %v151, %v734
  %v736 = vpop.f32.mrb[0].mxu0
  %737 = vmatprep.mubr.f32.mxu0 0.0
  %738 = vmatmul.mubr.f32.gmra.mrb[0].mxu0 %v236
  %v739 = vpop.f32.mrb[0].mxu0
  %v740 = vadd.f32 %v151, %v739
  %v741 = vpop.f32.mrb[0].mxu0
  %742 = vmatprep.mubr.f32.mxu0 0.0
  %743 = vmatmul.mubr.f32.gmra.mrb[0].mxu0 %v239
  %v744 = vpop.f32.mrb[0].mxu0
  %v745 = vadd.f32 %v151, %v744
  %v746 = vpop.f32.mrb[0].mxu0
  %747 = vmatprep.mubr.f32.mxu0 0.0
  %748 = vmatmul.mubr.f32.gmra.mrb[0].mxu0 %v242
  %v749 = vpop.f32.mrb[0].mxu0
  %v750 = vadd.f32 %v151, %v749
  %v751 = vpop.f32.mrb[0].mxu0
  %752 = vmatprep.mubr.f32.mxu0 0.0
  %753 = vmatmul.mubr.f32.gmra.mrb[0].mxu0 %v245
  %v754 = vpop.f32.mrb[0].mxu0
  %v755 = vadd.f32 %v151, %v754
  %v756 = vpop.f32.mrb[0].mxu0
  %757 = vmatprep.mubr.f32.mxu0 0.0
  %758 = vmatmul.mubr.f32.gmra.mrb[0].mxu0 %v248
  %v759 = vpop.f32.mrb[0].mxu0
  %v760 = vadd.f32 %v151, %v759
  %v761 = vpop.f32.mrb[0].mxu0
  %762 = vmatprep.mubr.f32.mxu0 0.0
  %763 = vmatmul.mubr.f32.gmra.mrb[0].mxu0 %v251
  %v764 = vpop.f32.mrb[0].mxu0
  %v765 = vadd.f32 %v151, %v764
  %v766 = vpop.f32.mrb[0].mxu0
  %767 = vmatprep.mubr.f32.mxu0 0.0
  %768 = vmatmul.mubr.f32.gmra.mrb[0].mxu0 %v254
  %v769 = vpop.f32.mrb[0].mxu0
  %v770 = vadd.f32 %v151, %v769
  %v771 = vpop.f32.mrb[0].mxu0
  %772 = vmatprep.mubr.f32.mxu0 0.0
  %773 = vmatmul.mubr.f32.gmra.mrb[0].mxu0 %v257
  %v774 = vpop.f32.mrb[0].mxu0
  %v775 = vadd.f32 %v151, %v774
  %v776 = vpop.f32.mrb[0].mxu0
  %777 = vmatprep.mubr.f32.mxu0 0.0
  %778 = vmatmul.mubr.f32.gmra.mrb[0].mxu0 %v260
  %v779 = vpop.f32.mrb[0].mxu0
  %v780 = vadd.f32 %v151, %v779
  %v781 = vpop.f32.mrb[0].mxu0
  %782 = vmatprep.mubr.f32.mxu0 0.0
  %783 = vmatmul.mubr.f32.gmra.mrb[0].mxu0 %v263
  %v784 = vpop.f32.mrb[0].mxu0
  %v785 = vadd.f32 %v151, %v784
  %v786 = vpop.f32.mrb[0].mxu0
  %787 = vmatprep.mubr.f32.mxu0 0.0
  %788 = vmatmul.mubr.f32.gmra.mrb[0].mxu0 %v266
  %v789 = vpop.f32.mrb[0].mxu0
  %v790 = vadd.f32 %v151, %v789
  %v791 = vpop.f32.mrb[0].mxu0
  %792 = vmatprep.mubr.f32.mxu0 0.0
  %793 = vmatmul.mubr.f32.gmra.mrb[0].mxu0 %v269
  %v794 = vpop.f32.mrb[0].mxu0
  %v795 = vadd.f32 %v151, %v794
  %v796 = vpop.f32.mrb[0].mxu0
  %797 = vmatprep.mubr.f32.mxu0 0.0
  %798 = vmatmul.mubr.f32.gmra.mrb[0].mxu0 %v272
  %v799 = vpop.f32.mrb[0].mxu0
  %v800 = vadd.f32 %v151, %v799
  %v801 = vpop.f32.mrb[0].mxu0
  %802 = vmatprep.mubr.f32.mxu0 0.0
  %803 = vmatmul.mubr.f32.gmra.mrb[0].mxu0 %v275
  %v804 = vpop.f32.mrb[0].mxu0
  %v805 = vadd.f32 %v151, %v804
  %v806 = vpop.f32.mrb[0].mxu0
  %807 = vmatprep.mubr.f32.mxu0 0.0
  %808 = vmatmul.mubr.f32.gmra.mrb[0].mxu0 %v278
  %v809 = vpop.f32.mrb[0].mxu0
  %v810 = vadd.f32 %v151, %v809
  %v811 = vpop.f32.mrb[0].mxu0
  %812 = vmatprep.mubr.f32.mxu0 0.0
  %813 = vmatmul.mubr.f32.gmra.mrb[0].mxu0 %v281
  %v814 = vpop.f32.mrb[0].mxu0
  %v815 = vadd.f32 %v151, %v814
  %v816 = vpop.f32.mrb[0].mxu0
  %817 = vmatprep.mubr.f32.mxu0 0.0
  %818 = vmatmul.mubr.f32.gmra.mrb[0].mxu0 %v284
  %v819 = vpop.f32.mrb[0].mxu0
  %v820 = vadd.f32 %v151, %v819
  %v821 = vpop.f32.mrb[0].mxu0
  %822 = vmatprep.mubr.f32.mxu0 0.0
  %823 = vmatmul.mubr.f32.gmra.mrb[0].mxu0 %v287
  %v824 = vpop.f32.mrb[0].mxu0
  %v825 = vadd.f32 %v151, %v824
  %v826 = vpop.f32.mrb[0].mxu0
  %827 = vmatprep.mubr.f32.mxu0 0.0
  %828 = vmatmul.mubr.f32.gmra.mrb[0].mxu0 %v290
  %v829 = vpop.f32.mrb[0].mxu0
  %v830 = vadd.f32 %v151, %v829
  %v831 = vpop.f32.mrb[0].mxu0
  %832 = vmatprep.mubr.f32.mxu0 0.0
  %833 = vmatmul.mubr.f32.gmra.mrb[0].mxu0 %v293
  %v834 = vpop.f32.mrb[0].mxu0
  %v835 = vadd.f32 %v151, %v834
  %v836 = vpop.f32.mrb[0].mxu0
  %837 = vmatprep.mubr.f32.mxu0 0.0
  %838 = vmatmul.mubr.f32.gmra.mrb[0].mxu0 %v296
  %v839 = vpop.f32.mrb[0].mxu0
  %v840 = vadd.f32 %v151, %v839
  %v841 = vpop.f32.mrb[0].mxu0
  %842 = vmatprep.mubr.f32.mxu0 0.0
  %843 = vmatmul.mubr.f32.gmra.mrb[0].mxu0 %v299
  %v844 = vpop.f32.mrb[0].mxu0
  %v845 = vadd.f32 %v151, %v844
  %v846 = vpop.f32.mrb[0].mxu0
  %847 = vmatprep.mubr.f32.mxu0 0.0
  %848 = vmatmul.mubr.f32.gmra.mrb[0].mxu0 %v302
  %v849 = vpop.f32.mrb[0].mxu0
  %v850 = vadd.f32 %v151, %v849
  %v851 = vpop.f32.mrb[0].mxu0
  %852 = vmatprep.mubr.f32.mxu0 0.0
  %853 = vmatmul.mubr.f32.gmra.mrb[0].mxu0 %v305
  %v854 = vpop.f32.mrb[0].mxu0
  %v855 = vadd.f32 %v151, %v854
  %v856 = vpop.f32.mrb[0].mxu0
  %857 = vmatprep.mubr.f32.mxu0 0.0
  %858 = vmatmul.mubr.f32.gmra.mrb[0].mxu0 %v308
  %v859 = vpop.f32.mrb[0].mxu0
  %v860 = vadd.f32 %v151, %v859
  %v861 = vpop.f32.mrb[0].mxu0
  %862 = vmatprep.mubr.f32.mxu0 0.0
  %863 = vmatmul.mubr.f32.gmra.mrb[0].mxu0 %v311
  %v864 = vpop.f32.mrb[0].mxu0
  %v865 = vadd.f32 %v151, %v864
  %v866 = vpop.f32.mrb[0].mxu0
  %867 = vmatprep.mubr.f32.mxu0 0.0
  %868 = vmatmul.mubr.f32.gmra.mrb[0].mxu0 %v314
  %v869 = vpop.f32.mrb[0].mxu0
  %v870 = vadd.f32 %v151, %v869
  %v871 = vpop.f32.mrb[0].mxu0
  %872 = vmatprep.mubr.f32.mxu0 0.0
  %873 = vmatmul.mubr.f32.gmra.mrb[0].mxu0 %v317
  %v874 = vpop.f32.mrb[0].mxu0
  %v875 = vadd.f32 %v151, %v874
  %v876 = vpop.f32.mrb[0].mxu0
  %877 = vmatprep.mubr.f32.mxu0 0.0
  %878 = vmatmul.mubr.f32.gmra.mrb[0].mxu0 %v320
  %v879 = vpop.f32.mrb[0].mxu0
  %v880 = vadd.f32 %v151, %v879
  %v881 = vpop.f32.mrb[0].mxu0
  %882 = vmatprep.mubr.f32.mxu0 0.0
  %883 = vmatmul.mubr.f32.gmra.mrb[0].mxu0 %v323
  %v884 = vpop.f32.mrb[0].mxu0
  %v885 = vadd.f32 %v151, %v884
  %v886 = vpop.f32.mrb[0].mxu0
  %887 = vmatprep.mubr.f32.mxu0 0.0
  %888 = vmatmul.mubr.f32.gmra.mrb[0].mxu0 %v326
  %v889 = vpop.f32.mrb[0].mxu0
  %v890 = vadd.f32 %v151, %v889
  %v891 = vpop.f32.mrb[0].mxu0
  %892 = vmatprep.mubr.f32.mxu0 0.0
  %893 = vmatmul.mubr.f32.gmra.mrb[0].mxu0 %v329
  %v894 = vpop.f32.mrb[0].mxu0
  %v895 = vadd.f32 %v151, %v894
  %v896 = vpop.f32.mrb[0].mxu0
  %897 = vmatprep.mubr.f32.mxu0 0.0
  %898 = vmatmul.mubr.f32.gmra.mrb[0].mxu0 %v332
  %v899 = vpop.f32.mrb[0].mxu0
  %v900 = vadd.f32 %v151, %v899
  %v901 = vpop.f32.mrb[0].mxu0
  %902 = vmatprep.mubr.f32.mxu0 0.0
  %903 = vmatmul.mubr.f32.gmra.mrb[0].mxu0 %v335
  %v904 = vpop.f32.mrb[0].mxu0
  %v905 = vadd.f32 %v151, %v904
  %v906 = vpop.f32.mrb[0].mxu0
  %907 = vmatprep.mubr.f32.mxu0 0.0
  %908 = vmatmul.mubr.f32.gmra.mrb[0].mxu0 %v338
  %v909 = vpop.f32.mrb[0].mxu0
  %v910 = vadd.f32 %v151, %v909
  %v911 = vpop.f32.mrb[0].mxu0
  %912 = vmatprep.mubr.f32.mxu0 0.0
  %913 = vmatmul.mubr.f32.gmra.mrb[0].mxu0 %v341
  %v914 = vpop.f32.mrb[0].mxu0
  %v915 = vadd.f32 %v151, %v914
  %v916 = vpop.f32.mrb[0].mxu0
  %917 = vmatprep.mubr.f32.mxu0 0.0
  %918 = vmatmul.mubr.f32.gmra.mrb[0].mxu0 %v344
  %v919 = vpop.f32.mrb[0].mxu0
  %v920 = vadd.f32 %v151, %v919
  %v921 = vpop.f32.mrb[0].mxu0
  %922 = vmatprep.mubr.f32.mxu0 0.0
  %923 = vmatmul.mubr.f32.gmra.mrb[0].mxu0 %v347
  %v924 = vpop.f32.mrb[0].mxu0
  %v925 = vadd.f32 %v151, %v924
  %v926 = vpop.f32.mrb[0].mxu0
  %927 = vmatprep.mubr.f32.mxu0 0.0
  %928 = vmatmul.mubr.f32.gmra.mrb[0].mxu0 %v350
  %v929 = vpop.f32.mrb[0].mxu0
  %v930 = vadd.f32 %v151, %v929
  %v931 = vpop.f32.mrb[0].mxu0
  %932 = vmatprep.mubr.f32.mxu0 0.0
  %933 = vmatmul.mubr.f32.gmra.mrb[0].mxu0 %v353
  %v934 = vpop.f32.mrb[0].mxu0
  %v935 = vadd.f32 %v151, %v934
  %v936 = vpop.f32.mrb[0].mxu0
  %937 = vmatprep.mubr.f32.mxu0 0.0
  %938 = vmatmul.mubr.f32.gmra.mrb[0].mxu0 %v356
  %v939 = vpop.f32.mrb[0].mxu0
  %v940 = vadd.f32 %v151, %v939
  %v941 = vpop.f32.mrb[0].mxu0
  %942 = vmatprep.mubr.f32.mxu0 0.0
  %943 = vmatmul.mubr.f32.gmra.mrb[0].mxu0 %v359
  %v944 = vpop.f32.mrb[0].mxu0
  %v945 = vadd.f32 %v151, %v944
  %v946 = vpop.f32.mrb[0].mxu0
  %947 = vmatprep.mubr.f32.mxu0 0.0
  %948 = vmatmul.mubr.f32.gmra.mrb[0].mxu0 %v362
  %v949 = vpop.f32.mrb[0].mxu0
  %v950 = vadd.f32 %v151, %v949
  %v951 = vpop.f32.mrb[0].mxu0
  %952 = vmatprep.mubr.f32.mxu0 0.0
  %953 = vmatmul.mubr.f32.gmra.mrb[0].mxu0 %v365
  %v954 = vpop.f32.mrb[0].mxu0
  %v955 = vadd.f32 %v151, %v954
  %v956 = vpop.f32.mrb[0].mxu0
  %957 = vmatprep.mubr.f32.mxu0 0.0
  %958 = vmatmul.mubr.f32.gmra.mrb[0].mxu0 %v368
  %v959 = vpop.f32.mrb[0].mxu0
  %v960 = vadd.f32 %v151, %v959
  %v961 = vpop.f32.mrb[0].mxu0
  %962 = vmatprep.mubr.f32.mxu0 0.0
  %963 = vmatmul.mubr.f32.gmra.mrb[0].mxu0 %v371
  %v964 = vpop.f32.mrb[0].mxu0
  %v965 = vadd.f32 %v151, %v964
  %v966 = vpop.f32.mrb[0].mxu0
  %967 = vmatprep.mubr.f32.mxu0 0.0
  %968 = vmatmul.mubr.f32.gmra.mrb[0].mxu0 %v374
  %v969 = vpop.f32.mrb[0].mxu0
  %v970 = vadd.f32 %v151, %v969
  %v971 = vpop.f32.mrb[0].mxu0
  %972 = vmatprep.mubr.f32.mxu0 0.0
  %973 = vmatmul.mubr.f32.gmra.mrb[0].mxu0 %v377
  %v974 = vpop.f32.mrb[0].mxu0
  %v975 = vadd.f32 %v151, %v974
  %v976 = vpop.f32.mrb[0].mxu0
  %977 = vmatprep.mubr.f32.mxu0 0.0
  %978 = vmatmul.mubr.f32.gmra.mrb[0].mxu0 %v380
  %v979 = vpop.f32.mrb[0].mxu0
  %v980 = vadd.f32 %v151, %v979
  %v981 = vpop.f32.mrb[0].mxu0
  %982 = vmatprep.mubr.f32.mxu0 0.0
  %983 = vmatmul.mubr.f32.gmra.mrb[0].mxu0 %v383
  %v984 = vpop.f32.mrb[0].mxu0
  %v985 = vadd.f32 %v151, %v984
  %v986 = vpop.f32.mrb[0].mxu0
  %987 = vmatprep.mubr.f32.mxu0 0.0
  %988 = vmatmul.mubr.f32.gmra.mrb[0].mxu0 %v386
  %v989 = vpop.f32.mrb[0].mxu0
  %v990 = vadd.f32 %v151, %v989
  %v991 = vpop.f32.mrb[0].mxu0
  %992 = vmatprep.mubr.f32.mxu0 0.0
  %993 = vmatmul.mubr.f32.gmra.mrb[0].mxu0 %v389
  %v994 = vpop.f32.mrb[0].mxu0
  %v995 = vadd.f32 %v151, %v994
  %v996 = vpop.f32.mrb[0].mxu0
  %997 = vmatprep.mubr.f32.mxu0 0.0
  %998 = vmatmul.mubr.f32.gmra.mrb[0].mxu0 %v392
  %v999 = vpop.f32.mrb[0].mxu0
  %v1000 = vadd.f32 %v151, %v999
  %v1001 = vpop.f32.mrb[0].mxu0
  %1002 = vmatprep.mubr.f32.mxu0 0.0
  %1003 = vmatmul.mubr.f32.gmra.mrb[0].mxu0 %v395
  %v1004 = vpop.f32.mrb[0].mxu0
  %v1005 = vadd.f32 %v151, %v1004
  %v1006 = vpop.f32.mrb[0].mxu0
  %1007 = vmatprep.mubr.f32.mxu0 0.0
  %1008 = vmatmul.mubr.f32.gmra.mrb[0].mxu0 %v398
  %v1009 = vpop.f32.mrb[0].mxu0
  %v1010 = vadd.f32 %v151, %v1009
  %v1011 = vpop.f32.mrb[0].mxu0
  %1012 = vmatprep.mubr.f32.mxu0 0.0
  %1013 = vmatmul.mubr.f32.gmra.mrb[0].mxu0 %v401
  %v1014 = vpop.f32.mrb[0].mxu0
  %v1015 = vadd.f32 %v151, %v1014
  %v1016 = vpop.f32.mrb[0].mxu0
  %1017 = vmatprep.mubr.f32.mxu0 0.0
  %1018 = vmatmul.mubr.f32.gmra.mrb[0].mxu0 %v404
  %v1019 = vpop.f32.mrb[0].mxu0
  %v1020 = vadd.f32 %v151, %v1019
  %v1021 = vpop.f32.mrb[0].mxu0
  %1022 = vmatprep.mubr.f32.mxu0 0.0
  %1023 = vmatmul.mubr.f32.gmra.mrb[0].mxu0 %v407
  %v1024 = vpop.f32.mrb[0].mxu0
  %v1025 = vadd.f32 %v151, %v1024
  %v1026 = vpop.f32.mrb[0].mxu0
  %1027 = vmatprep.mubr.f32.mxu0 0.0
  %1028 = vmatmul.mubr.f32.gmra.mrb[0].mxu0 %v410
  %v1029 = vpop.f32.mrb[0].mxu0
  %v1030 = vadd.f32 %v151, %v1029
  %v1031 = vpop.f32.mrb[0].mxu0
  %1032 = vmatprep.mubr.f32.mxu0 0.0
  %1033 = vmatmul.mubr.f32.gmra.mrb[0].mxu0 %v413
  %v1034 = vpop.f32.mrb[0].mxu0
  %v1035 = vadd.f32 %v151, %v1034
  %v1036 = vpop.f32.mrb[0].mxu0
  %1037 = vmatprep.mubr.f32.mxu0 0.0
  %1038 = vmatmul.mubr.f32.gmra.mrb[0].mxu0 %v416
  %v1039 = vpop.f32.mrb[0].mxu0
  %v1040 = vadd.f32 %v151, %v1039
  %v1041 = vpop.f32.mrb[0].mxu0
  %1042 = vmatprep.mubr.f32.mxu0 0.0
  %1043 = vmatmul.mubr.f32.gmra.mrb[0].mxu0 %v419
  %v1044 = vpop.f32.mrb[0].mxu0
  %v1045 = vadd.f32 %v151, %v1044
  %v1046 = vpop.f32.mrb[0].mxu0
  %1047 = vmatprep.mubr.f32.mxu0 0.0
  %1048 = vmatmul.mubr.f32.gmra.mrb[0].mxu0 %v422
  %v1049 = vpop.f32.mrb[0].mxu0
  %v1050 = vadd.f32 %v151, %v1049
  %v1051 = vpop.f32.mrb[0].mxu0
  %1052 = vmatprep.mubr.f32.mxu0 0.0
  %1053 = vmatmul.mubr.f32.gmra.mrb[0].mxu0 %v425
  %v1054 = vpop.f32.mrb[0].mxu0
  %v1055 = vadd.f32 %v151, %v1054
  %v1056 = vpop.f32.mrb[0].mxu0
  %1057 = vmatprep.mubr.f32.mxu0 0.0
  %1058 = vmatmul.mubr.f32.gmra.mrb[0].mxu0 %v428
  %v1059 = vpop.f32.mrb[0].mxu0
  %v1060 = vadd.f32 %v151, %v1059
  %v1061 = vpop.f32.mrb[0].mxu0
  %1062 = vmatprep.mubr.f32.mxu0 0.0
  %1063 = vmatmul.mubr.f32.gmra.mrb[0].mxu0 %v431
  %v1064 = vpop.f32.mrb[0].mxu0
  %v1065 = vadd.f32 %v151, %v1064
  %v1066 = vpop.f32.mrb[0].mxu0
  %1067 = vmatprep.mubr.f32.mxu0 0.0
  %1068 = vmatmul.mubr.f32.gmra.mrb[0].mxu0 %v434
  %v1069 = vpop.f32.mrb[0].mxu0
  %v1070 = vadd.f32 %v151, %v1069
  %v1071 = vpop.f32.mrb[0].mxu0
  %1072 = vmatprep.mubr.f32.mxu0 0.0
  %1073 = vmatmul.mubr.f32.gmra.mrb[0].mxu0 %v437
  %v1074 = vpop.f32.mrb[0].mxu0
  %v1075 = vadd.f32 %v151, %v1074
  %v1076 = vpop.f32.mrb[0].mxu0
  %1077 = vmatprep.mubr.f32.mxu0 0.0
  %1078 = vmatmul.mubr.f32.gmra.mrb[0].mxu0 %v440
  %v1079 = vpop.f32.mrb[0].mxu0
  %v1080 = vadd.f32 %v151, %v1079
  %v1081 = vpop.f32.mrb[0].mxu0
  %1082 = vmatprep.mubr.f32.mxu0 0.0
  %1083 = vmatmul.mubr.f32.gmra.mrb[0].mxu0 %v443
  %v1084 = vpop.f32.mrb[0].mxu0
  %v1085 = vadd.f32 %v151, %v1084
  %v1086 = vpop.f32.mrb[0].mxu0
  %1087 = vmatprep.mubr.f32.mxu0 0.0
  %1088 = vmatmul.mubr.f32.gmra.mrb[0].mxu0 %v446
  %v1089 = vpop.f32.mrb[0].mxu0
  %v1090 = vadd.f32 %v151, %v1089
  %v1091 = vpop.f32.mrb[0].mxu0
  %1092 = vmatprep.mubr.f32.mxu0 0.0
  %1093 = vmatmul.mubr.f32.gmra.mrb[0].mxu0 %v449
  %v1094 = vpop.f32.mrb[0].mxu0
  %v1095 = vadd.f32 %v151, %v1094
  %v1096 = vpop.f32.mrb[0].mxu0
  %1097 = vmatprep.mubr.f32.mxu0 0.0
  %1098 = vmatmul.mubr.f32.gmra.mrb[0].mxu0 %v452
  %v1099 = vpop.f32.mrb[0].mxu0
  %v1100 = vadd.f32 %v151, %v1099
  %v1101 = vpop.f32.mrb[0].mxu0
  %1102 = vmatprep.mubr.f32.mxu0 0.0
  %1103 = vmatmul.mubr.f32.gmra.mrb[0].mxu0 %v455
  %v1104 = vpop.f32.mrb[0].mxu0
  %v1105 = vadd.f32 %v151, %v1104
  %v1106 = vpop.f32.mrb[0].mxu0
  %1107 = vmatprep.mubr.f32.mxu0 0.0
  %1108 = vmatmul.mubr.f32.gmra.mrb[0].mxu0 %v458
  %v1109 = vpop.f32.mrb[0].mxu0
  %v1110 = vadd.f32 %v151, %v1109
  %v1111 = vpop.f32.mrb[0].mxu0
  %1112 = vmatprep.mubr.f32.mxu0 0.0
  %1113 = vmatmul.mubr.f32.gmra.mrb[0].mxu0 %v461
  %v1114 = vpop.f32.mrb[0].mxu0
  %v1115 = vadd.f32 %v151, %v1114
  %v1116 = vpop.f32.mrb[0].mxu0
  %1117 = vmatprep.mubr.f32.mxu0 0.0
  %1118 = vmatmul.mubr.f32.gmra.mrb[0].mxu0 %v464
  %v1119 = vpop.f32.mrb[0].mxu0
  %v1120 = vadd.f32 %v151, %v1119
  %v1121 = vpop.f32.mrb[0].mxu0
  %1122 = vmatprep.mubr.f32.mxu0 0.0
  %1123 = vmatmul.mubr.f32.gmra.mrb[0].mxu0 %v467
  %v1124 = vpop.f32.mrb[0].mxu0
  %v1125 = vadd.f32 %v151, %v1124
  %v1126 = vpop.f32.mrb[0].mxu0
  %1127 = vmatprep.mubr.f32.mxu0 0.0
  %1128 = vmatmul.mubr.f32.gmra.mrb[0].mxu0 %v470
  %v1129 = vpop.f32.mrb[0].mxu0
  %v1130 = vadd.f32 %v151, %v1129
  %v1131 = vpop.f32.mrb[0].mxu0
  %1132 = vmatprep.mubr.f32.mxu0 0.0
  %1133 = vmatmul.mubr.f32.gmra.mrb[0].mxu0 %v473
  %v1134 = vpop.f32.mrb[0].mxu0
  %v1135 = vadd.f32 %v151, %v1134
  %v1136 = vpop.f32.mrb[0].mxu0
  %1137 = vmatprep.mubr.f32.mxu0 0.0
  %1138 = vmatmul.mubr.f32.gmra.mrb[0].mxu0 %v476
  %v1139 = vpop.f32.mrb[0].mxu0
  %v1140 = vadd.f32 %v151, %v1139
  %v1141 = vpop.f32.mrb[0].mxu0
  %1142 = vmatprep.mubr.f32.mxu0 0.0
  %1143 = vmatmul.mubr.f32.gmra.mrb[0].mxu0 %v479
  %v1144 = vpop.f32.mrb[0].mxu0
  %v1145 = vadd.f32 %v151, %v1144
  %v1146 = vpop.f32.mrb[0].mxu0
  %1147 = vmatprep.mubr.f32.mxu0 0.0
  %1148 = vmatmul.mubr.f32.gmra.mrb[0].mxu0 %v482
  %v1149 = vpop.f32.mrb[0].mxu0
  %v1150 = vadd.f32 %v151, %v1149
  %v1151 = vpop.f32.mrb[0].mxu0
  %1152 = vmatprep.mubr.f32.mxu0 0.0
  %1153 = vmatmul.mubr.f32.gmra.mrb[0].mxu0 %v485
  %v1154 = vpop.f32.mrb[0].mxu0
  %v1155 = vadd.f32 %v151, %v1154
  %v1156 = vpop.f32.mrb[0].mxu0
  %1157 = vmatprep.mubr.f32.mxu0 0.0
  %1158 = vmatmul.mubr.f32.gmra.mrb[0].mxu0 %v488
  %v1159 = vpop.f32.mrb[0].mxu0
  %v1160 = vadd.f32 %v151, %v1159
  %v1161 = vpop.f32.mrb[0].mxu0
  %1162 = vmatprep.mubr.f32.mxu0 0.0
  %1163 = vmatmul.mubr.f32.gmra.mrb[0].mxu0 %v491
  %v1164 = vpop.f32.mrb[0].mxu0
  %v1165 = vadd.f32 %v151, %v1164
  %v1166 = vpop.f32.mrb[0].mxu0
  %1167 = vmatprep.mubr.f32.mxu0 0.0
  %1168 = vmatmul.mubr.f32.gmra.mrb[0].mxu0 %v494
  %v1169 = vpop.f32.mrb[0].mxu0
  %v1170 = vadd.f32 %v151, %v1169
  %v1171 = vpop.f32.mrb[0].mxu0
  %1172 = vmatprep.mubr.f32.mxu0 0.0
  %1173 = vmatmul.mubr.f32.gmra.mrb[0].mxu0 %v497
  %v1174 = vpop.f32.mrb[0].mxu0
  %v1175 = vadd.f32 %v151, %v1174
  %v1176 = vpop.f32.mrb[0].mxu0
  %1177 = vmatprep.mubr.f32.mxu0 0.0
  %1178 = vmatmul.mubr.f32.gmra.mrb[0].mxu0 %v500
  %v1179 = vpop.f32.mrb[0].mxu0
  %v1180 = vadd.f32 %v151, %v1179
  %v1181 = vpop.f32.mrb[0].mxu0
  %1182 = vmatprep.mubr.f32.mxu0 0.0
  %1183 = vmatmul.mubr.f32.gmra.mrb[0].mxu0 %v503
  %v1184 = vpop.f32.mrb[0].mxu0
  %v1185 = vadd.f32 %v151, %v1184
  %v1186 = vpop.f32.mrb[0].mxu0
  %1187 = vmatprep.mubr.f32.mxu0 0.0
  %1188 = vmatmul.mubr.f32.gmra.mrb[0].mxu0 %v506
  %v1189 = vpop.f32.mrb[0].mxu0
  %v1190 = vadd.f32 %v151, %v1189
  %v1191 = vpop.f32.mrb[0].mxu0
  %1192 = vmatprep.mubr.f32.mxu0 0.0
  %1193 = vmatmul.mubr.f32.gmra.mrb[0].mxu0 %v509
  %v1194 = vpop.f32.mrb[0].mxu0
  %v1195 = vadd.f32 %v151, %v1194
  %v1196 = vpop.f32.mrb[0].mxu0
  %1197 = vmatprep.mubr.f32.mxu0 0.0
  %1198 = vmatmul.mubr.f32.gmra.mrb[0].mxu0 %v512
  %v1199 = vpop.f32.mrb[0].mxu0
  %v1200 = vadd.f32 %v151, %v1199
  %v1201 = vpop.f32.mrb[0].mxu0
  %1202 = vmatprep.mubr.f32.mxu0 0.0
  %1203 = vmatmul.mubr.f32.gmra.mrb[0].mxu0 %v515
  %v1204 = vpop.f32.mrb[0].mxu0
  %v1205 = vadd.f32 %v151, %v1204
  %v1206 = vpop.f32.mrb[0].mxu0
  %1207 = vmatprep.mubr.f32.mxu0 0.0
  %1208 = vmatmul.mubr.f32.gmra.mrb[0].mxu0 %v518
  %v1209 = vpop.f32.mrb[0].mxu0
  %v1210 = vadd.f32 %v151, %v1209
  %v1211 = vpop.f32.mrb[0].mxu0
  %1212 = vmatprep.mubr.f32.mxu0 0.0
  %1213 = vmatmul.mubr.f32.gmra.mrb[0].mxu0 %v521
  %v1214 = vpop.f32.mrb[0].mxu0
  %v1215 = vadd.f32 %v151, %v1214
  %v1216 = vpop.f32.mrb[0].mxu0
  %1217 = vmatprep.mubr.f32.mxu0 0.0
  %1218 = vmatmul.mubr.f32.gmra.mrb[0].mxu0 %v524
  %v1219 = vpop.f32.mrb[0].mxu0
  %v1220 = vadd.f32 %v151, %v1219
  %v1221 = vpop.f32.mrb[0].mxu0
  %1222 = vmatprep.mubr.f32.mxu0 0.0
  %1223 = vmatmul.mubr.f32.gmra.mrb[0].mxu0 %v527
  %v1224 = vpop.f32.mrb[0].mxu0
  %v1225 = vadd.f32 %v151, %v1224
  %v1226 = vpop.f32.mrb[0].mxu0
  %1227 = vmatprep.mubr.f32.mxu0 0.0
  %1228 = vmatmul.mubr.f32.gmra.mrb[0].mxu0 %v530
  %v1229 = vpop.f32.mrb[0].mxu0
  %v1230 = vadd.f32 %v151, %v1229
  %v1231 = vpop.f32.mrb[0].mxu0
  %1232 = vmatprep.mubr.f32.mxu0 0.0
  %1233 = vmatmul.mubr.f32.gmra.mrb[0].mxu0 %v533
  %v1234 = vpop.f32.mrb[0].mxu0
  %v1235 = vadd.f32 %v151, %v1234
  %v1236 = vpop.f32.mrb[0].mxu0
  %1237 = vmatprep.mubr.f32.mxu0 0.0
  %1238 = vmatmul.mubr.f32.gmra.mrb[0].mxu0 %v536
  %v1239 = vpop.f32.mrb[0].mxu0
  %v1240 = vadd.f32 %v151, %v1239
  %v1241 = vpop.f32.mrb[0].mxu0
  %1242 = vdwg.mxu0
  %v1243 = vlaneseq
  %v1244 = vand.u32 %v1243, 127
  %vm1245 = vcmp.lt.s32.totalorder %v1244, 64
  %vm1246 = vcmp.lt.f32.partialorder %v605, 0.0
  %vm1247 = vcmp.lt.f32.partialorder %v610, 0.0
  %vm1248 = vcmp.lt.f32.partialorder %v615, 0.0
  %vm1249 = vcmp.lt.f32.partialorder %v620, 0.0
  %vm1250 = vcmp.lt.f32.partialorder %v625, 0.0
  %vm1251 = vcmp.lt.f32.partialorder %v630, 0.0
  %vm1252 = vcmp.lt.f32.partialorder %v635, 0.0
  %vm1253 = vcmp.lt.f32.partialorder %v640, 0.0
  %vm1254 = vcmp.lt.f32.partialorder %v645, 0.0
  %vm1255 = vcmp.lt.f32.partialorder %v650, 0.0
  %vm1256 = vcmp.lt.f32.partialorder %v655, 0.0
  %vm1257 = vcmp.lt.f32.partialorder %v660, 0.0
  %vm1258 = vcmp.lt.f32.partialorder %v665, 0.0
  %vm1259 = vcmp.lt.f32.partialorder %v670, 0.0
  %vm1260 = vcmp.lt.f32.partialorder %v675, 0.0
  %vm1261 = vcmp.lt.f32.partialorder %v680, 0.0
  %vm1262 = vcmp.lt.f32.partialorder %v685, 0.0
  %vm1263 = vcmp.lt.f32.partialorder %v690, 0.0
  %vm1264 = vcmp.lt.f32.partialorder %v695, 0.0
  %vm1265 = vcmp.lt.f32.partialorder %v700, 0.0
  %vm1266 = vcmp.lt.f32.partialorder %v705, 0.0
  %vm1267 = vcmp.lt.f32.partialorder %v710, 0.0
  %vm1268 = vcmp.lt.f32.partialorder %v715, 0.0
  %vm1269 = vcmp.lt.f32.partialorder %v720, 0.0
  %vm1270 = vcmp.lt.f32.partialorder %v725, 0.0
  %vm1271 = vcmp.lt.f32.partialorder %v730, 0.0
  %vm1272 = vcmp.lt.f32.partialorder %v735, 0.0
  %vm1273 = vcmp.lt.f32.partialorder %v740, 0.0
  %vm1274 = vcmp.lt.f32.partialorder %v745, 0.0
  %vm1275 = vcmp.lt.f32.partialorder %v750, 0.0
  %vm1276 = vcmp.lt.f32.partialorder %v755, 0.0
  %vm1277 = vcmp.lt.f32.partialorder %v760, 0.0
  %vm1278 = vcmp.lt.f32.partialorder %v765, 0.0
  %vm1279 = vcmp.lt.f32.partialorder %v770, 0.0
  %vm1280 = vcmp.lt.f32.partialorder %v775, 0.0
  %vm1281 = vcmp.lt.f32.partialorder %v780, 0.0
  %vm1282 = vcmp.lt.f32.partialorder %v785, 0.0
  %vm1283 = vcmp.lt.f32.partialorder %v790, 0.0
  %vm1284 = vcmp.lt.f32.partialorder %v795, 0.0
  %vm1285 = vcmp.lt.f32.partialorder %v800, 0.0
  %vm1286 = vcmp.lt.f32.partialorder %v805, 0.0
  %vm1287 = vcmp.lt.f32.partialorder %v810, 0.0
  %vm1288 = vcmp.lt.f32.partialorder %v815, 0.0
  %vm1289 = vcmp.lt.f32.partialorder %v820, 0.0
  %vm1290 = vcmp.lt.f32.partialorder %v825, 0.0
  %vm1291 = vcmp.lt.f32.partialorder %v830, 0.0
  %vm1292 = vcmp.lt.f32.partialorder %v835, 0.0
  %vm1293 = vcmp.lt.f32.partialorder %v840, 0.0
  %vm1294 = vcmp.lt.f32.partialorder %v845, 0.0
  %vm1295 = vcmp.lt.f32.partialorder %v850, 0.0
  %vm1296 = vcmp.lt.f32.partialorder %v855, 0.0
  %vm1297 = vcmp.lt.f32.partialorder %v860, 0.0
  %vm1298 = vcmp.lt.f32.partialorder %v865, 0.0
  %vm1299 = vcmp.lt.f32.partialorder %v870, 0.0
  %vm1300 = vcmp.lt.f32.partialorder %v875, 0.0
  %vm1301 = vcmp.lt.f32.partialorder %v880, 0.0
  %vm1302 = vcmp.lt.f32.partialorder %v885, 0.0
  %vm1303 = vcmp.lt.f32.partialorder %v890, 0.0
  %vm1304 = vcmp.lt.f32.partialorder %v895, 0.0
  %vm1305 = vcmp.lt.f32.partialorder %v900, 0.0
  %vm1306 = vcmp.lt.f32.partialorder %v905, 0.0
  %vm1307 = vcmp.lt.f32.partialorder %v910, 0.0
  %vm1308 = vcmp.lt.f32.partialorder %v915, 0.0
  %vm1309 = vcmp.lt.f32.partialorder %v920, 0.0
  %vm1310 = vcmp.lt.f32.partialorder %v925, 0.0
  %vm1311 = vcmp.lt.f32.partialorder %v930, 0.0
  %vm1312 = vcmp.lt.f32.partialorder %v935, 0.0
  %vm1313 = vcmp.lt.f32.partialorder %v940, 0.0
  %vm1314 = vcmp.lt.f32.partialorder %v945, 0.0
  %vm1315 = vcmp.lt.f32.partialorder %v950, 0.0
  %vm1316 = vcmp.lt.f32.partialorder %v955, 0.0
  %vm1317 = vcmp.lt.f32.partialorder %v960, 0.0
  %vm1318 = vcmp.lt.f32.partialorder %v965, 0.0
  %vm1319 = vcmp.lt.f32.partialorder %v970, 0.0
  %vm1320 = vcmp.lt.f32.partialorder %v975, 0.0
  %vm1321 = vcmp.lt.f32.partialorder %v980, 0.0
  %vm1322 = vcmp.lt.f32.partialorder %v985, 0.0
  %vm1323 = vcmp.lt.f32.partialorder %v990, 0.0
  %vm1324 = vcmp.lt.f32.partialorder %v995, 0.0
  %vm1325 = vcmp.lt.f32.partialorder %v1000, 0.0
  %vm1326 = vcmp.lt.f32.partialorder %v1005, 0.0
  %vm1327 = vcmp.lt.f32.partialorder %v1010, 0.0
  %vm1328 = vcmp.lt.f32.partialorder %v1015, 0.0
  %vm1329 = vcmp.lt.f32.partialorder %v1020, 0.0
  %vm1330 = vcmp.lt.f32.partialorder %v1025, 0.0
  %vm1331 = vcmp.lt.f32.partialorder %v1030, 0.0
  %vm1332 = vcmp.lt.f32.partialorder %v1035, 0.0
  %vm1333 = vcmp.lt.f32.partialorder %v1040, 0.0
  %vm1334 = vcmp.lt.f32.partialorder %v1045, 0.0
  %vm1335 = vcmp.lt.f32.partialorder %v1050, 0.0
  %vm1336 = vcmp.lt.f32.partialorder %v1055, 0.0
  %vm1337 = vcmp.lt.f32.partialorder %v1060, 0.0
  %vm1338 = vcmp.lt.f32.partialorder %v1065, 0.0
  %vm1339 = vcmp.lt.f32.partialorder %v1070, 0.0
  %vm1340 = vcmp.lt.f32.partialorder %v1075, 0.0
  %vm1341 = vcmp.lt.f32.partialorder %v1080, 0.0
  %vm1342 = vcmp.lt.f32.partialorder %v1085, 0.0
  %vm1343 = vcmp.lt.f32.partialorder %v1090, 0.0
  %vm1344 = vcmp.lt.f32.partialorder %v1095, 0.0
  %vm1345 = vcmp.lt.f32.partialorder %v1100, 0.0
  %vm1346 = vcmp.lt.f32.partialorder %v1105, 0.0
  %vm1347 = vcmp.lt.f32.partialorder %v1110, 0.0
  %vm1348 = vcmp.lt.f32.partialorder %v1115, 0.0
  %vm1349 = vcmp.lt.f32.partialorder %v1120, 0.0
  %vm1350 = vcmp.lt.f32.partialorder %v1125, 0.0
  %vm1351 = vcmp.lt.f32.partialorder %v1130, 0.0
  %vm1352 = vcmp.lt.f32.partialorder %v1135, 0.0
  %vm1353 = vcmp.lt.f32.partialorder %v1140, 0.0
  %vm1354 = vcmp.lt.f32.partialorder %v1145, 0.0
  %vm1355 = vcmp.lt.f32.partialorder %v1150, 0.0
  %vm1356 = vcmp.lt.f32.partialorder %v1155, 0.0
  %vm1357 = vcmp.lt.f32.partialorder %v1160, 0.0
  %vm1358 = vcmp.lt.f32.partialorder %v1165, 0.0
  %vm1359 = vcmp.lt.f32.partialorder %v1170, 0.0
  %vm1360 = vcmp.lt.f32.partialorder %v1175, 0.0
  %vm1361 = vcmp.lt.f32.partialorder %v1180, 0.0
  %vm1362 = vcmp.lt.f32.partialorder %v1185, 0.0
  %vm1363 = vcmp.lt.f32.partialorder %v1190, 0.0
  %vm1364 = vcmp.lt.f32.partialorder %v1195, 0.0
  %vm1365 = vcmp.lt.f32.partialorder %v1200, 0.0
  %vm1366 = vcmp.lt.f32.partialorder %v1205, 0.0
  %vm1367 = vcmp.lt.f32.partialorder %v1210, 0.0
  %vm1368 = vcmp.lt.f32.partialorder %v1215, 0.0
  %vm1369 = vcmp.lt.f32.partialorder %v1220, 0.0
  %vm1370 = vcmp.lt.f32.partialorder %v1225, 0.0
  %vm1371 = vcmp.lt.f32.partialorder %v1230, 0.0
  %vm1372 = vcmp.lt.f32.partialorder %v1235, 0.0
  %vm1373 = vcmp.lt.f32.partialorder %v1240, 0.0
  %vm1374 = vmand %vm1245, %vm1246
  %vm1375 = vmand %vm1245, %vm1247
  %vm1376 = vmand %vm1245, %vm1248
  %vm1377 = vmand %vm1245, %vm1249
  %vm1378 = vmand %vm1245, %vm1250
  %vm1379 = vmand %vm1245, %vm1251
  %vm1380 = vmand %vm1245, %vm1252
  %vm1381 = vmand %vm1245, %vm1253
  %vm1382 = vmand %vm1245, %vm1254
  %vm1383 = vmand %vm1245, %vm1255
  %vm1384 = vmand %vm1245, %vm1256
  %vm1385 = vmand %vm1245, %vm1257
  %vm1386 = vmand %vm1245, %vm1258
  %vm1387 = vmand %vm1245, %vm1259
  %vm1388 = vmand %vm1245, %vm1260
  %vm1389 = vmand %vm1245, %vm1261
  %vm1390 = vmand %vm1245, %vm1262
  %vm1391 = vmand %vm1245, %vm1263
  %vm1392 = vmand %vm1245, %vm1264
  %vm1393 = vmand %vm1245, %vm1265
  %vm1394 = vmand %vm1245, %vm1266
  %vm1395 = vmand %vm1245, %vm1267
  %vm1396 = vmand %vm1245, %vm1268
  %vm1397 = vmand %vm1245, %vm1269
  %vm1398 = vmand %vm1245, %vm1270
  %vm1399 = vmand %vm1245, %vm1271
  %vm1400 = vmand %vm1245, %vm1272
  %vm1401 = vmand %vm1245, %vm1273
  %vm1402 = vmand %vm1245, %vm1274
  %vm1403 = vmand %vm1245, %vm1275
  %vm1404 = vmand %vm1245, %vm1276
  %vm1405 = vmand %vm1245, %vm1277
  %vm1406 = vmand %vm1245, %vm1278
  %vm1407 = vmand %vm1245, %vm1279
  %vm1408 = vmand %vm1245, %vm1280
  %vm1409 = vmand %vm1245, %vm1281
  %vm1410 = vmand %vm1245, %vm1282
  %vm1411 = vmand %vm1245, %vm1283
  %vm1412 = vmand %vm1245, %vm1284
  %vm1413 = vmand %vm1245, %vm1285
  %vm1414 = vmand %vm1245, %vm1286
  %vm1415 = vmand %vm1245, %vm1287
  %vm1416 = vmand %vm1245, %vm1288
  %vm1417 = vmand %vm1245, %vm1289
  %vm1418 = vmand %vm1245, %vm1290
  %vm1419 = vmand %vm1245, %vm1291
  %vm1420 = vmand %vm1245, %vm1292
  %vm1421 = vmand %vm1245, %vm1293
  %vm1422 = vmand %vm1245, %vm1294
  %vm1423 = vmand %vm1245, %vm1295
  %vm1424 = vmand %vm1245, %vm1296
  %vm1425 = vmand %vm1245, %vm1297
  %vm1426 = vmand %vm1245, %vm1298
  %vm1427 = vmand %vm1245, %vm1299
  %vm1428 = vmand %vm1245, %vm1300
  %vm1429 = vmand %vm1245, %vm1301
  %vm1430 = vmand %vm1245, %vm1302
  %vm1431 = vmand %vm1245, %vm1303
  %vm1432 = vmand %vm1245, %vm1304
  %vm1433 = vmand %vm1245, %vm1305
  %vm1434 = vmand %vm1245, %vm1306
  %vm1435 = vmand %vm1245, %vm1307
  %vm1436 = vmand %vm1245, %vm1308
  %vm1437 = vmand %vm1245, %vm1309
  %vm1438 = vmand %vm1245, %vm1310
  %vm1439 = vmand %vm1245, %vm1311
  %vm1440 = vmand %vm1245, %vm1312
  %vm1441 = vmand %vm1245, %vm1313
  %vm1442 = vmand %vm1245, %vm1314
  %vm1443 = vmand %vm1245, %vm1315
  %vm1444 = vmand %vm1245, %vm1316
  %vm1445 = vmand %vm1245, %vm1317
  %vm1446 = vmand %vm1245, %vm1318
  %vm1447 = vmand %vm1245, %vm1319
  %vm1448 = vmand %vm1245, %vm1320
  %vm1449 = vmand %vm1245, %vm1321
  %vm1450 = vmand %vm1245, %vm1322
  %vm1451 = vmand %vm1245, %vm1323
  %vm1452 = vmand %vm1245, %vm1324
  %vm1453 = vmand %vm1245, %vm1325
  %vm1454 = vmand %vm1245, %vm1326
  %vm1455 = vmand %vm1245, %vm1327
  %vm1456 = vmand %vm1245, %vm1328
  %vm1457 = vmand %vm1245, %vm1329
  %vm1458 = vmand %vm1245, %vm1330
  %vm1459 = vmand %vm1245, %vm1331
  %vm1460 = vmand %vm1245, %vm1332
  %vm1461 = vmand %vm1245, %vm1333
  %vm1462 = vmand %vm1245, %vm1334
  %vm1463 = vmand %vm1245, %vm1335
  %vm1464 = vmand %vm1245, %vm1336
  %vm1465 = vmand %vm1245, %vm1337
  %vm1466 = vmand %vm1245, %vm1338
  %vm1467 = vmand %vm1245, %vm1339
  %vm1468 = vmand %vm1245, %vm1340
  %vm1469 = vmand %vm1245, %vm1341
  %vm1470 = vmand %vm1245, %vm1342
  %vm1471 = vmand %vm1245, %vm1343
  %vm1472 = vmand %vm1245, %vm1344
  %vm1473 = vmand %vm1245, %vm1345
  %vm1474 = vmand %vm1245, %vm1346
  %vm1475 = vmand %vm1245, %vm1347
  %vm1476 = vmand %vm1245, %vm1348
  %vm1477 = vmand %vm1245, %vm1349
  %vm1478 = vmand %vm1245, %vm1350
  %vm1479 = vmand %vm1245, %vm1351
  %vm1480 = vmand %vm1245, %vm1352
  %vm1481 = vmand %vm1245, %vm1353
  %vm1482 = vmand %vm1245, %vm1354
  %vm1483 = vmand %vm1245, %vm1355
  %vm1484 = vmand %vm1245, %vm1356
  %vm1485 = vmand %vm1245, %vm1357
  %vm1486 = vmand %vm1245, %vm1358
  %vm1487 = vmand %vm1245, %vm1359
  %vm1488 = vmand %vm1245, %vm1360
  %vm1489 = vmand %vm1245, %vm1361
  %vm1490 = vmand %vm1245, %vm1362
  %vm1491 = vmand %vm1245, %vm1363
  %vm1492 = vmand %vm1245, %vm1364
  %vm1493 = vmand %vm1245, %vm1365
  %vm1494 = vmand %vm1245, %vm1366
  %vm1495 = vmand %vm1245, %vm1367
  %vm1496 = vmand %vm1245, %vm1368
  %vm1497 = vmand %vm1245, %vm1369
  %vm1498 = vmand %vm1245, %vm1370
  %vm1499 = vmand %vm1245, %vm1371
  %vm1500 = vmand %vm1245, %vm1372
  %vm1501 = vmand %vm1245, %vm1373
  %v1502 = vmul.f32 %v605, 0.01
  %v1503 = vmul.f32 %v610, 0.01
  %v1504 = vmul.f32 %v615, 0.01
  %v1505 = vmul.f32 %v620, 0.01
  %v1506 = vmul.f32 %v625, 0.01
  %v1507 = vmul.f32 %v630, 0.01
  %v1508 = vmul.f32 %v635, 0.01
  %v1509 = vmul.f32 %v640, 0.01
  %v1510 = vmul.f32 %v645, 0.01
  %v1511 = vmul.f32 %v650, 0.01
  %v1512 = vmul.f32 %v655, 0.01
  %v1513 = vmul.f32 %v660, 0.01
  %v1514 = vmul.f32 %v665, 0.01
  %v1515 = vmul.f32 %v670, 0.01
  %v1516 = vmul.f32 %v675, 0.01
  %v1517 = vmul.f32 %v680, 0.01
  %v1518 = vmul.f32 %v685, 0.01
  %v1519 = vmul.f32 %v690, 0.01
  %v1520 = vmul.f32 %v695, 0.01
  %v1521 = vmul.f32 %v700, 0.01
  %v1522 = vmul.f32 %v705, 0.01
  %v1523 = vmul.f32 %v710, 0.01
  %v1524 = vmul.f32 %v715, 0.01
  %v1525 = vmul.f32 %v720, 0.01
  %v1526 = vmul.f32 %v725, 0.01
  %v1527 = vmul.f32 %v730, 0.01
  %v1528 = vmul.f32 %v735, 0.01
  %v1529 = vmul.f32 %v740, 0.01
  %v1530 = vmul.f32 %v745, 0.01
  %v1531 = vmul.f32 %v750, 0.01
  %v1532 = vmul.f32 %v755, 0.01
  %v1533 = vmul.f32 %v760, 0.01
  %v1534 = vmul.f32 %v765, 0.01
  %v1535 = vmul.f32 %v770, 0.01
  %v1536 = vmul.f32 %v775, 0.01
  %v1537 = vmul.f32 %v780, 0.01
  %v1538 = vmul.f32 %v785, 0.01
  %v1539 = vmul.f32 %v790, 0.01
  %v1540 = vmul.f32 %v795, 0.01
  %v1541 = vmul.f32 %v800, 0.01
  %v1542 = vmul.f32 %v805, 0.01
  %v1543 = vmul.f32 %v810, 0.01
  %v1544 = vmul.f32 %v815, 0.01
  %v1545 = vmul.f32 %v820, 0.01
  %v1546 = vmul.f32 %v825, 0.01
  %v1547 = vmul.f32 %v830, 0.01
  %v1548 = vmul.f32 %v835, 0.01
  %v1549 = vmul.f32 %v840, 0.01
  %v1550 = vmul.f32 %v845, 0.01
  %v1551 = vmul.f32 %v850, 0.01
  %v1552 = vmul.f32 %v855, 0.01
  %v1553 = vmul.f32 %v860, 0.01
  %v1554 = vmul.f32 %v865, 0.01
  %v1555 = vmul.f32 %v870, 0.01
  %v1556 = vmul.f32 %v875, 0.01
  %v1557 = vmul.f32 %v880, 0.01
  %v1558 = vmul.f32 %v885, 0.01
  %v1559 = vmul.f32 %v890, 0.01
  %v1560 = vmul.f32 %v895, 0.01
  %v1561 = vmul.f32 %v900, 0.01
  %v1562 = vmul.f32 %v905, 0.01
  %v1563 = vmul.f32 %v910, 0.01
  %v1564 = vmul.f32 %v915, 0.01
  %v1565 = vmul.f32 %v920, 0.01
  %v1566 = vmul.f32 %v925, 0.01
  %v1567 = vmul.f32 %v930, 0.01
  %v1568 = vmul.f32 %v935, 0.01
  %v1569 = vmul.f32 %v940, 0.01
  %v1570 = vmul.f32 %v945, 0.01
  %v1571 = vmul.f32 %v950, 0.01
  %v1572 = vmul.f32 %v955, 0.01
  %v1573 = vmul.f32 %v960, 0.01
  %v1574 = vmul.f32 %v965, 0.01
  %v1575 = vmul.f32 %v970, 0.01
  %v1576 = vmul.f32 %v975, 0.01
  %v1577 = vmul.f32 %v980, 0.01
  %v1578 = vmul.f32 %v985, 0.01
  %v1579 = vmul.f32 %v990, 0.01
  %v1580 = vmul.f32 %v995, 0.01
  %v1581 = vmul.f32 %v1000, 0.01
  %v1582 = vmul.f32 %v1005, 0.01
  %v1583 = vmul.f32 %v1010, 0.01
  %v1584 = vmul.f32 %v1015, 0.01
  %v1585 = vmul.f32 %v1020, 0.01
  %v1586 = vmul.f32 %v1025, 0.01
  %v1587 = vmul.f32 %v1030, 0.01
  %v1588 = vmul.f32 %v1035, 0.01
  %v1589 = vmul.f32 %v1040, 0.01
  %v1590 = vmul.f32 %v1045, 0.01
  %v1591 = vmul.f32 %v1050, 0.01
  %v1592 = vmul.f32 %v1055, 0.01
  %v1593 = vmul.f32 %v1060, 0.01
  %v1594 = vmul.f32 %v1065, 0.01
  %v1595 = vmul.f32 %v1070, 0.01
  %v1596 = vmul.f32 %v1075, 0.01
  %v1597 = vmul.f32 %v1080, 0.01
  %v1598 = vmul.f32 %v1085, 0.01
  %v1599 = vmul.f32 %v1090, 0.01
  %v1600 = vmul.f32 %v1095, 0.01
  %v1601 = vmul.f32 %v1100, 0.01
  %v1602 = vmul.f32 %v1105, 0.01
  %v1603 = vmul.f32 %v1110, 0.01
  %v1604 = vmul.f32 %v1115, 0.01
  %v1605 = vmul.f32 %v1120, 0.01
  %v1606 = vmul.f32 %v1125, 0.01
  %v1607 = vmul.f32 %v1130, 0.01
  %v1608 = vmul.f32 %v1135, 0.01
  %v1609 = vmul.f32 %v1140, 0.01
  %v1610 = vmul.f32 %v1145, 0.01
  %v1611 = vmul.f32 %v1150, 0.01
  %v1612 = vmul.f32 %v1155, 0.01
  %v1613 = vmul.f32 %v1160, 0.01
  %v1614 = vmul.f32 %v1165, 0.01
  %v1615 = vmul.f32 %v1170, 0.01
  %v1616 = vmul.f32 %v1175, 0.01
  %v1617 = vmul.f32 %v1180, 0.01
  %v1618 = vmul.f32 %v1185, 0.01
  %v1619 = vmul.f32 %v1190, 0.01
  %v1620 = vmul.f32 %v1195, 0.01
  %v1621 = vmul.f32 %v1200, 0.01
  %v1622 = vmul.f32 %v1205, 0.01
  %v1623 = vmul.f32 %v1210, 0.01
  %v1624 = vmul.f32 %v1215, 0.01
  %v1625 = vmul.f32 %v1220, 0.01
  %v1626 = vmul.f32 %v1225, 0.01
  %v1627 = vmul.f32 %v1230, 0.01
  %v1628 = vmul.f32 %v1235, 0.01
  %v1629 = vmul.f32 %v1240, 0.01
  %v1630 = vsel %vm1374, %v1502, %v605
  %v1631 = vsel %vm1375, %v1503, %v610
  %v1632 = vsel %vm1376, %v1504, %v615
  %v1633 = vsel %vm1377, %v1505, %v620
  %v1634 = vsel %vm1378, %v1506, %v625
  %v1635 = vsel %vm1379, %v1507, %v630
  %v1636 = vsel %vm1380, %v1508, %v635
  %v1637 = vsel %vm1381, %v1509, %v640
  %v1638 = vsel %vm1382, %v1510, %v645
  %v1639 = vsel %vm1383, %v1511, %v650
  %v1640 = vsel %vm1384, %v1512, %v655
  %v1641 = vsel %vm1385, %v1513, %v660
  %v1642 = vsel %vm1386, %v1514, %v665
  %v1643 = vsel %vm1387, %v1515, %v670
  %v1644 = vsel %vm1388, %v1516, %v675
  %v1645 = vsel %vm1389, %v1517, %v680
  %v1646 = vsel %vm1390, %v1518, %v685
  %v1647 = vsel %vm1391, %v1519, %v690
  %v1648 = vsel %vm1392, %v1520, %v695
  %v1649 = vsel %vm1393, %v1521, %v700
  %v1650 = vsel %vm1394, %v1522, %v705
  %v1651 = vsel %vm1395, %v1523, %v710
  %v1652 = vsel %vm1396, %v1524, %v715
  %v1653 = vsel %vm1397, %v1525, %v720
  %v1654 = vsel %vm1398, %v1526, %v725
  %v1655 = vsel %vm1399, %v1527, %v730
  %v1656 = vsel %vm1400, %v1528, %v735
  %v1657 = vsel %vm1401, %v1529, %v740
  %v1658 = vsel %vm1402, %v1530, %v745
  %v1659 = vsel %vm1403, %v1531, %v750
  %v1660 = vsel %vm1404, %v1532, %v755
  %v1661 = vsel %vm1405, %v1533, %v760
  %v1662 = vsel %vm1406, %v1534, %v765
  %v1663 = vsel %vm1407, %v1535, %v770
  %v1664 = vsel %vm1408, %v1536, %v775
  %v1665 = vsel %vm1409, %v1537, %v780
  %v1666 = vsel %vm1410, %v1538, %v785
  %v1667 = vsel %vm1411, %v1539, %v790
  %v1668 = vsel %vm1412, %v1540, %v795
  %v1669 = vsel %vm1413, %v1541, %v800
  %v1670 = vsel %vm1414, %v1542, %v805
  %v1671 = vsel %vm1415, %v1543, %v810
  %v1672 = vsel %vm1416, %v1544, %v815
  %v1673 = vsel %vm1417, %v1545, %v820
  %v1674 = vsel %vm1418, %v1546, %v825
  %v1675 = vsel %vm1419, %v1547, %v830
  %v1676 = vsel %vm1420, %v1548, %v835
  %v1677 = vsel %vm1421, %v1549, %v840
  %v1678 = vsel %vm1422, %v1550, %v845
  %v1679 = vsel %vm1423, %v1551, %v850
  %v1680 = vsel %vm1424, %v1552, %v855
  %v1681 = vsel %vm1425, %v1553, %v860
  %v1682 = vsel %vm1426, %v1554, %v865
  %v1683 = vsel %vm1427, %v1555, %v870
  %v1684 = vsel %vm1428, %v1556, %v875
  %v1685 = vsel %vm1429, %v1557, %v880
  %v1686 = vsel %vm1430, %v1558, %v885
  %v1687 = vsel %vm1431, %v1559, %v890
  %v1688 = vsel %vm1432, %v1560, %v895
  %v1689 = vsel %vm1433, %v1561, %v900
  %v1690 = vsel %vm1434, %v1562, %v905
  %v1691 = vsel %vm1435, %v1563, %v910
  %v1692 = vsel %vm1436, %v1564, %v915
  %v1693 = vsel %vm1437, %v1565, %v920
  %v1694 = vsel %vm1438, %v1566, %v925
  %v1695 = vsel %vm1439, %v1567, %v930
  %v1696 = vsel %vm1440, %v1568, %v935
  %v1697 = vsel %vm1441, %v1569, %v940
  %v1698 = vsel %vm1442, %v1570, %v945
  %v1699 = vsel %vm1443, %v1571, %v950
  %v1700 = vsel %vm1444, %v1572, %v955
  %v1701 = vsel %vm1445, %v1573, %v960
  %v1702 = vsel %vm1446, %v1574, %v965
  %v1703 = vsel %vm1447, %v1575, %v970
  %v1704 = vsel %vm1448, %v1576, %v975
  %v1705 = vsel %vm1449, %v1577, %v980
  %v1706 = vsel %vm1450, %v1578, %v985
  %v1707 = vsel %vm1451, %v1579, %v990
  %v1708 = vsel %vm1452, %v1580, %v995
  %v1709 = vsel %vm1453, %v1581, %v1000
  %v1710 = vsel %vm1454, %v1582, %v1005
  %v1711 = vsel %vm1455, %v1583, %v1010
  %v1712 = vsel %vm1456, %v1584, %v1015
  %v1713 = vsel %vm1457, %v1585, %v1020
  %v1714 = vsel %vm1458, %v1586, %v1025
  %v1715 = vsel %vm1459, %v1587, %v1030
  %v1716 = vsel %vm1460, %v1588, %v1035
  %v1717 = vsel %vm1461, %v1589, %v1040
  %v1718 = vsel %vm1462, %v1590, %v1045
  %v1719 = vsel %vm1463, %v1591, %v1050
  %v1720 = vsel %vm1464, %v1592, %v1055
  %v1721 = vsel %vm1465, %v1593, %v1060
  %v1722 = vsel %vm1466, %v1594, %v1065
  %v1723 = vsel %vm1467, %v1595, %v1070
  %v1724 = vsel %vm1468, %v1596, %v1075
  %v1725 = vsel %vm1469, %v1597, %v1080
  %v1726 = vsel %vm1470, %v1598, %v1085
  %v1727 = vsel %vm1471, %v1599, %v1090
  %v1728 = vsel %vm1472, %v1600, %v1095
  %v1729 = vsel %vm1473, %v1601, %v1100
  %v1730 = vsel %vm1474, %v1602, %v1105
  %v1731 = vsel %vm1475, %v1603, %v1110
  %v1732 = vsel %vm1476, %v1604, %v1115
  %v1733 = vsel %vm1477, %v1605, %v1120
  %v1734 = vsel %vm1478, %v1606, %v1125
  %v1735 = vsel %vm1479, %v1607, %v1130
  %v1736 = vsel %vm1480, %v1608, %v1135
  %v1737 = vsel %vm1481, %v1609, %v1140
  %v1738 = vsel %vm1482, %v1610, %v1145
  %v1739 = vsel %vm1483, %v1611, %v1150
  %v1740 = vsel %vm1484, %v1612, %v1155
  %v1741 = vsel %vm1485, %v1613, %v1160
  %v1742 = vsel %vm1486, %v1614, %v1165
  %v1743 = vsel %vm1487, %v1615, %v1170
  %v1744 = vsel %vm1488, %v1616, %v1175
  %v1745 = vsel %vm1489, %v1617, %v1180
  %v1746 = vsel %vm1490, %v1618, %v1185
  %v1747 = vsel %vm1491, %v1619, %v1190
  %v1748 = vsel %vm1492, %v1620, %v1195
  %v1749 = vsel %vm1493, %v1621, %v1200
  %v1750 = vsel %vm1494, %v1622, %v1205
  %v1751 = vsel %vm1495, %v1623, %v1210
  %v1752 = vsel %vm1496, %v1624, %v1215
  %v1753 = vsel %vm1497, %v1625, %v1220
  %v1754 = vsel %vm1498, %v1626, %v1225
  %v1755 = vsel %vm1499, %v1627, %v1230
  %v1756 = vsel %vm1500, %v1628, %v1235
  %v1757 = vsel %vm1501, %v1629, %v1240
  %1758 = vst [vmem:[%s3] sm:$0xff] %v1630
  %1759 = vst [vmem:[%s3 + $0x8] sm:$0xff] %v1631
  %1760 = vst [vmem:[%s3 + $0x10] sm:$0xff] %v1632
  %1761 = vst [vmem:[%s3 + $0x18] sm:$0xff] %v1633
  %1762 = vst [vmem:[%s3 + $0x20] sm:$0xff] %v1634
  %1763 = vst [vmem:[%s3 + $0x28] sm:$0xff] %v1635
  %1764 = vst [vmem:[%s3 + $0x30] sm:$0xff] %v1636
  %1765 = vst [vmem:[%s3 + $0x38] sm:$0xff] %v1637
  %1766 = vst [vmem:[%s3 + $0x40] sm:$0xff] %v1638
  %1767 = vst [vmem:[%s3 + $0x48] sm:$0xff] %v1639
  %1768 = vst [vmem:[%s3 + $0x50] sm:$0xff] %v1640
  %1769 = vst [vmem:[%s3 + $0x58] sm:$0xff] %v1641
  %1770 = vst [vmem:[%s3 + $0x60] sm:$0xff] %v1642
  %1771 = vst [vmem:[%s3 + $0x68] sm:$0xff] %v1643
  %1772 = vst [vmem:[%s3 + $0x70] sm:$0xff] %v1644
  %1773 = vst [vmem:[%s3 + $0x78] sm:$0xff] %v1645
  %1774 = vst [vmem:[%s3 + $0x80] sm:$0xff] %v1646
  %1775 = vst [vmem:[%s3 + $0x88] sm:$0xff] %v1647
  %1776 = vst [vmem:[%s3 + $0x90] sm:$0xff] %v1648
  %1777 = vst [vmem:[%s3 + $0x98] sm:$0xff] %v1649
  %1778 = vst [vmem:[%s3 + $0xa0] sm:$0xff] %v1650
  %1779 = vst [vmem:[%s3 + $0xa8] sm:$0xff] %v1651
  %1780 = vst [vmem:[%s3 + $0xb0] sm:$0xff] %v1652
  %1781 = vst [vmem:[%s3 + $0xb8] sm:$0xff] %v1653
  %1782 = vst [vmem:[%s3 + $0xc0] sm:$0xff] %v1654
  %1783 = vst [vmem:[%s3 + $0xc8] sm:$0xff] %v1655
  %1784 = vst [vmem:[%s3 + $0xd0] sm:$0xff] %v1656
  %1785 = vst [vmem:[%s3 + $0xd8] sm:$0xff] %v1657
  %1786 = vst [vmem:[%s3 + $0xe0] sm:$0xff] %v1658
  %1787 = vst [vmem:[%s3 + $0xe8] sm:$0xff] %v1659
  %1788 = vst [vmem:[%s3 + $0xf0] sm:$0xff] %v1660
  %1789 = vst [vmem:[%s3 + $0xf8] sm:$0xff] %v1661
  %1790 = vst [vmem:[%s3 + $0x100] sm:$0xff] %v1662
  %1791 = vst [vmem:[%s3 + $0x108] sm:$0xff] %v1663
  %1792 = vst [vmem:[%s3 + $0x110] sm:$0xff] %v1664
  %1793 = vst [vmem:[%s3 + $0x118] sm:$0xff] %v1665
  %1794 = vst [vmem:[%s3 + $0x120] sm:$0xff] %v1666
  %1795 = vst [vmem:[%s3 + $0x128] sm:$0xff] %v1667
  %1796 = vst [vmem:[%s3 + $0x130] sm:$0xff] %v1668
  %1797 = vst [vmem:[%s3 + $0x138] sm:$0xff] %v1669
  %1798 = vst [vmem:[%s3 + $0x140] sm:$0xff] %v1670
  %1799 = vst [vmem:[%s3 + $0x148] sm:$0xff] %v1671
  %1800 = vst [vmem:[%s3 + $0x150] sm:$0xff] %v1672
  %1801 = vst [vmem:[%s3 + $0x158] sm:$0xff] %v1673
  %1802 = vst [vmem:[%s3 + $0x160] sm:$0xff] %v1674
  %1803 = vst [vmem:[%s3 + $0x168] sm:$0xff] %v1675
  %1804 = vst [vmem:[%s3 + $0x170] sm:$0xff] %v1676
  %1805 = vst [vmem:[%s3 + $0x178] sm:$0xff] %v1677
  %1806 = vst [vmem:[%s3 + $0x180] sm:$0xff] %v1678
  %1807 = vst [vmem:[%s3 + $0x188] sm:$0xff] %v1679
  %1808 = vst [vmem:[%s3 + $0x190] sm:$0xff] %v1680
  %1809 = vst [vmem:[%s3 + $0x198] sm:$0xff] %v1681
  %1810 = vst [vmem:[%s3 + $0x1a0] sm:$0xff] %v1682
  %1811 = vst [vmem:[%s3 + $0x1a8] sm:$0xff] %v1683
  %1812 = vst [vmem:[%s3 + $0x1b0] sm:$0xff] %v1684
  %1813 = vst [vmem:[%s3 + $0x1b8] sm:$0xff] %v1685
  %1814 = vst [vmem:[%s3 + $0x1c0] sm:$0xff] %v1686
  %1815 = vst [vmem:[%s3 + $0x1c8] sm:$0xff] %v1687
  %1816 = vst [vmem:[%s3 + $0x1d0] sm:$0xff] %v1688
  %1817 = vst [vmem:[%s3 + $0x1d8] sm:$0xff] %v1689
  %1818 = vst [vmem:[%s3 + $0x1e0] sm:$0xff] %v1690
  %1819 = vst [vmem:[%s3 + $0x1e8] sm:$0xff] %v1691
  %1820 = vst [vmem:[%s3 + $0x1f0] sm:$0xff] %v1692
  %1821 = vst [vmem:[%s3 + $0x1f8] sm:$0xff] %v1693
  %1822 = vst [vmem:[%s3 + $0x200] sm:$0xff] %v1694
  %1823 = vst [vmem:[%s3 + $0x208] sm:$0xff] %v1695
  %1824 = vst [vmem:[%s3 + $0x210] sm:$0xff] %v1696
  %1825 = vst [vmem:[%s3 + $0x218] sm:$0xff] %v1697
  %1826 = vst [vmem:[%s3 + $0x220] sm:$0xff] %v1698
  %1827 = vst [vmem:[%s3 + $0x228] sm:$0xff] %v1699
  %1828 = vst [vmem:[%s3 + $0x230] sm:$0xff] %v1700
  %1829 = vst [vmem:[%s3 + $0x238] sm:$0xff] %v1701
  %1830 = vst [vmem:[%s3 + $0x240] sm:$0xff] %v1702
  %1831 = vst [vmem:[%s3 + $0x248] sm:$0xff] %v1703
  %1832 = vst [vmem:[%s3 + $0x250] sm:$0xff] %v1704
  %1833 = vst [vmem:[%s3 + $0x258] sm:$0xff] %v1705
  %1834 = vst [vmem:[%s3 + $0x260] sm:$0xff] %v1706
  %1835 = vst [vmem:[%s3 + $0x268] sm:$0xff] %v1707
  %1836 = vst [vmem:[%s3 + $0x270] sm:$0xff] %v1708
  %1837 = vst [vmem:[%s3 + $0x278] sm:$0xff] %v1709
  %1838 = vst [vmem:[%s3 + $0x280] sm:$0xff] %v1710
  %1839 = vst [vmem:[%s3 + $0x288] sm:$0xff] %v1711
  %1840 = vst [vmem:[%s3 + $0x290] sm:$0xff] %v1712
  %1841 = vst [vmem:[%s3 + $0x298] sm:$0xff] %v1713
  %1842 = vst [vmem:[%s3 + $0x2a0] sm:$0xff] %v1714
  %1843 = vst [vmem:[%s3 + $0x2a8] sm:$0xff] %v1715
  %1844 = vst [vmem:[%s3 + $0x2b0] sm:$0xff] %v1716
  %1845 = vst [vmem:[%s3 + $0x2b8] sm:$0xff] %v1717
  %1846 = vst [vmem:[%s3 + $0x2c0] sm:$0xff] %v1718
  %1847 = vst [vmem:[%s3 + $0x2c8] sm:$0xff] %v1719
  %1848 = vst [vmem:[%s3 + $0x2d0] sm:$0xff] %v1720
  %1849 = vst [vmem:[%s3 + $0x2d8] sm:$0xff] %v1721
  %1850 = vst [vmem:[%s3 + $0x2e0] sm:$0xff] %v1722
  %1851 = vst [vmem:[%s3 + $0x2e8] sm:$0xff] %v1723
  %1852 = vst [vmem:[%s3 + $0x2f0] sm:$0xff] %v1724
  %1853 = vst [vmem:[%s3 + $0x2f8] sm:$0xff] %v1725
  %1854 = vst [vmem:[%s3 + $0x300] sm:$0xff] %v1726
  %1855 = vst [vmem:[%s3 + $0x308] sm:$0xff] %v1727
  %1856 = vst [vmem:[%s3 + $0x310] sm:$0xff] %v1728
  %1857 = vst [vmem:[%s3 + $0x318] sm:$0xff] %v1729
  %1858 = vst [vmem:[%s3 + $0x320] sm:$0xff] %v1730
  %1859 = vst [vmem:[%s3 + $0x328] sm:$0xff] %v1731
  %1860 = vst [vmem:[%s3 + $0x330] sm:$0xff] %v1732
  %1861 = vst [vmem:[%s3 + $0x338] sm:$0xff] %v1733
  %1862 = vst [vmem:[%s3 + $0x340] sm:$0xff] %v1734
  %1863 = vst [vmem:[%s3 + $0x348] sm:$0xff] %v1735
  %1864 = vst [vmem:[%s3 + $0x350] sm:$0xff] %v1736
  %1865 = vst [vmem:[%s3 + $0x358] sm:$0xff] %v1737
  %1866 = vst [vmem:[%s3 + $0x360] sm:$0xff] %v1738
  %1867 = vst [vmem:[%s3 + $0x368] sm:$0xff] %v1739
  %1868 = vst [vmem:[%s3 + $0x370] sm:$0xff] %v1740
  %1869 = vst [vmem:[%s3 + $0x378] sm:$0xff] %v1741
  %1870 = vst [vmem:[%s3 + $0x380] sm:$0xff] %v1742
  %1871 = vst [vmem:[%s3 + $0x388] sm:$0xff] %v1743
  %1872 = vst [vmem:[%s3 + $0x390] sm:$0xff] %v1744
  %1873 = vst [vmem:[%s3 + $0x398] sm:$0xff] %v1745
  %1874 = vst [vmem:[%s3 + $0x3a0] sm:$0xff] %v1746
  %1875 = vst [vmem:[%s3 + $0x3a8] sm:$0xff] %v1747
  %1876 = vst [vmem:[%s3 + $0x3b0] sm:$0xff] %v1748
  %1877 = vst [vmem:[%s3 + $0x3b8] sm:$0xff] %v1749
  %1878 = vst [vmem:[%s3 + $0x3c0] sm:$0xff] %v1750
  %1879 = vst [vmem:[%s3 + $0x3c8] sm:$0xff] %v1751
  %1880 = vst [vmem:[%s3 + $0x3d0] sm:$0xff] %v1752
  %1881 = vst [vmem:[%s3 + $0x3d8] sm:$0xff] %v1753
  %1882 = vst [vmem:[%s3 + $0x3e0] sm:$0xff] %v1754
  %1883 = vst [vmem:[%s3 + $0x3e8] sm:$0xff] %v1755
  %1884 = vst [vmem:[%s3 + $0x3f0] sm:$0xff] %v1756
  %1885 = vst [vmem:[%s3 + $0x3f8] sm:$0xff] %v1757
  // Predicated region
  $region14: #{deconv_res_block_forward.2} parent=0 // pred_check
    _
  $region15: #{deconv_res_block_forward.2} parent=0 // pred_check_branch
    %1887 = sbr.rel (0) target = $region17
  $region16: #{deconv_res_block_forward.2} parent=0 // pred_region
    _
  $region17: #{deconv_res_block_forward.2} parent=0 // pred_fallthru
    _
  // Predicated region
  $region18: #{deconv_res_block_forward.2} parent=0 // pred_check
    _
  $region19: #{deconv_res_block_forward.2} parent=0 // pred_check_branch
    %1889 = sbr.rel (0) target = $region21
  $region20: #{deconv_res_block_forward.2} parent=0 // pred_region
    _
  $region21: #{deconv_res_block_forward.2} parent=0 // pred_fallthru
    _

// kernel: tile.28
$region0: #{tile.28}
  #allocation0 [shape = 's32[1]{0}', space=sflag, size = 0x4, scoped, tag = 'scoped memory for tile.28']
  %s0 = inlined_call_operand.vmem [shape: f32[8], index: 0, kind: input, shape index: {}]
  %s1 = inlined_call_operand.vmem [shape: f32[16,8], index: 1, kind: output, shape index: {}]
  // Predicated region
  $region2: #{tile.28} parent=0 // pred_check
    _
  $region3: #{tile.28} parent=0 // pred_check_branch
    %3 = sbr.rel (0) target = $region5
  $region4: #{tile.28} parent=0 // pred_region
    _
  $region5: #{tile.28} parent=0 // pred_fallthru
    _
  %v4 = vld [vmem:[%s0] ss:$0 sm:$0xff]
  %5 = vst [vmem:[%s1] sm:$0xff] %v4
  %s6 = scalar_lea.vmem %s1, 8
  %7 = vst [vmem:[%s6] sm:$0xff] %v4

// kernel: tile.29
$region0: #{tile.29}
  %s0 = inlined_call_operand.vmem [shape: f32[16,8], index: 0, kind: input, shape index: {}]
  %s1 = inlined_call_operand.vmem [shape: f32[1,128], index: 1, kind: output, shape index: {}]
  $region1: #{tile.29} parent=0
    #allocation0 [shape = 'u8[4096]{0}', space=vmem, size = 0x1000, scoped, tag = 'scoped mem for output reshape']
    %v2 = vld [vmem:[%s0] sm:$0x1]
    %vm3 = vcmask 64512
    %4 = vst.msk [vmem:[#allocation0] sm:$0x1] %vm3, %v2
    %s5 = scalar_lea.vmem %s0, 15
    %v6 = vld [vmem:[%s5] sm:$0x1]
    %7 = vrot.lane.b32.xlu0 %v6, 120
    %v8 = vpop.permute.xlu0 %7
    %vm9 = vcmask 1048512
    %10 = vst.msk [vmem:[#allocation0] sm:$0x1] %vm9, %v8
    %s11 = scalar_lea.vmem %s0, 14
    %v12 = vld [vmem:[%s11] sm:$0x1]
    %13 = vrot.lane.b32.xlu0 %v12, 112
    %v14 = vpop.permute.xlu0 %13
    %vm15 = vcmask 982912
    %16 = vst.msk [vmem:[#allocation0] sm:$0x1] %vm15, %v14
    %s17 = scalar_lea.vmem %s0, 13
    %v18 = vld [vmem:[%s17] sm:$0x1]
    %19 = vrot.lane.b32.xlu0 %v18, 104
    %v20 = vpop.permute.xlu0 %19
    %vm21 = vcmask 917312
    %22 = vst.msk [vmem:[#allocation0] sm:$0x1] %vm21, %v20
    %s23 = scalar_lea.vmem %s0, 12
    %v24 = vld [vmem:[%s23] sm:$0x1]
    %25 = vrot.lane.b32.xlu0 %v24, 96
    %v26 = vpop.permute.xlu0 %25
    %vm27 = vcmask 851712
    %28 = vst.msk [vmem:[#allocation0] sm:$0x1] %vm27, %v26
    %s29 = scalar_lea.vmem %s0, 11
    %v30 = vld [vmem:[%s29] sm:$0x1]
    %31 = vrot.lane.b32.xlu0 %v30, 88
    %v32 = vpop.permute.xlu0 %31
    %vm33 = vcmask 786112
    %34 = vst.msk [vmem:[#allocation0] sm:$0x1] %vm33, %v32
    %s35 = scalar_lea.vmem %s0, 10
    %v36 = vld [vmem:[%s35] sm:$0x1]
    %37 = vrot.lane.b32.xlu0 %v36, 80
    %v38 = vpop.permute.xlu0 %37
    %vm39 = vcmask 720512
    %40 = vst.msk [vmem:[#allocation0] sm:$0x1] %vm39, %v38
    %s41 = scalar_lea.vmem %s0, 9
    %v42 = vld [vmem:[%s41] sm:$0x1]
    %43 = vrot.lane.b32.xlu0 %v42, 72
    %v44 = vpop.permute.xlu0 %43
    %vm45 = vcmask 654912
    %46 = vst.msk [vmem:[#allocation0] sm:$0x1] %vm45, %v44
    %s47 = scalar_lea.vmem %s0, 8
    %v48 = vld [vmem:[%s47] sm:$0x1]
    %49 = vrot.lane.b32.xlu0 %v48, 64
    %v50 = vpop.permute.xlu0 %49
    %vm51 = vcmask 589312
    %52 = vst.msk [vmem:[#allocation0] sm:$0x1] %vm51, %v50
    %s53 = scalar_lea.vmem %s0, 7
    %v54 = vld [vmem:[%s53] sm:$0x1]
    %55 = vrot.lane.b32.xlu0 %v54, 56
    %v56 = vpop.permute.xlu0 %55
    %vm57 = vcmask 523712
    %58 = vst.msk [vmem:[#allocation0] sm:$0x1] %vm57, %v56
    %s59 = scalar_lea.vmem %s0, 6
    %v60 = vld [vmem:[%s59] sm:$0x1]
    %61 = vrot.lane.b32.xlu0 %v60, 48
    %v62 = vpop.permute.xlu0 %61
    %vm63 = vcmask 458112
    %64 = vst.msk [vmem:[#allocation0] sm:$0x1] %vm63, %v62
    %s65 = scalar_lea.vmem %s0, 5
    %v66 = vld [vmem:[%s65] sm:$0x1]
    %67 = vrot.lane.b32.xlu0 %v66, 40
    %v68 = vpop.permute.xlu0 %67
    %vm69 = vcmask 392512
    %70 = vst.msk [vmem:[#allocation0] sm:$0x1] %vm69, %v68
    %s71 = scalar_lea.vmem %s0, 4
    %v72 = vld [vmem:[%s71] sm:$0x1]
    %73 = vrot.lane.b32.xlu0 %v72, 32
    %v74 = vpop.permute.xlu0 %73
    %vm75 = vcmask 326912
    %76 = vst.msk [vmem:[#allocation0] sm:$0x1] %vm75, %v74
    %s77 = scalar_lea.vmem %s0, 3
    %v78 = vld [vmem:[%s77] sm:$0x1]
    %79 = vrot.lane.b32.xlu0 %v78, 24
    %v80 = vpop.permute.xlu0 %79
    %vm81 = vcmask 261312
    %82 = vst.msk [vmem:[#allocation0] sm:$0x1] %vm81, %v80
    %s83 = scalar_lea.vmem %s0, 2
    %v84 = vld [vmem:[%s83] sm:$0x1]
    %85 = vrot.lane.b32.xlu0 %v84, 16
    %v86 = vpop.permute.xlu0 %85
    %vm87 = vcmask 195712
    %88 = vst.msk [vmem:[#allocation0] sm:$0x1] %vm87, %v86
    %s89 = scalar_lea.vmem %s0, 1
    %v90 = vld [vmem:[%s89] sm:$0x1]
    %91 = vrot.lane.b32.xlu0 %v90, 8
    %v92 = vpop.permute.xlu0 %91
    %vm93 = vcmask 130112
    %94 = vst.msk [vmem:[#allocation0] sm:$0x1] %vm93, %v92
    %s96 = sshllo.u32 0, 1
    %v98 = vld [vmem:[#allocation0] sm:%s96]
    %s99 = sshllo.u32 0, 1
    %100 = vst [vmem:[%s1] sm:%s99] %v98

// kernel: deconv_res_block_forward.3
$region0: #{deconv_res_block_forward.3}
  #allocation0 [shape = 'u32[]', space=smem, size = 0x4, offset = 0x4, fixed_abs, tag = 'smem constant byte address 0x4 - core index']
  #allocation1 [shape = 'u32[144,128]{1,0:T(1,128)}', space=vmem, size = 0x12000, scoped, tag = 'internal scratch']
  %s0 = inlined_call_operand.vmem [shape: f32[2,18,18,128], index: 0, kind: input, shape index: {}]
  %s1 = inlined_call_operand.vmem [shape: f32[9,128,128], index: 1, kind: input, shape index: {}]
  %s2 = inlined_call_operand.vmem [shape: f32[1,128], index: 2, kind: input, shape index: {}]
  %s3 = inlined_call_operand.vmem [shape: f32[512,128], index: 3, kind: input, shape index: {}]
  %s4 = inlined_call_operand.vmem [shape: f32[128,8], index: 4, kind: input, shape index: {}]
  %s5 = inlined_call_operand.vmem [shape: f32[8,128], index: 5, kind: input, shape index: {}]
  %s6 = inlined_call_operand.vmem [shape: f32[4,8], index: 6, kind: input, shape index: {}]
  %s7 = inlined_call_operand.vmem [shape: f32[512,128], index: 7, kind: output, shape index: {}]
  %s8 = sld [smem:[#allocation0]]
  $region38: #{deconv_res_block_forward.3} parent=0
    _
  %s10 = ssub.s32 1, %s8
  %s11 = scalar_select 0, %s10, %s8
  // Predicated region
  $region2: #{deconv_res_block_forward.3} parent=0 // pred_check
    _
  $region3: #{deconv_res_block_forward.3} parent=0 // pred_check_branch
    %13 = sbr.rel (0) target = $region5
  $region4: #{deconv_res_block_forward.3} parent=0 // pred_region
    _
  $region5: #{deconv_res_block_forward.3} parent=0 // pred_fallthru
    _
  // Predicated region
  $region6: #{deconv_res_block_forward.3} parent=0 // pred_check
    _
  $region7: #{deconv_res_block_forward.3} parent=0 // pred_check_branch
    %15 = sbr.rel (0) target = $region9
  $region8: #{deconv_res_block_forward.3} parent=0 // pred_region
    _
  $region9: #{deconv_res_block_forward.3} parent=0 // pred_fallthru
    _
  // Predicated region
  $region10: #{deconv_res_block_forward.3} parent=0 // pred_check
    _
  $region11: #{deconv_res_block_forward.3} parent=0 // pred_check_branch
    %17 = sbr.rel (0) target = $region13
  $region12: #{deconv_res_block_forward.3} parent=0 // pred_region
    _
  $region13: #{deconv_res_block_forward.3} parent=0 // pred_fallthru
    _
  // Predicated region
  $region14: #{deconv_res_block_forward.3} parent=0 // pred_check
    _
  $region15: #{deconv_res_block_forward.3} parent=0 // pred_check_branch
    %19 = sbr.rel (0) target = $region17
  $region16: #{deconv_res_block_forward.3} parent=0 // pred_region
    _
  $region17: #{deconv_res_block_forward.3} parent=0 // pred_fallthru
    _
  // Predicated region
  $region18: #{deconv_res_block_forward.3} parent=0 // pred_check
    _
  $region19: #{deconv_res_block_forward.3} parent=0 // pred_check_branch
    %21 = sbr.rel (0) target = $region21
  $region20: #{deconv_res_block_forward.3} parent=0 // pred_region
    _
  $region21: #{deconv_res_block_forward.3} parent=0 // pred_fallthru
    _
  // Predicated region
  $region22: #{deconv_res_block_forward.3} parent=0 // pred_check
    _
  $region23: #{deconv_res_block_forward.3} parent=0 // pred_check_branch
    %23 = sbr.rel (0) target = $region25
  $region24: #{deconv_res_block_forward.3} parent=0 // pred_region
    _
  $region25: #{deconv_res_block_forward.3} parent=0 // pred_fallthru
    _
  // Predicated region
  $region26: #{deconv_res_block_forward.3} parent=0 // pred_check
    _
  $region27: #{deconv_res_block_forward.3} parent=0 // pred_check_branch
    %25 = sbr.rel (0) target = $region29
  $region28: #{deconv_res_block_forward.3} parent=0 // pred_region
    _
  $region29: #{deconv_res_block_forward.3} parent=0 // pred_fallthru
    _
  %v26 = vld [vmem:[%s0] sm:$0xff]
  %v27 = vld [vmem:[%s0 + $0x8] sm:$0xff]
  %v28 = vld [vmem:[%s0 + $0x18] sm:$0xff]
  %v29 = vld [vmem:[%s0 + $0x20] sm:$0xff]
  %v30 = vld [vmem:[%s0 + $0x30] sm:$0xff]
  %v31 = vld [vmem:[%s0 + $0x38] sm:$0xff]
  %v32 = vld [vmem:[%s0 + $0x48] sm:$0xff]
  %v33 = vld [vmem:[%s0 + $0x50] sm:$0xff]
  %v34 = vld [vmem:[%s0 + $0x60] sm:$0xff]
  %v35 = vld [vmem:[%s0 + $0x68] sm:$0xff]
  %v36 = vld [vmem:[%s0 + $0x78] sm:$0xff]
  %v37 = vld [vmem:[%s0 + $0x80] sm:$0xff]
  %v38 = vld [vmem:[%s0 + $0x90] sm:$0xff]
  %v39 = vld [vmem:[%s0 + $0x98] sm:$0xff]
  %v40 = vld [vmem:[%s0 + $0xa8] sm:$0xff]
  %v41 = vld [vmem:[%s0 + $0xb0] sm:$0xff]
  %v42 = vld [vmem:[%s0 + $0xc0] sm:$0xff]
  %v43 = vld [vmem:[%s0 + $0xc8] sm:$0xff]
  %v44 = vld [vmem:[%s0 + $0xd8] sm:$0xff]
  %v45 = vld [vmem:[%s0 + $0xe0] sm:$0xff]
  %v46 = vld [vmem:[%s0 + $0xf0] sm:$0xff]
  %v47 = vld [vmem:[%s0 + $0xf8] sm:$0xff]
  %v48 = vld [vmem:[%s0 + $0x108] sm:$0xff]
  %v49 = vld [vmem:[%s0 + $0x110] sm:$0xff]
  %v50 = vld [vmem:[%s0 + $0x120] sm:$0xff]
  %v51 = vld [vmem:[%s0 + $0x128] sm:$0xff]
  %v52 = vld [vmem:[%s0 + $0x138] sm:$0xff]
  %v53 = vld [vmem:[%s0 + $0x140] sm:$0xff]
  %v54 = vld [vmem:[%s0 + $0x150] sm:$0xff]
  %v55 = vld [vmem:[%s0 + $0x158] sm:$0xff]
  %v56 = vld [vmem:[%s0 + $0x168] sm:$0xff]
  %v57 = vld [vmem:[%s0 + $0x170] sm:$0xff]
  %v58 = vld [vmem:[%s0 + $0x1b0] sm:$0xff]
  %v59 = vld [vmem:[%s0 + $0x1b8] sm:$0xff]
  %v60 = vld [vmem:[%s0 + $0x1c8] sm:$0xff]
  %v61 = vld [vmem:[%s0 + $0x1d0] sm:$0xff]
  %v62 = vld [vmem:[%s0 + $0x1e0] sm:$0xff]
  %v63 = vld [vmem:[%s0 + $0x1e8] sm:$0xff]
  %v64 = vld [vmem:[%s0 + $0x1f8] sm:$0xff]
  %v65 = vld [vmem:[%s0 + $0x200] sm:$0xff]
  %v66 = vld [vmem:[%s0 + $0x210] sm:$0xff]
  %v67 = vld [vmem:[%s0 + $0x218] sm:$0xff]
  %v68 = vld [vmem:[%s0 + $0x228] sm:$0xff]
  %v69 = vld [vmem:[%s0 + $0x230] sm:$0xff]
  %v70 = vld [vmem:[%s0 + $0x240] sm:$0xff]
  %v71 = vld [vmem:[%s0 + $0x248] sm:$0xff]
  %v72 = vld [vmem:[%s0 + $0x258] sm:$0xff]
  %v73 = vld [vmem:[%s0 + $0x260] sm:$0xff]
  %v74 = vld [vmem:[%s0 + $0x270] sm:$0xff]
  %v75 = vld [vmem:[%s0 + $0x278] sm:$0xff]
  %v76 = vld [vmem:[%s0 + $0x288] sm:$0xff]
  %v77 = vld [vmem:[%s0 + $0x290] sm:$0xff]
  %v78 = vld [vmem:[%s0 + $0x2a0] sm:$0xff]
  %v79 = vld [vmem:[%s0 + $0x2a8] sm:$0xff]
  %v80 = vld [vmem:[%s0 + $0x2b8] sm:$0xff]
  %v81 = vld [vmem:[%s0 + $0x2c0] sm:$0xff]
  %v82 = vld [vmem:[%s0 + $0x2d0] sm:$0xff]
  %v83 = vld [vmem:[%s0 + $0x2d8] sm:$0xff]
  %v84 = vld [vmem:[%s0 + $0x2e8] sm:$0xff]
  %v85 = vld [vmem:[%s0 + $0x2f0] sm:$0xff]
  %v86 = vld [vmem:[%s0 + $0x300] sm:$0xff]
  %v87 = vld [vmem:[%s0 + $0x308] sm:$0xff]
  %v88 = vld [vmem:[%s0 + $0x318] sm:$0xff]
  %v89 = vld [vmem:[%s0 + $0x320] sm:$0xff]
  %v90 = vld [vmem:[%s1] sm:$0xff]
  %v91 = vld [vmem:[%s1 + $0x8] sm:$0xff]
  %v92 = vld [vmem:[%s1 + $0x10] sm:$0xff]
  %v93 = vld [vmem:[%s1 + $0x18] sm:$0xff]
  %v94 = vld [vmem:[%s1 + $0x20] sm:$0xff]
  %v95 = vld [vmem:[%s1 + $0x28] sm:$0xff]
  %v96 = vld [vmem:[%s1 + $0x30] sm:$0xff]
  %v97 = vld [vmem:[%s1 + $0x38] sm:$0xff]
  %v98 = vld [vmem:[%s1 + $0x40] sm:$0xff]
  %v99 = vld [vmem:[%s1 + $0x48] sm:$0xff]
  %v100 = vld [vmem:[%s1 + $0x50] sm:$0xff]
  %v101 = vld [vmem:[%s1 + $0x58] sm:$0xff]
  %v102 = vld [vmem:[%s1 + $0x60] sm:$0xff]
  %v103 = vld [vmem:[%s1 + $0x68] sm:$0xff]
  %v104 = vld [vmem:[%s1 + $0x70] sm:$0xff]
  %v105 = vld [vmem:[%s1 + $0x78] sm:$0xff]
  %v106 = vld [vmem:[%s0 + $0x1] sm:$0xff]
  %v107 = vld [vmem:[%s0 + $0x9] sm:$0xff]
  %v108 = vld [vmem:[%s0 + $0x19] sm:$0xff]
  %v109 = vld [vmem:[%s0 + $0x21] sm:$0xff]
  %v110 = vld [vmem:[%s0 + $0x31] sm:$0xff]
  %v111 = vld [vmem:[%s0 + $0x39] sm:$0xff]
  %v112 = vld [vmem:[%s0 + $0x49] sm:$0xff]
  %v113 = vld [vmem:[%s0 + $0x51] sm:$0xff]
  %v114 = vld [vmem:[%s0 + $0x61] sm:$0xff]
  %v115 = vld [vmem:[%s0 + $0x69] sm:$0xff]
  %v116 = vld [vmem:[%s0 + $0x79] sm:$0xff]
  %v117 = vld [vmem:[%s0 + $0x81] sm:$0xff]
  %v118 = vld [vmem:[%s0 + $0x91] sm:$0xff]
  %v119 = vld [vmem:[%s0 + $0x99] sm:$0xff]
  %v120 = vld [vmem:[%s0 + $0xa9] sm:$0xff]
  %v121 = vld [vmem:[%s0 + $0xb1] sm:$0xff]
  %v122 = vld [vmem:[%s0 + $0xc1] sm:$0xff]
  %v123 = vld [vmem:[%s0 + $0xc9] sm:$0xff]
  %v124 = vld [vmem:[%s0 + $0xd9] sm:$0xff]
  %v125 = vld [vmem:[%s0 + $0xe1] sm:$0xff]
  %v126 = vld [vmem:[%s0 + $0xf1] sm:$0xff]
  %v127 = vld [vmem:[%s0 + $0xf9] sm:$0xff]
  %v128 = vld [vmem:[%s0 + $0x109] sm:$0xff]
  %v129 = vld [vmem:[%s0 + $0x111] sm:$0xff]
  %v130 = vld [vmem:[%s0 + $0x121] sm:$0xff]
  %v131 = vld [vmem:[%s0 + $0x129] sm:$0xff]
  %v132 = vld [vmem:[%s0 + $0x139] sm:$0xff]
  %v133 = vld [vmem:[%s0 + $0x141] sm:$0xff]
  %v134 = vld [vmem:[%s0 + $0x151] sm:$0xff]
  %v135 = vld [vmem:[%s0 + $0x159] sm:$0xff]
  %v136 = vld [vmem:[%s0 + $0x169] sm:$0xff]
  %v137 = vld [vmem:[%s0 + $0x171] sm:$0xff]
  %v138 = vld [vmem:[%s0 + $0x1b1] sm:$0xff]
  %v139 = vld [vmem:[%s0 + $0x1b9] sm:$0xff]
  %v140 = vld [vmem:[%s0 + $0x1c9] sm:$0xff]
  %v141 = vld [vmem:[%s0 + $0x1d1] sm:$0xff]
  %v142 = vld [vmem:[%s0 + $0x1e1] sm:$0xff]
  %v143 = vld [vmem:[%s0 + $0x1e9] sm:$0xff]
  %v144 = vld [vmem:[%s0 + $0x1f9] sm:$0xff]
  %v145 = vld [vmem:[%s0 + $0x201] sm:$0xff]
  %v146 = vld [vmem:[%s0 + $0x211] sm:$0xff]
  %v147 = vld [vmem:[%s0 + $0x219] sm:$0xff]
  %v148 = vld [vmem:[%s0 + $0x229] sm:$0xff]
  %v149 = vld [vmem:[%s0 + $0x231] sm:$0xff]
  %v150 = vld [vmem:[%s0 + $0x241] sm:$0xff]
  %v151 = vld [vmem:[%s0 + $0x249] sm:$0xff]
  %v152 = vld [vmem:[%s0 + $0x259] sm:$0xff]
  %v153 = vld [vmem:[%s0 + $0x261] sm:$0xff]
  %v154 = vld [vmem:[%s0 + $0x271] sm:$0xff]
  %v155 = vld [vmem:[%s0 + $0x279] sm:$0xff]
  %v156 = vld [vmem:[%s0 + $0x289] sm:$0xff]
  %v157 = vld [vmem:[%s0 + $0x291] sm:$0xff]
  %v158 = vld [vmem:[%s0 + $0x2a1] sm:$0xff]
  %v159 = vld [vmem:[%s0 + $0x2a9] sm:$0xff]
  %v160 = vld [vmem:[%s0 + $0x2b9] sm:$0xff]
  %v161 = vld [vmem:[%s0 + $0x2c1] sm:$0xff]
  %v162 = vld [vmem:[%s0 + $0x2d1] sm:$0xff]
  %v163 = vld [vmem:[%s0 + $0x2d9] sm:$0xff]
  %v164 = vld [vmem:[%s0 + $0x2e9] sm:$0xff]
  %v165 = vld [vmem:[%s0 + $0x2f1] sm:$0xff]
  %v166 = vld [vmem:[%s0 + $0x301] sm:$0xff]
  %v167 = vld [vmem:[%s0 + $0x309] sm:$0xff]
  %v168 = vld [vmem:[%s0 + $0x319] sm:$0xff]
  %v169 = vld [vmem:[%s0 + $0x321] sm:$0xff]
  %s170 = scalar_lea.vmem %s1, 128
  %v171 = vld [vmem:[%s170] sm:$0xff]
  %v172 = vld [vmem:[%s170 + $0x8] sm:$0xff]
  %v173 = vld [vmem:[%s170 + $0x10] sm:$0xff]
  %v174 = vld [vmem:[%s170 + $0x18] sm:$0xff]
  %v175 = vld [vmem:[%s170 + $0x20] sm:$0xff]
  %v176 = vld [vmem:[%s170 + $0x28] sm:$0xff]
  %v177 = vld [vmem:[%s170 + $0x30] sm:$0xff]
  %v178 = vld [vmem:[%s170 + $0x38] sm:$0xff]
  %v179 = vld [vmem:[%s170 + $0x40] sm:$0xff]
  %v180 = vld [vmem:[%s170 + $0x48] sm:$0xff]
  %v181 = vld [vmem:[%s170 + $0x50] sm:$0xff]
  %v182 = vld [vmem:[%s170 + $0x58] sm:$0xff]
  %v183 = vld [vmem:[%s170 + $0x60] sm:$0xff]
  %v184 = vld [vmem:[%s170 + $0x68] sm:$0xff]
  %v185 = vld [vmem:[%s170 + $0x70] sm:$0xff]
  %v186 = vld [vmem:[%s170 + $0x78] sm:$0xff]
  %187 = vmatprep.subr.mxu0 0.0
  %188 = vmatpush1.msra.mxu0 %v171
  %189 = vmatprep.subr.mxu0 0.0
  %190 = vmatpush1.msra.mxu0 %v172
  %191 = vmatprep.subr.mxu0 0.0
  %192 = vmatpush1.msra.mxu0 %v173
  %193 = vmatprep.subr.mxu0 0.0
  %194 = vmatpush1.msra.mxu0 %v174
  %195 = vmatprep.subr.mxu0 0.0
  %196 = vmatpush1.msra.mxu0 %v175
  %197 = vmatprep.subr.mxu0 0.0
  %198 = vmatpush1.msra.mxu0 %v176
  %199 = vmatprep.subr.mxu0 0.0
  %200 = vmatpush1.msra.mxu0 %v177
  %201 = vmatprep.subr.mxu0 0.0
  %202 = vmatpush1.msra.mxu0 %v178
  %203 = vmatprep.subr.mxu0 0.0
  %204 = vmatpush1.msra.mxu0 %v179
  %205 = vmatprep.subr.mxu0 0.0
  %206 = vmatpush1.msra.mxu0 %v180
  %207 = vmatprep.subr.mxu0 0.0
  %208 = vmatpush1.msra.mxu0 %v181
  %209 = vmatprep.subr.mxu0 0.0
  %210 = vmatpush1.msra.mxu0 %v182
  %211 = vmatprep.subr.mxu0 0.0
  %212 = vmatpush1.msra.mxu0 %v183
  %213 = vmatprep.subr.mxu0 0.0
  %214 = vmatpush1.msra.mxu0 %v184
  %215 = vmatprep.subr.mxu0 0.0
  %216 = vmatpush1.msra.mxu0 %v185
  %217 = vmatprep.subr.mxu0 0.0
  %218 = vmatpush1.msra.mxu0 %v186
  %219 = vmatprep.subr.mxu0 0.0
  %220 = vmatpush1.msra.mxu0 0.0
  %221 = vmatprep.subr.mxu0 0.0
  %222 = vmatpush1.msra.mxu0 0.0
  %223 = vmatprep.subr.mxu0 0.0
  %224 = vmatpush1.msra.mxu0 0.0
  %225 = vmatprep.subr.mxu0 0.0
  %226 = vmatpush1.msra.mxu0 0.0
  %227 = vmatprep.subr.mxu0 0.0
  %228 = vmatpush1.msra.mxu0 0.0
  %229 = vmatprep.subr.mxu0 0.0
  %230 = vmatpush1.msra.mxu0 0.0
  %231 = vmatprep.subr.mxu0 0.0
  %232 = vmatpush1.msra.mxu0 0.0
  %233 = vmatprep.subr.mxu0 0.0
  %234 = vmatpush1.msra.mxu0 0.0
  %235 = vmatprep.subr.mxu0 0.0
  %236 = vmatpush1.msra.mxu0 0.0
  %237 = vmatprep.subr.mxu0 0.0
  %238 = vmatpush1.msra.mxu0 0.0
  %239 = vmatprep.subr.mxu0 0.0
  %240 = vmatpush1.msra.mxu0 0.0
  %241 = vmatprep.subr.mxu0 0.0
  %242 = vmatpush1.msra.mxu0 0.0
  %243 = vmatprep.subr.mxu0 0.0
  %244 = vmatpush1.msra.mxu0 0.0
  %245 = vmatprep.subr.mxu0 0.0
  %246 = vmatpush1.msra.mxu0 0.0
  %247 = vmatprep.subr.mxu0 0.0
  %248 = vmatpush1.msra.mxu0 0.0
  %249 = vmatprep.subr.mxu0 0.0
  %250 = vmatpush1.msra.mxu0 0.0
  %251 = vmatprep.mubr.f32.mxu0 0.0
  %252 = vmatmul.mubr.f32.gmra.mrb[0].mxu0 %v106
  %v253 = vpop.f32.mrb[0].mxu0
  %v254 = vadd.f32 0.0, %v253
  %v255 = vpop.f32.mrb[0].mxu0
  %256 = vmatprep.mubr.f32.mxu0 0.0
  %257 = vmatmul.mubr.f32.gmra.mrb[0].mxu0 %v107
  %v258 = vpop.f32.mrb[0].mxu0
  %v259 = vadd.f32 0.0, %v258
  %v260 = vpop.f32.mrb[0].mxu0
  %261 = vmatprep.mubr.f32.mxu0 0.0
  %262 = vmatmul.mubr.f32.gmra.mrb[0].mxu0 %v108
  %v263 = vpop.f32.mrb[0].mxu0
  %v264 = vadd.f32 0.0, %v263
  %v265 = vpop.f32.mrb[0].mxu0
  %266 = vmatprep.mubr.f32.mxu0 0.0
  %267 = vmatmul.mubr.f32.gmra.mrb[0].mxu0 %v109
  %v268 = vpop.f32.mrb[0].mxu0
  %v269 = vadd.f32 0.0, %v268
  %v270 = vpop.f32.mrb[0].mxu0
  %271 = vmatprep.mubr.f32.mxu0 0.0
  %272 = vmatmul.mubr.f32.gmra.mrb[0].mxu0 %v110
  %v273 = vpop.f32.mrb[0].mxu0
  %v274 = vadd.f32 0.0, %v273
  %v275 = vpop.f32.mrb[0].mxu0
  %276 = vmatprep.mubr.f32.mxu0 0.0
  %277 = vmatmul.mubr.f32.gmra.mrb[0].mxu0 %v111
  %v278 = vpop.f32.mrb[0].mxu0
  %v279 = vadd.f32 0.0, %v278
  %v280 = vpop.f32.mrb[0].mxu0
  %281 = vmatprep.mubr.f32.mxu0 0.0
  %282 = vmatmul.mubr.f32.gmra.mrb[0].mxu0 %v112
  %v283 = vpop.f32.mrb[0].mxu0
  %v284 = vadd.f32 0.0, %v283
  %v285 = vpop.f32.mrb[0].mxu0
  %286 = vmatprep.mubr.f32.mxu0 0.0
  %287 = vmatmul.mubr.f32.gmra.mrb[0].mxu0 %v113
  %v288 = vpop.f32.mrb[0].mxu0
  %v289 = vadd.f32 0.0, %v288
  %v290 = vpop.f32.mrb[0].mxu0
  %291 = vmatprep.mubr.f32.mxu0 0.0
  %292 = vmatmul.mubr.f32.gmra.mrb[0].mxu0 %v114
  %v293 = vpop.f32.mrb[0].mxu0
  %v294 = vadd.f32 0.0, %v293
  %v295 = vpop.f32.mrb[0].mxu0
  %296 = vmatprep.mubr.f32.mxu0 0.0
  %297 = vmatmul.mubr.f32.gmra.mrb[0].mxu0 %v115
  %v298 = vpop.f32.mrb[0].mxu0
  %v299 = vadd.f32 0.0, %v298
  %v300 = vpop.f32.mrb[0].mxu0
  %301 = vmatprep.mubr.f32.mxu0 0.0
  %302 = vmatmul.mubr.f32.gmra.mrb[0].mxu0 %v116
  %v303 = vpop.f32.mrb[0].mxu0
  %v304 = vadd.f32 0.0, %v303
  %v305 = vpop.f32.mrb[0].mxu0
  %306 = vmatprep.mubr.f32.mxu0 0.0
  %307 = vmatmul.mubr.f32.gmra.mrb[0].mxu0 %v117
  %v308 = vpop.f32.mrb[0].mxu0
  %v309 = vadd.f32 0.0, %v308
  %v310 = vpop.f32.mrb[0].mxu0
  %311 = vmatprep.mubr.f32.mxu0 0.0
  %312 = vmatmul.mubr.f32.gmra.mrb[0].mxu0 %v118
  %v313 = vpop.f32.mrb[0].mxu0
  %v314 = vadd.f32 0.0, %v313
  %v315 = vpop.f32.mrb[0].mxu0
  %316 = vmatprep.mubr.f32.mxu0 0.0
  %317 = vmatmul.mubr.f32.gmra.mrb[0].mxu0 %v119
  %v318 = vpop.f32.mrb[0].mxu0
  %v319 = vadd.f32 0.0, %v318
  %v320 = vpop.f32.mrb[0].mxu0
  %321 = vmatprep.mubr.f32.mxu0 0.0
  %322 = vmatmul.mubr.f32.gmra.mrb[0].mxu0 %v120
  %v323 = vpop.f32.mrb[0].mxu0
  %v324 = vadd.f32 0.0, %v323
  %v325 = vpop.f32.mrb[0].mxu0
  %326 = vmatprep.mubr.f32.mxu0 0.0
  %327 = vmatmul.mubr.f32.gmra.mrb[0].mxu0 %v121
  %v328 = vpop.f32.mrb[0].mxu0
  %v329 = vadd.f32 0.0, %v328
  %v330 = vpop.f32.mrb[0].mxu0
  %331 = vmatprep.mubr.f32.mxu0 0.0
  %332 = vmatmul.mubr.f32.gmra.mrb[0].mxu0 %v122
  %v333 = vpop.f32.mrb[0].mxu0
  %v334 = vadd.f32 0.0, %v333
  %v335 = vpop.f32.mrb[0].mxu0
  %336 = vmatprep.mubr.f32.mxu0 0.0
  %337 = vmatmul.mubr.f32.gmra.mrb[0].mxu0 %v123
  %v338 = vpop.f32.mrb[0].mxu0
  %v339 = vadd.f32 0.0, %v338
  %v340 = vpop.f32.mrb[0].mxu0
  %341 = vmatprep.mubr.f32.mxu0 0.0
  %342 = vmatmul.mubr.f32.gmra.mrb[0].mxu0 %v124
  %v343 = vpop.f32.mrb[0].mxu0
  %v344 = vadd.f32 0.0, %v343
  %v345 = vpop.f32.mrb[0].mxu0
  %346 = vmatprep.mubr.f32.mxu0 0.0
  %347 = vmatmul.mubr.f32.gmra.mrb[0].mxu0 %v125
  %v348 = vpop.f32.mrb[0].mxu0
  %v349 = vadd.f32 0.0, %v348
  %v350 = vpop.f32.mrb[0].mxu0
  %351 = vmatprep.mubr.f32.mxu0 0.0
  %352 = vmatmul.mubr.f32.gmra.mrb[0].mxu0 %v126
  %v353 = vpop.f32.mrb[0].mxu0
  %v354 = vadd.f32 0.0, %v353
  %v355 = vpop.f32.mrb[0].mxu0
  %356 = vmatprep.mubr.f32.mxu0 0.0
  %357 = vmatmul.mubr.f32.gmra.mrb[0].mxu0 %v127
  %v358 = vpop.f32.mrb[0].mxu0
  %v359 = vadd.f32 0.0, %v358
  %v360 = vpop.f32.mrb[0].mxu0
  %361 = vmatprep.mubr.f32.mxu0 0.0
  %362 = vmatmul.mubr.f32.gmra.mrb[0].mxu0 %v128
  %v363 = vpop.f32.mrb[0].mxu0
  %v364 = vadd.f32 0.0, %v363
  %v365 = vpop.f32.mrb[0].mxu0
  %366 = vmatprep.mubr.f32.mxu0 0.0
  %367 = vmatmul.mubr.f32.gmra.mrb[0].mxu0 %v129
  %v368 = vpop.f32.mrb[0].mxu0
  %v369 = vadd.f32 0.0, %v368
  %v370 = vpop.f32.mrb[0].mxu0
  %371 = vmatprep.mubr.f32.mxu0 0.0
  %372 = vmatmul.mubr.f32.gmra.mrb[0].mxu0 %v130
  %v373 = vpop.f32.mrb[0].mxu0
  %v374 = vadd.f32 0.0, %v373
  %v375 = vpop.f32.mrb[0].mxu0
  %376 = vmatprep.mubr.f32.mxu0 0.0
  %377 = vmatmul.mubr.f32.gmra.mrb[0].mxu0 %v131
  %v378 = vpop.f32.mrb[0].mxu0
  %v379 = vadd.f32 0.0, %v378
  %v380 = vpop.f32.mrb[0].mxu0
  %381 = vmatprep.mubr.f32.mxu0 0.0
  %382 = vmatmul.mubr.f32.gmra.mrb[0].mxu0 %v132
  %v383 = vpop.f32.mrb[0].mxu0
  %v384 = vadd.f32 0.0, %v383
  %v385 = vpop.f32.mrb[0].mxu0
  %386 = vmatprep.mubr.f32.mxu0 0.0
  %387 = vmatmul.mubr.f32.gmra.mrb[0].mxu0 %v133
  %v388 = vpop.f32.mrb[0].mxu0
  %v389 = vadd.f32 0.0, %v388
  %v390 = vpop.f32.mrb[0].mxu0
  %391 = vmatprep.mubr.f32.mxu0 0.0
  %392 = vmatmul.mubr.f32.gmra.mrb[0].mxu0 %v134
  %v393 = vpop.f32.mrb[0].mxu0
  %v394 = vadd.f32 0.0, %v393
  %v395 = vpop.f32.mrb[0].mxu0
  %396 = vmatprep.mubr.f32.mxu0 0.0
  %397 = vmatmul.mubr.f32.gmra.mrb[0].mxu0 %v135
  %v398 = vpop.f32.mrb[0].mxu0
  %v399 = vadd.f32 0.0, %v398
  %v400 = vpop.f32.mrb[0].mxu0
  %401 = vmatprep.mubr.f32.mxu0 0.0
  %402 = vmatmul.mubr.f32.gmra.mrb[0].mxu0 %v136
  %v403 = vpop.f32.mrb[0].mxu0
  %v404 = vadd.f32 0.0, %v403
  %v405 = vpop.f32.mrb[0].mxu0
  %406 = vmatprep.mubr.f32.mxu0 0.0
  %407 = vmatmul.mubr.f32.gmra.mrb[0].mxu0 %v137
  %v408 = vpop.f32.mrb[0].mxu0
  %v409 = vadd.f32 0.0, %v408
  %v410 = vpop.f32.mrb[0].mxu0
  %411 = vmatprep.mubr.f32.mxu0 0.0
  %412 = vmatmul.mubr.f32.gmra.mrb[0].mxu0 %v138
  %v413 = vpop.f32.mrb[0].mxu0
  %v414 = vadd.f32 0.0, %v413
  %v415 = vpop.f32.mrb[0].mxu0
  %416 = vmatprep.mubr.f32.mxu0 0.0
  %417 = vmatmul.mubr.f32.gmra.mrb[0].mxu0 %v139
  %v418 = vpop.f32.mrb[0].mxu0
  %v419 = vadd.f32 0.0, %v418
  %v420 = vpop.f32.mrb[0].mxu0
  %421 = vmatprep.mubr.f32.mxu0 0.0
  %422 = vmatmul.mubr.f32.gmra.mrb[0].mxu0 %v140
  %v423 = vpop.f32.mrb[0].mxu0
  %v424 = vadd.f32 0.0, %v423
  %v425 = vpop.f32.mrb[0].mxu0
  %426 = vmatprep.mubr.f32.mxu0 0.0
  %427 = vmatmul.mubr.f32.gmra.mrb[0].mxu0 %v141
  %v428 = vpop.f32.mrb[0].mxu0
  %v429 = vadd.f32 0.0, %v428
  %v430 = vpop.f32.mrb[0].mxu0
  %431 = vmatprep.mubr.f32.mxu0 0.0
  %432 = vmatmul.mubr.f32.gmra.mrb[0].mxu0 %v142
  %v433 = vpop.f32.mrb[0].mxu0
  %v434 = vadd.f32 0.0, %v433
  %v435 = vpop.f32.mrb[0].mxu0
  %436 = vmatprep.mubr.f32.mxu0 0.0
  %437 = vmatmul.mubr.f32.gmra.mrb[0].mxu0 %v143
  %v438 = vpop.f32.mrb[0].mxu0
  %v439 = vadd.f32 0.0, %v438
  %v440 = vpop.f32.mrb[0].mxu0
  %441 = vmatprep.mubr.f32.mxu0 0.0
  %442 = vmatmul.mubr.f32.gmra.mrb[0].mxu0 %v144
  %v443 = vpop.f32.mrb[0].mxu0
  %v444 = vadd.f32 0.0, %v443
  %v445 = vpop.f32.mrb[0].mxu0
  %446 = vmatprep.mubr.f32.mxu0 0.0
  %447 = vmatmul.mubr.f32.gmra.mrb[0].mxu0 %v145
  %v448 = vpop.f32.mrb[0].mxu0
  %v449 = vadd.f32 0.0, %v448
  %v450 = vpop.f32.mrb[0].mxu0
  %451 = vmatprep.mubr.f32.mxu0 0.0
  %452 = vmatmul.mubr.f32.gmra.mrb[0].mxu0 %v146
  %v453 = vpop.f32.mrb[0].mxu0
  %v454 = vadd.f32 0.0, %v453
  %v455 = vpop.f32.mrb[0].mxu0
  %456 = vmatprep.mubr.f32.mxu0 0.0
  %457 = vmatmul.mubr.f32.gmra.mrb[0].mxu0 %v147
  %v458 = vpop.f32.mrb[0].mxu0
  %v459 = vadd.f32 0.0, %v458
  %v460 = vpop.f32.mrb[0].mxu0
  %461 = vmatprep.mubr.f32.mxu0 0.0
  %462 = vmatmul.mubr.f32.gmra.mrb[0].mxu0 %v148
  %v463 = vpop.f32.mrb[0].mxu0
  %v464 = vadd.f32 0.0, %v463
  %v465 = vpop.f32.mrb[0].mxu0
  %466 = vmatprep.mubr.f32.mxu0 0.0
  %467 = vmatmul.mubr.f32.gmra.mrb[0].mxu0 %v149
  %v468 = vpop.f32.mrb[0].mxu0
  %v469 = vadd.f32 0.0, %v468
  %v470 = vpop.f32.mrb[0].mxu0
  %471 = vmatprep.mubr.f32.mxu0 0.0
  %472 = vmatmul.mubr.f32.gmra.mrb[0].mxu0 %v150
  %v473 = vpop.f32.mrb[0].mxu0
  %v474 = vadd.f32 0.0, %v473
  %v475 = vpop.f32.mrb[0].mxu0
  %476 = vmatprep.mubr.f32.mxu0 0.0
  %477 = vmatmul.mubr.f32.gmra.mrb[0].mxu0 %v151
  %v478 = vpop.f32.mrb[0].mxu0
  %v479 = vadd.f32 0.0, %v478
  %v480 = vpop.f32.mrb[0].mxu0
  %481 = vmatprep.mubr.f32.mxu0 0.0
  %482 = vmatmul.mubr.f32.gmra.mrb[0].mxu0 %v152
  %v483 = vpop.f32.mrb[0].mxu0
  %v484 = vadd.f32 0.0, %v483
  %v485 = vpop.f32.mrb[0].mxu0
  %486 = vmatprep.mubr.f32.mxu0 0.0
  %487 = vmatmul.mubr.f32.gmra.mrb[0].mxu0 %v153
  %v488 = vpop.f32.mrb[0].mxu0
  %v489 = vadd.f32 0.0, %v488
  %v490 = vpop.f32.mrb[0].mxu0
  %491 = vmatprep.mubr.f32.mxu0 0.0
  %492 = vmatmul.mubr.f32.gmra.mrb[0].mxu0 %v154
  %v493 = vpop.f32.mrb[0].mxu0
  %v494 = vadd.f32 0.0, %v493
  %v495 = vpop.f32.mrb[0].mxu0
  %496 = vmatprep.mubr.f32.mxu0 0.0
  %497 = vmatmul.mubr.f32.gmra.mrb[0].mxu0 %v155
  %v498 = vpop.f32.mrb[0].mxu0
  %v499 = vadd.f32 0.0, %v498
  %v500 = vpop.f32.mrb[0].mxu0
  %501 = vmatprep.mubr.f32.mxu0 0.0
  %502 = vmatmul.mubr.f32.gmra.mrb[0].mxu0 %v156
  %v503 = vpop.f32.mrb[0].mxu0
  %v504 = vadd.f32 0.0, %v503
  %v505 = vpop.f32.mrb[0].mxu0
  %506 = vmatprep.mubr.f32.mxu0 0.0
  %507 = vmatmul.mubr.f32.gmra.mrb[0].mxu0 %v157
  %v508 = vpop.f32.mrb[0].mxu0
  %v509 = vadd.f32 0.0, %v508
  %v510 = vpop.f32.mrb[0].mxu0
  %511 = vmatprep.mubr.f32.mxu0 0.0
  %512 = vmatmul.mubr.f32.gmra.mrb[0].mxu0 %v158
  %v513 = vpop.f32.mrb[0].mxu0
  %v514 = vadd.f32 0.0, %v513
  %v515 = vpop.f32.mrb[0].mxu0
  %516 = vmatprep.mubr.f32.mxu0 0.0
  %517 = vmatmul.mubr.f32.gmra.mrb[0].mxu0 %v159
  %v518 = vpop.f32.mrb[0].mxu0
  %v519 = vadd.f32 0.0, %v518
  %v520 = vpop.f32.mrb[0].mxu0
  %521 = vmatprep.mubr.f32.mxu0 0.0
  %522 = vmatmul.mubr.f32.gmra.mrb[0].mxu0 %v160
  %v523 = vpop.f32.mrb[0].mxu0
  %v524 = vadd.f32 0.0, %v523
  %v525 = vpop.f32.mrb[0].mxu0
  %526 = vmatprep.mubr.f32.mxu0 0.0
  %527 = vmatmul.mubr.f32.gmra.mrb[0].mxu0 %v161
  %v528 = vpop.f32.mrb[0].mxu0
  %v529 = vadd.f32 0.0, %v528
  %v530 = vpop.f32.mrb[0].mxu0
  %531 = vmatprep.mubr.f32.mxu0 0.0
  %532 = vmatmul.mubr.f32.gmra.mrb[0].mxu0 %v162
  %v533 = vpop.f32.mrb[0].mxu0
  %v534 = vadd.f32 0.0, %v533
  %v535 = vpop.f32.mrb[0].mxu0
  %536 = vmatprep.mubr.f32.mxu0 0.0
  %537 = vmatmul.mubr.f32.gmra.mrb[0].mxu0 %v163
  %v538 = vpop.f32.mrb[0].mxu0
  %v539 = vadd.f32 0.0, %v538
  %v540 = vpop.f32.mrb[0].mxu0
  %541 = vmatprep.mubr.f32.mxu0 0.0
  %542 = vmatmul.mubr.f32.gmra.mrb[0].mxu0 %v164
  %v543 = vpop.f32.mrb[0].mxu0
  %v544 = vadd.f32 0.0, %v543
  %v545 = vpop.f32.mrb[0].mxu0
  %546 = vmatprep.mubr.f32.mxu0 0.0
  %547 = vmatmul.mubr.f32.gmra.mrb[0].mxu0 %v165
  %v548 = vpop.f32.mrb[0].mxu0
  %v549 = vadd.f32 0.0, %v548
  %v550 = vpop.f32.mrb[0].mxu0
  %551 = vmatprep.mubr.f32.mxu0 0.0
  %552 = vmatmul.mubr.f32.gmra.mrb[0].mxu0 %v166
  %v553 = vpop.f32.mrb[0].mxu0
  %v554 = vadd.f32 0.0, %v553
  %v555 = vpop.f32.mrb[0].mxu0
  %556 = vmatprep.mubr.f32.mxu0 0.0
  %557 = vmatmul.mubr.f32.gmra.mrb[0].mxu0 %v167
  %v558 = vpop.f32.mrb[0].mxu0
  %v559 = vadd.f32 0.0, %v558
  %v560 = vpop.f32.mrb[0].mxu0
  %561 = vmatprep.mubr.f32.mxu0 0.0
  %562 = vmatmul.mubr.f32.gmra.mrb[0].mxu0 %v168
  %v563 = vpop.f32.mrb[0].mxu0
  %v564 = vadd.f32 0.0, %v563
  %v565 = vpop.f32.mrb[0].mxu0
  %566 = vmatprep.mubr.f32.mxu0 0.0
  %567 = vmatmul.mubr.f32.gmra.mrb[0].mxu0 %v169
  %v568 = vpop.f32.mrb[0].mxu0
  %v569 = vadd.f32 0.0, %v568
  %v570 = vpop.f32.mrb[0].mxu0
  %571 = vdwg.mxu0
  %572 = vmatprep.subr.mxu0 0.0
  %573 = vmatpush1.msra.mxu0 %v90
  %574 = vmatprep.subr.mxu0 0.0
  %575 = vmatpush1.msra.mxu0 %v91
  %576 = vmatprep.subr.mxu0 0.0
  %577 = vmatpush1.msra.mxu0 %v92
  %578 = vmatprep.subr.mxu0 0.0
  %579 = vmatpush1.msra.mxu0 %v93
  %580 = vmatprep.subr.mxu0 0.0
  %581 = vmatpush1.msra.mxu0 %v94
  %582 = vmatprep.subr.mxu0 0.0
  %583 = vmatpush1.msra.mxu0 %v95
  %584 = vmatprep.subr.mxu0 0.0
  %585 = vmatpush1.msra.mxu0 %v96
  %586 = vmatprep.subr.mxu0 0.0
  %587 = vmatpush1.msra.mxu0 %v97
  %588 = vmatprep.subr.mxu0 0.0
  %589 = vmatpush1.msra.mxu0 %v98
  %590 = vmatprep.subr.mxu0 0.0
  %591 = vmatpush1.msra.mxu0 %v99
  %592 = vmatprep.subr.mxu0 0.0
  %593 = vmatpush1.msra.mxu0 %v100
  %594 = vmatprep.subr.mxu0 0.0
  %595 = vmatpush1.msra.mxu0 %v101
  %596 = vmatprep.subr.mxu0 0.0
  %597 = vmatpush1.msra.mxu0 %v102
  %598 = vmatprep.subr.mxu0 0.0
  %599 = vmatpush1.msra.mxu0 %v103
  %600 = vmatprep.subr.mxu0 0.0
  %601 = vmatpush1.msra.mxu0 %v104
  %602 = vmatprep.subr.mxu0 0.0
  %603 = vmatpush1.msra.mxu0 %v105
  %604 = vmatprep.subr.mxu0 0.0
  %605 = vmatpush1.msra.mxu0 0.0
  %606 = vmatprep.subr.mxu0 0.0
  %607 = vmatpush1.msra.mxu0 0.0
  %608 = vmatprep.subr.mxu0 0.0
  %609 = vmatpush1.msra.mxu0 0.0
  %610 = vmatprep.subr.mxu0 0.0
  %611 = vmatpush1.msra.mxu0 0.0
  %612 = vmatprep.subr.mxu0 0.0
  %613 = vmatpush1.msra.mxu0 0.0
  %614 = vmatprep.subr.mxu0 0.0
  %615 = vmatpush1.msra.mxu0 0.0
  %616 = vmatprep.subr.mxu0 0.0
  %617 = vmatpush1.msra.mxu0 0.0
  %618 = vmatprep.subr.mxu0 0.0
  %619 = vmatpush1.msra.mxu0 0.0
  %620 = vmatprep.subr.mxu0 0.0
  %621 = vmatpush1.msra.mxu0 0.0
  %622 = vmatprep.subr.mxu0 0.0
  %623 = vmatpush1.msra.mxu0 0.0
  %624 = vmatprep.subr.mxu0 0.0
  %625 = vmatpush1.msra.mxu0 0.0
  %626 = vmatprep.subr.mxu0 0.0
  %627 = vmatpush1.msra.mxu0 0.0
  %628 = vmatprep.subr.mxu0 0.0
  %629 = vmatpush1.msra.mxu0 0.0
  %630 = vmatprep.subr.mxu0 0.0
  %631 = vmatpush1.msra.mxu0 0.0
  %632 = vmatprep.subr.mxu0 0.0
  %633 = vmatpush1.msra.mxu0 0.0
  %634 = vmatprep.subr.mxu0 0.0
  %635 = vmatpush1.msra.mxu0 0.0
  %636 = vmatprep.mubr.f32.mxu0 0.0
  %637 = vmatmul.mubr.f32.gmra.mrb[0].mxu0 %v26
  %v638 = vpop.f32.mrb[0].mxu0
  %v639 = vadd.f32 %v254, %v638
  %v640 = vpop.f32.mrb[0].mxu0
  %641 = vmatprep.mubr.f32.mxu0 0.0
  %642 = vmatmul.mubr.f32.gmra.mrb[0].mxu0 %v27
  %v643 = vpop.f32.mrb[0].mxu0
  %v644 = vadd.f32 %v259, %v643
  %v645 = vpop.f32.mrb[0].mxu0
  %646 = vmatprep.mubr.f32.mxu0 0.0
  %647 = vmatmul.mubr.f32.gmra.mrb[0].mxu0 %v28
  %v648 = vpop.f32.mrb[0].mxu0
  %v649 = vadd.f32 %v264, %v648
  %v650 = vpop.f32.mrb[0].mxu0
  %651 = vmatprep.mubr.f32.mxu0 0.0
  %652 = vmatmul.mubr.f32.gmra.mrb[0].mxu0 %v29
  %v653 = vpop.f32.mrb[0].mxu0
  %v654 = vadd.f32 %v269, %v653
  %v655 = vpop.f32.mrb[0].mxu0
  %656 = vmatprep.mubr.f32.mxu0 0.0
  %657 = vmatmul.mubr.f32.gmra.mrb[0].mxu0 %v30
  %v658 = vpop.f32.mrb[0].mxu0
  %v659 = vadd.f32 %v274, %v658
  %v660 = vpop.f32.mrb[0].mxu0
  %661 = vmatprep.mubr.f32.mxu0 0.0
  %662 = vmatmul.mubr.f32.gmra.mrb[0].mxu0 %v31
  %v663 = vpop.f32.mrb[0].mxu0
  %v664 = vadd.f32 %v279, %v663
  %v665 = vpop.f32.mrb[0].mxu0
  %666 = vmatprep.mubr.f32.mxu0 0.0
  %667 = vmatmul.mubr.f32.gmra.mrb[0].mxu0 %v32
  %v668 = vpop.f32.mrb[0].mxu0
  %v669 = vadd.f32 %v284, %v668
  %v670 = vpop.f32.mrb[0].mxu0
  %671 = vmatprep.mubr.f32.mxu0 0.0
  %672 = vmatmul.mubr.f32.gmra.mrb[0].mxu0 %v33
  %v673 = vpop.f32.mrb[0].mxu0
  %v674 = vadd.f32 %v289, %v673
  %v675 = vpop.f32.mrb[0].mxu0
  %676 = vmatprep.mubr.f32.mxu0 0.0
  %677 = vmatmul.mubr.f32.gmra.mrb[0].mxu0 %v34
  %v678 = vpop.f32.mrb[0].mxu0
  %v679 = vadd.f32 %v294, %v678
  %v680 = vpop.f32.mrb[0].mxu0
  %681 = vmatprep.mubr.f32.mxu0 0.0
  %682 = vmatmul.mubr.f32.gmra.mrb[0].mxu0 %v35
  %v683 = vpop.f32.mrb[0].mxu0
  %v684 = vadd.f32 %v299, %v683
  %v685 = vpop.f32.mrb[0].mxu0
  %686 = vmatprep.mubr.f32.mxu0 0.0
  %687 = vmatmul.mubr.f32.gmra.mrb[0].mxu0 %v36
  %v688 = vpop.f32.mrb[0].mxu0
  %v689 = vadd.f32 %v304, %v688
  %v690 = vpop.f32.mrb[0].mxu0
  %691 = vmatprep.mubr.f32.mxu0 0.0
  %692 = vmatmul.mubr.f32.gmra.mrb[0].mxu0 %v37
  %v693 = vpop.f32.mrb[0].mxu0
  %v694 = vadd.f32 %v309, %v693
  %v695 = vpop.f32.mrb[0].mxu0
  %696 = vmatprep.mubr.f32.mxu0 0.0
  %697 = vmatmul.mubr.f32.gmra.mrb[0].mxu0 %v38
  %v698 = vpop.f32.mrb[0].mxu0
  %v699 = vadd.f32 %v314, %v698
  %v700 = vpop.f32.mrb[0].mxu0
  %701 = vmatprep.mubr.f32.mxu0 0.0
  %702 = vmatmul.mubr.f32.gmra.mrb[0].mxu0 %v39
  %v703 = vpop.f32.mrb[0].mxu0
  %v704 = vadd.f32 %v319, %v703
  %v705 = vpop.f32.mrb[0].mxu0
  %706 = vmatprep.mubr.f32.mxu0 0.0
  %707 = vmatmul.mubr.f32.gmra.mrb[0].mxu0 %v40
  %v708 = vpop.f32.mrb[0].mxu0
  %v709 = vadd.f32 %v324, %v708
  %v710 = vpop.f32.mrb[0].mxu0
  %711 = vmatprep.mubr.f32.mxu0 0.0
  %712 = vmatmul.mubr.f32.gmra.mrb[0].mxu0 %v41
  %v713 = vpop.f32.mrb[0].mxu0
  %v714 = vadd.f32 %v329, %v713
  %v715 = vpop.f32.mrb[0].mxu0
  %716 = vmatprep.mubr.f32.mxu0 0.0
  %717 = vmatmul.mubr.f32.gmra.mrb[0].mxu0 %v42
  %v718 = vpop.f32.mrb[0].mxu0
  %v719 = vadd.f32 %v334, %v718
  %v720 = vpop.f32.mrb[0].mxu0
  %721 = vmatprep.mubr.f32.mxu0 0.0
  %722 = vmatmul.mubr.f32.gmra.mrb[0].mxu0 %v43
  %v723 = vpop.f32.mrb[0].mxu0
  %v724 = vadd.f32 %v339, %v723
  %v725 = vpop.f32.mrb[0].mxu0
  %726 = vmatprep.mubr.f32.mxu0 0.0
  %727 = vmatmul.mubr.f32.gmra.mrb[0].mxu0 %v44
  %v728 = vpop.f32.mrb[0].mxu0
  %v729 = vadd.f32 %v344, %v728
  %v730 = vpop.f32.mrb[0].mxu0
  %731 = vmatprep.mubr.f32.mxu0 0.0
  %732 = vmatmul.mubr.f32.gmra.mrb[0].mxu0 %v45
  %v733 = vpop.f32.mrb[0].mxu0
  %v734 = vadd.f32 %v349, %v733
  %v735 = vpop.f32.mrb[0].mxu0
  %736 = vmatprep.mubr.f32.mxu0 0.0
  %737 = vmatmul.mubr.f32.gmra.mrb[0].mxu0 %v46
  %v738 = vpop.f32.mrb[0].mxu0
  %v739 = vadd.f32 %v354, %v738
  %v740 = vpop.f32.mrb[0].mxu0
  %741 = vmatprep.mubr.f32.mxu0 0.0
  %742 = vmatmul.mubr.f32.gmra.mrb[0].mxu0 %v47
  %v743 = vpop.f32.mrb[0].mxu0
  %v744 = vadd.f32 %v359, %v743
  %v745 = vpop.f32.mrb[0].mxu0
  %746 = vmatprep.mubr.f32.mxu0 0.0
  %747 = vmatmul.mubr.f32.gmra.mrb[0].mxu0 %v48
  %v748 = vpop.f32.mrb[0].mxu0
  %v749 = vadd.f32 %v364, %v748
  %v750 = vpop.f32.mrb[0].mxu0
  %751 = vmatprep.mubr.f32.mxu0 0.0
  %752 = vmatmul.mubr.f32.gmra.mrb[0].mxu0 %v49
  %v753 = vpop.f32.mrb[0].mxu0
  %v754 = vadd.f32 %v369, %v753
  %v755 = vpop.f32.mrb[0].mxu0
  %756 = vmatprep.mubr.f32.mxu0 0.0
  %757 = vmatmul.mubr.f32.gmra.mrb[0].mxu0 %v50
  %v758 = vpop.f32.mrb[0].mxu0
  %v759 = vadd.f32 %v374, %v758
  %v760 = vpop.f32.mrb[0].mxu0
  %761 = vmatprep.mubr.f32.mxu0 0.0
  %762 = vmatmul.mubr.f32.gmra.mrb[0].mxu0 %v51
  %v763 = vpop.f32.mrb[0].mxu0
  %v764 = vadd.f32 %v379, %v763
  %v765 = vpop.f32.mrb[0].mxu0
  %766 = vmatprep.mubr.f32.mxu0 0.0
  %767 = vmatmul.mubr.f32.gmra.mrb[0].mxu0 %v52
  %v768 = vpop.f32.mrb[0].mxu0
  %v769 = vadd.f32 %v384, %v768
  %v770 = vpop.f32.mrb[0].mxu0
  %771 = vmatprep.mubr.f32.mxu0 0.0
  %772 = vmatmul.mubr.f32.gmra.mrb[0].mxu0 %v53
  %v773 = vpop.f32.mrb[0].mxu0
  %v774 = vadd.f32 %v389, %v773
  %v775 = vpop.f32.mrb[0].mxu0
  %776 = vmatprep.mubr.f32.mxu0 0.0
  %777 = vmatmul.mubr.f32.gmra.mrb[0].mxu0 %v54
  %v778 = vpop.f32.mrb[0].mxu0
  %v779 = vadd.f32 %v394, %v778
  %v780 = vpop.f32.mrb[0].mxu0
  %781 = vmatprep.mubr.f32.mxu0 0.0
  %782 = vmatmul.mubr.f32.gmra.mrb[0].mxu0 %v55
  %v783 = vpop.f32.mrb[0].mxu0
  %v784 = vadd.f32 %v399, %v783
  %v785 = vpop.f32.mrb[0].mxu0
  %786 = vmatprep.mubr.f32.mxu0 0.0
  %787 = vmatmul.mubr.f32.gmra.mrb[0].mxu0 %v56
  %v788 = vpop.f32.mrb[0].mxu0
  %v789 = vadd.f32 %v404, %v788
  %v790 = vpop.f32.mrb[0].mxu0
  %791 = vmatprep.mubr.f32.mxu0 0.0
  %792 = vmatmul.mubr.f32.gmra.mrb[0].mxu0 %v57
  %v793 = vpop.f32.mrb[0].mxu0
  %v794 = vadd.f32 %v409, %v793
  %v795 = vpop.f32.mrb[0].mxu0
  %796 = vmatprep.mubr.f32.mxu0 0.0
  %797 = vmatmul.mubr.f32.gmra.mrb[0].mxu0 %v58
  %v798 = vpop.f32.mrb[0].mxu0
  %v799 = vadd.f32 %v414, %v798
  %v800 = vpop.f32.mrb[0].mxu0
  %801 = vmatprep.mubr.f32.mxu0 0.0
  %802 = vmatmul.mubr.f32.gmra.mrb[0].mxu0 %v59
  %v803 = vpop.f32.mrb[0].mxu0
  %v804 = vadd.f32 %v419, %v803
  %v805 = vpop.f32.mrb[0].mxu0
  %806 = vmatprep.mubr.f32.mxu0 0.0
  %807 = vmatmul.mubr.f32.gmra.mrb[0].mxu0 %v60
  %v808 = vpop.f32.mrb[0].mxu0
  %v809 = vadd.f32 %v424, %v808
  %v810 = vpop.f32.mrb[0].mxu0
  %811 = vmatprep.mubr.f32.mxu0 0.0
  %812 = vmatmul.mubr.f32.gmra.mrb[0].mxu0 %v61
  %v813 = vpop.f32.mrb[0].mxu0
  %v814 = vadd.f32 %v429, %v813
  %v815 = vpop.f32.mrb[0].mxu0
  %816 = vmatprep.mubr.f32.mxu0 0.0
  %817 = vmatmul.mubr.f32.gmra.mrb[0].mxu0 %v62
  %v818 = vpop.f32.mrb[0].mxu0
  %v819 = vadd.f32 %v434, %v818
  %v820 = vpop.f32.mrb[0].mxu0
  %821 = vmatprep.mubr.f32.mxu0 0.0
  %822 = vmatmul.mubr.f32.gmra.mrb[0].mxu0 %v63
  %v823 = vpop.f32.mrb[0].mxu0
  %v824 = vadd.f32 %v439, %v823
  %v825 = vpop.f32.mrb[0].mxu0
  %826 = vmatprep.mubr.f32.mxu0 0.0
  %827 = vmatmul.mubr.f32.gmra.mrb[0].mxu0 %v64
  %v828 = vpop.f32.mrb[0].mxu0
  %v829 = vadd.f32 %v444, %v828
  %v830 = vpop.f32.mrb[0].mxu0
  %831 = vmatprep.mubr.f32.mxu0 0.0
  %832 = vmatmul.mubr.f32.gmra.mrb[0].mxu0 %v65
  %v833 = vpop.f32.mrb[0].mxu0
  %v834 = vadd.f32 %v449, %v833
  %v835 = vpop.f32.mrb[0].mxu0
  %836 = vmatprep.mubr.f32.mxu0 0.0
  %837 = vmatmul.mubr.f32.gmra.mrb[0].mxu0 %v66
  %v838 = vpop.f32.mrb[0].mxu0
  %v839 = vadd.f32 %v454, %v838
  %v840 = vpop.f32.mrb[0].mxu0
  %841 = vmatprep.mubr.f32.mxu0 0.0
  %842 = vmatmul.mubr.f32.gmra.mrb[0].mxu0 %v67
  %v843 = vpop.f32.mrb[0].mxu0
  %v844 = vadd.f32 %v459, %v843
  %v845 = vpop.f32.mrb[0].mxu0
  %846 = vmatprep.mubr.f32.mxu0 0.0
  %847 = vmatmul.mubr.f32.gmra.mrb[0].mxu0 %v68
  %v848 = vpop.f32.mrb[0].mxu0
  %v849 = vadd.f32 %v464, %v848
  %v850 = vpop.f32.mrb[0].mxu0
  %851 = vmatprep.mubr.f32.mxu0 0.0
  %852 = vmatmul.mubr.f32.gmra.mrb[0].mxu0 %v69
  %v853 = vpop.f32.mrb[0].mxu0
  %v854 = vadd.f32 %v469, %v853
  %v855 = vpop.f32.mrb[0].mxu0
  %856 = vmatprep.mubr.f32.mxu0 0.0
  %857 = vmatmul.mubr.f32.gmra.mrb[0].mxu0 %v70
  %v858 = vpop.f32.mrb[0].mxu0
  %v859 = vadd.f32 %v474, %v858
  %v860 = vpop.f32.mrb[0].mxu0
  %861 = vmatprep.mubr.f32.mxu0 0.0
  %862 = vmatmul.mubr.f32.gmra.mrb[0].mxu0 %v71
  %v863 = vpop.f32.mrb[0].mxu0
  %v864 = vadd.f32 %v479, %v863
  %v865 = vpop.f32.mrb[0].mxu0
  %866 = vmatprep.mubr.f32.mxu0 0.0
  %867 = vmatmul.mubr.f32.gmra.mrb[0].mxu0 %v72
  %v868 = vpop.f32.mrb[0].mxu0
  %v869 = vadd.f32 %v484, %v868
  %v870 = vpop.f32.mrb[0].mxu0
  %871 = vmatprep.mubr.f32.mxu0 0.0
  %872 = vmatmul.mubr.f32.gmra.mrb[0].mxu0 %v73
  %v873 = vpop.f32.mrb[0].mxu0
  %v874 = vadd.f32 %v489, %v873
  %v875 = vpop.f32.mrb[0].mxu0
  %876 = vmatprep.mubr.f32.mxu0 0.0
  %877 = vmatmul.mubr.f32.gmra.mrb[0].mxu0 %v74
  %v878 = vpop.f32.mrb[0].mxu0
  %v879 = vadd.f32 %v494, %v878
  %v880 = vpop.f32.mrb[0].mxu0
  %881 = vmatprep.mubr.f32.mxu0 0.0
  %882 = vmatmul.mubr.f32.gmra.mrb[0].mxu0 %v75
  %v883 = vpop.f32.mrb[0].mxu0
  %v884 = vadd.f32 %v499, %v883
  %v885 = vpop.f32.mrb[0].mxu0
  %886 = vmatprep.mubr.f32.mxu0 0.0
  %887 = vmatmul.mubr.f32.gmra.mrb[0].mxu0 %v76
  %v888 = vpop.f32.mrb[0].mxu0
  %v889 = vadd.f32 %v504, %v888
  %v890 = vpop.f32.mrb[0].mxu0
  %891 = vmatprep.mubr.f32.mxu0 0.0
  %892 = vmatmul.mubr.f32.gmra.mrb[0].mxu0 %v77
  %v893 = vpop.f32.mrb[0].mxu0
  %v894 = vadd.f32 %v509, %v893
  %v895 = vpop.f32.mrb[0].mxu0
  %896 = vmatprep.mubr.f32.mxu0 0.0
  %897 = vmatmul.mubr.f32.gmra.mrb[0].mxu0 %v78
  %v898 = vpop.f32.mrb[0].mxu0
  %v899 = vadd.f32 %v514, %v898
  %v900 = vpop.f32.mrb[0].mxu0
  %901 = vmatprep.mubr.f32.mxu0 0.0
  %902 = vmatmul.mubr.f32.gmra.mrb[0].mxu0 %v79
  %v903 = vpop.f32.mrb[0].mxu0
  %v904 = vadd.f32 %v519, %v903
  %v905 = vpop.f32.mrb[0].mxu0
  %906 = vmatprep.mubr.f32.mxu0 0.0
  %907 = vmatmul.mubr.f32.gmra.mrb[0].mxu0 %v80
  %v908 = vpop.f32.mrb[0].mxu0
  %v909 = vadd.f32 %v524, %v908
  %v910 = vpop.f32.mrb[0].mxu0
  %911 = vmatprep.mubr.f32.mxu0 0.0
  %912 = vmatmul.mubr.f32.gmra.mrb[0].mxu0 %v81
  %v913 = vpop.f32.mrb[0].mxu0
  %v914 = vadd.f32 %v529, %v913
  %v915 = vpop.f32.mrb[0].mxu0
  %916 = vmatprep.mubr.f32.mxu0 0.0
  %917 = vmatmul.mubr.f32.gmra.mrb[0].mxu0 %v82
  %v918 = vpop.f32.mrb[0].mxu0
  %v919 = vadd.f32 %v534, %v918
  %v920 = vpop.f32.mrb[0].mxu0
  %921 = vmatprep.mubr.f32.mxu0 0.0
  %922 = vmatmul.mubr.f32.gmra.mrb[0].mxu0 %v83
  %v923 = vpop.f32.mrb[0].mxu0
  %v924 = vadd.f32 %v539, %v923
  %v925 = vpop.f32.mrb[0].mxu0
  %926 = vmatprep.mubr.f32.mxu0 0.0
  %927 = vmatmul.mubr.f32.gmra.mrb[0].mxu0 %v84
  %v928 = vpop.f32.mrb[0].mxu0
  %v929 = vadd.f32 %v544, %v928
  %v930 = vpop.f32.mrb[0].mxu0
  %931 = vmatprep.mubr.f32.mxu0 0.0
  %932 = vmatmul.mubr.f32.gmra.mrb[0].mxu0 %v85
  %v933 = vpop.f32.mrb[0].mxu0
  %v934 = vadd.f32 %v549, %v933
  %v935 = vpop.f32.mrb[0].mxu0
  %936 = vmatprep.mubr.f32.mxu0 0.0
  %937 = vmatmul.mubr.f32.gmra.mrb[0].mxu0 %v86
  %v938 = vpop.f32.mrb[0].mxu0
  %v939 = vadd.f32 %v554, %v938
  %v940 = vpop.f32.mrb[0].mxu0
  %941 = vmatprep.mubr.f32.mxu0 0.0
  %942 = vmatmul.mubr.f32.gmra.mrb[0].mxu0 %v87
  %v943 = vpop.f32.mrb[0].mxu0
  %v944 = vadd.f32 %v559, %v943
  %v945 = vpop.f32.mrb[0].mxu0
  %946 = vmatprep.mubr.f32.mxu0 0.0
  %947 = vmatmul.mubr.f32.gmra.mrb[0].mxu0 %v88
  %v948 = vpop.f32.mrb[0].mxu0
  %v949 = vadd.f32 %v564, %v948
  %v950 = vpop.f32.mrb[0].mxu0
  %951 = vmatprep.mubr.f32.mxu0 0.0
  %952 = vmatmul.mubr.f32.gmra.mrb[0].mxu0 %v89
  %v953 = vpop.f32.mrb[0].mxu0
  %v954 = vadd.f32 %v569, %v953
  %v955 = vpop.f32.mrb[0].mxu0
  %956 = vdwg.mxu0
  %v957 = vld [vmem:[%s0 + $0x2] sm:$0xff]
  %v958 = vld [vmem:[%s0 + $0xa] sm:$0xff]
  %v959 = vld [vmem:[%s0 + $0x1a] sm:$0xff]
  %v960 = vld [vmem:[%s0 + $0x22] sm:$0xff]
  %v961 = vld [vmem:[%s0 + $0x32] sm:$0xff]
  %v962 = vld [vmem:[%s0 + $0x3a] sm:$0xff]
  %v963 = vld [vmem:[%s0 + $0x4a] sm:$0xff]
  %v964 = vld [vmem:[%s0 + $0x52] sm:$0xff]
  %v965 = vld [vmem:[%s0 + $0x62] sm:$0xff]
  %v966 = vld [vmem:[%s0 + $0x6a] sm:$0xff]
  %v967 = vld [vmem:[%s0 + $0x7a] sm:$0xff]
  %v968 = vld [vmem:[%s0 + $0x82] sm:$0xff]
  %v969 = vld [vmem:[%s0 + $0x92] sm:$0xff]
  %v970 = vld [vmem:[%s0 + $0x9a] sm:$0xff]
  %v971 = vld [vmem:[%s0 + $0xaa] sm:$0xff]
  %v972 = vld [vmem:[%s0 + $0xb2] sm:$0xff]
  %v973 = vld [vmem:[%s0 + $0xc2] sm:$0xff]
  %v974 = vld [vmem:[%s0 + $0xca] sm:$0xff]
  %v975 = vld [vmem:[%s0 + $0xda] sm:$0xff]
  %v976 = vld [vmem:[%s0 + $0xe2] sm:$0xff]
  %v977 = vld [vmem:[%s0 + $0xf2] sm:$0xff]
  %v978 = vld [vmem:[%s0 + $0xfa] sm:$0xff]
  %v979 = vld [vmem:[%s0 + $0x10a] sm:$0xff]
  %v980 = vld [vmem:[%s0 + $0x112] sm:$0xff]
  %v981 = vld [vmem:[%s0 + $0x122] sm:$0xff]
  %v982 = vld [vmem:[%s0 + $0x12a] sm:$0xff]
  %v983 = vld [vmem:[%s0 + $0x13a] sm:$0xff]
  %v984 = vld [vmem:[%s0 + $0x142] sm:$0xff]
  %v985 = vld [vmem:[%s0 + $0x152] sm:$0xff]
  %v986 = vld [vmem:[%s0 + $0x15a] sm:$0xff]
  %v987 = vld [vmem:[%s0 + $0x16a] sm:$0xff]
  %v988 = vld [vmem:[%s0 + $0x172] sm:$0xff]
  %v989 = vld [vmem:[%s0 + $0x1b2] sm:$0xff]
  %v990 = vld [vmem:[%s0 + $0x1ba] sm:$0xff]
  %v991 = vld [vmem:[%s0 + $0x1ca] sm:$0xff]
  %v992 = vld [vmem:[%s0 + $0x1d2] sm:$0xff]
  %v993 = vld [vmem:[%s0 + $0x1e2] sm:$0xff]
  %v994 = vld [vmem:[%s0 + $0x1ea] sm:$0xff]
  %v995 = vld [vmem:[%s0 + $0x1fa] sm:$0xff]
  %v996 = vld [vmem:[%s0 + $0x202] sm:$0xff]
  %v997 = vld [vmem:[%s0 + $0x212] sm:$0xff]
  %v998 = vld [vmem:[%s0 + $0x21a] sm:$0xff]
  %v999 = vld [vmem:[%s0 + $0x22a] sm:$0xff]
  %v1000 = vld [vmem:[%s0 + $0x232] sm:$0xff]
  %v1001 = vld [vmem:[%s0 + $0x242] sm:$0xff]
  %v1002 = vld [vmem:[%s0 + $0x24a] sm:$0xff]
  %v1003 = vld [vmem:[%s0 + $0x25a] sm:$0xff]
  %v1004 = vld [vmem:[%s0 + $0x262] sm:$0xff]
  %v1005 = vld [vmem:[%s0 + $0x272] sm:$0xff]
  %v1006 = vld [vmem:[%s0 + $0x27a] sm:$0xff]
  %v1007 = vld [vmem:[%s0 + $0x28a] sm:$0xff]
  %v1008 = vld [vmem:[%s0 + $0x292] sm:$0xff]
  %v1009 = vld [vmem:[%s0 + $0x2a2] sm:$0xff]
  %v1010 = vld [vmem:[%s0 + $0x2aa] sm:$0xff]
  %v1011 = vld [vmem:[%s0 + $0x2ba] sm:$0xff]
  %v1012 = vld [vmem:[%s0 + $0x2c2] sm:$0xff]
  %v1013 = vld [vmem:[%s0 + $0x2d2] sm:$0xff]
  %v1014 = vld [vmem:[%s0 + $0x2da] sm:$0xff]
  %v1015 = vld [vmem:[%s0 + $0x2ea] sm:$0xff]
  %v1016 = vld [vmem:[%s0 + $0x2f2] sm:$0xff]
  %v1017 = vld [vmem:[%s0 + $0x302] sm:$0xff]
  %v1018 = vld [vmem:[%s0 + $0x30a] sm:$0xff]
  %v1019 = vld [vmem:[%s0 + $0x31a] sm:$0xff]
  %v1020 = vld [vmem:[%s0 + $0x322] sm:$0xff]
  %s1021 = scalar_lea.vmem %s1, 256
  %v1022 = vld [vmem:[%s1021] sm:$0xff]
  %v1023 = vld [vmem:[%s1021 + $0x8] sm:$0xff]
  %v1024 = vld [vmem:[%s1021 + $0x10] sm:$0xff]
  %v1025 = vld [vmem:[%s1021 + $0x18] sm:$0xff]
  %v1026 = vld [vmem:[%s1021 + $0x20] sm:$0xff]
  %v1027 = vld [vmem:[%s1021 + $0x28] sm:$0xff]
  %v1028 = vld [vmem:[%s1021 + $0x30] sm:$0xff]
  %v1029 = vld [vmem:[%s1021 + $0x38] sm:$0xff]
  %v1030 = vld [vmem:[%s1021 + $0x40] sm:$0xff]
  %v1031 = vld [vmem:[%s1021 + $0x48] sm:$0xff]
  %v1032 = vld [vmem:[%s1021 + $0x50] sm:$0xff]
  %v1033 = vld [vmem:[%s1021 + $0x58] sm:$0xff]
  %v1034 = vld [vmem:[%s1021 + $0x60] sm:$0xff]
  %v1035 = vld [vmem:[%s1021 + $0x68] sm:$0xff]
  %v1036 = vld [vmem:[%s1021 + $0x70] sm:$0xff]
  %v1037 = vld [vmem:[%s1021 + $0x78] sm:$0xff]
  %1038 = vmatprep.subr.mxu0 0.0
  %1039 = vmatpush1.msra.mxu0 %v1022
  %1040 = vmatprep.subr.mxu0 0.0
  %1041 = vmatpush1.msra.mxu0 %v1023
  %1042 = vmatprep.subr.mxu0 0.0
  %1043 = vmatpush1.msra.mxu0 %v1024
  %1044 = vmatprep.subr.mxu0 0.0
  %1045 = vmatpush1.msra.mxu0 %v1025
  %1046 = vmatprep.subr.mxu0 0.0
  %1047 = vmatpush1.msra.mxu0 %v1026
  %1048 = vmatprep.subr.mxu0 0.0
  %1049 = vmatpush1.msra.mxu0 %v1027
  %1050 = vmatprep.subr.mxu0 0.0
  %1051 = vmatpush1.msra.mxu0 %v1028
  %1052 = vmatprep.subr.mxu0 0.0
  %1053 = vmatpush1.msra.mxu0 %v1029
  %1054 = vmatprep.subr.mxu0 0.0
  %1055 = vmatpush1.msra.mxu0 %v1030
  %1056 = vmatprep.subr.mxu0 0.0
  %1057 = vmatpush1.msra.mxu0 %v1031
  %1058 = vmatprep.subr.mxu0 0.0
  %1059 = vmatpush1.msra.mxu0 %v1032
  %1060 = vmatprep.subr.mxu0 0.0
  %1061 = vmatpush1.msra.mxu0 %v1033
  %1062 = vmatprep.subr.mxu0 0.0
  %1063 = vmatpush1.msra.mxu0 %v1034
  %1064 = vmatprep.subr.mxu0 0.0
  %1065 = vmatpush1.msra.mxu0 %v1035
  %1066 = vmatprep.subr.mxu0 0.0
  %1067 = vmatpush1.msra.mxu0 %v1036
  %1068 = vmatprep.subr.mxu0 0.0
  %1069 = vmatpush1.msra.mxu0 %v1037
  %1070 = vmatprep.subr.mxu0 0.0
  %1071 = vmatpush1.msra.mxu0 0.0
  %1072 = vmatprep.subr.mxu0 0.0
  %1073 = vmatpush1.msra.mxu0 0.0
  %1074 = vmatprep.subr.mxu0 0.0
  %1075 = vmatpush1.msra.mxu0 0.0
  %1076 = vmatprep.subr.mxu0 0.0
  %1077 = vmatpush1.msra.mxu0 0.0
  %1078 = vmatprep.subr.mxu0 0.0
  %1079 = vmatpush1.msra.mxu0 0.0
  %1080 = vmatprep.subr.mxu0 0.0
  %1081 = vmatpush1.msra.mxu0 0.0
  %1082 = vmatprep.subr.mxu0 0.0
  %1083 = vmatpush1.msra.mxu0 0.0
  %1084 = vmatprep.subr.mxu0 0.0
  %1085 = vmatpush1.msra.mxu0 0.0
  %1086 = vmatprep.subr.mxu0 0.0
  %1087 = vmatpush1.msra.mxu0 0.0
  %1088 = vmatprep.subr.mxu0 0.0
  %1089 = vmatpush1.msra.mxu0 0.0
  %1090 = vmatprep.subr.mxu0 0.0
  %1091 = vmatpush1.msra.mxu0 0.0
  %1092 = vmatprep.subr.mxu0 0.0
  %1093 = vmatpush1.msra.mxu0 0.0
  %1094 = vmatprep.subr.mxu0 0.0
  %1095 = vmatpush1.msra.mxu0 0.0
  %1096 = vmatprep.subr.mxu0 0.0
  %1097 = vmatpush1.msra.mxu0 0.0
  %1098 = vmatprep.subr.mxu0 0.0
  %1099 = vmatpush1.msra.mxu0 0.0
  %1100 = vmatprep.subr.mxu0 0.0
  %1101 = vmatpush1.msra.mxu0 0.0
  %1102 = vmatprep.mubr.f32.mxu0 0.0
  %1103 = vmatmul.mubr.f32.gmra.mrb[0].mxu0 %v957
  %v1104 = vpop.f32.mrb[0].mxu0
  %v1105 = vadd.f32 0.0, %v1104
  %v1106 = vpop.f32.mrb[0].mxu0
  %1107 = vmatprep.mubr.f32.mxu0 0.0
  %1108 = vmatmul.mubr.f32.gmra.mrb[0].mxu0 %v958
  %v1109 = vpop.f32.mrb[0].mxu0
  %v1110 = vadd.f32 0.0, %v1109
  %v1111 = vpop.f32.mrb[0].mxu0
  %1112 = vmatprep.mubr.f32.mxu0 0.0
  %1113 = vmatmul.mubr.f32.gmra.mrb[0].mxu0 %v959
  %v1114 = vpop.f32.mrb[0].mxu0
  %v1115 = vadd.f32 0.0, %v1114
  %v1116 = vpop.f32.mrb[0].mxu0
  %1117 = vmatprep.mubr.f32.mxu0 0.0
  %1118 = vmatmul.mubr.f32.gmra.mrb[0].mxu0 %v960
  %v1119 = vpop.f32.mrb[0].mxu0
  %v1120 = vadd.f32 0.0, %v1119
  %v1121 = vpop.f32.mrb[0].mxu0
  %1122 = vmatprep.mubr.f32.mxu0 0.0
  %1123 = vmatmul.mubr.f32.gmra.mrb[0].mxu0 %v961
  %v1124 = vpop.f32.mrb[0].mxu0
  %v1125 = vadd.f32 0.0, %v1124
  %v1126 = vpop.f32.mrb[0].mxu0
  %1127 = vmatprep.mubr.f32.mxu0 0.0
  %1128 = vmatmul.mubr.f32.gmra.mrb[0].mxu0 %v962
  %v1129 = vpop.f32.mrb[0].mxu0
  %v1130 = vadd.f32 0.0, %v1129
  %v1131 = vpop.f32.mrb[0].mxu0
  %1132 = vmatprep.mubr.f32.mxu0 0.0
  %1133 = vmatmul.mubr.f32.gmra.mrb[0].mxu0 %v963
  %v1134 = vpop.f32.mrb[0].mxu0
  %v1135 = vadd.f32 0.0, %v1134
  %v1136 = vpop.f32.mrb[0].mxu0
  %1137 = vmatprep.mubr.f32.mxu0 0.0
  %1138 = vmatmul.mubr.f32.gmra.mrb[0].mxu0 %v964
  %v1139 = vpop.f32.mrb[0].mxu0
  %v1140 = vadd.f32 0.0, %v1139
  %v1141 = vpop.f32.mrb[0].mxu0
  %1142 = vmatprep.mubr.f32.mxu0 0.0
  %1143 = vmatmul.mubr.f32.gmra.mrb[0].mxu0 %v965
  %v1144 = vpop.f32.mrb[0].mxu0
  %v1145 = vadd.f32 0.0, %v1144
  %v1146 = vpop.f32.mrb[0].mxu0
  %1147 = vmatprep.mubr.f32.mxu0 0.0
  %1148 = vmatmul.mubr.f32.gmra.mrb[0].mxu0 %v966
  %v1149 = vpop.f32.mrb[0].mxu0
  %v1150 = vadd.f32 0.0, %v1149
  %v1151 = vpop.f32.mrb[0].mxu0
  %1152 = vmatprep.mubr.f32.mxu0 0.0
  %1153 = vmatmul.mubr.f32.gmra.mrb[0].mxu0 %v967
  %v1154 = vpop.f32.mrb[0].mxu0
  %v1155 = vadd.f32 0.0, %v1154
  %v1156 = vpop.f32.mrb[0].mxu0
  %1157 = vmatprep.mubr.f32.mxu0 0.0
  %1158 = vmatmul.mubr.f32.gmra.mrb[0].mxu0 %v968
  %v1159 = vpop.f32.mrb[0].mxu0
  %v1160 = vadd.f32 0.0, %v1159
  %v1161 = vpop.f32.mrb[0].mxu0
  %1162 = vmatprep.mubr.f32.mxu0 0.0
  %1163 = vmatmul.mubr.f32.gmra.mrb[0].mxu0 %v969
  %v1164 = vpop.f32.mrb[0].mxu0
  %v1165 = vadd.f32 0.0, %v1164
  %v1166 = vpop.f32.mrb[0].mxu0
  %1167 = vmatprep.mubr.f32.mxu0 0.0
  %1168 = vmatmul.mubr.f32.gmra.mrb[0].mxu0 %v970
  %v1169 = vpop.f32.mrb[0].mxu0
  %v1170 = vadd.f32 0.0, %v1169
  %v1171 = vpop.f32.mrb[0].mxu0
  %1172 = vmatprep.mubr.f32.mxu0 0.0
  %1173 = vmatmul.mubr.f32.gmra.mrb[0].mxu0 %v971
  %v1174 = vpop.f32.mrb[0].mxu0
  %v1175 = vadd.f32 0.0, %v1174
  %v1176 = vpop.f32.mrb[0].mxu0
  %1177 = vmatprep.mubr.f32.mxu0 0.0
  %1178 = vmatmul.mubr.f32.gmra.mrb[0].mxu0 %v972
  %v1179 = vpop.f32.mrb[0].mxu0
  %v1180 = vadd.f32 0.0, %v1179
  %v1181 = vpop.f32.mrb[0].mxu0
  %1182 = vmatprep.mubr.f32.mxu0 0.0
  %1183 = vmatmul.mubr.f32.gmra.mrb[0].mxu0 %v973
  %v1184 = vpop.f32.mrb[0].mxu0
  %v1185 = vadd.f32 0.0, %v1184
  %v1186 = vpop.f32.mrb[0].mxu0
  %1187 = vmatprep.mubr.f32.mxu0 0.0
  %1188 = vmatmul.mubr.f32.gmra.mrb[0].mxu0 %v974
  %v1189 = vpop.f32.mrb[0].mxu0
  %v1190 = vadd.f32 0.0, %v1189
  %v1191 = vpop.f32.mrb[0].mxu0
  %1192 = vmatprep.mubr.f32.mxu0 0.0
  %1193 = vmatmul.mubr.f32.gmra.mrb[0].mxu0 %v975
  %v1194 = vpop.f32.mrb[0].mxu0
  %v1195 = vadd.f32 0.0, %v1194
  %v1196 = vpop.f32.mrb[0].mxu0
  %1197 = vmatprep.mubr.f32.mxu0 0.0
  %1198 = vmatmul.mubr.f32.gmra.mrb[0].mxu0 %v976
  %v1199 = vpop.f32.mrb[0].mxu0
  %v1200 = vadd.f32 0.0, %v1199
  %v1201 = vpop.f32.mrb[0].mxu0
  %1202 = vmatprep.mubr.f32.mxu0 0.0
  %1203 = vmatmul.mubr.f32.gmra.mrb[0].mxu0 %v977
  %v1204 = vpop.f32.mrb[0].mxu0
  %v1205 = vadd.f32 0.0, %v1204
  %v1206 = vpop.f32.mrb[0].mxu0
  %1207 = vmatprep.mubr.f32.mxu0 0.0
  %1208 = vmatmul.mubr.f32.gmra.mrb[0].mxu0 %v978
  %v1209 = vpop.f32.mrb[0].mxu0
  %v1210 = vadd.f32 0.0, %v1209
  %v1211 = vpop.f32.mrb[0].mxu0
  %1212 = vmatprep.mubr.f32.mxu0 0.0
  %1213 = vmatmul.mubr.f32.gmra.mrb[0].mxu0 %v979
  %v1214 = vpop.f32.mrb[0].mxu0
  %v1215 = vadd.f32 0.0, %v1214
  %v1216 = vpop.f32.mrb[0].mxu0
  %1217 = vmatprep.mubr.f32.mxu0 0.0
  %1218 = vmatmul.mubr.f32.gmra.mrb[0].mxu0 %v980
  %v1219 = vpop.f32.mrb[0].mxu0
  %v1220 = vadd.f32 0.0, %v1219
  %v1221 = vpop.f32.mrb[0].mxu0
  %1222 = vmatprep.mubr.f32.mxu0 0.0
  %1223 = vmatmul.mubr.f32.gmra.mrb[0].mxu0 %v981
  %v1224 = vpop.f32.mrb[0].mxu0
  %v1225 = vadd.f32 0.0, %v1224
  %v1226 = vpop.f32.mrb[0].mxu0
  %1227 = vmatprep.mubr.f32.mxu0 0.0
  %1228 = vmatmul.mubr.f32.gmra.mrb[0].mxu0 %v982
  %v1229 = vpop.f32.mrb[0].mxu0
  %v1230 = vadd.f32 0.0, %v1229
  %v1231 = vpop.f32.mrb[0].mxu0
  %1232 = vmatprep.mubr.f32.mxu0 0.0
  %1233 = vmatmul.mubr.f32.gmra.mrb[0].mxu0 %v983
  %v1234 = vpop.f32.mrb[0].mxu0
  %v1235 = vadd.f32 0.0, %v1234
  %v1236 = vpop.f32.mrb[0].mxu0
  %1237 = vmatprep.mubr.f32.mxu0 0.0
  %1238 = vmatmul.mubr.f32.gmra.mrb[0].mxu0 %v984
  %v1239 = vpop.f32.mrb[0].mxu0
  %v1240 = vadd.f32 0.0, %v1239
  %v1241 = vpop.f32.mrb[0].mxu0
  %1242 = vmatprep.mubr.f32.mxu0 0.0
  %1243 = vmatmul.mubr.f32.gmra.mrb[0].mxu0 %v985
  %v1244 = vpop.f32.mrb[0].mxu0
  %v1245 = vadd.f32 0.0, %v1244
  %v1246 = vpop.f32.mrb[0].mxu0
  %1247 = vmatprep.mubr.f32.mxu0 0.0
  %1248 = vmatmul.mubr.f32.gmra.mrb[0].mxu0 %v986
  %v1249 = vpop.f32.mrb[0].mxu0
  %v1250 = vadd.f32 0.0, %v1249
  %v1251 = vpop.f32.mrb[0].mxu0
  %1252 = vmatprep.mubr.f32.mxu0 0.0
  %1253 = vmatmul.mubr.f32.gmra.mrb[0].mxu0 %v987
  %v1254 = vpop.f32.mrb[0].mxu0
  %v1255 = vadd.f32 0.0, %v1254
  %v1256 = vpop.f32.mrb[0].mxu0
  %1257 = vmatprep.mubr.f32.mxu0 0.0
  %1258 = vmatmul.mubr.f32.gmra.mrb[0].mxu0 %v988
  %v1259 = vpop.f32.mrb[0].mxu0
  %v1260 = vadd.f32 0.0, %v1259
  %v1261 = vpop.f32.mrb[0].mxu0
  %1262 = vmatprep.mubr.f32.mxu0 0.0
  %1263 = vmatmul.mubr.f32.gmra.mrb[0].mxu0 %v989
  %v1264 = vpop.f32.mrb[0].mxu0
  %v1265 = vadd.f32 0.0, %v1264
  %v1266 = vpop.f32.mrb[0].mxu0
  %1267 = vmatprep.mubr.f32.mxu0 0.0
  %1268 = vmatmul.mubr.f32.gmra.mrb[0].mxu0 %v990
  %v1269 = vpop.f32.mrb[0].mxu0
  %v1270 = vadd.f32 0.0, %v1269
  %v1271 = vpop.f32.mrb[0].mxu0
  %1272 = vmatprep.mubr.f32.mxu0 0.0
  %1273 = vmatmul.mubr.f32.gmra.mrb[0].mxu0 %v991
  %v1274 = vpop.f32.mrb[0].mxu0
  %v1275 = vadd.f32 0.0, %v1274
  %v1276 = vpop.f32.mrb[0].mxu0
  %1277 = vmatprep.mubr.f32.mxu0 0.0
  %1278 = vmatmul.mubr.f32.gmra.mrb[0].mxu0 %v992
  %v1279 = vpop.f32.mrb[0].mxu0
  %v1280 = vadd.f32 0.0, %v1279
  %v1281 = vpop.f32.mrb[0].mxu0
  %1282 = vmatprep.mubr.f32.mxu0 0.0
  %1283 = vmatmul.mubr.f32.gmra.mrb[0].mxu0 %v993
  %v1284 = vpop.f32.mrb[0].mxu0
  %v1285 = vadd.f32 0.0, %v1284
  %v1286 = vpop.f32.mrb[0].mxu0
  %1287 = vmatprep.mubr.f32.mxu0 0.0
  %1288 = vmatmul.mubr.f32.gmra.mrb[0].mxu0 %v994
  %v1289 = vpop.f32.mrb[0].mxu0
  %v1290 = vadd.f32 0.0, %v1289
  %v1291 = vpop.f32.mrb[0].mxu0
  %1292 = vmatprep.mubr.f32.mxu0 0.0
  %1293 = vmatmul.mubr.f32.gmra.mrb[0].mxu0 %v995
  %v1294 = vpop.f32.mrb[0].mxu0
  %v1295 = vadd.f32 0.0, %v1294
  %v1296 = vpop.f32.mrb[0].mxu0
  %1297 = vmatprep.mubr.f32.mxu0 0.0
  %1298 = vmatmul.mubr.f32.gmra.mrb[0].mxu0 %v996
  %v1299 = vpop.f32.mrb[0].mxu0
  %v1300 = vadd.f32 0.0, %v1299
  %v1301 = vpop.f32.mrb[0].mxu0
  %1302 = vmatprep.mubr.f32.mxu0 0.0
  %1303 = vmatmul.mubr.f32.gmra.mrb[0].mxu0 %v997
  %v1304 = vpop.f32.mrb[0].mxu0
  %v1305 = vadd.f32 0.0, %v1304
  %v1306 = vpop.f32.mrb[0].mxu0
  %1307 = vmatprep.mubr.f32.mxu0 0.0
  %1308 = vmatmul.mubr.f32.gmra.mrb[0].mxu0 %v998
  %v1309 = vpop.f32.mrb[0].mxu0
  %v1310 = vadd.f32 0.0, %v1309
  %v1311 = vpop.f32.mrb[0].mxu0
  %1312 = vmatprep.mubr.f32.mxu0 0.0
  %1313 = vmatmul.mubr.f32.gmra.mrb[0].mxu0 %v999
  %v1314 = vpop.f32.mrb[0].mxu0
  %v1315 = vadd.f32 0.0, %v1314
  %v1316 = vpop.f32.mrb[0].mxu0
  %1317 = vmatprep.mubr.f32.mxu0 0.0
  %1318 = vmatmul.mubr.f32.gmra.mrb[0].mxu0 %v1000
  %v1319 = vpop.f32.mrb[0].mxu0
  %v1320 = vadd.f32 0.0, %v1319
  %v1321 = vpop.f32.mrb[0].mxu0
  %1322 = vmatprep.mubr.f32.mxu0 0.0
  %1323 = vmatmul.mubr.f32.gmra.mrb[0].mxu0 %v1001
  %v1324 = vpop.f32.mrb[0].mxu0
  %v1325 = vadd.f32 0.0, %v1324
  %v1326 = vpop.f32.mrb[0].mxu0
  %1327 = vmatprep.mubr.f32.mxu0 0.0
  %1328 = vmatmul.mubr.f32.gmra.mrb[0].mxu0 %v1002
  %v1329 = vpop.f32.mrb[0].mxu0
  %v1330 = vadd.f32 0.0, %v1329
  %v1331 = vpop.f32.mrb[0].mxu0
  %1332 = vmatprep.mubr.f32.mxu0 0.0
  %1333 = vmatmul.mubr.f32.gmra.mrb[0].mxu0 %v1003
  %v1334 = vpop.f32.mrb[0].mxu0
  %v1335 = vadd.f32 0.0, %v1334
  %v1336 = vpop.f32.mrb[0].mxu0
  %1337 = vmatprep.mubr.f32.mxu0 0.0
  %1338 = vmatmul.mubr.f32.gmra.mrb[0].mxu0 %v1004
  %v1339 = vpop.f32.mrb[0].mxu0
  %v1340 = vadd.f32 0.0, %v1339
  %v1341 = vpop.f32.mrb[0].mxu0
  %1342 = vmatprep.mubr.f32.mxu0 0.0
  %1343 = vmatmul.mubr.f32.gmra.mrb[0].mxu0 %v1005
  %v1344 = vpop.f32.mrb[0].mxu0
  %v1345 = vadd.f32 0.0, %v1344
  %v1346 = vpop.f32.mrb[0].mxu0
  %1347 = vmatprep.mubr.f32.mxu0 0.0
  %1348 = vmatmul.mubr.f32.gmra.mrb[0].mxu0 %v1006
  %v1349 = vpop.f32.mrb[0].mxu0
  %v1350 = vadd.f32 0.0, %v1349
  %v1351 = vpop.f32.mrb[0].mxu0
  %1352 = vmatprep.mubr.f32.mxu0 0.0
  %1353 = vmatmul.mubr.f32.gmra.mrb[0].mxu0 %v1007
  %v1354 = vpop.f32.mrb[0].mxu0
  %v1355 = vadd.f32 0.0, %v1354
  %v1356 = vpop.f32.mrb[0].mxu0
  %1357 = vmatprep.mubr.f32.mxu0 0.0
  %1358 = vmatmul.mubr.f32.gmra.mrb[0].mxu0 %v1008
  %v1359 = vpop.f32.mrb[0].mxu0
  %v1360 = vadd.f32 0.0, %v1359
  %v1361 = vpop.f32.mrb[0].mxu0
  %1362 = vmatprep.mubr.f32.mxu0 0.0
  %1363 = vmatmul.mubr.f32.gmra.mrb[0].mxu0 %v1009
  %v1364 = vpop.f32.mrb[0].mxu0
  %v1365 = vadd.f32 0.0, %v1364
  %v1366 = vpop.f32.mrb[0].mxu0
  %1367 = vmatprep.mubr.f32.mxu0 0.0
  %1368 = vmatmul.mubr.f32.gmra.mrb[0].mxu0 %v1010
  %v1369 = vpop.f32.mrb[0].mxu0
  %v1370 = vadd.f32 0.0, %v1369
  %v1371 = vpop.f32.mrb[0].mxu0
  %1372 = vmatprep.mubr.f32.mxu0 0.0
  %1373 = vmatmul.mubr.f32.gmra.mrb[0].mxu0 %v1011
  %v1374 = vpop.f32.mrb[0].mxu0
  %v1375 = vadd.f32 0.0, %v1374
  %v1376 = vpop.f32.mrb[0].mxu0
  %1377 = vmatprep.mubr.f32.mxu0 0.0
  %1378 = vmatmul.mubr.f32.gmra.mrb[0].mxu0 %v1012
  %v1379 = vpop.f32.mrb[0].mxu0
  %v1380 = vadd.f32 0.0, %v1379
  %v1381 = vpop.f32.mrb[0].mxu0
  %1382 = vmatprep.mubr.f32.mxu0 0.0
  %1383 = vmatmul.mubr.f32.gmra.mrb[0].mxu0 %v1013
  %v1384 = vpop.f32.mrb[0].mxu0
  %v1385 = vadd.f32 0.0, %v1384
  %v1386 = vpop.f32.mrb[0].mxu0
  %1387 = vmatprep.mubr.f32.mxu0 0.0
  %1388 = vmatmul.mubr.f32.gmra.mrb[0].mxu0 %v1014
  %v1389 = vpop.f32.mrb[0].mxu0
  %v1390 = vadd.f32 0.0, %v1389
  %v1391 = vpop.f32.mrb[0].mxu0
  %1392 = vmatprep.mubr.f32.mxu0 0.0
  %1393 = vmatmul.mubr.f32.gmra.mrb[0].mxu0 %v1015
  %v1394 = vpop.f32.mrb[0].mxu0
  %v1395 = vadd.f32 0.0, %v1394
  %v1396 = vpop.f32.mrb[0].mxu0
  %1397 = vmatprep.mubr.f32.mxu0 0.0
  %1398 = vmatmul.mubr.f32.gmra.mrb[0].mxu0 %v1016
  %v1399 = vpop.f32.mrb[0].mxu0
  %v1400 = vadd.f32 0.0, %v1399
  %v1401 = vpop.f32.mrb[0].mxu0
  %1402 = vmatprep.mubr.f32.mxu0 0.0
  %1403 = vmatmul.mubr.f32.gmra.mrb[0].mxu0 %v1017
  %v1404 = vpop.f32.mrb[0].mxu0
  %v1405 = vadd.f32 0.0, %v1404
  %v1406 = vpop.f32.mrb[0].mxu0
  %1407 = vmatprep.mubr.f32.mxu0 0.0
  %1408 = vmatmul.mubr.f32.gmra.mrb[0].mxu0 %v1018
  %v1409 = vpop.f32.mrb[0].mxu0
  %v1410 = vadd.f32 0.0, %v1409
  %v1411 = vpop.f32.mrb[0].mxu0
  %1412 = vmatprep.mubr.f32.mxu0 0.0
  %1413 = vmatmul.mubr.f32.gmra.mrb[0].mxu0 %v1019
  %v1414 = vpop.f32.mrb[0].mxu0
  %v1415 = vadd.f32 0.0, %v1414
  %v1416 = vpop.f32.mrb[0].mxu0
  %1417 = vmatprep.mubr.f32.mxu0 0.0
  %1418 = vmatmul.mubr.f32.gmra.mrb[0].mxu0 %v1020
  %v1419 = vpop.f32.mrb[0].mxu0
  %v1420 = vadd.f32 0.0, %v1419
  %v1421 = vpop.f32.mrb[0].mxu0
  %1422 = vdwg.mxu0
  %v1423 = vadd.f32 %v639, %v1105
  %v1424 = vadd.f32 %v644, %v1110
  %v1425 = vadd.f32 %v649, %v1115
  %v1426 = vadd.f32 %v654, %v1120
  %v1427 = vadd.f32 %v659, %v1125
  %v1428 = vadd.f32 %v664, %v1130
  %v1429 = vadd.f32 %v669, %v1135
  %v1430 = vadd.f32 %v674, %v1140
  %v1431 = vadd.f32 %v679, %v1145
  %v1432 = vadd.f32 %v684, %v1150
  %v1433 = vadd.f32 %v689, %v1155
  %v1434 = vadd.f32 %v694, %v1160
  %v1435 = vadd.f32 %v699, %v1165
  %v1436 = vadd.f32 %v704, %v1170
  %v1437 = vadd.f32 %v709, %v1175
  %v1438 = vadd.f32 %v714, %v1180
  %v1439 = vadd.f32 %v719, %v1185
  %v1440 = vadd.f32 %v724, %v1190
  %v1441 = vadd.f32 %v729, %v1195
  %v1442 = vadd.f32 %v734, %v1200
  %v1443 = vadd.f32 %v739, %v1205
  %v1444 = vadd.f32 %v744, %v1210
  %v1445 = vadd.f32 %v749, %v1215
  %v1446 = vadd.f32 %v754, %v1220
  %v1447 = vadd.f32 %v759, %v1225
  %v1448 = vadd.f32 %v764, %v1230
  %v1449 = vadd.f32 %v769, %v1235
  %v1450 = vadd.f32 %v774, %v1240
  %v1451 = vadd.f32 %v779, %v1245
  %v1452 = vadd.f32 %v784, %v1250
  %v1453 = vadd.f32 %v789, %v1255
  %v1454 = vadd.f32 %v794, %v1260
  %v1455 = vadd.f32 %v799, %v1265
  %v1456 = vadd.f32 %v804, %v1270
  %v1457 = vadd.f32 %v809, %v1275
  %v1458 = vadd.f32 %v814, %v1280
  %v1459 = vadd.f32 %v819, %v1285
  %v1460 = vadd.f32 %v824, %v1290
  %v1461 = vadd.f32 %v829, %v1295
  %v1462 = vadd.f32 %v834, %v1300
  %v1463 = vadd.f32 %v839, %v1305
  %v1464 = vadd.f32 %v844, %v1310
  %v1465 = vadd.f32 %v849, %v1315
  %v1466 = vadd.f32 %v854, %v1320
  %v1467 = vadd.f32 %v859, %v1325
  %v1468 = vadd.f32 %v864, %v1330
  %v1469 = vadd.f32 %v869, %v1335
  %v1470 = vadd.f32 %v874, %v1340
  %v1471 = vadd.f32 %v879, %v1345
  %v1472 = vadd.f32 %v884, %v1350
  %v1473 = vadd.f32 %v889, %v1355
  %v1474 = vadd.f32 %v894, %v1360
  %v1475 = vadd.f32 %v899, %v1365
  %v1476 = vadd.f32 %v904, %v1370
  %v1477 = vadd.f32 %v909, %v1375
  %v1478 = vadd.f32 %v914, %v1380
  %v1479 = vadd.f32 %v919, %v1385
  %v1480 = vadd.f32 %v924, %v1390
  %v1481 = vadd.f32 %v929, %v1395
  %v1482 = vadd.f32 %v934, %v1400
  %v1483 = vadd.f32 %v939, %v1405
  %v1484 = vadd.f32 %v944, %v1410
  %v1485 = vadd.f32 %v949, %v1415
  %v1486 = vadd.f32 %v954, %v1420
  %s1487 = scalar_lea.vmem %s0, 24
  %v1488 = vld [vmem:[%s1487] sm:$0xff]
  %v1489 = vld [vmem:[%s1487 + $0x8] sm:$0xff]
  %v1490 = vld [vmem:[%s1487 + $0x18] sm:$0xff]
  %v1491 = vld [vmem:[%s1487 + $0x20] sm:$0xff]
  %v1492 = vld [vmem:[%s1487 + $0x30] sm:$0xff]
  %v1493 = vld [vmem:[%s1487 + $0x38] sm:$0xff]
  %v1494 = vld [vmem:[%s1487 + $0x48] sm:$0xff]
  %v1495 = vld [vmem:[%s1487 + $0x50] sm:$0xff]
  %v1496 = vld [vmem:[%s1487 + $0x60] sm:$0xff]
  %v1497 = vld [vmem:[%s1487 + $0x68] sm:$0xff]
  %v1498 = vld [vmem:[%s1487 + $0x78] sm:$0xff]
  %v1499 = vld [vmem:[%s1487 + $0x80] sm:$0xff]
  %v1500 = vld [vmem:[%s1487 + $0x90] sm:$0xff]
  %v1501 = vld [vmem:[%s1487 + $0x98] sm:$0xff]
  %v1502 = vld [vmem:[%s1487 + $0xa8] sm:$0xff]
  %v1503 = vld [vmem:[%s1487 + $0xb0] sm:$0xff]
  %v1504 = vld [vmem:[%s1487 + $0xc0] sm:$0xff]
  %v1505 = vld [vmem:[%s1487 + $0xc8] sm:$0xff]
  %v1506 = vld [vmem:[%s1487 + $0xd8] sm:$0xff]
  %v1507 = vld [vmem:[%s1487 + $0xe0] sm:$0xff]
  %v1508 = vld [vmem:[%s1487 + $0xf0] sm:$0xff]
  %v1509 = vld [vmem:[%s1487 + $0xf8] sm:$0xff]
  %v1510 = vld [vmem:[%s1487 + $0x108] sm:$0xff]
  %v1511 = vld [vmem:[%s1487 + $0x110] sm:$0xff]
  %v1512 = vld [vmem:[%s1487 + $0x120] sm:$0xff]
  %v1513 = vld [vmem:[%s1487 + $0x128] sm:$0xff]
  %v1514 = vld [vmem:[%s1487 + $0x138] sm:$0xff]
  %v1515 = vld [vmem:[%s1487 + $0x140] sm:$0xff]
  %v1516 = vld [vmem:[%s1487 + $0x150] sm:$0xff]
  %v1517 = vld [vmem:[%s1487 + $0x158] sm:$0xff]
  %v1518 = vld [vmem:[%s1487 + $0x168] sm:$0xff]
  %v1519 = vld [vmem:[%s1487 + $0x170] sm:$0xff]
  %v1520 = vld [vmem:[%s1487 + $0x1b0] sm:$0xff]
  %v1521 = vld [vmem:[%s1487 + $0x1b8] sm:$0xff]
  %v1522 = vld [vmem:[%s1487 + $0x1c8] sm:$0xff]
  %v1523 = vld [vmem:[%s1487 + $0x1d0] sm:$0xff]
  %v1524 = vld [vmem:[%s1487 + $0x1e0] sm:$0xff]
  %v1525 = vld [vmem:[%s1487 + $0x1e8] sm:$0xff]
  %v1526 = vld [vmem:[%s1487 + $0x1f8] sm:$0xff]
  %v1527 = vld [vmem:[%s1487 + $0x200] sm:$0xff]
  %v1528 = vld [vmem:[%s1487 + $0x210] sm:$0xff]
  %v1529 = vld [vmem:[%s1487 + $0x218] sm:$0xff]
  %v1530 = vld [vmem:[%s1487 + $0x228] sm:$0xff]
  %v1531 = vld [vmem:[%s1487 + $0x230] sm:$0xff]
  %v1532 = vld [vmem:[%s1487 + $0x240] sm:$0xff]
  %v1533 = vld [vmem:[%s1487 + $0x248] sm:$0xff]
  %v1534 = vld [vmem:[%s1487 + $0x258] sm:$0xff]
  %v1535 = vld [vmem:[%s1487 + $0x260] sm:$0xff]
  %v1536 = vld [vmem:[%s1487 + $0x270] sm:$0xff]
  %v1537 = vld [vmem:[%s1487 + $0x278] sm:$0xff]
  %v1538 = vld [vmem:[%s1487 + $0x288] sm:$0xff]
  %v1539 = vld [vmem:[%s1487 + $0x290] sm:$0xff]
  %v1540 = vld [vmem:[%s1487 + $0x2a0] sm:$0xff]
  %v1541 = vld [vmem:[%s1487 + $0x2a8] sm:$0xff]
  %v1542 = vld [vmem:[%s1487 + $0x2b8] sm:$0xff]
  %v1543 = vld [vmem:[%s1487 + $0x2c0] sm:$0xff]
  %v1544 = vld [vmem:[%s1487 + $0x2d0] sm:$0xff]
  %v1545 = vld [vmem:[%s1487 + $0x2d8] sm:$0xff]
  %v1546 = vld [vmem:[%s1487 + $0x2e8] sm:$0xff]
  %v1547 = vld [vmem:[%s1487 + $0x2f0] sm:$0xff]
  %v1548 = vld [vmem:[%s1487 + $0x300] sm:$0xff]
  %v1549 = vld [vmem:[%s1487 + $0x308] sm:$0xff]
  %v1550 = vld [vmem:[%s1487 + $0x318] sm:$0xff]
  %v1551 = vld [vmem:[%s1487 + $0x320] sm:$0xff]
  %s1552 = scalar_lea.vmem %s1, 384
  %v1553 = vld [vmem:[%s1552] sm:$0xff]
  %v1554 = vld [vmem:[%s1552 + $0x8] sm:$0xff]
  %v1555 = vld [vmem:[%s1552 + $0x10] sm:$0xff]
  %v1556 = vld [vmem:[%s1552 + $0x18] sm:$0xff]
  %v1557 = vld [vmem:[%s1552 + $0x20] sm:$0xff]
  %v1558 = vld [vmem:[%s1552 + $0x28] sm:$0xff]
  %v1559 = vld [vmem:[%s1552 + $0x30] sm:$0xff]
  %v1560 = vld [vmem:[%s1552 + $0x38] sm:$0xff]
  %v1561 = vld [vmem:[%s1552 + $0x40] sm:$0xff]
  %v1562 = vld [vmem:[%s1552 + $0x48] sm:$0xff]
  %v1563 = vld [vmem:[%s1552 + $0x50] sm:$0xff]
  %v1564 = vld [vmem:[%s1552 + $0x58] sm:$0xff]
  %v1565 = vld [vmem:[%s1552 + $0x60] sm:$0xff]
  %v1566 = vld [vmem:[%s1552 + $0x68] sm:$0xff]
  %v1567 = vld [vmem:[%s1552 + $0x70] sm:$0xff]
  %v1568 = vld [vmem:[%s1552 + $0x78] sm:$0xff]
  %1569 = vmatprep.subr.mxu0 0.0
  %1570 = vmatpush1.msra.mxu0 %v1553
  %1571 = vmatprep.subr.mxu0 0.0
  %1572 = vmatpush1.msra.mxu0 %v1554
  %1573 = vmatprep.subr.mxu0 0.0
  %1574 = vmatpush1.msra.mxu0 %v1555
  %1575 = vmatprep.subr.mxu0 0.0
  %1576 = vmatpush1.msra.mxu0 %v1556
  %1577 = vmatprep.subr.mxu0 0.0
  %1578 = vmatpush1.msra.mxu0 %v1557
  %1579 = vmatprep.subr.mxu0 0.0
  %1580 = vmatpush1.msra.mxu0 %v1558
  %1581 = vmatprep.subr.mxu0 0.0
  %1582 = vmatpush1.msra.mxu0 %v1559
  %1583 = vmatprep.subr.mxu0 0.0
  %1584 = vmatpush1.msra.mxu0 %v1560
  %1585 = vmatprep.subr.mxu0 0.0
  %1586 = vmatpush1.msra.mxu0 %v1561
  %1587 = vmatprep.subr.mxu0 0.0
  %1588 = vmatpush1.msra.mxu0 %v1562
  %1589 = vmatprep.subr.mxu0 0.0
  %1590 = vmatpush1.msra.mxu0 %v1563
  %1591 = vmatprep.subr.mxu0 0.0
  %1592 = vmatpush1.msra.mxu0 %v1564
  %1593 = vmatprep.subr.mxu0 0.0
  %1594 = vmatpush1.msra.mxu0 %v1565
  %1595 = vmatprep.subr.mxu0 0.0
  %1596 = vmatpush1.msra.mxu0 %v1566
  %1597 = vmatprep.subr.mxu0 0.0
  %1598 = vmatpush1.msra.mxu0 %v1567
  %1599 = vmatprep.subr.mxu0 0.0
  %1600 = vmatpush1.msra.mxu0 %v1568
  %1601 = vmatprep.subr.mxu0 0.0
  %1602 = vmatpush1.msra.mxu0 0.0
  %1603 = vmatprep.subr.mxu0 0.0
  %1604 = vmatpush1.msra.mxu0 0.0
  %1605 = vmatprep.subr.mxu0 0.0
  %1606 = vmatpush1.msra.mxu0 0.0
  %1607 = vmatprep.subr.mxu0 0.0
  %1608 = vmatpush1.msra.mxu0 0.0
  %1609 = vmatprep.subr.mxu0 0.0
  %1610 = vmatpush1.msra.mxu0 0.0
  %1611 = vmatprep.subr.mxu0 0.0
  %1612 = vmatpush1.msra.mxu0 0.0
  %1613 = vmatprep.subr.mxu0 0.0
  %1614 = vmatpush1.msra.mxu0 0.0
  %1615 = vmatprep.subr.mxu0 0.0
  %1616 = vmatpush1.msra.mxu0 0.0
  %1617 = vmatprep.subr.mxu0 0.0
  %1618 = vmatpush1.msra.mxu0 0.0
  %1619 = vmatprep.subr.mxu0 0.0
  %1620 = vmatpush1.msra.mxu0 0.0
  %1621 = vmatprep.subr.mxu0 0.0
  %1622 = vmatpush1.msra.mxu0 0.0
  %1623 = vmatprep.subr.mxu0 0.0
  %1624 = vmatpush1.msra.mxu0 0.0
  %1625 = vmatprep.subr.mxu0 0.0
  %1626 = vmatpush1.msra.mxu0 0.0
  %1627 = vmatprep.subr.mxu0 0.0
  %1628 = vmatpush1.msra.mxu0 0.0
  %1629 = vmatprep.subr.mxu0 0.0
  %1630 = vmatpush1.msra.mxu0 0.0
  %1631 = vmatprep.subr.mxu0 0.0
  %1632 = vmatpush1.msra.mxu0 0.0
  %1633 = vmatprep.mubr.f32.mxu0 0.0
  %1634 = vmatmul.mubr.f32.gmra.mrb[0].mxu0 %v1488
  %v1635 = vpop.f32.mrb[0].mxu0
  %v1636 = vadd.f32 0.0, %v1635
  %v1637 = vpop.f32.mrb[0].mxu0
  %1638 = vmatprep.mubr.f32.mxu0 0.0
  %1639 = vmatmul.mubr.f32.gmra.mrb[0].mxu0 %v1489
  %v1640 = vpop.f32.mrb[0].mxu0
  %v1641 = vadd.f32 0.0, %v1640
  %v1642 = vpop.f32.mrb[0].mxu0
  %1643 = vmatprep.mubr.f32.mxu0 0.0
  %1644 = vmatmul.mubr.f32.gmra.mrb[0].mxu0 %v1490
  %v1645 = vpop.f32.mrb[0].mxu0
  %v1646 = vadd.f32 0.0, %v1645
  %v1647 = vpop.f32.mrb[0].mxu0
  %1648 = vmatprep.mubr.f32.mxu0 0.0
  %1649 = vmatmul.mubr.f32.gmra.mrb[0].mxu0 %v1491
  %v1650 = vpop.f32.mrb[0].mxu0
  %v1651 = vadd.f32 0.0, %v1650
  %v1652 = vpop.f32.mrb[0].mxu0
  %1653 = vmatprep.mubr.f32.mxu0 0.0
  %1654 = vmatmul.mubr.f32.gmra.mrb[0].mxu0 %v1492
  %v1655 = vpop.f32.mrb[0].mxu0
  %v1656 = vadd.f32 0.0, %v1655
  %v1657 = vpop.f32.mrb[0].mxu0
  %1658 = vmatprep.mubr.f32.mxu0 0.0
  %1659 = vmatmul.mubr.f32.gmra.mrb[0].mxu0 %v1493
  %v1660 = vpop.f32.mrb[0].mxu0
  %v1661 = vadd.f32 0.0, %v1660
  %v1662 = vpop.f32.mrb[0].mxu0
  %1663 = vmatprep.mubr.f32.mxu0 0.0
  %1664 = vmatmul.mubr.f32.gmra.mrb[0].mxu0 %v1494
  %v1665 = vpop.f32.mrb[0].mxu0
  %v1666 = vadd.f32 0.0, %v1665
  %v1667 = vpop.f32.mrb[0].mxu0
  %1668 = vmatprep.mubr.f32.mxu0 0.0
  %1669 = vmatmul.mubr.f32.gmra.mrb[0].mxu0 %v1495
  %v1670 = vpop.f32.mrb[0].mxu0
  %v1671 = vadd.f32 0.0, %v1670
  %v1672 = vpop.f32.mrb[0].mxu0
  %1673 = vmatprep.mubr.f32.mxu0 0.0
  %1674 = vmatmul.mubr.f32.gmra.mrb[0].mxu0 %v1496
  %v1675 = vpop.f32.mrb[0].mxu0
  %v1676 = vadd.f32 0.0, %v1675
  %v1677 = vpop.f32.mrb[0].mxu0
  %1678 = vmatprep.mubr.f32.mxu0 0.0
  %1679 = vmatmul.mubr.f32.gmra.mrb[0].mxu0 %v1497
  %v1680 = vpop.f32.mrb[0].mxu0
  %v1681 = vadd.f32 0.0, %v1680
  %v1682 = vpop.f32.mrb[0].mxu0
  %1683 = vmatprep.mubr.f32.mxu0 0.0
  %1684 = vmatmul.mubr.f32.gmra.mrb[0].mxu0 %v1498
  %v1685 = vpop.f32.mrb[0].mxu0
  %v1686 = vadd.f32 0.0, %v1685
  %v1687 = vpop.f32.mrb[0].mxu0
  %1688 = vmatprep.mubr.f32.mxu0 0.0
  %1689 = vmatmul.mubr.f32.gmra.mrb[0].mxu0 %v1499
  %v1690 = vpop.f32.mrb[0].mxu0
  %v1691 = vadd.f32 0.0, %v1690
  %v1692 = vpop.f32.mrb[0].mxu0
  %1693 = vmatprep.mubr.f32.mxu0 0.0
  %1694 = vmatmul.mubr.f32.gmra.mrb[0].mxu0 %v1500
  %v1695 = vpop.f32.mrb[0].mxu0
  %v1696 = vadd.f32 0.0, %v1695
  %v1697 = vpop.f32.mrb[0].mxu0
  %1698 = vmatprep.mubr.f32.mxu0 0.0
  %1699 = vmatmul.mubr.f32.gmra.mrb[0].mxu0 %v1501
  %v1700 = vpop.f32.mrb[0].mxu0
  %v1701 = vadd.f32 0.0, %v1700
  %v1702 = vpop.f32.mrb[0].mxu0
  %1703 = vmatprep.mubr.f32.mxu0 0.0
  %1704 = vmatmul.mubr.f32.gmra.mrb[0].mxu0 %v1502
  %v1705 = vpop.f32.mrb[0].mxu0
  %v1706 = vadd.f32 0.0, %v1705
  %v1707 = vpop.f32.mrb[0].mxu0
  %1708 = vmatprep.mubr.f32.mxu0 0.0
  %1709 = vmatmul.mubr.f32.gmra.mrb[0].mxu0 %v1503
  %v1710 = vpop.f32.mrb[0].mxu0
  %v1711 = vadd.f32 0.0, %v1710
  %v1712 = vpop.f32.mrb[0].mxu0
  %1713 = vmatprep.mubr.f32.mxu0 0.0
  %1714 = vmatmul.mubr.f32.gmra.mrb[0].mxu0 %v1504
  %v1715 = vpop.f32.mrb[0].mxu0
  %v1716 = vadd.f32 0.0, %v1715
  %v1717 = vpop.f32.mrb[0].mxu0
  %1718 = vmatprep.mubr.f32.mxu0 0.0
  %1719 = vmatmul.mubr.f32.gmra.mrb[0].mxu0 %v1505
  %v1720 = vpop.f32.mrb[0].mxu0
  %v1721 = vadd.f32 0.0, %v1720
  %v1722 = vpop.f32.mrb[0].mxu0
  %1723 = vmatprep.mubr.f32.mxu0 0.0
  %1724 = vmatmul.mubr.f32.gmra.mrb[0].mxu0 %v1506
  %v1725 = vpop.f32.mrb[0].mxu0
  %v1726 = vadd.f32 0.0, %v1725
  %v1727 = vpop.f32.mrb[0].mxu0
  %1728 = vmatprep.mubr.f32.mxu0 0.0
  %1729 = vmatmul.mubr.f32.gmra.mrb[0].mxu0 %v1507
  %v1730 = vpop.f32.mrb[0].mxu0
  %v1731 = vadd.f32 0.0, %v1730
  %v1732 = vpop.f32.mrb[0].mxu0
  %1733 = vmatprep.mubr.f32.mxu0 0.0
  %1734 = vmatmul.mubr.f32.gmra.mrb[0].mxu0 %v1508
  %v1735 = vpop.f32.mrb[0].mxu0
  %v1736 = vadd.f32 0.0, %v1735
  %v1737 = vpop.f32.mrb[0].mxu0
  %1738 = vmatprep.mubr.f32.mxu0 0.0
  %1739 = vmatmul.mubr.f32.gmra.mrb[0].mxu0 %v1509
  %v1740 = vpop.f32.mrb[0].mxu0
  %v1741 = vadd.f32 0.0, %v1740
  %v1742 = vpop.f32.mrb[0].mxu0
  %1743 = vmatprep.mubr.f32.mxu0 0.0
  %1744 = vmatmul.mubr.f32.gmra.mrb[0].mxu0 %v1510
  %v1745 = vpop.f32.mrb[0].mxu0
  %v1746 = vadd.f32 0.0, %v1745
  %v1747 = vpop.f32.mrb[0].mxu0
  %1748 = vmatprep.mubr.f32.mxu0 0.0
  %1749 = vmatmul.mubr.f32.gmra.mrb[0].mxu0 %v1511
  %v1750 = vpop.f32.mrb[0].mxu0
  %v1751 = vadd.f32 0.0, %v1750
  %v1752 = vpop.f32.mrb[0].mxu0
  %1753 = vmatprep.mubr.f32.mxu0 0.0
  %1754 = vmatmul.mubr.f32.gmra.mrb[0].mxu0 %v1512
  %v1755 = vpop.f32.mrb[0].mxu0
  %v1756 = vadd.f32 0.0, %v1755
  %v1757 = vpop.f32.mrb[0].mxu0
  %1758 = vmatprep.mubr.f32.mxu0 0.0
  %1759 = vmatmul.mubr.f32.gmra.mrb[0].mxu0 %v1513
  %v1760 = vpop.f32.mrb[0].mxu0
  %v1761 = vadd.f32 0.0, %v1760
  %v1762 = vpop.f32.mrb[0].mxu0
  %1763 = vmatprep.mubr.f32.mxu0 0.0
  %1764 = vmatmul.mubr.f32.gmra.mrb[0].mxu0 %v1514
  %v1765 = vpop.f32.mrb[0].mxu0
  %v1766 = vadd.f32 0.0, %v1765
  %v1767 = vpop.f32.mrb[0].mxu0
  %1768 = vmatprep.mubr.f32.mxu0 0.0
  %1769 = vmatmul.mubr.f32.gmra.mrb[0].mxu0 %v1515
  %v1770 = vpop.f32.mrb[0].mxu0
  %v1771 = vadd.f32 0.0, %v1770
  %v1772 = vpop.f32.mrb[0].mxu0
  %1773 = vmatprep.mubr.f32.mxu0 0.0
  %1774 = vmatmul.mubr.f32.gmra.mrb[0].mxu0 %v1516
  %v1775 = vpop.f32.mrb[0].mxu0
  %v1776 = vadd.f32 0.0, %v1775
  %v1777 = vpop.f32.mrb[0].mxu0
  %1778 = vmatprep.mubr.f32.mxu0 0.0
  %1779 = vmatmul.mubr.f32.gmra.mrb[0].mxu0 %v1517
  %v1780 = vpop.f32.mrb[0].mxu0
  %v1781 = vadd.f32 0.0, %v1780
  %v1782 = vpop.f32.mrb[0].mxu0
  %1783 = vmatprep.mubr.f32.mxu0 0.0
  %1784 = vmatmul.mubr.f32.gmra.mrb[0].mxu0 %v1518
  %v1785 = vpop.f32.mrb[0].mxu0
  %v1786 = vadd.f32 0.0, %v1785
  %v1787 = vpop.f32.mrb[0].mxu0
  %1788 = vmatprep.mubr.f32.mxu0 0.0
  %1789 = vmatmul.mubr.f32.gmra.mrb[0].mxu0 %v1519
  %v1790 = vpop.f32.mrb[0].mxu0
  %v1791 = vadd.f32 0.0, %v1790
  %v1792 = vpop.f32.mrb[0].mxu0
  %1793 = vmatprep.mubr.f32.mxu0 0.0
  %1794 = vmatmul.mubr.f32.gmra.mrb[0].mxu0 %v1520
  %v1795 = vpop.f32.mrb[0].mxu0
  %v1796 = vadd.f32 0.0, %v1795
  %v1797 = vpop.f32.mrb[0].mxu0
  %1798 = vmatprep.mubr.f32.mxu0 0.0
  %1799 = vmatmul.mubr.f32.gmra.mrb[0].mxu0 %v1521
  %v1800 = vpop.f32.mrb[0].mxu0
  %v1801 = vadd.f32 0.0, %v1800
  %v1802 = vpop.f32.mrb[0].mxu0
  %1803 = vmatprep.mubr.f32.mxu0 0.0
  %1804 = vmatmul.mubr.f32.gmra.mrb[0].mxu0 %v1522
  %v1805 = vpop.f32.mrb[0].mxu0
  %v1806 = vadd.f32 0.0, %v1805
  %v1807 = vpop.f32.mrb[0].mxu0
  %1808 = vmatprep.mubr.f32.mxu0 0.0
  %1809 = vmatmul.mubr.f32.gmra.mrb[0].mxu0 %v1523
  %v1810 = vpop.f32.mrb[0].mxu0
  %v1811 = vadd.f32 0.0, %v1810
  %v1812 = vpop.f32.mrb[0].mxu0
  %1813 = vmatprep.mubr.f32.mxu0 0.0
  %1814 = vmatmul.mubr.f32.gmra.mrb[0].mxu0 %v1524
  %v1815 = vpop.f32.mrb[0].mxu0
  %v1816 = vadd.f32 0.0, %v1815
  %v1817 = vpop.f32.mrb[0].mxu0
  %1818 = vmatprep.mubr.f32.mxu0 0.0
  %1819 = vmatmul.mubr.f32.gmra.mrb[0].mxu0 %v1525
  %v1820 = vpop.f32.mrb[0].mxu0
  %v1821 = vadd.f32 0.0, %v1820
  %v1822 = vpop.f32.mrb[0].mxu0
  %1823 = vmatprep.mubr.f32.mxu0 0.0
  %1824 = vmatmul.mubr.f32.gmra.mrb[0].mxu0 %v1526
  %v1825 = vpop.f32.mrb[0].mxu0
  %v1826 = vadd.f32 0.0, %v1825
  %v1827 = vpop.f32.mrb[0].mxu0
  %1828 = vmatprep.mubr.f32.mxu0 0.0
  %1829 = vmatmul.mubr.f32.gmra.mrb[0].mxu0 %v1527
  %v1830 = vpop.f32.mrb[0].mxu0
  %v1831 = vadd.f32 0.0, %v1830
  %v1832 = vpop.f32.mrb[0].mxu0
  %1833 = vmatprep.mubr.f32.mxu0 0.0
  %1834 = vmatmul.mubr.f32.gmra.mrb[0].mxu0 %v1528
  %v1835 = vpop.f32.mrb[0].mxu0
  %v1836 = vadd.f32 0.0, %v1835
  %v1837 = vpop.f32.mrb[0].mxu0
  %1838 = vmatprep.mubr.f32.mxu0 0.0
  %1839 = vmatmul.mubr.f32.gmra.mrb[0].mxu0 %v1529
  %v1840 = vpop.f32.mrb[0].mxu0
  %v1841 = vadd.f32 0.0, %v1840
  %v1842 = vpop.f32.mrb[0].mxu0
  %1843 = vmatprep.mubr.f32.mxu0 0.0
  %1844 = vmatmul.mubr.f32.gmra.mrb[0].mxu0 %v1530
  %v1845 = vpop.f32.mrb[0].mxu0
  %v1846 = vadd.f32 0.0, %v1845
  %v1847 = vpop.f32.mrb[0].mxu0
  %1848 = vmatprep.mubr.f32.mxu0 0.0
  %1849 = vmatmul.mubr.f32.gmra.mrb[0].mxu0 %v1531
  %v1850 = vpop.f32.mrb[0].mxu0
  %v1851 = vadd.f32 0.0, %v1850
  %v1852 = vpop.f32.mrb[0].mxu0
  %1853 = vmatprep.mubr.f32.mxu0 0.0
  %1854 = vmatmul.mubr.f32.gmra.mrb[0].mxu0 %v1532
  %v1855 = vpop.f32.mrb[0].mxu0
  %v1856 = vadd.f32 0.0, %v1855
  %v1857 = vpop.f32.mrb[0].mxu0
  %1858 = vmatprep.mubr.f32.mxu0 0.0
  %1859 = vmatmul.mubr.f32.gmra.mrb[0].mxu0 %v1533
  %v1860 = vpop.f32.mrb[0].mxu0
  %v1861 = vadd.f32 0.0, %v1860
  %v1862 = vpop.f32.mrb[0].mxu0
  %1863 = vmatprep.mubr.f32.mxu0 0.0
  %1864 = vmatmul.mubr.f32.gmra.mrb[0].mxu0 %v1534
  %v1865 = vpop.f32.mrb[0].mxu0
  %v1866 = vadd.f32 0.0, %v1865
  %v1867 = vpop.f32.mrb[0].mxu0
  %1868 = vmatprep.mubr.f32.mxu0 0.0
  %1869 = vmatmul.mubr.f32.gmra.mrb[0].mxu0 %v1535
  %v1870 = vpop.f32.mrb[0].mxu0
  %v1871 = vadd.f32 0.0, %v1870
  %v1872 = vpop.f32.mrb[0].mxu0
  %1873 = vmatprep.mubr.f32.mxu0 0.0
  %1874 = vmatmul.mubr.f32.gmra.mrb[0].mxu0 %v1536
  %v1875 = vpop.f32.mrb[0].mxu0
  %v1876 = vadd.f32 0.0, %v1875
  %v1877 = vpop.f32.mrb[0].mxu0
  %1878 = vmatprep.mubr.f32.mxu0 0.0
  %1879 = vmatmul.mubr.f32.gmra.mrb[0].mxu0 %v1537
  %v1880 = vpop.f32.mrb[0].mxu0
  %v1881 = vadd.f32 0.0, %v1880
  %v1882 = vpop.f32.mrb[0].mxu0
  %1883 = vmatprep.mubr.f32.mxu0 0.0
  %1884 = vmatmul.mubr.f32.gmra.mrb[0].mxu0 %v1538
  %v1885 = vpop.f32.mrb[0].mxu0
  %v1886 = vadd.f32 0.0, %v1885
  %v1887 = vpop.f32.mrb[0].mxu0
  %1888 = vmatprep.mubr.f32.mxu0 0.0
  %1889 = vmatmul.mubr.f32.gmra.mrb[0].mxu0 %v1539
  %v1890 = vpop.f32.mrb[0].mxu0
  %v1891 = vadd.f32 0.0, %v1890
  %v1892 = vpop.f32.mrb[0].mxu0
  %1893 = vmatprep.mubr.f32.mxu0 0.0
  %1894 = vmatmul.mubr.f32.gmra.mrb[0].mxu0 %v1540
  %v1895 = vpop.f32.mrb[0].mxu0
  %v1896 = vadd.f32 0.0, %v1895
  %v1897 = vpop.f32.mrb[0].mxu0
  %1898 = vmatprep.mubr.f32.mxu0 0.0
  %1899 = vmatmul.mubr.f32.gmra.mrb[0].mxu0 %v1541
  %v1900 = vpop.f32.mrb[0].mxu0
  %v1901 = vadd.f32 0.0, %v1900
  %v1902 = vpop.f32.mrb[0].mxu0
  %1903 = vmatprep.mubr.f32.mxu0 0.0
  %1904 = vmatmul.mubr.f32.gmra.mrb[0].mxu0 %v1542
  %v1905 = vpop.f32.mrb[0].mxu0
  %v1906 = vadd.f32 0.0, %v1905
  %v1907 = vpop.f32.mrb[0].mxu0
  %1908 = vmatprep.mubr.f32.mxu0 0.0
  %1909 = vmatmul.mubr.f32.gmra.mrb[0].mxu0 %v1543
  %v1910 = vpop.f32.mrb[0].mxu0
  %v1911 = vadd.f32 0.0, %v1910
  %v1912 = vpop.f32.mrb[0].mxu0
  %1913 = vmatprep.mubr.f32.mxu0 0.0
  %1914 = vmatmul.mubr.f32.gmra.mrb[0].mxu0 %v1544
  %v1915 = vpop.f32.mrb[0].mxu0
  %v1916 = vadd.f32 0.0, %v1915
  %v1917 = vpop.f32.mrb[0].mxu0
  %1918 = vmatprep.mubr.f32.mxu0 0.0
  %1919 = vmatmul.mubr.f32.gmra.mrb[0].mxu0 %v1545
  %v1920 = vpop.f32.mrb[0].mxu0
  %v1921 = vadd.f32 0.0, %v1920
  %v1922 = vpop.f32.mrb[0].mxu0
  %1923 = vmatprep.mubr.f32.mxu0 0.0
  %1924 = vmatmul.mubr.f32.gmra.mrb[0].mxu0 %v1546
  %v1925 = vpop.f32.mrb[0].mxu0
  %v1926 = vadd.f32 0.0, %v1925
  %v1927 = vpop.f32.mrb[0].mxu0
  %1928 = vmatprep.mubr.f32.mxu0 0.0
  %1929 = vmatmul.mubr.f32.gmra.mrb[0].mxu0 %v1547
  %v1930 = vpop.f32.mrb[0].mxu0
  %v1931 = vadd.f32 0.0, %v1930
  %v1932 = vpop.f32.mrb[0].mxu0
  %1933 = vmatprep.mubr.f32.mxu0 0.0
  %1934 = vmatmul.mubr.f32.gmra.mrb[0].mxu0 %v1548
  %v1935 = vpop.f32.mrb[0].mxu0
  %v1936 = vadd.f32 0.0, %v1935
  %v1937 = vpop.f32.mrb[0].mxu0
  %1938 = vmatprep.mubr.f32.mxu0 0.0
  %1939 = vmatmul.mubr.f32.gmra.mrb[0].mxu0 %v1549
  %v1940 = vpop.f32.mrb[0].mxu0
  %v1941 = vadd.f32 0.0, %v1940
  %v1942 = vpop.f32.mrb[0].mxu0
  %1943 = vmatprep.mubr.f32.mxu0 0.0
  %1944 = vmatmul.mubr.f32.gmra.mrb[0].mxu0 %v1550
  %v1945 = vpop.f32.mrb[0].mxu0
  %v1946 = vadd.f32 0.0, %v1945
  %v1947 = vpop.f32.mrb[0].mxu0
  %1948 = vmatprep.mubr.f32.mxu0 0.0
  %1949 = vmatmul.mubr.f32.gmra.mrb[0].mxu0 %v1551
  %v1950 = vpop.f32.mrb[0].mxu0
  %v1951 = vadd.f32 0.0, %v1950
  %v1952 = vpop.f32.mrb[0].mxu0
  %1953 = vdwg.mxu0
  %v1954 = vadd.f32 %v1423, %v1636
  %v1955 = vadd.f32 %v1424, %v1641
  %v1956 = vadd.f32 %v1425, %v1646
  %v1957 = vadd.f32 %v1426, %v1651
  %v1958 = vadd.f32 %v1427, %v1656
  %v1959 = vadd.f32 %v1428, %v1661
  %v1960 = vadd.f32 %v1429, %v1666
  %v1961 = vadd.f32 %v1430, %v1671
  %v1962 = vadd.f32 %v1431, %v1676
  %v1963 = vadd.f32 %v1432, %v1681
  %v1964 = vadd.f32 %v1433, %v1686
  %v1965 = vadd.f32 %v1434, %v1691
  %v1966 = vadd.f32 %v1435, %v1696
  %v1967 = vadd.f32 %v1436, %v1701
  %v1968 = vadd.f32 %v1437, %v1706
  %v1969 = vadd.f32 %v1438, %v1711
  %v1970 = vadd.f32 %v1439, %v1716
  %v1971 = vadd.f32 %v1440, %v1721
  %v1972 = vadd.f32 %v1441, %v1726
  %v1973 = vadd.f32 %v1442, %v1731
  %v1974 = vadd.f32 %v1443, %v1736
  %v1975 = vadd.f32 %v1444, %v1741
  %v1976 = vadd.f32 %v1445, %v1746
  %v1977 = vadd.f32 %v1446, %v1751
  %v1978 = vadd.f32 %v1447, %v1756
  %v1979 = vadd.f32 %v1448, %v1761
  %v1980 = vadd.f32 %v1449, %v1766
  %v1981 = vadd.f32 %v1450, %v1771
  %v1982 = vadd.f32 %v1451, %v1776
  %v1983 = vadd.f32 %v1452, %v1781
  %v1984 = vadd.f32 %v1453, %v1786
  %v1985 = vadd.f32 %v1454, %v1791
  %v1986 = vadd.f32 %v1455, %v1796
  %v1987 = vadd.f32 %v1456, %v1801
  %v1988 = vadd.f32 %v1457, %v1806
  %v1989 = vadd.f32 %v1458, %v1811
  %v1990 = vadd.f32 %v1459, %v1816
  %v1991 = vadd.f32 %v1460, %v1821
  %v1992 = vadd.f32 %v1461, %v1826
  %v1993 = vadd.f32 %v1462, %v1831
  %v1994 = vadd.f32 %v1463, %v1836
  %v1995 = vadd.f32 %v1464, %v1841
  %v1996 = vadd.f32 %v1465, %v1846
  %v1997 = vadd.f32 %v1466, %v1851
  %v1998 = vadd.f32 %v1467, %v1856
  %v1999 = vadd.f32 %v1468, %v1861
  %v2000 = vadd.f32 %v1469, %v1866
  %v2001 = vadd.f32 %v1470, %v1871
  %v2002 = vadd.f32 %v1471, %v1876
  %v2003 = vadd.f32 %v1472, %v1881
  %v2004 = vadd.f32 %v1473, %v1886
  %v2005 = vadd.f32 %v1474, %v1891
  %v2006 = vadd.f32 %v1475, %v1896
  %v2007 = vadd.f32 %v1476, %v1901
  %v2008 = vadd.f32 %v1477, %v1906
  %v2009 = vadd.f32 %v1478, %v1911
  %v2010 = vadd.f32 %v1479, %v1916
  %v2011 = vadd.f32 %v1480, %v1921
  %v2012 = vadd.f32 %v1481, %v1926
  %v2013 = vadd.f32 %v1482, %v1931
  %v2014 = vadd.f32 %v1483, %v1936
  %v2015 = vadd.f32 %v1484, %v1941
  %v2016 = vadd.f32 %v1485, %v1946
  %v2017 = vadd.f32 %v1486, %v1951
  %v2018 = vld [vmem:[%s1487 + $0x1] sm:$0xff]
  %v2019 = vld [vmem:[%s1487 + $0x9] sm:$0xff]
  %v2020 = vld [vmem:[%s1487 + $0x19] sm:$0xff]
  %v2021 = vld [vmem:[%s1487 + $0x21] sm:$0xff]
  %v2022 = vld [vmem:[%s1487 + $0x31] sm:$0xff]
  %v2023 = vld [vmem:[%s1487 + $0x39] sm:$0xff]
  %v2024 = vld [vmem:[%s1487 + $0x49] sm:$0xff]
  %v2025 = vld [vmem:[%s1487 + $0x51] sm:$0xff]
  %v2026 = vld [vmem:[%s1487 + $0x61] sm:$0xff]
  %v2027 = vld [vmem:[%s1487 + $0x69] sm:$0xff]
  %v2028 = vld [vmem:[%s1487 + $0x79] sm:$0xff]
  %v2029 = vld [vmem:[%s1487 + $0x81] sm:$0xff]
  %v2030 = vld [vmem:[%s1487 + $0x91] sm:$0xff]
  %v2031 = vld [vmem:[%s1487 + $0x99] sm:$0xff]
  %v2032 = vld [vmem:[%s1487 + $0xa9] sm:$0xff]
  %v2033 = vld [vmem:[%s1487 + $0xb1] sm:$0xff]
  %v2034 = vld [vmem:[%s1487 + $0xc1] sm:$0xff]
  %v2035 = vld [vmem:[%s1487 + $0xc9] sm:$0xff]
  %v2036 = vld [vmem:[%s1487 + $0xd9] sm:$0xff]
  %v2037 = vld [vmem:[%s1487 + $0xe1] sm:$0xff]
  %v2038 = vld [vmem:[%s1487 + $0xf1] sm:$0xff]
  %v2039 = vld [vmem:[%s1487 + $0xf9] sm:$0xff]
  %v2040 = vld [vmem:[%s1487 + $0x109] sm:$0xff]
  %v2041 = vld [vmem:[%s1487 + $0x111] sm:$0xff]
  %v2042 = vld [vmem:[%s1487 + $0x121] sm:$0xff]
  %v2043 = vld [vmem:[%s1487 + $0x129] sm:$0xff]
  %v2044 = vld [vmem:[%s1487 + $0x139] sm:$0xff]
  %v2045 = vld [vmem:[%s1487 + $0x141] sm:$0xff]
  %v2046 = vld [vmem:[%s1487 + $0x151] sm:$0xff]
  %v2047 = vld [vmem:[%s1487 + $0x159] sm:$0xff]
  %v2048 = vld [vmem:[%s1487 + $0x169] sm:$0xff]
  %v2049 = vld [vmem:[%s1487 + $0x171] sm:$0xff]
  %v2050 = vld [vmem:[%s1487 + $0x1b1] sm:$0xff]
  %v2051 = vld [vmem:[%s1487 + $0x1b9] sm:$0xff]
  %v2052 = vld [vmem:[%s1487 + $0x1c9] sm:$0xff]
  %v2053 = vld [vmem:[%s1487 + $0x1d1] sm:$0xff]
  %v2054 = vld [vmem:[%s1487 + $0x1e1] sm:$0xff]
  %v2055 = vld [vmem:[%s1487 + $0x1e9] sm:$0xff]
  %v2056 = vld [vmem:[%s1487 + $0x1f9] sm:$0xff]
  %v2057 = vld [vmem:[%s1487 + $0x201] sm:$0xff]
  %v2058 = vld [vmem:[%s1487 + $0x211] sm:$0xff]
  %v2059 = vld [vmem:[%s1487 + $0x219] sm:$0xff]
  %v2060 = vld [vmem:[%s1487 + $0x229] sm:$0xff]
  %v2061 = vld [vmem:[%s1487 + $0x231] sm:$0xff]
  %v2062 = vld [vmem:[%s1487 + $0x241] sm:$0xff]
  %v2063 = vld [vmem:[%s1487 + $0x249] sm:$0xff]
  %v2064 = vld [vmem:[%s1487 + $0x259] sm:$0xff]
  %v2065 = vld [vmem:[%s1487 + $0x261] sm:$0xff]
  %v2066 = vld [vmem:[%s1487 + $0x271] sm:$0xff]
  %v2067 = vld [vmem:[%s1487 + $0x279] sm:$0xff]
  %v2068 = vld [vmem:[%s1487 + $0x289] sm:$0xff]
  %v2069 = vld [vmem:[%s1487 + $0x291] sm:$0xff]
  %v2070 = vld [vmem:[%s1487 + $0x2a1] sm:$0xff]
  %v2071 = vld [vmem:[%s1487 + $0x2a9] sm:$0xff]
  %v2072 = vld [vmem:[%s1487 + $0x2b9] sm:$0xff]
  %v2073 = vld [vmem:[%s1487 + $0x2c1] sm:$0xff]
  %v2074 = vld [vmem:[%s1487 + $0x2d1] sm:$0xff]
  %v2075 = vld [vmem:[%s1487 + $0x2d9] sm:$0xff]
  %v2076 = vld [vmem:[%s1487 + $0x2e9] sm:$0xff]
  %v2077 = vld [vmem:[%s1487 + $0x2f1] sm:$0xff]
  %v2078 = vld [vmem:[%s1487 + $0x301] sm:$0xff]
  %v2079 = vld [vmem:[%s1487 + $0x309] sm:$0xff]
  %v2080 = vld [vmem:[%s1487 + $0x319] sm:$0xff]
  %v2081 = vld [vmem:[%s1487 + $0x321] sm:$0xff]
  %s2082 = scalar_lea.vmem %s1, 512
  %v2083 = vld [vmem:[%s2082] sm:$0xff]
  %v2084 = vld [vmem:[%s2082 + $0x8] sm:$0xff]
  %v2085 = vld [vmem:[%s2082 + $0x10] sm:$0xff]
  %v2086 = vld [vmem:[%s2082 + $0x18] sm:$0xff]
  %v2087 = vld [vmem:[%s2082 + $0x20] sm:$0xff]
  %v2088 = vld [vmem:[%s2082 + $0x28] sm:$0xff]
  %v2089 = vld [vmem:[%s2082 + $0x30] sm:$0xff]
  %v2090 = vld [vmem:[%s2082 + $0x38] sm:$0xff]
  %v2091 = vld [vmem:[%s2082 + $0x40] sm:$0xff]
  %v2092 = vld [vmem:[%s2082 + $0x48] sm:$0xff]
  %v2093 = vld [vmem:[%s2082 + $0x50] sm:$0xff]
  %v2094 = vld [vmem:[%s2082 + $0x58] sm:$0xff]
  %v2095 = vld [vmem:[%s2082 + $0x60] sm:$0xff]
  %v2096 = vld [vmem:[%s2082 + $0x68] sm:$0xff]
  %v2097 = vld [vmem:[%s2082 + $0x70] sm:$0xff]
  %v2098 = vld [vmem:[%s2082 + $0x78] sm:$0xff]
  %2099 = vmatprep.subr.mxu0 0.0
  %2100 = vmatpush1.msra.mxu0 %v2083
  %2101 = vmatprep.subr.mxu0 0.0
  %2102 = vmatpush1.msra.mxu0 %v2084
  %2103 = vmatprep.subr.mxu0 0.0
  %2104 = vmatpush1.msra.mxu0 %v2085
  %2105 = vmatprep.subr.mxu0 0.0
  %2106 = vmatpush1.msra.mxu0 %v2086
  %2107 = vmatprep.subr.mxu0 0.0
  %2108 = vmatpush1.msra.mxu0 %v2087
  %2109 = vmatprep.subr.mxu0 0.0
  %2110 = vmatpush1.msra.mxu0 %v2088
  %2111 = vmatprep.subr.mxu0 0.0
  %2112 = vmatpush1.msra.mxu0 %v2089
  %2113 = vmatprep.subr.mxu0 0.0
  %2114 = vmatpush1.msra.mxu0 %v2090
  %2115 = vmatprep.subr.mxu0 0.0
  %2116 = vmatpush1.msra.mxu0 %v2091
  %2117 = vmatprep.subr.mxu0 0.0
  %2118 = vmatpush1.msra.mxu0 %v2092
  %2119 = vmatprep.subr.mxu0 0.0
  %2120 = vmatpush1.msra.mxu0 %v2093
  %2121 = vmatprep.subr.mxu0 0.0
  %2122 = vmatpush1.msra.mxu0 %v2094
  %2123 = vmatprep.subr.mxu0 0.0
  %2124 = vmatpush1.msra.mxu0 %v2095
  %2125 = vmatprep.subr.mxu0 0.0
  %2126 = vmatpush1.msra.mxu0 %v2096
  %2127 = vmatprep.subr.mxu0 0.0
  %2128 = vmatpush1.msra.mxu0 %v2097
  %2129 = vmatprep.subr.mxu0 0.0
  %2130 = vmatpush1.msra.mxu0 %v2098
  %2131 = vmatprep.subr.mxu0 0.0
  %2132 = vmatpush1.msra.mxu0 0.0
  %2133 = vmatprep.subr.mxu0 0.0
  %2134 = vmatpush1.msra.mxu0 0.0
  %2135 = vmatprep.subr.mxu0 0.0
  %2136 = vmatpush1.msra.mxu0 0.0
  %2137 = vmatprep.subr.mxu0 0.0
  %2138 = vmatpush1.msra.mxu0 0.0
  %2139 = vmatprep.subr.mxu0 0.0
  %2140 = vmatpush1.msra.mxu0 0.0
  %2141 = vmatprep.subr.mxu0 0.0
  %2142 = vmatpush1.msra.mxu0 0.0
  %2143 = vmatprep.subr.mxu0 0.0
  %2144 = vmatpush1.msra.mxu0 0.0
  %2145 = vmatprep.subr.mxu0 0.0
  %2146 = vmatpush1.msra.mxu0 0.0
  %2147 = vmatprep.subr.mxu0 0.0
  %2148 = vmatpush1.msra.mxu0 0.0
  %2149 = vmatprep.subr.mxu0 0.0
  %2150 = vmatpush1.msra.mxu0 0.0
  %2151 = vmatprep.subr.mxu0 0.0
  %2152 = vmatpush1.msra.mxu0 0.0
  %2153 = vmatprep.subr.mxu0 0.0
  %2154 = vmatpush1.msra.mxu0 0.0
  %2155 = vmatprep.subr.mxu0 0.0
  %2156 = vmatpush1.msra.mxu0 0.0
  %2157 = vmatprep.subr.mxu0 0.0
  %2158 = vmatpush1.msra.mxu0 0.0
  %2159 = vmatprep.subr.mxu0 0.0
  %2160 = vmatpush1.msra.mxu0 0.0
  %2161 = vmatprep.subr.mxu0 0.0
  %2162 = vmatpush1.msra.mxu0 0.0
  %2163 = vmatprep.mubr.f32.mxu0 0.0
  %2164 = vmatmul.mubr.f32.gmra.mrb[0].mxu0 %v2018
  %v2165 = vpop.f32.mrb[0].mxu0
  %v2166 = vadd.f32 0.0, %v2165
  %v2167 = vpop.f32.mrb[0].mxu0
  %2168 = vmatprep.mubr.f32.mxu0 0.0
  %2169 = vmatmul.mubr.f32.gmra.mrb[0].mxu0 %v2019
  %v2170 = vpop.f32.mrb[0].mxu0
  %v2171 = vadd.f32 0.0, %v2170
  %v2172 = vpop.f32.mrb[0].mxu0
  %2173 = vmatprep.mubr.f32.mxu0 0.0
  %2174 = vmatmul.mubr.f32.gmra.mrb[0].mxu0 %v2020
  %v2175 = vpop.f32.mrb[0].mxu0
  %v2176 = vadd.f32 0.0, %v2175
  %v2177 = vpop.f32.mrb[0].mxu0
  %2178 = vmatprep.mubr.f32.mxu0 0.0
  %2179 = vmatmul.mubr.f32.gmra.mrb[0].mxu0 %v2021
  %v2180 = vpop.f32.mrb[0].mxu0
  %v2181 = vadd.f32 0.0, %v2180
  %v2182 = vpop.f32.mrb[0].mxu0
  %2183 = vmatprep.mubr.f32.mxu0 0.0
  %2184 = vmatmul.mubr.f32.gmra.mrb[0].mxu0 %v2022
  %v2185 = vpop.f32.mrb[0].mxu0
  %v2186 = vadd.f32 0.0, %v2185
  %v2187 = vpop.f32.mrb[0].mxu0
  %2188 = vmatprep.mubr.f32.mxu0 0.0
  %2189 = vmatmul.mubr.f32.gmra.mrb[0].mxu0 %v2023
  %v2190 = vpop.f32.mrb[0].mxu0
  %v2191 = vadd.f32 0.0, %v2190
  %v2192 = vpop.f32.mrb[0].mxu0
  %2193 = vmatprep.mubr.f32.mxu0 0.0
  %2194 = vmatmul.mubr.f32.gmra.mrb[0].mxu0 %v2024
  %v2195 = vpop.f32.mrb[0].mxu0
  %v2196 = vadd.f32 0.0, %v2195
  %v2197 = vpop.f32.mrb[0].mxu0
  %2198 = vmatprep.mubr.f32.mxu0 0.0
  %2199 = vmatmul.mubr.f32.gmra.mrb[0].mxu0 %v2025
  %v2200 = vpop.f32.mrb[0].mxu0
  %v2201 = vadd.f32 0.0, %v2200
  %v2202 = vpop.f32.mrb[0].mxu0
  %2203 = vmatprep.mubr.f32.mxu0 0.0
  %2204 = vmatmul.mubr.f32.gmra.mrb[0].mxu0 %v2026
  %v2205 = vpop.f32.mrb[0].mxu0
  %v2206 = vadd.f32 0.0, %v2205
  %v2207 = vpop.f32.mrb[0].mxu0
  %2208 = vmatprep.mubr.f32.mxu0 0.0
  %2209 = vmatmul.mubr.f32.gmra.mrb[0].mxu0 %v2027
  %v2210 = vpop.f32.mrb[0].mxu0
  %v2211 = vadd.f32 0.0, %v2210
  %v2212 = vpop.f32.mrb[0].mxu0
  %2213 = vmatprep.mubr.f32.mxu0 0.0
  %2214 = vmatmul.mubr.f32.gmra.mrb[0].mxu0 %v2028
  %v2215 = vpop.f32.mrb[0].mxu0
  %v2216 = vadd.f32 0.0, %v2215
  %v2217 = vpop.f32.mrb[0].mxu0
  %2218 = vmatprep.mubr.f32.mxu0 0.0
  %2219 = vmatmul.mubr.f32.gmra.mrb[0].mxu0 %v2029
  %v2220 = vpop.f32.mrb[0].mxu0
  %v2221 = vadd.f32 0.0, %v2220
  %v2222 = vpop.f32.mrb[0].mxu0
  %2223 = vmatprep.mubr.f32.mxu0 0.0
  %2224 = vmatmul.mubr.f32.gmra.mrb[0].mxu0 %v2030
  %v2225 = vpop.f32.mrb[0].mxu0
  %v2226 = vadd.f32 0.0, %v2225
  %v2227 = vpop.f32.mrb[0].mxu0
  %2228 = vmatprep.mubr.f32.mxu0 0.0
  %2229 = vmatmul.mubr.f32.gmra.mrb[0].mxu0 %v2031
  %v2230 = vpop.f32.mrb[0].mxu0
  %v2231 = vadd.f32 0.0, %v2230
  %v2232 = vpop.f32.mrb[0].mxu0
  %2233 = vmatprep.mubr.f32.mxu0 0.0
  %2234 = vmatmul.mubr.f32.gmra.mrb[0].mxu0 %v2032
  %v2235 = vpop.f32.mrb[0].mxu0
  %v2236 = vadd.f32 0.0, %v2235
  %v2237 = vpop.f32.mrb[0].mxu0
  %2238 = vmatprep.mubr.f32.mxu0 0.0
  %2239 = vmatmul.mubr.f32.gmra.mrb[0].mxu0 %v2033
  %v2240 = vpop.f32.mrb[0].mxu0
  %v2241 = vadd.f32 0.0, %v2240
  %v2242 = vpop.f32.mrb[0].mxu0
  %2243 = vmatprep.mubr.f32.mxu0 0.0
  %2244 = vmatmul.mubr.f32.gmra.mrb[0].mxu0 %v2034
  %v2245 = vpop.f32.mrb[0].mxu0
  %v2246 = vadd.f32 0.0, %v2245
  %v2247 = vpop.f32.mrb[0].mxu0
  %2248 = vmatprep.mubr.f32.mxu0 0.0
  %2249 = vmatmul.mubr.f32.gmra.mrb[0].mxu0 %v2035
  %v2250 = vpop.f32.mrb[0].mxu0
  %v2251 = vadd.f32 0.0, %v2250
  %v2252 = vpop.f32.mrb[0].mxu0
  %2253 = vmatprep.mubr.f32.mxu0 0.0
  %2254 = vmatmul.mubr.f32.gmra.mrb[0].mxu0 %v2036
  %v2255 = vpop.f32.mrb[0].mxu0
  %v2256 = vadd.f32 0.0, %v2255
  %v2257 = vpop.f32.mrb[0].mxu0
  %2258 = vmatprep.mubr.f32.mxu0 0.0
  %2259 = vmatmul.mubr.f32.gmra.mrb[0].mxu0 %v2037
  %v2260 = vpop.f32.mrb[0].mxu0
  %v2261 = vadd.f32 0.0, %v2260
  %v2262 = vpop.f32.mrb[0].mxu0
  %2263 = vmatprep.mubr.f32.mxu0 0.0
  %2264 = vmatmul.mubr.f32.gmra.mrb[0].mxu0 %v2038
  %v2265 = vpop.f32.mrb[0].mxu0
  %v2266 = vadd.f32 0.0, %v2265
  %v2267 = vpop.f32.mrb[0].mxu0
  %2268 = vmatprep.mubr.f32.mxu0 0.0
  %2269 = vmatmul.mubr.f32.gmra.mrb[0].mxu0 %v2039
  %v2270 = vpop.f32.mrb[0].mxu0
  %v2271 = vadd.f32 0.0, %v2270
  %v2272 = vpop.f32.mrb[0].mxu0
  %2273 = vmatprep.mubr.f32.mxu0 0.0
  %2274 = vmatmul.mubr.f32.gmra.mrb[0].mxu0 %v2040
  %v2275 = vpop.f32.mrb[0].mxu0
  %v2276 = vadd.f32 0.0, %v2275
  %v2277 = vpop.f32.mrb[0].mxu0
  %2278 = vmatprep.mubr.f32.mxu0 0.0
  %2279 = vmatmul.mubr.f32.gmra.mrb[0].mxu0 %v2041
  %v2280 = vpop.f32.mrb[0].mxu0
  %v2281 = vadd.f32 0.0, %v2280
  %v2282 = vpop.f32.mrb[0].mxu0
  %2283 = vmatprep.mubr.f32.mxu0 0.0
  %2284 = vmatmul.mubr.f32.gmra.mrb[0].mxu0 %v2042
  %v2285 = vpop.f32.mrb[0].mxu0
  %v2286 = vadd.f32 0.0, %v2285
  %v2287 = vpop.f32.mrb[0].mxu0
  %2288 = vmatprep.mubr.f32.mxu0 0.0
  %2289 = vmatmul.mubr.f32.gmra.mrb[0].mxu0 %v2043
  %v2290 = vpop.f32.mrb[0].mxu0
  %v2291 = vadd.f32 0.0, %v2290
  %v2292 = vpop.f32.mrb[0].mxu0
  %2293 = vmatprep.mubr.f32.mxu0 0.0
  %2294 = vmatmul.mubr.f32.gmra.mrb[0].mxu0 %v2044
  %v2295 = vpop.f32.mrb[0].mxu0
  %v2296 = vadd.f32 0.0, %v2295
  %v2297 = vpop.f32.mrb[0].mxu0
  %2298 = vmatprep.mubr.f32.mxu0 0.0
  %2299 = vmatmul.mubr.f32.gmra.mrb[0].mxu0 %v2045
  %v2300 = vpop.f32.mrb[0].mxu0
  %v2301 = vadd.f32 0.0, %v2300
  %v2302 = vpop.f32.mrb[0].mxu0
  %2303 = vmatprep.mubr.f32.mxu0 0.0
  %2304 = vmatmul.mubr.f32.gmra.mrb[0].mxu0 %v2046
  %v2305 = vpop.f32.mrb[0].mxu0
  %v2306 = vadd.f32 0.0, %v2305
  %v2307 = vpop.f32.mrb[0].mxu0
  %2308 = vmatprep.mubr.f32.mxu0 0.0
  %2309 = vmatmul.mubr.f32.gmra.mrb[0].mxu0 %v2047
  %v2310 = vpop.f32.mrb[0].mxu0
  %v2311 = vadd.f32 0.0, %v2310
  %v2312 = vpop.f32.mrb[0].mxu0
  %2313 = vmatprep.mubr.f32.mxu0 0.0
  %2314 = vmatmul.mubr.f32.gmra.mrb[0].mxu0 %v2048
  %v2315 = vpop.f32.mrb[0].mxu0
  %v2316 = vadd.f32 0.0, %v2315
  %v2317 = vpop.f32.mrb[0].mxu0
  %2318 = vmatprep.mubr.f32.mxu0 0.0
  %2319 = vmatmul.mubr.f32.gmra.mrb[0].mxu0 %v2049
  %v2320 = vpop.f32.mrb[0].mxu0
  %v2321 = vadd.f32 0.0, %v2320
  %v2322 = vpop.f32.mrb[0].mxu0
  %2323 = vmatprep.mubr.f32.mxu0 0.0
  %2324 = vmatmul.mubr.f32.gmra.mrb[0].mxu0 %v2050
  %v2325 = vpop.f32.mrb[0].mxu0
  %v2326 = vadd.f32 0.0, %v2325
  %v2327 = vpop.f32.mrb[0].mxu0
  %2328 = vmatprep.mubr.f32.mxu0 0.0
  %2329 = vmatmul.mubr.f32.gmra.mrb[0].mxu0 %v2051
  %v2330 = vpop.f32.mrb[0].mxu0
  %v2331 = vadd.f32 0.0, %v2330
  %v2332 = vpop.f32.mrb[0].mxu0
  %2333 = vmatprep.mubr.f32.mxu0 0.0
  %2334 = vmatmul.mubr.f32.gmra.mrb[0].mxu0 %v2052
  %v2335 = vpop.f32.mrb[0].mxu0
  %v2336 = vadd.f32 0.0, %v2335
  %v2337 = vpop.f32.mrb[0].mxu0
  %2338 = vmatprep.mubr.f32.mxu0 0.0
  %2339 = vmatmul.mubr.f32.gmra.mrb[0].mxu0 %v2053
  %v2340 = vpop.f32.mrb[0].mxu0
  %v2341 = vadd.f32 0.0, %v2340
  %v2342 = vpop.f32.mrb[0].mxu0
  %2343 = vmatprep.mubr.f32.mxu0 0.0
  %2344 = vmatmul.mubr.f32.gmra.mrb[0].mxu0 %v2054
  %v2345 = vpop.f32.mrb[0].mxu0
  %v2346 = vadd.f32 0.0, %v2345
  %v2347 = vpop.f32.mrb[0].mxu0
  %2348 = vmatprep.mubr.f32.mxu0 0.0
  %2349 = vmatmul.mubr.f32.gmra.mrb[0].mxu0 %v2055
  %v2350 = vpop.f32.mrb[0].mxu0
  %v2351 = vadd.f32 0.0, %v2350
  %v2352 = vpop.f32.mrb[0].mxu0
  %2353 = vmatprep.mubr.f32.mxu0 0.0
  %2354 = vmatmul.mubr.f32.gmra.mrb[0].mxu0 %v2056
  %v2355 = vpop.f32.mrb[0].mxu0
  %v2356 = vadd.f32 0.0, %v2355
  %v2357 = vpop.f32.mrb[0].mxu0
  %2358 = vmatprep.mubr.f32.mxu0 0.0
  %2359 = vmatmul.mubr.f32.gmra.mrb[0].mxu0 %v2057
  %v2360 = vpop.f32.mrb[0].mxu0
  %v2361 = vadd.f32 0.0, %v2360
  %v2362 = vpop.f32.mrb[0].mxu0
  %2363 = vmatprep.mubr.f32.mxu0 0.0
  %2364 = vmatmul.mubr.f32.gmra.mrb[0].mxu0 %v2058
  %v2365 = vpop.f32.mrb[0].mxu0
  %v2366 = vadd.f32 0.0, %v2365
  %v2367 = vpop.f32.mrb[0].mxu0
  %2368 = vmatprep.mubr.f32.mxu0 0.0
  %2369 = vmatmul.mubr.f32.gmra.mrb[0].mxu0 %v2059
  %v2370 = vpop.f32.mrb[0].mxu0
  %v2371 = vadd.f32 0.0, %v2370
  %v2372 = vpop.f32.mrb[0].mxu0
  %2373 = vmatprep.mubr.f32.mxu0 0.0
  %2374 = vmatmul.mubr.f32.gmra.mrb[0].mxu0 %v2060
  %v2375 = vpop.f32.mrb[0].mxu0
  %v2376 = vadd.f32 0.0, %v2375
  %v2377 = vpop.f32.mrb[0].mxu0
  %2378 = vmatprep.mubr.f32.mxu0 0.0
  %2379 = vmatmul.mubr.f32.gmra.mrb[0].mxu0 %v2061
  %v2380 = vpop.f32.mrb[0].mxu0
  %v2381 = vadd.f32 0.0, %v2380
  %v2382 = vpop.f32.mrb[0].mxu0
  %2383 = vmatprep.mubr.f32.mxu0 0.0
  %2384 = vmatmul.mubr.f32.gmra.mrb[0].mxu0 %v2062
  %v2385 = vpop.f32.mrb[0].mxu0
  %v2386 = vadd.f32 0.0, %v2385
  %v2387 = vpop.f32.mrb[0].mxu0
  %2388 = vmatprep.mubr.f32.mxu0 0.0
  %2389 = vmatmul.mubr.f32.gmra.mrb[0].mxu0 %v2063
  %v2390 = vpop.f32.mrb[0].mxu0
  %v2391 = vadd.f32 0.0, %v2390
  %v2392 = vpop.f32.mrb[0].mxu0
  %2393 = vmatprep.mubr.f32.mxu0 0.0
  %2394 = vmatmul.mubr.f32.gmra.mrb[0].mxu0 %v2064
  %v2395 = vpop.f32.mrb[0].mxu0
  %v2396 = vadd.f32 0.0, %v2395
  %v2397 = vpop.f32.mrb[0].mxu0
  %2398 = vmatprep.mubr.f32.mxu0 0.0
  %2399 = vmatmul.mubr.f32.gmra.mrb[0].mxu0 %v2065
  %v2400 = vpop.f32.mrb[0].mxu0
  %v2401 = vadd.f32 0.0, %v2400
  %v2402 = vpop.f32.mrb[0].mxu0
  %2403 = vmatprep.mubr.f32.mxu0 0.0
  %2404 = vmatmul.mubr.f32.gmra.mrb[0].mxu0 %v2066
  %v2405 = vpop.f32.mrb[0].mxu0
  %v2406 = vadd.f32 0.0, %v2405
  %v2407 = vpop.f32.mrb[0].mxu0
  %2408 = vmatprep.mubr.f32.mxu0 0.0
  %2409 = vmatmul.mubr.f32.gmra.mrb[0].mxu0 %v2067
  %v2410 = vpop.f32.mrb[0].mxu0
  %v2411 = vadd.f32 0.0, %v2410
  %v2412 = vpop.f32.mrb[0].mxu0
  %2413 = vmatprep.mubr.f32.mxu0 0.0
  %2414 = vmatmul.mubr.f32.gmra.mrb[0].mxu0 %v2068
  %v2415 = vpop.f32.mrb[0].mxu0
  %v2416 = vadd.f32 0.0, %v2415
  %v2417 = vpop.f32.mrb[0].mxu0
  %2418 = vmatprep.mubr.f32.mxu0 0.0
  %2419 = vmatmul.mubr.f32.gmra.mrb[0].mxu0 %v2069
  %v2420 = vpop.f32.mrb[0].mxu0
  %v2421 = vadd.f32 0.0, %v2420
  %v2422 = vpop.f32.mrb[0].mxu0
  %2423 = vmatprep.mubr.f32.mxu0 0.0
  %2424 = vmatmul.mubr.f32.gmra.mrb[0].mxu0 %v2070
  %v2425 = vpop.f32.mrb[0].mxu0
  %v2426 = vadd.f32 0.0, %v2425
  %v2427 = vpop.f32.mrb[0].mxu0
  %2428 = vmatprep.mubr.f32.mxu0 0.0
  %2429 = vmatmul.mubr.f32.gmra.mrb[0].mxu0 %v2071
  %v2430 = vpop.f32.mrb[0].mxu0
  %v2431 = vadd.f32 0.0, %v2430
  %v2432 = vpop.f32.mrb[0].mxu0
  %2433 = vmatprep.mubr.f32.mxu0 0.0
  %2434 = vmatmul.mubr.f32.gmra.mrb[0].mxu0 %v2072
  %v2435 = vpop.f32.mrb[0].mxu0
  %v2436 = vadd.f32 0.0, %v2435
  %v2437 = vpop.f32.mrb[0].mxu0
  %2438 = vmatprep.mubr.f32.mxu0 0.0
  %2439 = vmatmul.mubr.f32.gmra.mrb[0].mxu0 %v2073
  %v2440 = vpop.f32.mrb[0].mxu0
  %v2441 = vadd.f32 0.0, %v2440
  %v2442 = vpop.f32.mrb[0].mxu0
  %2443 = vmatprep.mubr.f32.mxu0 0.0
  %2444 = vmatmul.mubr.f32.gmra.mrb[0].mxu0 %v2074
  %v2445 = vpop.f32.mrb[0].mxu0
  %v2446 = vadd.f32 0.0, %v2445
  %v2447 = vpop.f32.mrb[0].mxu0
  %2448 = vmatprep.mubr.f32.mxu0 0.0
  %2449 = vmatmul.mubr.f32.gmra.mrb[0].mxu0 %v2075
  %v2450 = vpop.f32.mrb[0].mxu0
  %v2451 = vadd.f32 0.0, %v2450
  %v2452 = vpop.f32.mrb[0].mxu0
  %2453 = vmatprep.mubr.f32.mxu0 0.0
  %2454 = vmatmul.mubr.f32.gmra.mrb[0].mxu0 %v2076
  %v2455 = vpop.f32.mrb[0].mxu0
  %v2456 = vadd.f32 0.0, %v2455
  %v2457 = vpop.f32.mrb[0].mxu0
  %2458 = vmatprep.mubr.f32.mxu0 0.0
  %2459 = vmatmul.mubr.f32.gmra.mrb[0].mxu0 %v2077
  %v2460 = vpop.f32.mrb[0].mxu0
  %v2461 = vadd.f32 0.0, %v2460
  %v2462 = vpop.f32.mrb[0].mxu0
  %2463 = vmatprep.mubr.f32.mxu0 0.0
  %2464 = vmatmul.mubr.f32.gmra.mrb[0].mxu0 %v2078
  %v2465 = vpop.f32.mrb[0].mxu0
  %v2466 = vadd.f32 0.0, %v2465
  %v2467 = vpop.f32.mrb[0].mxu0
  %2468 = vmatprep.mubr.f32.mxu0 0.0
  %2469 = vmatmul.mubr.f32.gmra.mrb[0].mxu0 %v2079
  %v2470 = vpop.f32.mrb[0].mxu0
  %v2471 = vadd.f32 0.0, %v2470
  %v2472 = vpop.f32.mrb[0].mxu0
  %2473 = vmatprep.mubr.f32.mxu0 0.0
  %2474 = vmatmul.mubr.f32.gmra.mrb[0].mxu0 %v2080
  %v2475 = vpop.f32.mrb[0].mxu0
  %v2476 = vadd.f32 0.0, %v2475
  %v2477 = vpop.f32.mrb[0].mxu0
  %2478 = vmatprep.mubr.f32.mxu0 0.0
  %2479 = vmatmul.mubr.f32.gmra.mrb[0].mxu0 %v2081
  %v2480 = vpop.f32.mrb[0].mxu0
  %v2481 = vadd.f32 0.0, %v2480
  %v2482 = vpop.f32.mrb[0].mxu0
  %2483 = vdwg.mxu0
  %v2484 = vadd.f32 %v1954, %v2166
  %v2485 = vadd.f32 %v1955, %v2171
  %v2486 = vadd.f32 %v1956, %v2176
  %v2487 = vadd.f32 %v1957, %v2181
  %v2488 = vadd.f32 %v1958, %v2186
  %v2489 = vadd.f32 %v1959, %v2191
  %v2490 = vadd.f32 %v1960, %v2196
  %v2491 = vadd.f32 %v1961, %v2201
  %v2492 = vadd.f32 %v1962, %v2206
  %v2493 = vadd.f32 %v1963, %v2211
  %v2494 = vadd.f32 %v1964, %v2216
  %v2495 = vadd.f32 %v1965, %v2221
  %v2496 = vadd.f32 %v1966, %v2226
  %v2497 = vadd.f32 %v1967, %v2231
  %v2498 = vadd.f32 %v1968, %v2236
  %v2499 = vadd.f32 %v1969, %v2241
  %v2500 = vadd.f32 %v1970, %v2246
  %v2501 = vadd.f32 %v1971, %v2251
  %v2502 = vadd.f32 %v1972, %v2256
  %v2503 = vadd.f32 %v1973, %v2261
  %v2504 = vadd.f32 %v1974, %v2266
  %v2505 = vadd.f32 %v1975, %v2271
  %v2506 = vadd.f32 %v1976, %v2276
  %v2507 = vadd.f32 %v1977, %v2281
  %v2508 = vadd.f32 %v1978, %v2286
  %v2509 = vadd.f32 %v1979, %v2291
  %v2510 = vadd.f32 %v1980, %v2296
  %v2511 = vadd.f32 %v1981, %v2301
  %v2512 = vadd.f32 %v1982, %v2306
  %v2513 = vadd.f32 %v1983, %v2311
  %v2514 = vadd.f32 %v1984, %v2316
  %v2515 = vadd.f32 %v1985, %v2321
  %v2516 = vadd.f32 %v1986, %v2326
  %v2517 = vadd.f32 %v1987, %v2331
  %v2518 = vadd.f32 %v1988, %v2336
  %v2519 = vadd.f32 %v1989, %v2341
  %v2520 = vadd.f32 %v1990, %v2346
  %v2521 = vadd.f32 %v1991, %v2351
  %v2522 = vadd.f32 %v1992, %v2356
  %v2523 = vadd.f32 %v1993, %v2361
  %v2524 = vadd.f32 %v1994, %v2366
  %v2525 = vadd.f32 %v1995, %v2371
  %v2526 = vadd.f32 %v1996, %v2376
  %v2527 = vadd.f32 %v1997, %v2381
  %v2528 = vadd.f32 %v1998, %v2386
  %v2529 = vadd.f32 %v1999, %v2391
  %v2530 = vadd.f32 %v2000, %v2396
  %v2531 = vadd.f32 %v2001, %v2401
  %v2532 = vadd.f32 %v2002, %v2406
  %v2533 = vadd.f32 %v2003, %v2411
  %v2534 = vadd.f32 %v2004, %v2416
  %v2535 = vadd.f32 %v2005, %v2421
  %v2536 = vadd.f32 %v2006, %v2426
  %v2537 = vadd.f32 %v2007, %v2431
  %v2538 = vadd.f32 %v2008, %v2436
  %v2539 = vadd.f32 %v2009, %v2441
  %v2540 = vadd.f32 %v2010, %v2446
  %v2541 = vadd.f32 %v2011, %v2451
  %v2542 = vadd.f32 %v2012, %v2456
  %v2543 = vadd.f32 %v2013, %v2461
  %v2544 = vadd.f32 %v2014, %v2466
  %v2545 = vadd.f32 %v2015, %v2471
  %v2546 = vadd.f32 %v2016, %v2476
  %v2547 = vadd.f32 %v2017, %v2481
  %v2548 = vld [vmem:[%s1487 + $0x2] sm:$0xff]
  %v2549 = vld [vmem:[%s1487 + $0xa] sm:$0xff]
  %v2550 = vld [vmem:[%s1487 + $0x1a] sm:$0xff]
  %v2551 = vld [vmem:[%s1487 + $0x22] sm:$0xff]
  %v2552 = vld [vmem:[%s1487 + $0x32] sm:$0xff]
  %v2553 = vld [vmem:[%s1487 + $0x3a] sm:$0xff]
  %v2554 = vld [vmem:[%s1487 + $0x4a] sm:$0xff]
  %v2555 = vld [vmem:[%s1487 + $0x52] sm:$0xff]
  %v2556 = vld [vmem:[%s1487 + $0x62] sm:$0xff]
  %v2557 = vld [vmem:[%s1487 + $0x6a] sm:$0xff]
  %v2558 = vld [vmem:[%s1487 + $0x7a] sm:$0xff]
  %v2559 = vld [vmem:[%s1487 + $0x82] sm:$0xff]
  %v2560 = vld [vmem:[%s1487 + $0x92] sm:$0xff]
  %v2561 = vld [vmem:[%s1487 + $0x9a] sm:$0xff]
  %v2562 = vld [vmem:[%s1487 + $0xaa] sm:$0xff]
  %v2563 = vld [vmem:[%s1487 + $0xb2] sm:$0xff]
  %v2564 = vld [vmem:[%s1487 + $0xc2] sm:$0xff]
  %v2565 = vld [vmem:[%s1487 + $0xca] sm:$0xff]
  %v2566 = vld [vmem:[%s1487 + $0xda] sm:$0xff]
  %v2567 = vld [vmem:[%s1487 + $0xe2] sm:$0xff]
  %v2568 = vld [vmem:[%s1487 + $0xf2] sm:$0xff]
  %v2569 = vld [vmem:[%s1487 + $0xfa] sm:$0xff]
  %v2570 = vld [vmem:[%s1487 + $0x10a] sm:$0xff]
  %v2571 = vld [vmem:[%s1487 + $0x112] sm:$0xff]
  %v2572 = vld [vmem:[%s1487 + $0x122] sm:$0xff]
  %v2573 = vld [vmem:[%s1487 + $0x12a] sm:$0xff]
  %v2574 = vld [vmem:[%s1487 + $0x13a] sm:$0xff]
  %v2575 = vld [vmem:[%s1487 + $0x142] sm:$0xff]
  %v2576 = vld [vmem:[%s1487 + $0x152] sm:$0xff]
  %v2577 = vld [vmem:[%s1487 + $0x15a] sm:$0xff]
  %v2578 = vld [vmem:[%s1487 + $0x16a] sm:$0xff]
  %v2579 = vld [vmem:[%s1487 + $0x172] sm:$0xff]
  %v2580 = vld [vmem:[%s1487 + $0x1b2] sm:$0xff]
  %v2581 = vld [vmem:[%s1487 + $0x1ba] sm:$0xff]
  %v2582 = vld [vmem:[%s1487 + $0x1ca] sm:$0xff]
  %v2583 = vld [vmem:[%s1487 + $0x1d2] sm:$0xff]
  %v2584 = vld [vmem:[%s1487 + $0x1e2] sm:$0xff]
  %v2585 = vld [vmem:[%s1487 + $0x1ea] sm:$0xff]
  %v2586 = vld [vmem:[%s1487 + $0x1fa] sm:$0xff]
  %v2587 = vld [vmem:[%s1487 + $0x202] sm:$0xff]
  %v2588 = vld [vmem:[%s1487 + $0x212] sm:$0xff]
  %v2589 = vld [vmem:[%s1487 + $0x21a] sm:$0xff]
  %v2590 = vld [vmem:[%s1487 + $0x22a] sm:$0xff]
  %v2591 = vld [vmem:[%s1487 + $0x232] sm:$0xff]
  %v2592 = vld [vmem:[%s1487 + $0x242] sm:$0xff]
  %v2593 = vld [vmem:[%s1487 + $0x24a] sm:$0xff]
  %v2594 = vld [vmem:[%s1487 + $0x25a] sm:$0xff]
  %v2595 = vld [vmem:[%s1487 + $0x262] sm:$0xff]
  %v2596 = vld [vmem:[%s1487 + $0x272] sm:$0xff]
  %v2597 = vld [vmem:[%s1487 + $0x27a] sm:$0xff]
  %v2598 = vld [vmem:[%s1487 + $0x28a] sm:$0xff]
  %v2599 = vld [vmem:[%s1487 + $0x292] sm:$0xff]
  %v2600 = vld [vmem:[%s1487 + $0x2a2] sm:$0xff]
  %v2601 = vld [vmem:[%s1487 + $0x2aa] sm:$0xff]
  %v2602 = vld [vmem:[%s1487 + $0x2ba] sm:$0xff]
  %v2603 = vld [vmem:[%s1487 + $0x2c2] sm:$0xff]
  %v2604 = vld [vmem:[%s1487 + $0x2d2] sm:$0xff]
  %v2605 = vld [vmem:[%s1487 + $0x2da] sm:$0xff]
  %v2606 = vld [vmem:[%s1487 + $0x2ea] sm:$0xff]
  %v2607 = vld [vmem:[%s1487 + $0x2f2] sm:$0xff]
  %v2608 = vld [vmem:[%s1487 + $0x302] sm:$0xff]
  %v2609 = vld [vmem:[%s1487 + $0x30a] sm:$0xff]
  %v2610 = vld [vmem:[%s1487 + $0x31a] sm:$0xff]
  %v2611 = vld [vmem:[%s1487 + $0x322] sm:$0xff]
  %s2612 = scalar_lea.vmem %s1, 640
  %v2613 = vld [vmem:[%s2612] sm:$0xff]
  %v2614 = vld [vmem:[%s2612 + $0x8] sm:$0xff]
  %v2615 = vld [vmem:[%s2612 + $0x10] sm:$0xff]
  %v2616 = vld [vmem:[%s2612 + $0x18] sm:$0xff]
  %v2617 = vld [vmem:[%s2612 + $0x20] sm:$0xff]
  %v2618 = vld [vmem:[%s2612 + $0x28] sm:$0xff]
  %v2619 = vld [vmem:[%s2612 + $0x30] sm:$0xff]
  %v2620 = vld [vmem:[%s2612 + $0x38] sm:$0xff]
  %v2621 = vld [vmem:[%s2612 + $0x40] sm:$0xff]
  %v2622 = vld [vmem:[%s2612 + $0x48] sm:$0xff]
  %v2623 = vld [vmem:[%s2612 + $0x50] sm:$0xff]
  %v2624 = vld [vmem:[%s2612 + $0x58] sm:$0xff]
  %v2625 = vld [vmem:[%s2612 + $0x60] sm:$0xff]
  %v2626 = vld [vmem:[%s2612 + $0x68] sm:$0xff]
  %v2627 = vld [vmem:[%s2612 + $0x70] sm:$0xff]
  %v2628 = vld [vmem:[%s2612 + $0x78] sm:$0xff]
  %2629 = vmatprep.subr.mxu0 0.0
  %2630 = vmatpush1.msra.mxu0 %v2613
  %2631 = vmatprep.subr.mxu0 0.0
  %2632 = vmatpush1.msra.mxu0 %v2614
  %2633 = vmatprep.subr.mxu0 0.0
  %2634 = vmatpush1.msra.mxu0 %v2615
  %2635 = vmatprep.subr.mxu0 0.0
  %2636 = vmatpush1.msra.mxu0 %v2616
  %2637 = vmatprep.subr.mxu0 0.0
  %2638 = vmatpush1.msra.mxu0 %v2617
  %2639 = vmatprep.subr.mxu0 0.0
  %2640 = vmatpush1.msra.mxu0 %v2618
  %2641 = vmatprep.subr.mxu0 0.0
  %2642 = vmatpush1.msra.mxu0 %v2619
  %2643 = vmatprep.subr.mxu0 0.0
  %2644 = vmatpush1.msra.mxu0 %v2620
  %2645 = vmatprep.subr.mxu0 0.0
  %2646 = vmatpush1.msra.mxu0 %v2621
  %2647 = vmatprep.subr.mxu0 0.0
  %2648 = vmatpush1.msra.mxu0 %v2622
  %2649 = vmatprep.subr.mxu0 0.0
  %2650 = vmatpush1.msra.mxu0 %v2623
  %2651 = vmatprep.subr.mxu0 0.0
  %2652 = vmatpush1.msra.mxu0 %v2624
  %2653 = vmatprep.subr.mxu0 0.0
  %2654 = vmatpush1.msra.mxu0 %v2625
  %2655 = vmatprep.subr.mxu0 0.0
  %2656 = vmatpush1.msra.mxu0 %v2626
  %2657 = vmatprep.subr.mxu0 0.0
  %2658 = vmatpush1.msra.mxu0 %v2627
  %2659 = vmatprep.subr.mxu0 0.0
  %2660 = vmatpush1.msra.mxu0 %v2628
  %2661 = vmatprep.subr.mxu0 0.0
  %2662 = vmatpush1.msra.mxu0 0.0
  %2663 = vmatprep.subr.mxu0 0.0
  %2664 = vmatpush1.msra.mxu0 0.0
  %2665 = vmatprep.subr.mxu0 0.0
  %2666 = vmatpush1.msra.mxu0 0.0
  %2667 = vmatprep.subr.mxu0 0.0
  %2668 = vmatpush1.msra.mxu0 0.0
  %2669 = vmatprep.subr.mxu0 0.0
  %2670 = vmatpush1.msra.mxu0 0.0
  %2671 = vmatprep.subr.mxu0 0.0
  %2672 = vmatpush1.msra.mxu0 0.0
  %2673 = vmatprep.subr.mxu0 0.0
  %2674 = vmatpush1.msra.mxu0 0.0
  %2675 = vmatprep.subr.mxu0 0.0
  %2676 = vmatpush1.msra.mxu0 0.0
  %2677 = vmatprep.subr.mxu0 0.0
  %2678 = vmatpush1.msra.mxu0 0.0
  %2679 = vmatprep.subr.mxu0 0.0
  %2680 = vmatpush1.msra.mxu0 0.0
  %2681 = vmatprep.subr.mxu0 0.0
  %2682 = vmatpush1.msra.mxu0 0.0
  %2683 = vmatprep.subr.mxu0 0.0
  %2684 = vmatpush1.msra.mxu0 0.0
  %2685 = vmatprep.subr.mxu0 0.0
  %2686 = vmatpush1.msra.mxu0 0.0
  %2687 = vmatprep.subr.mxu0 0.0
  %2688 = vmatpush1.msra.mxu0 0.0
  %2689 = vmatprep.subr.mxu0 0.0
  %2690 = vmatpush1.msra.mxu0 0.0
  %2691 = vmatprep.subr.mxu0 0.0
  %2692 = vmatpush1.msra.mxu0 0.0
  %2693 = vmatprep.mubr.f32.mxu0 0.0
  %2694 = vmatmul.mubr.f32.gmra.mrb[0].mxu0 %v2548
  %v2695 = vpop.f32.mrb[0].mxu0
  %v2696 = vadd.f32 0.0, %v2695
  %v2697 = vpop.f32.mrb[0].mxu0
  %2698 = vmatprep.mubr.f32.mxu0 0.0
  %2699 = vmatmul.mubr.f32.gmra.mrb[0].mxu0 %v2549
  %v2700 = vpop.f32.mrb[0].mxu0
  %v2701 = vadd.f32 0.0, %v2700
  %v2702 = vpop.f32.mrb[0].mxu0
  %2703 = vmatprep.mubr.f32.mxu0 0.0
  %2704 = vmatmul.mubr.f32.gmra.mrb[0].mxu0 %v2550
  %v2705 = vpop.f32.mrb[0].mxu0
  %v2706 = vadd.f32 0.0, %v2705
  %v2707 = vpop.f32.mrb[0].mxu0
  %2708 = vmatprep.mubr.f32.mxu0 0.0
  %2709 = vmatmul.mubr.f32.gmra.mrb[0].mxu0 %v2551
  %v2710 = vpop.f32.mrb[0].mxu0
  %v2711 = vadd.f32 0.0, %v2710
  %v2712 = vpop.f32.mrb[0].mxu0
  %2713 = vmatprep.mubr.f32.mxu0 0.0
  %2714 = vmatmul.mubr.f32.gmra.mrb[0].mxu0 %v2552
  %v2715 = vpop.f32.mrb[0].mxu0
  %v2716 = vadd.f32 0.0, %v2715
  %v2717 = vpop.f32.mrb[0].mxu0
  %2718 = vmatprep.mubr.f32.mxu0 0.0
  %2719 = vmatmul.mubr.f32.gmra.mrb[0].mxu0 %v2553
  %v2720 = vpop.f32.mrb[0].mxu0
  %v2721 = vadd.f32 0.0, %v2720
  %v2722 = vpop.f32.mrb[0].mxu0
  %2723 = vmatprep.mubr.f32.mxu0 0.0
  %2724 = vmatmul.mubr.f32.gmra.mrb[0].mxu0 %v2554
  %v2725 = vpop.f32.mrb[0].mxu0
  %v2726 = vadd.f32 0.0, %v2725
  %v2727 = vpop.f32.mrb[0].mxu0
  %2728 = vmatprep.mubr.f32.mxu0 0.0
  %2729 = vmatmul.mubr.f32.gmra.mrb[0].mxu0 %v2555
  %v2730 = vpop.f32.mrb[0].mxu0
  %v2731 = vadd.f32 0.0, %v2730
  %v2732 = vpop.f32.mrb[0].mxu0
  %2733 = vmatprep.mubr.f32.mxu0 0.0
  %2734 = vmatmul.mubr.f32.gmra.mrb[0].mxu0 %v2556
  %v2735 = vpop.f32.mrb[0].mxu0
  %v2736 = vadd.f32 0.0, %v2735
  %v2737 = vpop.f32.mrb[0].mxu0
  %2738 = vmatprep.mubr.f32.mxu0 0.0
  %2739 = vmatmul.mubr.f32.gmra.mrb[0].mxu0 %v2557
  %v2740 = vpop.f32.mrb[0].mxu0
  %v2741 = vadd.f32 0.0, %v2740
  %v2742 = vpop.f32.mrb[0].mxu0
  %2743 = vmatprep.mubr.f32.mxu0 0.0
  %2744 = vmatmul.mubr.f32.gmra.mrb[0].mxu0 %v2558
  %v2745 = vpop.f32.mrb[0].mxu0
  %v2746 = vadd.f32 0.0, %v2745
  %v2747 = vpop.f32.mrb[0].mxu0
  %2748 = vmatprep.mubr.f32.mxu0 0.0
  %2749 = vmatmul.mubr.f32.gmra.mrb[0].mxu0 %v2559
  %v2750 = vpop.f32.mrb[0].mxu0
  %v2751 = vadd.f32 0.0, %v2750
  %v2752 = vpop.f32.mrb[0].mxu0
  %2753 = vmatprep.mubr.f32.mxu0 0.0
  %2754 = vmatmul.mubr.f32.gmra.mrb[0].mxu0 %v2560
  %v2755 = vpop.f32.mrb[0].mxu0
  %v2756 = vadd.f32 0.0, %v2755
  %v2757 = vpop.f32.mrb[0].mxu0
  %2758 = vmatprep.mubr.f32.mxu0 0.0
  %2759 = vmatmul.mubr.f32.gmra.mrb[0].mxu0 %v2561
  %v2760 = vpop.f32.mrb[0].mxu0
  %v2761 = vadd.f32 0.0, %v2760
  %v2762 = vpop.f32.mrb[0].mxu0
  %2763 = vmatprep.mubr.f32.mxu0 0.0
  %2764 = vmatmul.mubr.f32.gmra.mrb[0].mxu0 %v2562
  %v2765 = vpop.f32.mrb[0].mxu0
  %v2766 = vadd.f32 0.0, %v2765
  %v2767 = vpop.f32.mrb[0].mxu0
  %2768 = vmatprep.mubr.f32.mxu0 0.0
  %2769 = vmatmul.mubr.f32.gmra.mrb[0].mxu0 %v2563
  %v2770 = vpop.f32.mrb[0].mxu0
  %v2771 = vadd.f32 0.0, %v2770
  %v2772 = vpop.f32.mrb[0].mxu0
  %2773 = vmatprep.mubr.f32.mxu0 0.0
  %2774 = vmatmul.mubr.f32.gmra.mrb[0].mxu0 %v2564
  %v2775 = vpop.f32.mrb[0].mxu0
  %v2776 = vadd.f32 0.0, %v2775
  %v2777 = vpop.f32.mrb[0].mxu0
  %2778 = vmatprep.mubr.f32.mxu0 0.0
  %2779 = vmatmul.mubr.f32.gmra.mrb[0].mxu0 %v2565
  %v2780 = vpop.f32.mrb[0].mxu0
  %v2781 = vadd.f32 0.0, %v2780
  %v2782 = vpop.f32.mrb[0].mxu0
  %2783 = vmatprep.mubr.f32.mxu0 0.0
  %2784 = vmatmul.mubr.f32.gmra.mrb[0].mxu0 %v2566
  %v2785 = vpop.f32.mrb[0].mxu0
  %v2786 = vadd.f32 0.0, %v2785
  %v2787 = vpop.f32.mrb[0].mxu0
  %2788 = vmatprep.mubr.f32.mxu0 0.0
  %2789 = vmatmul.mubr.f32.gmra.mrb[0].mxu0 %v2567
  %v2790 = vpop.f32.mrb[0].mxu0
  %v2791 = vadd.f32 0.0, %v2790
  %v2792 = vpop.f32.mrb[0].mxu0
  %2793 = vmatprep.mubr.f32.mxu0 0.0
  %2794 = vmatmul.mubr.f32.gmra.mrb[0].mxu0 %v2568
  %v2795 = vpop.f32.mrb[0].mxu0
  %v2796 = vadd.f32 0.0, %v2795
  %v2797 = vpop.f32.mrb[0].mxu0
  %2798 = vmatprep.mubr.f32.mxu0 0.0
  %2799 = vmatmul.mubr.f32.gmra.mrb[0].mxu0 %v2569
  %v2800 = vpop.f32.mrb[0].mxu0
  %v2801 = vadd.f32 0.0, %v2800
  %v2802 = vpop.f32.mrb[0].mxu0
  %2803 = vmatprep.mubr.f32.mxu0 0.0
  %2804 = vmatmul.mubr.f32.gmra.mrb[0].mxu0 %v2570
  %v2805 = vpop.f32.mrb[0].mxu0
  %v2806 = vadd.f32 0.0, %v2805
  %v2807 = vpop.f32.mrb[0].mxu0
  %2808 = vmatprep.mubr.f32.mxu0 0.0
  %2809 = vmatmul.mubr.f32.gmra.mrb[0].mxu0 %v2571
  %v2810 = vpop.f32.mrb[0].mxu0
  %v2811 = vadd.f32 0.0, %v2810
  %v2812 = vpop.f32.mrb[0].mxu0
  %2813 = vmatprep.mubr.f32.mxu0 0.0
  %2814 = vmatmul.mubr.f32.gmra.mrb[0].mxu0 %v2572
  %v2815 = vpop.f32.mrb[0].mxu0
  %v2816 = vadd.f32 0.0, %v2815
  %v2817 = vpop.f32.mrb[0].mxu0
  %2818 = vmatprep.mubr.f32.mxu0 0.0
  %2819 = vmatmul.mubr.f32.gmra.mrb[0].mxu0 %v2573
  %v2820 = vpop.f32.mrb[0].mxu0
  %v2821 = vadd.f32 0.0, %v2820
  %v2822 = vpop.f32.mrb[0].mxu0
  %2823 = vmatprep.mubr.f32.mxu0 0.0
  %2824 = vmatmul.mubr.f32.gmra.mrb[0].mxu0 %v2574
  %v2825 = vpop.f32.mrb[0].mxu0
  %v2826 = vadd.f32 0.0, %v2825
  %v2827 = vpop.f32.mrb[0].mxu0
  %2828 = vmatprep.mubr.f32.mxu0 0.0
  %2829 = vmatmul.mubr.f32.gmra.mrb[0].mxu0 %v2575
  %v2830 = vpop.f32.mrb[0].mxu0
  %v2831 = vadd.f32 0.0, %v2830
  %v2832 = vpop.f32.mrb[0].mxu0
  %2833 = vmatprep.mubr.f32.mxu0 0.0
  %2834 = vmatmul.mubr.f32.gmra.mrb[0].mxu0 %v2576
  %v2835 = vpop.f32.mrb[0].mxu0
  %v2836 = vadd.f32 0.0, %v2835
  %v2837 = vpop.f32.mrb[0].mxu0
  %2838 = vmatprep.mubr.f32.mxu0 0.0
  %2839 = vmatmul.mubr.f32.gmra.mrb[0].mxu0 %v2577
  %v2840 = vpop.f32.mrb[0].mxu0
  %v2841 = vadd.f32 0.0, %v2840
  %v2842 = vpop.f32.mrb[0].mxu0
  %2843 = vmatprep.mubr.f32.mxu0 0.0
  %2844 = vmatmul.mubr.f32.gmra.mrb[0].mxu0 %v2578
  %v2845 = vpop.f32.mrb[0].mxu0
  %v2846 = vadd.f32 0.0, %v2845
  %v2847 = vpop.f32.mrb[0].mxu0
  %2848 = vmatprep.mubr.f32.mxu0 0.0
  %2849 = vmatmul.mubr.f32.gmra.mrb[0].mxu0 %v2579
  %v2850 = vpop.f32.mrb[0].mxu0
  %v2851 = vadd.f32 0.0, %v2850
  %v2852 = vpop.f32.mrb[0].mxu0
  %2853 = vmatprep.mubr.f32.mxu0 0.0
  %2854 = vmatmul.mubr.f32.gmra.mrb[0].mxu0 %v2580
  %v2855 = vpop.f32.mrb[0].mxu0
  %v2856 = vadd.f32 0.0, %v2855
  %v2857 = vpop.f32.mrb[0].mxu0
  %2858 = vmatprep.mubr.f32.mxu0 0.0
  %2859 = vmatmul.mubr.f32.gmra.mrb[0].mxu0 %v2581
  %v2860 = vpop.f32.mrb[0].mxu0
  %v2861 = vadd.f32 0.0, %v2860
  %v2862 = vpop.f32.mrb[0].mxu0
  %2863 = vmatprep.mubr.f32.mxu0 0.0
  %2864 = vmatmul.mubr.f32.gmra.mrb[0].mxu0 %v2582
  %v2865 = vpop.f32.mrb[0].mxu0
  %v2866 = vadd.f32 0.0, %v2865
  %v2867 = vpop.f32.mrb[0].mxu0
  %2868 = vmatprep.mubr.f32.mxu0 0.0
  %2869 = vmatmul.mubr.f32.gmra.mrb[0].mxu0 %v2583
  %v2870 = vpop.f32.mrb[0].mxu0
  %v2871 = vadd.f32 0.0, %v2870
  %v2872 = vpop.f32.mrb[0].mxu0
  %2873 = vmatprep.mubr.f32.mxu0 0.0
  %2874 = vmatmul.mubr.f32.gmra.mrb[0].mxu0 %v2584
  %v2875 = vpop.f32.mrb[0].mxu0
  %v2876 = vadd.f32 0.0, %v2875
  %v2877 = vpop.f32.mrb[0].mxu0
  %2878 = vmatprep.mubr.f32.mxu0 0.0
  %2879 = vmatmul.mubr.f32.gmra.mrb[0].mxu0 %v2585
  %v2880 = vpop.f32.mrb[0].mxu0
  %v2881 = vadd.f32 0.0, %v2880
  %v2882 = vpop.f32.mrb[0].mxu0
  %2883 = vmatprep.mubr.f32.mxu0 0.0
  %2884 = vmatmul.mubr.f32.gmra.mrb[0].mxu0 %v2586
  %v2885 = vpop.f32.mrb[0].mxu0
  %v2886 = vadd.f32 0.0, %v2885
  %v2887 = vpop.f32.mrb[0].mxu0
  %2888 = vmatprep.mubr.f32.mxu0 0.0
  %2889 = vmatmul.mubr.f32.gmra.mrb[0].mxu0 %v2587
  %v2890 = vpop.f32.mrb[0].mxu0
  %v2891 = vadd.f32 0.0, %v2890
  %v2892 = vpop.f32.mrb[0].mxu0
  %2893 = vmatprep.mubr.f32.mxu0 0.0
  %2894 = vmatmul.mubr.f32.gmra.mrb[0].mxu0 %v2588
  %v2895 = vpop.f32.mrb[0].mxu0
  %v2896 = vadd.f32 0.0, %v2895
  %v2897 = vpop.f32.mrb[0].mxu0
  %2898 = vmatprep.mubr.f32.mxu0 0.0
  %2899 = vmatmul.mubr.f32.gmra.mrb[0].mxu0 %v2589
  %v2900 = vpop.f32.mrb[0].mxu0
  %v2901 = vadd.f32 0.0, %v2900
  %v2902 = vpop.f32.mrb[0].mxu0
  %2903 = vmatprep.mubr.f32.mxu0 0.0
  %2904 = vmatmul.mubr.f32.gmra.mrb[0].mxu0 %v2590
  %v2905 = vpop.f32.mrb[0].mxu0
  %v2906 = vadd.f32 0.0, %v2905
  %v2907 = vpop.f32.mrb[0].mxu0
  %2908 = vmatprep.mubr.f32.mxu0 0.0
  %2909 = vmatmul.mubr.f32.gmra.mrb[0].mxu0 %v2591
  %v2910 = vpop.f32.mrb[0].mxu0
  %v2911 = vadd.f32 0.0, %v2910
  %v2912 = vpop.f32.mrb[0].mxu0
  %2913 = vmatprep.mubr.f32.mxu0 0.0
  %2914 = vmatmul.mubr.f32.gmra.mrb[0].mxu0 %v2592
  %v2915 = vpop.f32.mrb[0].mxu0
  %v2916 = vadd.f32 0.0, %v2915
  %v2917 = vpop.f32.mrb[0].mxu0
  %2918 = vmatprep.mubr.f32.mxu0 0.0
  %2919 = vmatmul.mubr.f32.gmra.mrb[0].mxu0 %v2593
  %v2920 = vpop.f32.mrb[0].mxu0
  %v2921 = vadd.f32 0.0, %v2920
  %v2922 = vpop.f32.mrb[0].mxu0
  %2923 = vmatprep.mubr.f32.mxu0 0.0
  %2924 = vmatmul.mubr.f32.gmra.mrb[0].mxu0 %v2594
  %v2925 = vpop.f32.mrb[0].mxu0
  %v2926 = vadd.f32 0.0, %v2925
  %v2927 = vpop.f32.mrb[0].mxu0
  %2928 = vmatprep.mubr.f32.mxu0 0.0
  %2929 = vmatmul.mubr.f32.gmra.mrb[0].mxu0 %v2595
  %v2930 = vpop.f32.mrb[0].mxu0
  %v2931 = vadd.f32 0.0, %v2930
  %v2932 = vpop.f32.mrb[0].mxu0
  %2933 = vmatprep.mubr.f32.mxu0 0.0
  %2934 = vmatmul.mubr.f32.gmra.mrb[0].mxu0 %v2596
  %v2935 = vpop.f32.mrb[0].mxu0
  %v2936 = vadd.f32 0.0, %v2935
  %v2937 = vpop.f32.mrb[0].mxu0
  %2938 = vmatprep.mubr.f32.mxu0 0.0
  %2939 = vmatmul.mubr.f32.gmra.mrb[0].mxu0 %v2597
  %v2940 = vpop.f32.mrb[0].mxu0
  %v2941 = vadd.f32 0.0, %v2940
  %v2942 = vpop.f32.mrb[0].mxu0
  %2943 = vmatprep.mubr.f32.mxu0 0.0
  %2944 = vmatmul.mubr.f32.gmra.mrb[0].mxu0 %v2598
  %v2945 = vpop.f32.mrb[0].mxu0
  %v2946 = vadd.f32 0.0, %v2945
  %v2947 = vpop.f32.mrb[0].mxu0
  %2948 = vmatprep.mubr.f32.mxu0 0.0
  %2949 = vmatmul.mubr.f32.gmra.mrb[0].mxu0 %v2599
  %v2950 = vpop.f32.mrb[0].mxu0
  %v2951 = vadd.f32 0.0, %v2950
  %v2952 = vpop.f32.mrb[0].mxu0
  %2953 = vmatprep.mubr.f32.mxu0 0.0
  %2954 = vmatmul.mubr.f32.gmra.mrb[0].mxu0 %v2600
  %v2955 = vpop.f32.mrb[0].mxu0
  %v2956 = vadd.f32 0.0, %v2955
  %v2957 = vpop.f32.mrb[0].mxu0
  %2958 = vmatprep.mubr.f32.mxu0 0.0
  %2959 = vmatmul.mubr.f32.gmra.mrb[0].mxu0 %v2601
  %v2960 = vpop.f32.mrb[0].mxu0
  %v2961 = vadd.f32 0.0, %v2960
  %v2962 = vpop.f32.mrb[0].mxu0
  %2963 = vmatprep.mubr.f32.mxu0 0.0
  %2964 = vmatmul.mubr.f32.gmra.mrb[0].mxu0 %v2602
  %v2965 = vpop.f32.mrb[0].mxu0
  %v2966 = vadd.f32 0.0, %v2965
  %v2967 = vpop.f32.mrb[0].mxu0
  %2968 = vmatprep.mubr.f32.mxu0 0.0
  %2969 = vmatmul.mubr.f32.gmra.mrb[0].mxu0 %v2603
  %v2970 = vpop.f32.mrb[0].mxu0
  %v2971 = vadd.f32 0.0, %v2970
  %v2972 = vpop.f32.mrb[0].mxu0
  %2973 = vmatprep.mubr.f32.mxu0 0.0
  %2974 = vmatmul.mubr.f32.gmra.mrb[0].mxu0 %v2604
  %v2975 = vpop.f32.mrb[0].mxu0
  %v2976 = vadd.f32 0.0, %v2975
  %v2977 = vpop.f32.mrb[0].mxu0
  %2978 = vmatprep.mubr.f32.mxu0 0.0
  %2979 = vmatmul.mubr.f32.gmra.mrb[0].mxu0 %v2605
  %v2980 = vpop.f32.mrb[0].mxu0
  %v2981 = vadd.f32 0.0, %v2980
  %v2982 = vpop.f32.mrb[0].mxu0
  %2983 = vmatprep.mubr.f32.mxu0 0.0
  %2984 = vmatmul.mubr.f32.gmra.mrb[0].mxu0 %v2606
  %v2985 = vpop.f32.mrb[0].mxu0
  %v2986 = vadd.f32 0.0, %v2985
  %v2987 = vpop.f32.mrb[0].mxu0
  %2988 = vmatprep.mubr.f32.mxu0 0.0
  %2989 = vmatmul.mubr.f32.gmra.mrb[0].mxu0 %v2607
  %v2990 = vpop.f32.mrb[0].mxu0
  %v2991 = vadd.f32 0.0, %v2990
  %v2992 = vpop.f32.mrb[0].mxu0
  %2993 = vmatprep.mubr.f32.mxu0 0.0
  %2994 = vmatmul.mubr.f32.gmra.mrb[0].mxu0 %v2608
  %v2995 = vpop.f32.mrb[0].mxu0
  %v2996 = vadd.f32 0.0, %v2995
  %v2997 = vpop.f32.mrb[0].mxu0
  %2998 = vmatprep.mubr.f32.mxu0 0.0
  %2999 = vmatmul.mubr.f32.gmra.mrb[0].mxu0 %v2609
  %v3000 = vpop.f32.mrb[0].mxu0
  %v3001 = vadd.f32 0.0, %v3000
  %v3002 = vpop.f32.mrb[0].mxu0
  %3003 = vmatprep.mubr.f32.mxu0 0.0
  %3004 = vmatmul.mubr.f32.gmra.mrb[0].mxu0 %v2610
  %v3005 = vpop.f32.mrb[0].mxu0
  %v3006 = vadd.f32 0.0, %v3005
  %v3007 = vpop.f32.mrb[0].mxu0
  %3008 = vmatprep.mubr.f32.mxu0 0.0
  %3009 = vmatmul.mubr.f32.gmra.mrb[0].mxu0 %v2611
  %v3010 = vpop.f32.mrb[0].mxu0
  %v3011 = vadd.f32 0.0, %v3010
  %v3012 = vpop.f32.mrb[0].mxu0
  %3013 = vdwg.mxu0
  %v3014 = vadd.f32 %v2484, %v2696
  %v3015 = vadd.f32 %v2485, %v2701
  %v3016 = vadd.f32 %v2486, %v2706
  %v3017 = vadd.f32 %v2487, %v2711
  %v3018 = vadd.f32 %v2488, %v2716
  %v3019 = vadd.f32 %v2489, %v2721
  %v3020 = vadd.f32 %v2490, %v2726
  %v3021 = vadd.f32 %v2491, %v2731
  %v3022 = vadd.f32 %v2492, %v2736
  %v3023 = vadd.f32 %v2493, %v2741
  %v3024 = vadd.f32 %v2494, %v2746
  %v3025 = vadd.f32 %v2495, %v2751
  %v3026 = vadd.f32 %v2496, %v2756
  %v3027 = vadd.f32 %v2497, %v2761
  %v3028 = vadd.f32 %v2498, %v2766
  %v3029 = vadd.f32 %v2499, %v2771
  %v3030 = vadd.f32 %v2500, %v2776
  %v3031 = vadd.f32 %v2501, %v2781
  %v3032 = vadd.f32 %v2502, %v2786
  %v3033 = vadd.f32 %v2503, %v2791
  %v3034 = vadd.f32 %v2504, %v2796
  %v3035 = vadd.f32 %v2505, %v2801
  %v3036 = vadd.f32 %v2506, %v2806
  %v3037 = vadd.f32 %v2507, %v2811
  %v3038 = vadd.f32 %v2508, %v2816
  %v3039 = vadd.f32 %v2509, %v2821
  %v3040 = vadd.f32 %v2510, %v2826
  %v3041 = vadd.f32 %v2511, %v2831
  %v3042 = vadd.f32 %v2512, %v2836
  %v3043 = vadd.f32 %v2513, %v2841
  %v3044 = vadd.f32 %v2514, %v2846
  %v3045 = vadd.f32 %v2515, %v2851
  %v3046 = vadd.f32 %v2516, %v2856
  %v3047 = vadd.f32 %v2517, %v2861
  %v3048 = vadd.f32 %v2518, %v2866
  %v3049 = vadd.f32 %v2519, %v2871
  %v3050 = vadd.f32 %v2520, %v2876
  %v3051 = vadd.f32 %v2521, %v2881
  %v3052 = vadd.f32 %v2522, %v2886
  %v3053 = vadd.f32 %v2523, %v2891
  %v3054 = vadd.f32 %v2524, %v2896
  %v3055 = vadd.f32 %v2525, %v2901
  %v3056 = vadd.f32 %v2526, %v2906
  %v3057 = vadd.f32 %v2527, %v2911
  %v3058 = vadd.f32 %v2528, %v2916
  %v3059 = vadd.f32 %v2529, %v2921
  %v3060 = vadd.f32 %v2530, %v2926
  %v3061 = vadd.f32 %v2531, %v2931
  %v3062 = vadd.f32 %v2532, %v2936
  %v3063 = vadd.f32 %v2533, %v2941
  %v3064 = vadd.f32 %v2534, %v2946
  %v3065 = vadd.f32 %v2535, %v2951
  %v3066 = vadd.f32 %v2536, %v2956
  %v3067 = vadd.f32 %v2537, %v2961
  %v3068 = vadd.f32 %v2538, %v2966
  %v3069 = vadd.f32 %v2539, %v2971
  %v3070 = vadd.f32 %v2540, %v2976
  %v3071 = vadd.f32 %v2541, %v2981
  %v3072 = vadd.f32 %v2542, %v2986
  %v3073 = vadd.f32 %v2543, %v2991
  %v3074 = vadd.f32 %v2544, %v2996
  %v3075 = vadd.f32 %v2545, %v3001
  %v3076 = vadd.f32 %v2546, %v3006
  %v3077 = vadd.f32 %v2547, %v3011
  %s3078 = scalar_lea.vmem %s0, 48
  %v3079 = vld [vmem:[%s3078] sm:$0xff]
  %v3080 = vld [vmem:[%s3078 + $0x8] sm:$0xff]
  %v3081 = vld [vmem:[%s3078 + $0x18] sm:$0xff]
  %v3082 = vld [vmem:[%s3078 + $0x20] sm:$0xff]
  %v3083 = vld [vmem:[%s3078 + $0x30] sm:$0xff]
  %v3084 = vld [vmem:[%s3078 + $0x38] sm:$0xff]
  %v3085 = vld [vmem:[%s3078 + $0x48] sm:$0xff]
  %v3086 = vld [vmem:[%s3078 + $0x50] sm:$0xff]
  %v3087 = vld [vmem:[%s3078 + $0x60] sm:$0xff]
  %v3088 = vld [vmem:[%s3078 + $0x68] sm:$0xff]
  %v3089 = vld [vmem:[%s3078 + $0x78] sm:$0xff]
  %v3090 = vld [vmem:[%s3078 + $0x80] sm:$0xff]
  %v3091 = vld [vmem:[%s3078 + $0x90] sm:$0xff]
  %v3092 = vld [vmem:[%s3078 + $0x98] sm:$0xff]
  %v3093 = vld [vmem:[%s3078 + $0xa8] sm:$0xff]
  %v3094 = vld [vmem:[%s3078 + $0xb0] sm:$0xff]
  %v3095 = vld [vmem:[%s3078 + $0xc0] sm:$0xff]
  %v3096 = vld [vmem:[%s3078 + $0xc8] sm:$0xff]
  %v3097 = vld [vmem:[%s3078 + $0xd8] sm:$0xff]
  %v3098 = vld [vmem:[%s3078 + $0xe0] sm:$0xff]
  %v3099 = vld [vmem:[%s3078 + $0xf0] sm:$0xff]
  %v3100 = vld [vmem:[%s3078 + $0xf8] sm:$0xff]
  %v3101 = vld [vmem:[%s3078 + $0x108] sm:$0xff]
  %v3102 = vld [vmem:[%s3078 + $0x110] sm:$0xff]
  %v3103 = vld [vmem:[%s3078 + $0x120] sm:$0xff]
  %v3104 = vld [vmem:[%s3078 + $0x128] sm:$0xff]
  %v3105 = vld [vmem:[%s3078 + $0x138] sm:$0xff]
  %v3106 = vld [vmem:[%s3078 + $0x140] sm:$0xff]
  %v3107 = vld [vmem:[%s3078 + $0x150] sm:$0xff]
  %v3108 = vld [vmem:[%s3078 + $0x158] sm:$0xff]
  %v3109 = vld [vmem:[%s3078 + $0x168] sm:$0xff]
  %v3110 = vld [vmem:[%s3078 + $0x170] sm:$0xff]
  %v3111 = vld [vmem:[%s3078 + $0x1b0] sm:$0xff]
  %v3112 = vld [vmem:[%s3078 + $0x1b8] sm:$0xff]
  %v3113 = vld [vmem:[%s3078 + $0x1c8] sm:$0xff]
  %v3114 = vld [vmem:[%s3078 + $0x1d0] sm:$0xff]
  %v3115 = vld [vmem:[%s3078 + $0x1e0] sm:$0xff]
  %v3116 = vld [vmem:[%s3078 + $0x1e8] sm:$0xff]
  %v3117 = vld [vmem:[%s3078 + $0x1f8] sm:$0xff]
  %v3118 = vld [vmem:[%s3078 + $0x200] sm:$0xff]
  %v3119 = vld [vmem:[%s3078 + $0x210] sm:$0xff]
  %v3120 = vld [vmem:[%s3078 + $0x218] sm:$0xff]
  %v3121 = vld [vmem:[%s3078 + $0x228] sm:$0xff]
  %v3122 = vld [vmem:[%s3078 + $0x230] sm:$0xff]
  %v3123 = vld [vmem:[%s3078 + $0x240] sm:$0xff]
  %v3124 = vld [vmem:[%s3078 + $0x248] sm:$0xff]
  %v3125 = vld [vmem:[%s3078 + $0x258] sm:$0xff]
  %v3126 = vld [vmem:[%s3078 + $0x260] sm:$0xff]
  %v3127 = vld [vmem:[%s3078 + $0x270] sm:$0xff]
  %v3128 = vld [vmem:[%s3078 + $0x278] sm:$0xff]
  %v3129 = vld [vmem:[%s3078 + $0x288] sm:$0xff]
  %v3130 = vld [vmem:[%s3078 + $0x290] sm:$0xff]
  %v3131 = vld [vmem:[%s3078 + $0x2a0] sm:$0xff]
  %v3132 = vld [vmem:[%s3078 + $0x2a8] sm:$0xff]
  %v3133 = vld [vmem:[%s3078 + $0x2b8] sm:$0xff]
  %v3134 = vld [vmem:[%s3078 + $0x2c0] sm:$0xff]
  %v3135 = vld [vmem:[%s3078 + $0x2d0] sm:$0xff]
  %v3136 = vld [vmem:[%s3078 + $0x2d8] sm:$0xff]
  %v3137 = vld [vmem:[%s3078 + $0x2e8] sm:$0xff]
  %v3138 = vld [vmem:[%s3078 + $0x2f0] sm:$0xff]
  %v3139 = vld [vmem:[%s3078 + $0x300] sm:$0xff]
  %v3140 = vld [vmem:[%s3078 + $0x308] sm:$0xff]
  %v3141 = vld [vmem:[%s3078 + $0x318] sm:$0xff]
  %v3142 = vld [vmem:[%s3078 + $0x320] sm:$0xff]
  %s3143 = scalar_lea.vmem %s1, 768
  %v3144 = vld [vmem:[%s3143] sm:$0xff]
  %v3145 = vld [vmem:[%s3143 + $0x8] sm:$0xff]
  %v3146 = vld [vmem:[%s3143 + $0x10] sm:$0xff]
  %v3147 = vld [vmem:[%s3143 + $0x18] sm:$0xff]
  %v3148 = vld [vmem:[%s3143 + $0x20] sm:$0xff]
  %v3149 = vld [vmem:[%s3143 + $0x28] sm:$0xff]
  %v3150 = vld [vmem:[%s3143 + $0x30] sm:$0xff]
  %v3151 = vld [vmem:[%s3143 + $0x38] sm:$0xff]
  %v3152 = vld [vmem:[%s3143 + $0x40] sm:$0xff]
  %v3153 = vld [vmem:[%s3143 + $0x48] sm:$0xff]
  %v3154 = vld [vmem:[%s3143 + $0x50] sm:$0xff]
  %v3155 = vld [vmem:[%s3143 + $0x58] sm:$0xff]
  %v3156 = vld [vmem:[%s3143 + $0x60] sm:$0xff]
  %v3157 = vld [vmem:[%s3143 + $0x68] sm:$0xff]
  %v3158 = vld [vmem:[%s3143 + $0x70] sm:$0xff]
  %v3159 = vld [vmem:[%s3143 + $0x78] sm:$0xff]
  %3160 = vmatprep.subr.mxu0 0.0
  %3161 = vmatpush1.msra.mxu0 %v3144
  %3162 = vmatprep.subr.mxu0 0.0
  %3163 = vmatpush1.msra.mxu0 %v3145
  %3164 = vmatprep.subr.mxu0 0.0
  %3165 = vmatpush1.msra.mxu0 %v3146
  %3166 = vmatprep.subr.mxu0 0.0
  %3167 = vmatpush1.msra.mxu0 %v3147
  %3168 = vmatprep.subr.mxu0 0.0
  %3169 = vmatpush1.msra.mxu0 %v3148
  %3170 = vmatprep.subr.mxu0 0.0
  %3171 = vmatpush1.msra.mxu0 %v3149
  %3172 = vmatprep.subr.mxu0 0.0
  %3173 = vmatpush1.msra.mxu0 %v3150
  %3174 = vmatprep.subr.mxu0 0.0
  %3175 = vmatpush1.msra.mxu0 %v3151
  %3176 = vmatprep.subr.mxu0 0.0
  %3177 = vmatpush1.msra.mxu0 %v3152
  %3178 = vmatprep.subr.mxu0 0.0
  %3179 = vmatpush1.msra.mxu0 %v3153
  %3180 = vmatprep.subr.mxu0 0.0
  %3181 = vmatpush1.msra.mxu0 %v3154
  %3182 = vmatprep.subr.mxu0 0.0
  %3183 = vmatpush1.msra.mxu0 %v3155
  %3184 = vmatprep.subr.mxu0 0.0
  %3185 = vmatpush1.msra.mxu0 %v3156
  %3186 = vmatprep.subr.mxu0 0.0
  %3187 = vmatpush1.msra.mxu0 %v3157
  %3188 = vmatprep.subr.mxu0 0.0
  %3189 = vmatpush1.msra.mxu0 %v3158
  %3190 = vmatprep.subr.mxu0 0.0
  %3191 = vmatpush1.msra.mxu0 %v3159
  %3192 = vmatprep.subr.mxu0 0.0
  %3193 = vmatpush1.msra.mxu0 0.0
  %3194 = vmatprep.subr.mxu0 0.0
  %3195 = vmatpush1.msra.mxu0 0.0
  %3196 = vmatprep.subr.mxu0 0.0
  %3197 = vmatpush1.msra.mxu0 0.0
  %3198 = vmatprep.subr.mxu0 0.0
  %3199 = vmatpush1.msra.mxu0 0.0
  %3200 = vmatprep.subr.mxu0 0.0
  %3201 = vmatpush1.msra.mxu0 0.0
  %3202 = vmatprep.subr.mxu0 0.0
  %3203 = vmatpush1.msra.mxu0 0.0
  %3204 = vmatprep.subr.mxu0 0.0
  %3205 = vmatpush1.msra.mxu0 0.0
  %3206 = vmatprep.subr.mxu0 0.0
  %3207 = vmatpush1.msra.mxu0 0.0
  %3208 = vmatprep.subr.mxu0 0.0
  %3209 = vmatpush1.msra.mxu0 0.0
  %3210 = vmatprep.subr.mxu0 0.0
  %3211 = vmatpush1.msra.mxu0 0.0
  %3212 = vmatprep.subr.mxu0 0.0
  %3213 = vmatpush1.msra.mxu0 0.0
  %3214 = vmatprep.subr.mxu0 0.0
  %3215 = vmatpush1.msra.mxu0 0.0
  %3216 = vmatprep.subr.mxu0 0.0
  %3217 = vmatpush1.msra.mxu0 0.0
  %3218 = vmatprep.subr.mxu0 0.0
  %3219 = vmatpush1.msra.mxu0 0.0
  %3220 = vmatprep.subr.mxu0 0.0
  %3221 = vmatpush1.msra.mxu0 0.0
  %3222 = vmatprep.subr.mxu0 0.0
  %3223 = vmatpush1.msra.mxu0 0.0
  %3224 = vmatprep.mubr.f32.mxu0 0.0
  %3225 = vmatmul.mubr.f32.gmra.mrb[0].mxu0 %v3079
  %v3226 = vpop.f32.mrb[0].mxu0
  %v3227 = vadd.f32 0.0, %v3226
  %v3228 = vpop.f32.mrb[0].mxu0
  %3229 = vmatprep.mubr.f32.mxu0 0.0
  %3230 = vmatmul.mubr.f32.gmra.mrb[0].mxu0 %v3080
  %v3231 = vpop.f32.mrb[0].mxu0
  %v3232 = vadd.f32 0.0, %v3231
  %v3233 = vpop.f32.mrb[0].mxu0
  %3234 = vmatprep.mubr.f32.mxu0 0.0
  %3235 = vmatmul.mubr.f32.gmra.mrb[0].mxu0 %v3081
  %v3236 = vpop.f32.mrb[0].mxu0
  %v3237 = vadd.f32 0.0, %v3236
  %v3238 = vpop.f32.mrb[0].mxu0
  %3239 = vmatprep.mubr.f32.mxu0 0.0
  %3240 = vmatmul.mubr.f32.gmra.mrb[0].mxu0 %v3082
  %v3241 = vpop.f32.mrb[0].mxu0
  %v3242 = vadd.f32 0.0, %v3241
  %v3243 = vpop.f32.mrb[0].mxu0
  %3244 = vmatprep.mubr.f32.mxu0 0.0
  %3245 = vmatmul.mubr.f32.gmra.mrb[0].mxu0 %v3083
  %v3246 = vpop.f32.mrb[0].mxu0
  %v3247 = vadd.f32 0.0, %v3246
  %v3248 = vpop.f32.mrb[0].mxu0
  %3249 = vmatprep.mubr.f32.mxu0 0.0
  %3250 = vmatmul.mubr.f32.gmra.mrb[0].mxu0 %v3084
  %v3251 = vpop.f32.mrb[0].mxu0
  %v3252 = vadd.f32 0.0, %v3251
  %v3253 = vpop.f32.mrb[0].mxu0
  %3254 = vmatprep.mubr.f32.mxu0 0.0
  %3255 = vmatmul.mubr.f32.gmra.mrb[0].mxu0 %v3085
  %v3256 = vpop.f32.mrb[0].mxu0
  %v3257 = vadd.f32 0.0, %v3256
  %v3258 = vpop.f32.mrb[0].mxu0
  %3259 = vmatprep.mubr.f32.mxu0 0.0
  %3260 = vmatmul.mubr.f32.gmra.mrb[0].mxu0 %v3086
  %v3261 = vpop.f32.mrb[0].mxu0
  %v3262 = vadd.f32 0.0, %v3261
  %v3263 = vpop.f32.mrb[0].mxu0
  %3264 = vmatprep.mubr.f32.mxu0 0.0
  %3265 = vmatmul.mubr.f32.gmra.mrb[0].mxu0 %v3087
  %v3266 = vpop.f32.mrb[0].mxu0
  %v3267 = vadd.f32 0.0, %v3266
  %v3268 = vpop.f32.mrb[0].mxu0
  %3269 = vmatprep.mubr.f32.mxu0 0.0
  %3270 = vmatmul.mubr.f32.gmra.mrb[0].mxu0 %v3088
  %v3271 = vpop.f32.mrb[0].mxu0
  %v3272 = vadd.f32 0.0, %v3271
  %v3273 = vpop.f32.mrb[0].mxu0
  %3274 = vmatprep.mubr.f32.mxu0 0.0
  %3275 = vmatmul.mubr.f32.gmra.mrb[0].mxu0 %v3089
  %v3276 = vpop.f32.mrb[0].mxu0
  %v3277 = vadd.f32 0.0, %v3276
  %v3278 = vpop.f32.mrb[0].mxu0
  %3279 = vmatprep.mubr.f32.mxu0 0.0
  %3280 = vmatmul.mubr.f32.gmra.mrb[0].mxu0 %v3090
  %v3281 = vpop.f32.mrb[0].mxu0
  %v3282 = vadd.f32 0.0, %v3281
  %v3283 = vpop.f32.mrb[0].mxu0
  %3284 = vmatprep.mubr.f32.mxu0 0.0
  %3285 = vmatmul.mubr.f32.gmra.mrb[0].mxu0 %v3091
  %v3286 = vpop.f32.mrb[0].mxu0
  %v3287 = vadd.f32 0.0, %v3286
  %v3288 = vpop.f32.mrb[0].mxu0
  %3289 = vmatprep.mubr.f32.mxu0 0.0
  %3290 = vmatmul.mubr.f32.gmra.mrb[0].mxu0 %v3092
  %v3291 = vpop.f32.mrb[0].mxu0
  %v3292 = vadd.f32 0.0, %v3291
  %v3293 = vpop.f32.mrb[0].mxu0
  %3294 = vmatprep.mubr.f32.mxu0 0.0
  %3295 = vmatmul.mubr.f32.gmra.mrb[0].mxu0 %v3093
  %v3296 = vpop.f32.mrb[0].mxu0
  %v3297 = vadd.f32 0.0, %v3296
  %v3298 = vpop.f32.mrb[0].mxu0
  %3299 = vmatprep.mubr.f32.mxu0 0.0
  %3300 = vmatmul.mubr.f32.gmra.mrb[0].mxu0 %v3094
  %v3301 = vpop.f32.mrb[0].mxu0
  %v3302 = vadd.f32 0.0, %v3301
  %v3303 = vpop.f32.mrb[0].mxu0
  %3304 = vmatprep.mubr.f32.mxu0 0.0
  %3305 = vmatmul.mubr.f32.gmra.mrb[0].mxu0 %v3095
  %v3306 = vpop.f32.mrb[0].mxu0
  %v3307 = vadd.f32 0.0, %v3306
  %v3308 = vpop.f32.mrb[0].mxu0
  %3309 = vmatprep.mubr.f32.mxu0 0.0
  %3310 = vmatmul.mubr.f32.gmra.mrb[0].mxu0 %v3096
  %v3311 = vpop.f32.mrb[0].mxu0
  %v3312 = vadd.f32 0.0, %v3311
  %v3313 = vpop.f32.mrb[0].mxu0
  %3314 = vmatprep.mubr.f32.mxu0 0.0
  %3315 = vmatmul.mubr.f32.gmra.mrb[0].mxu0 %v3097
  %v3316 = vpop.f32.mrb[0].mxu0
  %v3317 = vadd.f32 0.0, %v3316
  %v3318 = vpop.f32.mrb[0].mxu0
  %3319 = vmatprep.mubr.f32.mxu0 0.0
  %3320 = vmatmul.mubr.f32.gmra.mrb[0].mxu0 %v3098
  %v3321 = vpop.f32.mrb[0].mxu0
  %v3322 = vadd.f32 0.0, %v3321
  %v3323 = vpop.f32.mrb[0].mxu0
  %3324 = vmatprep.mubr.f32.mxu0 0.0
  %3325 = vmatmul.mubr.f32.gmra.mrb[0].mxu0 %v3099
  %v3326 = vpop.f32.mrb[0].mxu0
  %v3327 = vadd.f32 0.0, %v3326
  %v3328 = vpop.f32.mrb[0].mxu0
  %3329 = vmatprep.mubr.f32.mxu0 0.0
  %3330 = vmatmul.mubr.f32.gmra.mrb[0].mxu0 %v3100
  %v3331 = vpop.f32.mrb[0].mxu0
  %v3332 = vadd.f32 0.0, %v3331
  %v3333 = vpop.f32.mrb[0].mxu0
  %3334 = vmatprep.mubr.f32.mxu0 0.0
  %3335 = vmatmul.mubr.f32.gmra.mrb[0].mxu0 %v3101
  %v3336 = vpop.f32.mrb[0].mxu0
  %v3337 = vadd.f32 0.0, %v3336
  %v3338 = vpop.f32.mrb[0].mxu0
  %3339 = vmatprep.mubr.f32.mxu0 0.0
  %3340 = vmatmul.mubr.f32.gmra.mrb[0].mxu0 %v3102
  %v3341 = vpop.f32.mrb[0].mxu0
  %v3342 = vadd.f32 0.0, %v3341
  %v3343 = vpop.f32.mrb[0].mxu0
  %3344 = vmatprep.mubr.f32.mxu0 0.0
  %3345 = vmatmul.mubr.f32.gmra.mrb[0].mxu0 %v3103
  %v3346 = vpop.f32.mrb[0].mxu0
  %v3347 = vadd.f32 0.0, %v3346
  %v3348 = vpop.f32.mrb[0].mxu0
  %3349 = vmatprep.mubr.f32.mxu0 0.0
  %3350 = vmatmul.mubr.f32.gmra.mrb[0].mxu0 %v3104
  %v3351 = vpop.f32.mrb[0].mxu0
  %v3352 = vadd.f32 0.0, %v3351
  %v3353 = vpop.f32.mrb[0].mxu0
  %3354 = vmatprep.mubr.f32.mxu0 0.0
  %3355 = vmatmul.mubr.f32.gmra.mrb[0].mxu0 %v3105
  %v3356 = vpop.f32.mrb[0].mxu0
  %v3357 = vadd.f32 0.0, %v3356
  %v3358 = vpop.f32.mrb[0].mxu0
  %3359 = vmatprep.mubr.f32.mxu0 0.0
  %3360 = vmatmul.mubr.f32.gmra.mrb[0].mxu0 %v3106
  %v3361 = vpop.f32.mrb[0].mxu0
  %v3362 = vadd.f32 0.0, %v3361
  %v3363 = vpop.f32.mrb[0].mxu0
  %3364 = vmatprep.mubr.f32.mxu0 0.0
  %3365 = vmatmul.mubr.f32.gmra.mrb[0].mxu0 %v3107
  %v3366 = vpop.f32.mrb[0].mxu0
  %v3367 = vadd.f32 0.0, %v3366
  %v3368 = vpop.f32.mrb[0].mxu0
  %3369 = vmatprep.mubr.f32.mxu0 0.0
  %3370 = vmatmul.mubr.f32.gmra.mrb[0].mxu0 %v3108
  %v3371 = vpop.f32.mrb[0].mxu0
  %v3372 = vadd.f32 0.0, %v3371
  %v3373 = vpop.f32.mrb[0].mxu0
  %3374 = vmatprep.mubr.f32.mxu0 0.0
  %3375 = vmatmul.mubr.f32.gmra.mrb[0].mxu0 %v3109
  %v3376 = vpop.f32.mrb[0].mxu0
  %v3377 = vadd.f32 0.0, %v3376
  %v3378 = vpop.f32.mrb[0].mxu0
  %3379 = vmatprep.mubr.f32.mxu0 0.0
  %3380 = vmatmul.mubr.f32.gmra.mrb[0].mxu0 %v3110
  %v3381 = vpop.f32.mrb[0].mxu0
  %v3382 = vadd.f32 0.0, %v3381
  %v3383 = vpop.f32.mrb[0].mxu0
  %3384 = vmatprep.mubr.f32.mxu0 0.0
  %3385 = vmatmul.mubr.f32.gmra.mrb[0].mxu0 %v3111
  %v3386 = vpop.f32.mrb[0].mxu0
  %v3387 = vadd.f32 0.0, %v3386
  %v3388 = vpop.f32.mrb[0].mxu0
  %3389 = vmatprep.mubr.f32.mxu0 0.0
  %3390 = vmatmul.mubr.f32.gmra.mrb[0].mxu0 %v3112
  %v3391 = vpop.f32.mrb[0].mxu0
  %v3392 = vadd.f32 0.0, %v3391
  %v3393 = vpop.f32.mrb[0].mxu0
  %3394 = vmatprep.mubr.f32.mxu0 0.0
  %3395 = vmatmul.mubr.f32.gmra.mrb[0].mxu0 %v3113
  %v3396 = vpop.f32.mrb[0].mxu0
  %v3397 = vadd.f32 0.0, %v3396
  %v3398 = vpop.f32.mrb[0].mxu0
  %3399 = vmatprep.mubr.f32.mxu0 0.0
  %3400 = vmatmul.mubr.f32.gmra.mrb[0].mxu0 %v3114
  %v3401 = vpop.f32.mrb[0].mxu0
  %v3402 = vadd.f32 0.0, %v3401
  %v3403 = vpop.f32.mrb[0].mxu0
  %3404 = vmatprep.mubr.f32.mxu0 0.0
  %3405 = vmatmul.mubr.f32.gmra.mrb[0].mxu0 %v3115
  %v3406 = vpop.f32.mrb[0].mxu0
  %v3407 = vadd.f32 0.0, %v3406
  %v3408 = vpop.f32.mrb[0].mxu0
  %3409 = vmatprep.mubr.f32.mxu0 0.0
  %3410 = vmatmul.mubr.f32.gmra.mrb[0].mxu0 %v3116
  %v3411 = vpop.f32.mrb[0].mxu0
  %v3412 = vadd.f32 0.0, %v3411
  %v3413 = vpop.f32.mrb[0].mxu0
  %3414 = vmatprep.mubr.f32.mxu0 0.0
  %3415 = vmatmul.mubr.f32.gmra.mrb[0].mxu0 %v3117
  %v3416 = vpop.f32.mrb[0].mxu0
  %v3417 = vadd.f32 0.0, %v3416
  %v3418 = vpop.f32.mrb[0].mxu0
  %3419 = vmatprep.mubr.f32.mxu0 0.0
  %3420 = vmatmul.mubr.f32.gmra.mrb[0].mxu0 %v3118
  %v3421 = vpop.f32.mrb[0].mxu0
  %v3422 = vadd.f32 0.0, %v3421
  %v3423 = vpop.f32.mrb[0].mxu0
  %3424 = vmatprep.mubr.f32.mxu0 0.0
  %3425 = vmatmul.mubr.f32.gmra.mrb[0].mxu0 %v3119
  %v3426 = vpop.f32.mrb[0].mxu0
  %v3427 = vadd.f32 0.0, %v3426
  %v3428 = vpop.f32.mrb[0].mxu0
  %3429 = vmatprep.mubr.f32.mxu0 0.0
  %3430 = vmatmul.mubr.f32.gmra.mrb[0].mxu0 %v3120
  %v3431 = vpop.f32.mrb[0].mxu0
  %v3432 = vadd.f32 0.0, %v3431
  %v3433 = vpop.f32.mrb[0].mxu0
  %3434 = vmatprep.mubr.f32.mxu0 0.0
  %3435 = vmatmul.mubr.f32.gmra.mrb[0].mxu0 %v3121
  %v3436 = vpop.f32.mrb[0].mxu0
  %v3437 = vadd.f32 0.0, %v3436
  %v3438 = vpop.f32.mrb[0].mxu0
  %3439 = vmatprep.mubr.f32.mxu0 0.0
  %3440 = vmatmul.mubr.f32.gmra.mrb[0].mxu0 %v3122
  %v3441 = vpop.f32.mrb[0].mxu0
  %v3442 = vadd.f32 0.0, %v3441
  %v3443 = vpop.f32.mrb[0].mxu0
  %3444 = vmatprep.mubr.f32.mxu0 0.0
  %3445 = vmatmul.mubr.f32.gmra.mrb[0].mxu0 %v3123
  %v3446 = vpop.f32.mrb[0].mxu0
  %v3447 = vadd.f32 0.0, %v3446
  %v3448 = vpop.f32.mrb[0].mxu0
  %3449 = vmatprep.mubr.f32.mxu0 0.0
  %3450 = vmatmul.mubr.f32.gmra.mrb[0].mxu0 %v3124
  %v3451 = vpop.f32.mrb[0].mxu0
  %v3452 = vadd.f32 0.0, %v3451
  %v3453 = vpop.f32.mrb[0].mxu0
  %3454 = vmatprep.mubr.f32.mxu0 0.0
  %3455 = vmatmul.mubr.f32.gmra.mrb[0].mxu0 %v3125
  %v3456 = vpop.f32.mrb[0].mxu0
  %v3457 = vadd.f32 0.0, %v3456
  %v3458 = vpop.f32.mrb[0].mxu0
  %3459 = vmatprep.mubr.f32.mxu0 0.0
  %3460 = vmatmul.mubr.f32.gmra.mrb[0].mxu0 %v3126
  %v3461 = vpop.f32.mrb[0].mxu0
  %v3462 = vadd.f32 0.0, %v3461
  %v3463 = vpop.f32.mrb[0].mxu0
  %3464 = vmatprep.mubr.f32.mxu0 0.0
  %3465 = vmatmul.mubr.f32.gmra.mrb[0].mxu0 %v3127
  %v3466 = vpop.f32.mrb[0].mxu0
  %v3467 = vadd.f32 0.0, %v3466
  %v3468 = vpop.f32.mrb[0].mxu0
  %3469 = vmatprep.mubr.f32.mxu0 0.0
  %3470 = vmatmul.mubr.f32.gmra.mrb[0].mxu0 %v3128
  %v3471 = vpop.f32.mrb[0].mxu0
  %v3472 = vadd.f32 0.0, %v3471
  %v3473 = vpop.f32.mrb[0].mxu0
  %3474 = vmatprep.mubr.f32.mxu0 0.0
  %3475 = vmatmul.mubr.f32.gmra.mrb[0].mxu0 %v3129
  %v3476 = vpop.f32.mrb[0].mxu0
  %v3477 = vadd.f32 0.0, %v3476
  %v3478 = vpop.f32.mrb[0].mxu0
  %3479 = vmatprep.mubr.f32.mxu0 0.0
  %3480 = vmatmul.mubr.f32.gmra.mrb[0].mxu0 %v3130
  %v3481 = vpop.f32.mrb[0].mxu0
  %v3482 = vadd.f32 0.0, %v3481
  %v3483 = vpop.f32.mrb[0].mxu0
  %3484 = vmatprep.mubr.f32.mxu0 0.0
  %3485 = vmatmul.mubr.f32.gmra.mrb[0].mxu0 %v3131
  %v3486 = vpop.f32.mrb[0].mxu0
  %v3487 = vadd.f32 0.0, %v3486
  %v3488 = vpop.f32.mrb[0].mxu0
  %3489 = vmatprep.mubr.f32.mxu0 0.0
  %3490 = vmatmul.mubr.f32.gmra.mrb[0].mxu0 %v3132
  %v3491 = vpop.f32.mrb[0].mxu0
  %v3492 = vadd.f32 0.0, %v3491
  %v3493 = vpop.f32.mrb[0].mxu0
  %3494 = vmatprep.mubr.f32.mxu0 0.0
  %3495 = vmatmul.mubr.f32.gmra.mrb[0].mxu0 %v3133
  %v3496 = vpop.f32.mrb[0].mxu0
  %v3497 = vadd.f32 0.0, %v3496
  %v3498 = vpop.f32.mrb[0].mxu0
  %3499 = vmatprep.mubr.f32.mxu0 0.0
  %3500 = vmatmul.mubr.f32.gmra.mrb[0].mxu0 %v3134
  %v3501 = vpop.f32.mrb[0].mxu0
  %v3502 = vadd.f32 0.0, %v3501
  %v3503 = vpop.f32.mrb[0].mxu0
  %3504 = vmatprep.mubr.f32.mxu0 0.0
  %3505 = vmatmul.mubr.f32.gmra.mrb[0].mxu0 %v3135
  %v3506 = vpop.f32.mrb[0].mxu0
  %v3507 = vadd.f32 0.0, %v3506
  %v3508 = vpop.f32.mrb[0].mxu0
  %3509 = vmatprep.mubr.f32.mxu0 0.0
  %3510 = vmatmul.mubr.f32.gmra.mrb[0].mxu0 %v3136
  %v3511 = vpop.f32.mrb[0].mxu0
  %v3512 = vadd.f32 0.0, %v3511
  %v3513 = vpop.f32.mrb[0].mxu0
  %3514 = vmatprep.mubr.f32.mxu0 0.0
  %3515 = vmatmul.mubr.f32.gmra.mrb[0].mxu0 %v3137
  %v3516 = vpop.f32.mrb[0].mxu0
  %v3517 = vadd.f32 0.0, %v3516
  %v3518 = vpop.f32.mrb[0].mxu0
  %3519 = vmatprep.mubr.f32.mxu0 0.0
  %3520 = vmatmul.mubr.f32.gmra.mrb[0].mxu0 %v3138
  %v3521 = vpop.f32.mrb[0].mxu0
  %v3522 = vadd.f32 0.0, %v3521
  %v3523 = vpop.f32.mrb[0].mxu0
  %3524 = vmatprep.mubr.f32.mxu0 0.0
  %3525 = vmatmul.mubr.f32.gmra.mrb[0].mxu0 %v3139
  %v3526 = vpop.f32.mrb[0].mxu0
  %v3527 = vadd.f32 0.0, %v3526
  %v3528 = vpop.f32.mrb[0].mxu0
  %3529 = vmatprep.mubr.f32.mxu0 0.0
  %3530 = vmatmul.mubr.f32.gmra.mrb[0].mxu0 %v3140
  %v3531 = vpop.f32.mrb[0].mxu0
  %v3532 = vadd.f32 0.0, %v3531
  %v3533 = vpop.f32.mrb[0].mxu0
  %3534 = vmatprep.mubr.f32.mxu0 0.0
  %3535 = vmatmul.mubr.f32.gmra.mrb[0].mxu0 %v3141
  %v3536 = vpop.f32.mrb[0].mxu0
  %v3537 = vadd.f32 0.0, %v3536
  %v3538 = vpop.f32.mrb[0].mxu0
  %3539 = vmatprep.mubr.f32.mxu0 0.0
  %3540 = vmatmul.mubr.f32.gmra.mrb[0].mxu0 %v3142
  %v3541 = vpop.f32.mrb[0].mxu0
  %v3542 = vadd.f32 0.0, %v3541
  %v3543 = vpop.f32.mrb[0].mxu0
  %3544 = vdwg.mxu0
  %v3545 = vadd.f32 %v3014, %v3227
  %v3546 = vadd.f32 %v3015, %v3232
  %v3547 = vadd.f32 %v3016, %v3237
  %v3548 = vadd.f32 %v3017, %v3242
  %v3549 = vadd.f32 %v3018, %v3247
  %v3550 = vadd.f32 %v3019, %v3252
  %v3551 = vadd.f32 %v3020, %v3257
  %v3552 = vadd.f32 %v3021, %v3262
  %v3553 = vadd.f32 %v3022, %v3267
  %v3554 = vadd.f32 %v3023, %v3272
  %v3555 = vadd.f32 %v3024, %v3277
  %v3556 = vadd.f32 %v3025, %v3282
  %v3557 = vadd.f32 %v3026, %v3287
  %v3558 = vadd.f32 %v3027, %v3292
  %v3559 = vadd.f32 %v3028, %v3297
  %v3560 = vadd.f32 %v3029, %v3302
  %v3561 = vadd.f32 %v3030, %v3307
  %v3562 = vadd.f32 %v3031, %v3312
  %v3563 = vadd.f32 %v3032, %v3317
  %v3564 = vadd.f32 %v3033, %v3322
  %v3565 = vadd.f32 %v3034, %v3327
  %v3566 = vadd.f32 %v3035, %v3332
  %v3567 = vadd.f32 %v3036, %v3337
  %v3568 = vadd.f32 %v3037, %v3342
  %v3569 = vadd.f32 %v3038, %v3347
  %v3570 = vadd.f32 %v3039, %v3352
  %v3571 = vadd.f32 %v3040, %v3357
  %v3572 = vadd.f32 %v3041, %v3362
  %v3573 = vadd.f32 %v3042, %v3367
  %v3574 = vadd.f32 %v3043, %v3372
  %v3575 = vadd.f32 %v3044, %v3377
  %v3576 = vadd.f32 %v3045, %v3382
  %v3577 = vadd.f32 %v3046, %v3387
  %v3578 = vadd.f32 %v3047, %v3392
  %v3579 = vadd.f32 %v3048, %v3397
  %v3580 = vadd.f32 %v3049, %v3402
  %v3581 = vadd.f32 %v3050, %v3407
  %v3582 = vadd.f32 %v3051, %v3412
  %v3583 = vadd.f32 %v3052, %v3417
  %v3584 = vadd.f32 %v3053, %v3422
  %v3585 = vadd.f32 %v3054, %v3427
  %v3586 = vadd.f32 %v3055, %v3432
  %v3587 = vadd.f32 %v3056, %v3437
  %v3588 = vadd.f32 %v3057, %v3442
  %v3589 = vadd.f32 %v3058, %v3447
  %v3590 = vadd.f32 %v3059, %v3452
  %v3591 = vadd.f32 %v3060, %v3457
  %v3592 = vadd.f32 %v3061, %v3462
  %v3593 = vadd.f32 %v3062, %v3467
  %v3594 = vadd.f32 %v3063, %v3472
  %v3595 = vadd.f32 %v3064, %v3477
  %v3596 = vadd.f32 %v3065, %v3482
  %v3597 = vadd.f32 %v3066, %v3487
  %v3598 = vadd.f32 %v3067, %v3492
  %v3599 = vadd.f32 %v3068, %v3497
  %v3600 = vadd.f32 %v3069, %v3502
  %v3601 = vadd.f32 %v3070, %v3507
  %v3602 = vadd.f32 %v3071, %v3512
  %v3603 = vadd.f32 %v3072, %v3517
  %v3604 = vadd.f32 %v3073, %v3522
  %v3605 = vadd.f32 %v3074, %v3527
  %v3606 = vadd.f32 %v3075, %v3532
  %v3607 = vadd.f32 %v3076, %v3537
  %v3608 = vadd.f32 %v3077, %v3542
  %v3609 = vld [vmem:[%s3078 + $0x1] sm:$0xff]
  %v3610 = vld [vmem:[%s3078 + $0x9] sm:$0xff]
  %v3611 = vld [vmem:[%s3078 + $0x19] sm:$0xff]
  %v3612 = vld [vmem:[%s3078 + $0x21] sm:$0xff]
  %v3613 = vld [vmem:[%s3078 + $0x31] sm:$0xff]
  %v3614 = vld [vmem:[%s3078 + $0x39] sm:$0xff]
  %v3615 = vld [vmem:[%s3078 + $0x49] sm:$0xff]
  %v3616 = vld [vmem:[%s3078 + $0x51] sm:$0xff]
  %v3617 = vld [vmem:[%s3078 + $0x61] sm:$0xff]
  %v3618 = vld [vmem:[%s3078 + $0x69] sm:$0xff]
  %v3619 = vld [vmem:[%s3078 + $0x79] sm:$0xff]
  %v3620 = vld [vmem:[%s3078 + $0x81] sm:$0xff]
  %v3621 = vld [vmem:[%s3078 + $0x91] sm:$0xff]
  %v3622 = vld [vmem:[%s3078 + $0x99] sm:$0xff]
  %v3623 = vld [vmem:[%s3078 + $0xa9] sm:$0xff]
  %v3624 = vld [vmem:[%s3078 + $0xb1] sm:$0xff]
  %v3625 = vld [vmem:[%s3078 + $0xc1] sm:$0xff]
  %v3626 = vld [vmem:[%s3078 + $0xc9] sm:$0xff]
  %v3627 = vld [vmem:[%s3078 + $0xd9] sm:$0xff]
  %v3628 = vld [vmem:[%s3078 + $0xe1] sm:$0xff]
  %v3629 = vld [vmem:[%s3078 + $0xf1] sm:$0xff]
  %v3630 = vld [vmem:[%s3078 + $0xf9] sm:$0xff]
  %v3631 = vld [vmem:[%s3078 + $0x109] sm:$0xff]
  %v3632 = vld [vmem:[%s3078 + $0x111] sm:$0xff]
  %v3633 = vld [vmem:[%s3078 + $0x121] sm:$0xff]
  %v3634 = vld [vmem:[%s3078 + $0x129] sm:$0xff]
  %v3635 = vld [vmem:[%s3078 + $0x139] sm:$0xff]
  %v3636 = vld [vmem:[%s3078 + $0x141] sm:$0xff]
  %v3637 = vld [vmem:[%s3078 + $0x151] sm:$0xff]
  %v3638 = vld [vmem:[%s3078 + $0x159] sm:$0xff]
  %v3639 = vld [vmem:[%s3078 + $0x169] sm:$0xff]
  %v3640 = vld [vmem:[%s3078 + $0x171] sm:$0xff]
  %v3641 = vld [vmem:[%s3078 + $0x1b1] sm:$0xff]
  %v3642 = vld [vmem:[%s3078 + $0x1b9] sm:$0xff]
  %v3643 = vld [vmem:[%s3078 + $0x1c9] sm:$0xff]
  %v3644 = vld [vmem:[%s3078 + $0x1d1] sm:$0xff]
  %v3645 = vld [vmem:[%s3078 + $0x1e1] sm:$0xff]
  %v3646 = vld [vmem:[%s3078 + $0x1e9] sm:$0xff]
  %v3647 = vld [vmem:[%s3078 + $0x1f9] sm:$0xff]
  %v3648 = vld [vmem:[%s3078 + $0x201] sm:$0xff]
  %v3649 = vld [vmem:[%s3078 + $0x211] sm:$0xff]
  %v3650 = vld [vmem:[%s3078 + $0x219] sm:$0xff]
  %v3651 = vld [vmem:[%s3078 + $0x229] sm:$0xff]
  %v3652 = vld [vmem:[%s3078 + $0x231] sm:$0xff]
  %v3653 = vld [vmem:[%s3078 + $0x241] sm:$0xff]
  %v3654 = vld [vmem:[%s3078 + $0x249] sm:$0xff]
  %v3655 = vld [vmem:[%s3078 + $0x259] sm:$0xff]
  %v3656 = vld [vmem:[%s3078 + $0x261] sm:$0xff]
  %v3657 = vld [vmem:[%s3078 + $0x271] sm:$0xff]
  %v3658 = vld [vmem:[%s3078 + $0x279] sm:$0xff]
  %v3659 = vld [vmem:[%s3078 + $0x289] sm:$0xff]
  %v3660 = vld [vmem:[%s3078 + $0x291] sm:$0xff]
  %v3661 = vld [vmem:[%s3078 + $0x2a1] sm:$0xff]
  %v3662 = vld [vmem:[%s3078 + $0x2a9] sm:$0xff]
  %v3663 = vld [vmem:[%s3078 + $0x2b9] sm:$0xff]
  %v3664 = vld [vmem:[%s3078 + $0x2c1] sm:$0xff]
  %v3665 = vld [vmem:[%s3078 + $0x2d1] sm:$0xff]
  %v3666 = vld [vmem:[%s3078 + $0x2d9] sm:$0xff]
  %v3667 = vld [vmem:[%s3078 + $0x2e9] sm:$0xff]
  %v3668 = vld [vmem:[%s3078 + $0x2f1] sm:$0xff]
  %v3669 = vld [vmem:[%s3078 + $0x301] sm:$0xff]
  %v3670 = vld [vmem:[%s3078 + $0x309] sm:$0xff]
  %v3671 = vld [vmem:[%s3078 + $0x319] sm:$0xff]
  %v3672 = vld [vmem:[%s3078 + $0x321] sm:$0xff]
  %s3673 = scalar_lea.vmem %s1, 896
  %v3674 = vld [vmem:[%s3673] sm:$0xff]
  %v3675 = vld [vmem:[%s3673 + $0x8] sm:$0xff]
  %v3676 = vld [vmem:[%s3673 + $0x10] sm:$0xff]
  %v3677 = vld [vmem:[%s3673 + $0x18] sm:$0xff]
  %v3678 = vld [vmem:[%s3673 + $0x20] sm:$0xff]
  %v3679 = vld [vmem:[%s3673 + $0x28] sm:$0xff]
  %v3680 = vld [vmem:[%s3673 + $0x30] sm:$0xff]
  %v3681 = vld [vmem:[%s3673 + $0x38] sm:$0xff]
  %v3682 = vld [vmem:[%s3673 + $0x40] sm:$0xff]
  %v3683 = vld [vmem:[%s3673 + $0x48] sm:$0xff]
  %v3684 = vld [vmem:[%s3673 + $0x50] sm:$0xff]
  %v3685 = vld [vmem:[%s3673 + $0x58] sm:$0xff]
  %v3686 = vld [vmem:[%s3673 + $0x60] sm:$0xff]
  %v3687 = vld [vmem:[%s3673 + $0x68] sm:$0xff]
  %v3688 = vld [vmem:[%s3673 + $0x70] sm:$0xff]
  %v3689 = vld [vmem:[%s3673 + $0x78] sm:$0xff]
  %3690 = vmatprep.subr.mxu0 0.0
  %3691 = vmatpush1.msra.mxu0 %v3674
  %3692 = vmatprep.subr.mxu0 0.0
  %3693 = vmatpush1.msra.mxu0 %v3675
  %3694 = vmatprep.subr.mxu0 0.0
  %3695 = vmatpush1.msra.mxu0 %v3676
  %3696 = vmatprep.subr.mxu0 0.0
  %3697 = vmatpush1.msra.mxu0 %v3677
  %3698 = vmatprep.subr.mxu0 0.0
  %3699 = vmatpush1.msra.mxu0 %v3678
  %3700 = vmatprep.subr.mxu0 0.0
  %3701 = vmatpush1.msra.mxu0 %v3679
  %3702 = vmatprep.subr.mxu0 0.0
  %3703 = vmatpush1.msra.mxu0 %v3680
  %3704 = vmatprep.subr.mxu0 0.0
  %3705 = vmatpush1.msra.mxu0 %v3681
  %3706 = vmatprep.subr.mxu0 0.0
  %3707 = vmatpush1.msra.mxu0 %v3682
  %3708 = vmatprep.subr.mxu0 0.0
  %3709 = vmatpush1.msra.mxu0 %v3683
  %3710 = vmatprep.subr.mxu0 0.0
  %3711 = vmatpush1.msra.mxu0 %v3684
  %3712 = vmatprep.subr.mxu0 0.0
  %3713 = vmatpush1.msra.mxu0 %v3685
  %3714 = vmatprep.subr.mxu0 0.0
  %3715 = vmatpush1.msra.mxu0 %v3686
  %3716 = vmatprep.subr.mxu0 0.0
  %3717 = vmatpush1.msra.mxu0 %v3687
  %3718 = vmatprep.subr.mxu0 0.0
  %3719 = vmatpush1.msra.mxu0 %v3688
  %3720 = vmatprep.subr.mxu0 0.0
  %3721 = vmatpush1.msra.mxu0 %v3689
  %3722 = vmatprep.subr.mxu0 0.0
  %3723 = vmatpush1.msra.mxu0 0.0
  %3724 = vmatprep.subr.mxu0 0.0
  %3725 = vmatpush1.msra.mxu0 0.0
  %3726 = vmatprep.subr.mxu0 0.0
  %3727 = vmatpush1.msra.mxu0 0.0
  %3728 = vmatprep.subr.mxu0 0.0
  %3729 = vmatpush1.msra.mxu0 0.0
  %3730 = vmatprep.subr.mxu0 0.0
  %3731 = vmatpush1.msra.mxu0 0.0
  %3732 = vmatprep.subr.mxu0 0.0
  %3733 = vmatpush1.msra.mxu0 0.0
  %3734 = vmatprep.subr.mxu0 0.0
  %3735 = vmatpush1.msra.mxu0 0.0
  %3736 = vmatprep.subr.mxu0 0.0
  %3737 = vmatpush1.msra.mxu0 0.0
  %3738 = vmatprep.subr.mxu0 0.0
  %3739 = vmatpush1.msra.mxu0 0.0
  %3740 = vmatprep.subr.mxu0 0.0
  %3741 = vmatpush1.msra.mxu0 0.0
  %3742 = vmatprep.subr.mxu0 0.0
  %3743 = vmatpush1.msra.mxu0 0.0
  %3744 = vmatprep.subr.mxu0 0.0
  %3745 = vmatpush1.msra.mxu0 0.0
  %3746 = vmatprep.subr.mxu0 0.0
  %3747 = vmatpush1.msra.mxu0 0.0
  %3748 = vmatprep.subr.mxu0 0.0
  %3749 = vmatpush1.msra.mxu0 0.0
  %3750 = vmatprep.subr.mxu0 0.0
  %3751 = vmatpush1.msra.mxu0 0.0
  %3752 = vmatprep.subr.mxu0 0.0
  %3753 = vmatpush1.msra.mxu0 0.0
  %3754 = vmatprep.mubr.f32.mxu0 0.0
  %3755 = vmatmul.mubr.f32.gmra.mrb[0].mxu0 %v3609
  %v3756 = vpop.f32.mrb[0].mxu0
  %v3757 = vadd.f32 0.0, %v3756
  %v3758 = vpop.f32.mrb[0].mxu0
  %3759 = vmatprep.mubr.f32.mxu0 0.0
  %3760 = vmatmul.mubr.f32.gmra.mrb[0].mxu0 %v3610
  %v3761 = vpop.f32.mrb[0].mxu0
  %v3762 = vadd.f32 0.0, %v3761
  %v3763 = vpop.f32.mrb[0].mxu0
  %3764 = vmatprep.mubr.f32.mxu0 0.0
  %3765 = vmatmul.mubr.f32.gmra.mrb[0].mxu0 %v3611
  %v3766 = vpop.f32.mrb[0].mxu0
  %v3767 = vadd.f32 0.0, %v3766
  %v3768 = vpop.f32.mrb[0].mxu0
  %3769 = vmatprep.mubr.f32.mxu0 0.0
  %3770 = vmatmul.mubr.f32.gmra.mrb[0].mxu0 %v3612
  %v3771 = vpop.f32.mrb[0].mxu0
  %v3772 = vadd.f32 0.0, %v3771
  %v3773 = vpop.f32.mrb[0].mxu0
  %3774 = vmatprep.mubr.f32.mxu0 0.0
  %3775 = vmatmul.mubr.f32.gmra.mrb[0].mxu0 %v3613
  %v3776 = vpop.f32.mrb[0].mxu0
  %v3777 = vadd.f32 0.0, %v3776
  %v3778 = vpop.f32.mrb[0].mxu0
  %3779 = vmatprep.mubr.f32.mxu0 0.0
  %3780 = vmatmul.mubr.f32.gmra.mrb[0].mxu0 %v3614
  %v3781 = vpop.f32.mrb[0].mxu0
  %v3782 = vadd.f32 0.0, %v3781
  %v3783 = vpop.f32.mrb[0].mxu0
  %3784 = vmatprep.mubr.f32.mxu0 0.0
  %3785 = vmatmul.mubr.f32.gmra.mrb[0].mxu0 %v3615
  %v3786 = vpop.f32.mrb[0].mxu0
  %v3787 = vadd.f32 0.0, %v3786
  %v3788 = vpop.f32.mrb[0].mxu0
  %3789 = vmatprep.mubr.f32.mxu0 0.0
  %3790 = vmatmul.mubr.f32.gmra.mrb[0].mxu0 %v3616
  %v3791 = vpop.f32.mrb[0].mxu0
  %v3792 = vadd.f32 0.0, %v3791
  %v3793 = vpop.f32.mrb[0].mxu0
  %3794 = vmatprep.mubr.f32.mxu0 0.0
  %3795 = vmatmul.mubr.f32.gmra.mrb[0].mxu0 %v3617
  %v3796 = vpop.f32.mrb[0].mxu0
  %v3797 = vadd.f32 0.0, %v3796
  %v3798 = vpop.f32.mrb[0].mxu0
  %3799 = vmatprep.mubr.f32.mxu0 0.0
  %3800 = vmatmul.mubr.f32.gmra.mrb[0].mxu0 %v3618
  %v3801 = vpop.f32.mrb[0].mxu0
  %v3802 = vadd.f32 0.0, %v3801
  %v3803 = vpop.f32.mrb[0].mxu0
  %3804 = vmatprep.mubr.f32.mxu0 0.0
  %3805 = vmatmul.mubr.f32.gmra.mrb[0].mxu0 %v3619
  %v3806 = vpop.f32.mrb[0].mxu0
  %v3807 = vadd.f32 0.0, %v3806
  %v3808 = vpop.f32.mrb[0].mxu0
  %3809 = vmatprep.mubr.f32.mxu0 0.0
  %3810 = vmatmul.mubr.f32.gmra.mrb[0].mxu0 %v3620
  %v3811 = vpop.f32.mrb[0].mxu0
  %v3812 = vadd.f32 0.0, %v3811
  %v3813 = vpop.f32.mrb[0].mxu0
  %3814 = vmatprep.mubr.f32.mxu0 0.0
  %3815 = vmatmul.mubr.f32.gmra.mrb[0].mxu0 %v3621
  %v3816 = vpop.f32.mrb[0].mxu0
  %v3817 = vadd.f32 0.0, %v3816
  %v3818 = vpop.f32.mrb[0].mxu0
  %3819 = vmatprep.mubr.f32.mxu0 0.0
  %3820 = vmatmul.mubr.f32.gmra.mrb[0].mxu0 %v3622
  %v3821 = vpop.f32.mrb[0].mxu0
  %v3822 = vadd.f32 0.0, %v3821
  %v3823 = vpop.f32.mrb[0].mxu0
  %3824 = vmatprep.mubr.f32.mxu0 0.0
  %3825 = vmatmul.mubr.f32.gmra.mrb[0].mxu0 %v3623
  %v3826 = vpop.f32.mrb[0].mxu0
  %v3827 = vadd.f32 0.0, %v3826
  %v3828 = vpop.f32.mrb[0].mxu0
  %3829 = vmatprep.mubr.f32.mxu0 0.0
  %3830 = vmatmul.mubr.f32.gmra.mrb[0].mxu0 %v3624
  %v3831 = vpop.f32.mrb[0].mxu0
  %v3832 = vadd.f32 0.0, %v3831
  %v3833 = vpop.f32.mrb[0].mxu0
  %3834 = vmatprep.mubr.f32.mxu0 0.0
  %3835 = vmatmul.mubr.f32.gmra.mrb[0].mxu0 %v3625
  %v3836 = vpop.f32.mrb[0].mxu0
  %v3837 = vadd.f32 0.0, %v3836
  %v3838 = vpop.f32.mrb[0].mxu0
  %3839 = vmatprep.mubr.f32.mxu0 0.0
  %3840 = vmatmul.mubr.f32.gmra.mrb[0].mxu0 %v3626
  %v3841 = vpop.f32.mrb[0].mxu0
  %v3842 = vadd.f32 0.0, %v3841
  %v3843 = vpop.f32.mrb[0].mxu0
  %3844 = vmatprep.mubr.f32.mxu0 0.0
  %3845 = vmatmul.mubr.f32.gmra.mrb[0].mxu0 %v3627
  %v3846 = vpop.f32.mrb[0].mxu0
  %v3847 = vadd.f32 0.0, %v3846
  %v3848 = vpop.f32.mrb[0].mxu0
  %3849 = vmatprep.mubr.f32.mxu0 0.0
  %3850 = vmatmul.mubr.f32.gmra.mrb[0].mxu0 %v3628
  %v3851 = vpop.f32.mrb[0].mxu0
  %v3852 = vadd.f32 0.0, %v3851
  %v3853 = vpop.f32.mrb[0].mxu0
  %3854 = vmatprep.mubr.f32.mxu0 0.0
  %3855 = vmatmul.mubr.f32.gmra.mrb[0].mxu0 %v3629
  %v3856 = vpop.f32.mrb[0].mxu0
  %v3857 = vadd.f32 0.0, %v3856
  %v3858 = vpop.f32.mrb[0].mxu0
  %3859 = vmatprep.mubr.f32.mxu0 0.0
  %3860 = vmatmul.mubr.f32.gmra.mrb[0].mxu0 %v3630
  %v3861 = vpop.f32.mrb[0].mxu0
  %v3862 = vadd.f32 0.0, %v3861
  %v3863 = vpop.f32.mrb[0].mxu0
  %3864 = vmatprep.mubr.f32.mxu0 0.0
  %3865 = vmatmul.mubr.f32.gmra.mrb[0].mxu0 %v3631
  %v3866 = vpop.f32.mrb[0].mxu0
  %v3867 = vadd.f32 0.0, %v3866
  %v3868 = vpop.f32.mrb[0].mxu0
  %3869 = vmatprep.mubr.f32.mxu0 0.0
  %3870 = vmatmul.mubr.f32.gmra.mrb[0].mxu0 %v3632
  %v3871 = vpop.f32.mrb[0].mxu0
  %v3872 = vadd.f32 0.0, %v3871
  %v3873 = vpop.f32.mrb[0].mxu0
  %3874 = vmatprep.mubr.f32.mxu0 0.0
  %3875 = vmatmul.mubr.f32.gmra.mrb[0].mxu0 %v3633
  %v3876 = vpop.f32.mrb[0].mxu0
  %v3877 = vadd.f32 0.0, %v3876
  %v3878 = vpop.f32.mrb[0].mxu0
  %3879 = vmatprep.mubr.f32.mxu0 0.0
  %3880 = vmatmul.mubr.f32.gmra.mrb[0].mxu0 %v3634
  %v3881 = vpop.f32.mrb[0].mxu0
  %v3882 = vadd.f32 0.0, %v3881
  %v3883 = vpop.f32.mrb[0].mxu0
  %3884 = vmatprep.mubr.f32.mxu0 0.0
  %3885 = vmatmul.mubr.f32.gmra.mrb[0].mxu0 %v3635
  %v3886 = vpop.f32.mrb[0].mxu0
  %v3887 = vadd.f32 0.0, %v3886
  %v3888 = vpop.f32.mrb[0].mxu0
  %3889 = vmatprep.mubr.f32.mxu0 0.0
  %3890 = vmatmul.mubr.f32.gmra.mrb[0].mxu0 %v3636
  %v3891 = vpop.f32.mrb[0].mxu0
  %v3892 = vadd.f32 0.0, %v3891
  %v3893 = vpop.f32.mrb[0].mxu0
  %3894 = vmatprep.mubr.f32.mxu0 0.0
  %3895 = vmatmul.mubr.f32.gmra.mrb[0].mxu0 %v3637
  %v3896 = vpop.f32.mrb[0].mxu0
  %v3897 = vadd.f32 0.0, %v3896
  %v3898 = vpop.f32.mrb[0].mxu0
  %3899 = vmatprep.mubr.f32.mxu0 0.0
  %3900 = vmatmul.mubr.f32.gmra.mrb[0].mxu0 %v3638
  %v3901 = vpop.f32.mrb[0].mxu0
  %v3902 = vadd.f32 0.0, %v3901
  %v3903 = vpop.f32.mrb[0].mxu0
  %3904 = vmatprep.mubr.f32.mxu0 0.0
  %3905 = vmatmul.mubr.f32.gmra.mrb[0].mxu0 %v3639
  %v3906 = vpop.f32.mrb[0].mxu0
  %v3907 = vadd.f32 0.0, %v3906
  %v3908 = vpop.f32.mrb[0].mxu0
  %3909 = vmatprep.mubr.f32.mxu0 0.0
  %3910 = vmatmul.mubr.f32.gmra.mrb[0].mxu0 %v3640
  %v3911 = vpop.f32.mrb[0].mxu0
  %v3912 = vadd.f32 0.0, %v3911
  %v3913 = vpop.f32.mrb[0].mxu0
  %3914 = vmatprep.mubr.f32.mxu0 0.0
  %3915 = vmatmul.mubr.f32.gmra.mrb[0].mxu0 %v3641
  %v3916 = vpop.f32.mrb[0].mxu0
  %v3917 = vadd.f32 0.0, %v3916
  %v3918 = vpop.f32.mrb[0].mxu0
  %3919 = vmatprep.mubr.f32.mxu0 0.0
  %3920 = vmatmul.mubr.f32.gmra.mrb[0].mxu0 %v3642
  %v3921 = vpop.f32.mrb[0].mxu0
  %v3922 = vadd.f32 0.0, %v3921
  %v3923 = vpop.f32.mrb[0].mxu0
  %3924 = vmatprep.mubr.f32.mxu0 0.0
  %3925 = vmatmul.mubr.f32.gmra.mrb[0].mxu0 %v3643
  %v3926 = vpop.f32.mrb[0].mxu0
  %v3927 = vadd.f32 0.0, %v3926
  %v3928 = vpop.f32.mrb[0].mxu0
  %3929 = vmatprep.mubr.f32.mxu0 0.0
  %3930 = vmatmul.mubr.f32.gmra.mrb[0].mxu0 %v3644
  %v3931 = vpop.f32.mrb[0].mxu0
  %v3932 = vadd.f32 0.0, %v3931
  %v3933 = vpop.f32.mrb[0].mxu0
  %3934 = vmatprep.mubr.f32.mxu0 0.0
  %3935 = vmatmul.mubr.f32.gmra.mrb[0].mxu0 %v3645
  %v3936 = vpop.f32.mrb[0].mxu0
  %v3937 = vadd.f32 0.0, %v3936
  %v3938 = vpop.f32.mrb[0].mxu0
  %3939 = vmatprep.mubr.f32.mxu0 0.0
  %3940 = vmatmul.mubr.f32.gmra.mrb[0].mxu0 %v3646
  %v3941 = vpop.f32.mrb[0].mxu0
  %v3942 = vadd.f32 0.0, %v3941
  %v3943 = vpop.f32.mrb[0].mxu0
  %3944 = vmatprep.mubr.f32.mxu0 0.0
  %3945 = vmatmul.mubr.f32.gmra.mrb[0].mxu0 %v3647
  %v3946 = vpop.f32.mrb[0].mxu0
  %v3947 = vadd.f32 0.0, %v3946
  %v3948 = vpop.f32.mrb[0].mxu0
  %3949 = vmatprep.mubr.f32.mxu0 0.0
  %3950 = vmatmul.mubr.f32.gmra.mrb[0].mxu0 %v3648
  %v3951 = vpop.f32.mrb[0].mxu0
  %v3952 = vadd.f32 0.0, %v3951
  %v3953 = vpop.f32.mrb[0].mxu0
  %3954 = vmatprep.mubr.f32.mxu0 0.0
  %3955 = vmatmul.mubr.f32.gmra.mrb[0].mxu0 %v3649
  %v3956 = vpop.f32.mrb[0].mxu0
  %v3957 = vadd.f32 0.0, %v3956
  %v3958 = vpop.f32.mrb[0].mxu0
  %3959 = vmatprep.mubr.f32.mxu0 0.0
  %3960 = vmatmul.mubr.f32.gmra.mrb[0].mxu0 %v3650
  %v3961 = vpop.f32.mrb[0].mxu0
  %v3962 = vadd.f32 0.0, %v3961
  %v3963 = vpop.f32.mrb[0].mxu0
  %3964 = vmatprep.mubr.f32.mxu0 0.0
  %3965 = vmatmul.mubr.f32.gmra.mrb[0].mxu0 %v3651
  %v3966 = vpop.f32.mrb[0].mxu0
  %v3967 = vadd.f32 0.0, %v3966
  %v3968 = vpop.f32.mrb[0].mxu0
  %3969 = vmatprep.mubr.f32.mxu0 0.0
  %3970 = vmatmul.mubr.f32.gmra.mrb[0].mxu0 %v3652
  %v3971 = vpop.f32.mrb[0].mxu0
  %v3972 = vadd.f32 0.0, %v3971
  %v3973 = vpop.f32.mrb[0].mxu0
  %3974 = vmatprep.mubr.f32.mxu0 0.0
  %3975 = vmatmul.mubr.f32.gmra.mrb[0].mxu0 %v3653
  %v3976 = vpop.f32.mrb[0].mxu0
  %v3977 = vadd.f32 0.0, %v3976
  %v3978 = vpop.f32.mrb[0].mxu0
  %3979 = vmatprep.mubr.f32.mxu0 0.0
  %3980 = vmatmul.mubr.f32.gmra.mrb[0].mxu0 %v3654
  %v3981 = vpop.f32.mrb[0].mxu0
  %v3982 = vadd.f32 0.0, %v3981
  %v3983 = vpop.f32.mrb[0].mxu0
  %3984 = vmatprep.mubr.f32.mxu0 0.0
  %3985 = vmatmul.mubr.f32.gmra.mrb[0].mxu0 %v3655
  %v3986 = vpop.f32.mrb[0].mxu0
  %v3987 = vadd.f32 0.0, %v3986
  %v3988 = vpop.f32.mrb[0].mxu0
  %3989 = vmatprep.mubr.f32.mxu0 0.0
  %3990 = vmatmul.mubr.f32.gmra.mrb[0].mxu0 %v3656
  %v3991 = vpop.f32.mrb[0].mxu0
  %v3992 = vadd.f32 0.0, %v3991
  %v3993 = vpop.f32.mrb[0].mxu0
  %3994 = vmatprep.mubr.f32.mxu0 0.0
  %3995 = vmatmul.mubr.f32.gmra.mrb[0].mxu0 %v3657
  %v3996 = vpop.f32.mrb[0].mxu0
  %v3997 = vadd.f32 0.0, %v3996
  %v3998 = vpop.f32.mrb[0].mxu0
  %3999 = vmatprep.mubr.f32.mxu0 0.0
  %4000 = vmatmul.mubr.f32.gmra.mrb[0].mxu0 %v3658
  %v4001 = vpop.f32.mrb[0].mxu0
  %v4002 = vadd.f32 0.0, %v4001
  %v4003 = vpop.f32.mrb[0].mxu0
  %4004 = vmatprep.mubr.f32.mxu0 0.0
  %4005 = vmatmul.mubr.f32.gmra.mrb[0].mxu0 %v3659
  %v4006 = vpop.f32.mrb[0].mxu0
  %v4007 = vadd.f32 0.0, %v4006
  %v4008 = vpop.f32.mrb[0].mxu0
  %4009 = vmatprep.mubr.f32.mxu0 0.0
  %4010 = vmatmul.mubr.f32.gmra.mrb[0].mxu0 %v3660
  %v4011 = vpop.f32.mrb[0].mxu0
  %v4012 = vadd.f32 0.0, %v4011
  %v4013 = vpop.f32.mrb[0].mxu0
  %4014 = vmatprep.mubr.f32.mxu0 0.0
  %4015 = vmatmul.mubr.f32.gmra.mrb[0].mxu0 %v3661
  %v4016 = vpop.f32.mrb[0].mxu0
  %v4017 = vadd.f32 0.0, %v4016
  %v4018 = vpop.f32.mrb[0].mxu0
  %4019 = vmatprep.mubr.f32.mxu0 0.0
  %4020 = vmatmul.mubr.f32.gmra.mrb[0].mxu0 %v3662
  %v4021 = vpop.f32.mrb[0].mxu0
  %v4022 = vadd.f32 0.0, %v4021
  %v4023 = vpop.f32.mrb[0].mxu0
  %4024 = vmatprep.mubr.f32.mxu0 0.0
  %4025 = vmatmul.mubr.f32.gmra.mrb[0].mxu0 %v3663
  %v4026 = vpop.f32.mrb[0].mxu0
  %v4027 = vadd.f32 0.0, %v4026
  %v4028 = vpop.f32.mrb[0].mxu0
  %4029 = vmatprep.mubr.f32.mxu0 0.0
  %4030 = vmatmul.mubr.f32.gmra.mrb[0].mxu0 %v3664
  %v4031 = vpop.f32.mrb[0].mxu0
  %v4032 = vadd.f32 0.0, %v4031
  %v4033 = vpop.f32.mrb[0].mxu0
  %4034 = vmatprep.mubr.f32.mxu0 0.0
  %4035 = vmatmul.mubr.f32.gmra.mrb[0].mxu0 %v3665
  %v4036 = vpop.f32.mrb[0].mxu0
  %v4037 = vadd.f32 0.0, %v4036
  %v4038 = vpop.f32.mrb[0].mxu0
  %4039 = vmatprep.mubr.f32.mxu0 0.0
  %4040 = vmatmul.mubr.f32.gmra.mrb[0].mxu0 %v3666
  %v4041 = vpop.f32.mrb[0].mxu0
  %v4042 = vadd.f32 0.0, %v4041
  %v4043 = vpop.f32.mrb[0].mxu0
  %4044 = vmatprep.mubr.f32.mxu0 0.0
  %4045 = vmatmul.mubr.f32.gmra.mrb[0].mxu0 %v3667
  %v4046 = vpop.f32.mrb[0].mxu0
  %v4047 = vadd.f32 0.0, %v4046
  %v4048 = vpop.f32.mrb[0].mxu0
  %4049 = vmatprep.mubr.f32.mxu0 0.0
  %4050 = vmatmul.mubr.f32.gmra.mrb[0].mxu0 %v3668
  %v4051 = vpop.f32.mrb[0].mxu0
  %v4052 = vadd.f32 0.0, %v4051
  %v4053 = vpop.f32.mrb[0].mxu0
  %4054 = vmatprep.mubr.f32.mxu0 0.0
  %4055 = vmatmul.mubr.f32.gmra.mrb[0].mxu0 %v3669
  %v4056 = vpop.f32.mrb[0].mxu0
  %v4057 = vadd.f32 0.0, %v4056
  %v4058 = vpop.f32.mrb[0].mxu0
  %4059 = vmatprep.mubr.f32.mxu0 0.0
  %4060 = vmatmul.mubr.f32.gmra.mrb[0].mxu0 %v3670
  %v4061 = vpop.f32.mrb[0].mxu0
  %v4062 = vadd.f32 0.0, %v4061
  %v4063 = vpop.f32.mrb[0].mxu0
  %4064 = vmatprep.mubr.f32.mxu0 0.0
  %4065 = vmatmul.mubr.f32.gmra.mrb[0].mxu0 %v3671
  %v4066 = vpop.f32.mrb[0].mxu0
  %v4067 = vadd.f32 0.0, %v4066
  %v4068 = vpop.f32.mrb[0].mxu0
  %4069 = vmatprep.mubr.f32.mxu0 0.0
  %4070 = vmatmul.mubr.f32.gmra.mrb[0].mxu0 %v3672
  %v4071 = vpop.f32.mrb[0].mxu0
  %v4072 = vadd.f32 0.0, %v4071
  %v4073 = vpop.f32.mrb[0].mxu0
  %4074 = vdwg.mxu0
  %v4075 = vadd.f32 %v3545, %v3757
  %v4076 = vadd.f32 %v3546, %v3762
  %v4077 = vadd.f32 %v3547, %v3767
  %v4078 = vadd.f32 %v3548, %v3772
  %v4079 = vadd.f32 %v3549, %v3777
  %v4080 = vadd.f32 %v3550, %v3782
  %v4081 = vadd.f32 %v3551, %v3787
  %v4082 = vadd.f32 %v3552, %v3792
  %v4083 = vadd.f32 %v3553, %v3797
  %v4084 = vadd.f32 %v3554, %v3802
  %v4085 = vadd.f32 %v3555, %v3807
  %v4086 = vadd.f32 %v3556, %v3812
  %v4087 = vadd.f32 %v3557, %v3817
  %v4088 = vadd.f32 %v3558, %v3822
  %v4089 = vadd.f32 %v3559, %v3827
  %v4090 = vadd.f32 %v3560, %v3832
  %v4091 = vadd.f32 %v3561, %v3837
  %v4092 = vadd.f32 %v3562, %v3842
  %v4093 = vadd.f32 %v3563, %v3847
  %v4094 = vadd.f32 %v3564, %v3852
  %v4095 = vadd.f32 %v3565, %v3857
  %v4096 = vadd.f32 %v3566, %v3862
  %v4097 = vadd.f32 %v3567, %v3867
  %v4098 = vadd.f32 %v3568, %v3872
  %v4099 = vadd.f32 %v3569, %v3877
  %v4100 = vadd.f32 %v3570, %v3882
  %v4101 = vadd.f32 %v3571, %v3887
  %v4102 = vadd.f32 %v3572, %v3892
  %v4103 = vadd.f32 %v3573, %v3897
  %v4104 = vadd.f32 %v3574, %v3902
  %v4105 = vadd.f32 %v3575, %v3907
  %v4106 = vadd.f32 %v3576, %v3912
  %v4107 = vadd.f32 %v3577, %v3917
  %v4108 = vadd.f32 %v3578, %v3922
  %v4109 = vadd.f32 %v3579, %v3927
  %v4110 = vadd.f32 %v3580, %v3932
  %v4111 = vadd.f32 %v3581, %v3937
  %v4112 = vadd.f32 %v3582, %v3942
  %v4113 = vadd.f32 %v3583, %v3947
  %v4114 = vadd.f32 %v3584, %v3952
  %v4115 = vadd.f32 %v3585, %v3957
  %v4116 = vadd.f32 %v3586, %v3962
  %v4117 = vadd.f32 %v3587, %v3967
  %v4118 = vadd.f32 %v3588, %v3972
  %v4119 = vadd.f32 %v3589, %v3977
  %v4120 = vadd.f32 %v3590, %v3982
  %v4121 = vadd.f32 %v3591, %v3987
  %v4122 = vadd.f32 %v3592, %v3992
  %v4123 = vadd.f32 %v3593, %v3997
  %v4124 = vadd.f32 %v3594, %v4002
  %v4125 = vadd.f32 %v3595, %v4007
  %v4126 = vadd.f32 %v3596, %v4012
  %v4127 = vadd.f32 %v3597, %v4017
  %v4128 = vadd.f32 %v3598, %v4022
  %v4129 = vadd.f32 %v3599, %v4027
  %v4130 = vadd.f32 %v3600, %v4032
  %v4131 = vadd.f32 %v3601, %v4037
  %v4132 = vadd.f32 %v3602, %v4042
  %v4133 = vadd.f32 %v3603, %v4047
  %v4134 = vadd.f32 %v3604, %v4052
  %v4135 = vadd.f32 %v3605, %v4057
  %v4136 = vadd.f32 %v3606, %v4062
  %v4137 = vadd.f32 %v3607, %v4067
  %v4138 = vadd.f32 %v3608, %v4072
  %v4139 = vld [vmem:[%s3078 + $0x2] sm:$0xff]
  %v4140 = vld [vmem:[%s3078 + $0xa] sm:$0xff]
  %v4141 = vld [vmem:[%s3078 + $0x1a] sm:$0xff]
  %v4142 = vld [vmem:[%s3078 + $0x22] sm:$0xff]
  %v4143 = vld [vmem:[%s3078 + $0x32] sm:$0xff]
  %v4144 = vld [vmem:[%s3078 + $0x3a] sm:$0xff]
  %v4145 = vld [vmem:[%s3078 + $0x4a] sm:$0xff]
  %v4146 = vld [vmem:[%s3078 + $0x52] sm:$0xff]
  %v4147 = vld [vmem:[%s3078 + $0x62] sm:$0xff]
  %v4148 = vld [vmem:[%s3078 + $0x6a] sm:$0xff]
  %v4149 = vld [vmem:[%s3078 + $0x7a] sm:$0xff]
  %v4150 = vld [vmem:[%s3078 + $0x82] sm:$0xff]
  %v4151 = vld [vmem:[%s3078 + $0x92] sm:$0xff]
  %v4152 = vld [vmem:[%s3078 + $0x9a] sm:$0xff]
  %v4153 = vld [vmem:[%s3078 + $0xaa] sm:$0xff]
  %v4154 = vld [vmem:[%s3078 + $0xb2] sm:$0xff]
  %v4155 = vld [vmem:[%s3078 + $0xc2] sm:$0xff]
  %v4156 = vld [vmem:[%s3078 + $0xca] sm:$0xff]
  %v4157 = vld [vmem:[%s3078 + $0xda] sm:$0xff]
  %v4158 = vld [vmem:[%s3078 + $0xe2] sm:$0xff]
  %v4159 = vld [vmem:[%s3078 + $0xf2] sm:$0xff]
  %v4160 = vld [vmem:[%s3078 + $0xfa] sm:$0xff]
  %v4161 = vld [vmem:[%s3078 + $0x10a] sm:$0xff]
  %v4162 = vld [vmem:[%s3078 + $0x112] sm:$0xff]
  %v4163 = vld [vmem:[%s3078 + $0x122] sm:$0xff]
  %v4164 = vld [vmem:[%s3078 + $0x12a] sm:$0xff]
  %v4165 = vld [vmem:[%s3078 + $0x13a] sm:$0xff]
  %v4166 = vld [vmem:[%s3078 + $0x142] sm:$0xff]
  %v4167 = vld [vmem:[%s3078 + $0x152] sm:$0xff]
  %v4168 = vld [vmem:[%s3078 + $0x15a] sm:$0xff]
  %v4169 = vld [vmem:[%s3078 + $0x16a] sm:$0xff]
  %v4170 = vld [vmem:[%s3078 + $0x172] sm:$0xff]
  %v4171 = vld [vmem:[%s3078 + $0x1b2] sm:$0xff]
  %v4172 = vld [vmem:[%s3078 + $0x1ba] sm:$0xff]
  %v4173 = vld [vmem:[%s3078 + $0x1ca] sm:$0xff]
  %v4174 = vld [vmem:[%s3078 + $0x1d2] sm:$0xff]
  %v4175 = vld [vmem:[%s3078 + $0x1e2] sm:$0xff]
  %v4176 = vld [vmem:[%s3078 + $0x1ea] sm:$0xff]
  %v4177 = vld [vmem:[%s3078 + $0x1fa] sm:$0xff]
  %v4178 = vld [vmem:[%s3078 + $0x202] sm:$0xff]
  %v4179 = vld [vmem:[%s3078 + $0x212] sm:$0xff]
  %v4180 = vld [vmem:[%s3078 + $0x21a] sm:$0xff]
  %v4181 = vld [vmem:[%s3078 + $0x22a] sm:$0xff]
  %v4182 = vld [vmem:[%s3078 + $0x232] sm:$0xff]
  %v4183 = vld [vmem:[%s3078 + $0x242] sm:$0xff]
  %v4184 = vld [vmem:[%s3078 + $0x24a] sm:$0xff]
  %v4185 = vld [vmem:[%s3078 + $0x25a] sm:$0xff]
  %v4186 = vld [vmem:[%s3078 + $0x262] sm:$0xff]
  %v4187 = vld [vmem:[%s3078 + $0x272] sm:$0xff]
  %v4188 = vld [vmem:[%s3078 + $0x27a] sm:$0xff]
  %v4189 = vld [vmem:[%s3078 + $0x28a] sm:$0xff]
  %v4190 = vld [vmem:[%s3078 + $0x292] sm:$0xff]
  %v4191 = vld [vmem:[%s3078 + $0x2a2] sm:$0xff]
  %v4192 = vld [vmem:[%s3078 + $0x2aa] sm:$0xff]
  %v4193 = vld [vmem:[%s3078 + $0x2ba] sm:$0xff]
  %v4194 = vld [vmem:[%s3078 + $0x2c2] sm:$0xff]
  %v4195 = vld [vmem:[%s3078 + $0x2d2] sm:$0xff]
  %v4196 = vld [vmem:[%s3078 + $0x2da] sm:$0xff]
  %v4197 = vld [vmem:[%s3078 + $0x2ea] sm:$0xff]
  %v4198 = vld [vmem:[%s3078 + $0x2f2] sm:$0xff]
  %v4199 = vld [vmem:[%s3078 + $0x302] sm:$0xff]
  %v4200 = vld [vmem:[%s3078 + $0x30a] sm:$0xff]
  %v4201 = vld [vmem:[%s3078 + $0x31a] sm:$0xff]
  %v4202 = vld [vmem:[%s3078 + $0x322] sm:$0xff]
  %s4203 = scalar_lea.vmem %s1, 1024
  %v4204 = vld [vmem:[%s4203] sm:$0xff]
  %v4205 = vld [vmem:[%s4203 + $0x8] sm:$0xff]
  %v4206 = vld [vmem:[%s4203 + $0x10] sm:$0xff]
  %v4207 = vld [vmem:[%s4203 + $0x18] sm:$0xff]
  %v4208 = vld [vmem:[%s4203 + $0x20] sm:$0xff]
  %v4209 = vld [vmem:[%s4203 + $0x28] sm:$0xff]
  %v4210 = vld [vmem:[%s4203 + $0x30] sm:$0xff]
  %v4211 = vld [vmem:[%s4203 + $0x38] sm:$0xff]
  %v4212 = vld [vmem:[%s4203 + $0x40] sm:$0xff]
  %v4213 = vld [vmem:[%s4203 + $0x48] sm:$0xff]
  %v4214 = vld [vmem:[%s4203 + $0x50] sm:$0xff]
  %v4215 = vld [vmem:[%s4203 + $0x58] sm:$0xff]
  %v4216 = vld [vmem:[%s4203 + $0x60] sm:$0xff]
  %v4217 = vld [vmem:[%s4203 + $0x68] sm:$0xff]
  %v4218 = vld [vmem:[%s4203 + $0x70] sm:$0xff]
  %v4219 = vld [vmem:[%s4203 + $0x78] sm:$0xff]
  %4220 = vmatprep.subr.mxu0 0.0
  %4221 = vmatpush1.msra.mxu0 %v4204
  %4222 = vmatprep.subr.mxu0 0.0
  %4223 = vmatpush1.msra.mxu0 %v4205
  %4224 = vmatprep.subr.mxu0 0.0
  %4225 = vmatpush1.msra.mxu0 %v4206
  %4226 = vmatprep.subr.mxu0 0.0
  %4227 = vmatpush1.msra.mxu0 %v4207
  %4228 = vmatprep.subr.mxu0 0.0
  %4229 = vmatpush1.msra.mxu0 %v4208
  %4230 = vmatprep.subr.mxu0 0.0
  %4231 = vmatpush1.msra.mxu0 %v4209
  %4232 = vmatprep.subr.mxu0 0.0
  %4233 = vmatpush1.msra.mxu0 %v4210
  %4234 = vmatprep.subr.mxu0 0.0
  %4235 = vmatpush1.msra.mxu0 %v4211
  %4236 = vmatprep.subr.mxu0 0.0
  %4237 = vmatpush1.msra.mxu0 %v4212
  %4238 = vmatprep.subr.mxu0 0.0
  %4239 = vmatpush1.msra.mxu0 %v4213
  %4240 = vmatprep.subr.mxu0 0.0
  %4241 = vmatpush1.msra.mxu0 %v4214
  %4242 = vmatprep.subr.mxu0 0.0
  %4243 = vmatpush1.msra.mxu0 %v4215
  %4244 = vmatprep.subr.mxu0 0.0
  %4245 = vmatpush1.msra.mxu0 %v4216
  %4246 = vmatprep.subr.mxu0 0.0
  %4247 = vmatpush1.msra.mxu0 %v4217
  %4248 = vmatprep.subr.mxu0 0.0
  %4249 = vmatpush1.msra.mxu0 %v4218
  %4250 = vmatprep.subr.mxu0 0.0
  %4251 = vmatpush1.msra.mxu0 %v4219
  %4252 = vmatprep.subr.mxu0 0.0
  %4253 = vmatpush1.msra.mxu0 0.0
  %4254 = vmatprep.subr.mxu0 0.0
  %4255 = vmatpush1.msra.mxu0 0.0
  %4256 = vmatprep.subr.mxu0 0.0
  %4257 = vmatpush1.msra.mxu0 0.0
  %4258 = vmatprep.subr.mxu0 0.0
  %4259 = vmatpush1.msra.mxu0 0.0
  %4260 = vmatprep.subr.mxu0 0.0
  %4261 = vmatpush1.msra.mxu0 0.0
  %4262 = vmatprep.subr.mxu0 0.0
  %4263 = vmatpush1.msra.mxu0 0.0
  %4264 = vmatprep.subr.mxu0 0.0
  %4265 = vmatpush1.msra.mxu0 0.0
  %4266 = vmatprep.subr.mxu0 0.0
  %4267 = vmatpush1.msra.mxu0 0.0
  %4268 = vmatprep.subr.mxu0 0.0
  %4269 = vmatpush1.msra.mxu0 0.0
  %4270 = vmatprep.subr.mxu0 0.0
  %4271 = vmatpush1.msra.mxu0 0.0
  %4272 = vmatprep.subr.mxu0 0.0
  %4273 = vmatpush1.msra.mxu0 0.0
  %4274 = vmatprep.subr.mxu0 0.0
  %4275 = vmatpush1.msra.mxu0 0.0
  %4276 = vmatprep.subr.mxu0 0.0
  %4277 = vmatpush1.msra.mxu0 0.0
  %4278 = vmatprep.subr.mxu0 0.0
  %4279 = vmatpush1.msra.mxu0 0.0
  %4280 = vmatprep.subr.mxu0 0.0
  %4281 = vmatpush1.msra.mxu0 0.0
  %4282 = vmatprep.subr.mxu0 0.0
  %4283 = vmatpush1.msra.mxu0 0.0
  %4284 = vmatprep.mubr.f32.mxu0 0.0
  %4285 = vmatmul.mubr.f32.gmra.mrb[0].mxu0 %v4139
  %v4286 = vpop.f32.mrb[0].mxu0
  %v4287 = vadd.f32 0.0, %v4286
  %v4288 = vpop.f32.mrb[0].mxu0
  %4289 = vmatprep.mubr.f32.mxu0 0.0
  %4290 = vmatmul.mubr.f32.gmra.mrb[0].mxu0 %v4140
  %v4291 = vpop.f32.mrb[0].mxu0
  %v4292 = vadd.f32 0.0, %v4291
  %v4293 = vpop.f32.mrb[0].mxu0
  %4294 = vmatprep.mubr.f32.mxu0 0.0
  %4295 = vmatmul.mubr.f32.gmra.mrb[0].mxu0 %v4141
  %v4296 = vpop.f32.mrb[0].mxu0
  %v4297 = vadd.f32 0.0, %v4296
  %v4298 = vpop.f32.mrb[0].mxu0
  %4299 = vmatprep.mubr.f32.mxu0 0.0
  %4300 = vmatmul.mubr.f32.gmra.mrb[0].mxu0 %v4142
  %v4301 = vpop.f32.mrb[0].mxu0
  %v4302 = vadd.f32 0.0, %v4301
  %v4303 = vpop.f32.mrb[0].mxu0
  %4304 = vmatprep.mubr.f32.mxu0 0.0
  %4305 = vmatmul.mubr.f32.gmra.mrb[0].mxu0 %v4143
  %v4306 = vpop.f32.mrb[0].mxu0
  %v4307 = vadd.f32 0.0, %v4306
  %v4308 = vpop.f32.mrb[0].mxu0
  %4309 = vmatprep.mubr.f32.mxu0 0.0
  %4310 = vmatmul.mubr.f32.gmra.mrb[0].mxu0 %v4144
  %v4311 = vpop.f32.mrb[0].mxu0
  %v4312 = vadd.f32 0.0, %v4311
  %v4313 = vpop.f32.mrb[0].mxu0
  %4314 = vmatprep.mubr.f32.mxu0 0.0
  %4315 = vmatmul.mubr.f32.gmra.mrb[0].mxu0 %v4145
  %v4316 = vpop.f32.mrb[0].mxu0
  %v4317 = vadd.f32 0.0, %v4316
  %v4318 = vpop.f32.mrb[0].mxu0
  %4319 = vmatprep.mubr.f32.mxu0 0.0
  %4320 = vmatmul.mubr.f32.gmra.mrb[0].mxu0 %v4146
  %v4321 = vpop.f32.mrb[0].mxu0
  %v4322 = vadd.f32 0.0, %v4321
  %v4323 = vpop.f32.mrb[0].mxu0
  %4324 = vmatprep.mubr.f32.mxu0 0.0
  %4325 = vmatmul.mubr.f32.gmra.mrb[0].mxu0 %v4147
  %v4326 = vpop.f32.mrb[0].mxu0
  %v4327 = vadd.f32 0.0, %v4326
  %v4328 = vpop.f32.mrb[0].mxu0
  %4329 = vmatprep.mubr.f32.mxu0 0.0
  %4330 = vmatmul.mubr.f32.gmra.mrb[0].mxu0 %v4148
  %v4331 = vpop.f32.mrb[0].mxu0
  %v4332 = vadd.f32 0.0, %v4331
  %v4333 = vpop.f32.mrb[0].mxu0
  %4334 = vmatprep.mubr.f32.mxu0 0.0
  %4335 = vmatmul.mubr.f32.gmra.mrb[0].mxu0 %v4149
  %v4336 = vpop.f32.mrb[0].mxu0
  %v4337 = vadd.f32 0.0, %v4336
  %v4338 = vpop.f32.mrb[0].mxu0
  %4339 = vmatprep.mubr.f32.mxu0 0.0
  %4340 = vmatmul.mubr.f32.gmra.mrb[0].mxu0 %v4150
  %v4341 = vpop.f32.mrb[0].mxu0
  %v4342 = vadd.f32 0.0, %v4341
  %v4343 = vpop.f32.mrb[0].mxu0
  %4344 = vmatprep.mubr.f32.mxu0 0.0
  %4345 = vmatmul.mubr.f32.gmra.mrb[0].mxu0 %v4151
  %v4346 = vpop.f32.mrb[0].mxu0
  %v4347 = vadd.f32 0.0, %v4346
  %v4348 = vpop.f32.mrb[0].mxu0
  %4349 = vmatprep.mubr.f32.mxu0 0.0
  %4350 = vmatmul.mubr.f32.gmra.mrb[0].mxu0 %v4152
  %v4351 = vpop.f32.mrb[0].mxu0
  %v4352 = vadd.f32 0.0, %v4351
  %v4353 = vpop.f32.mrb[0].mxu0
  %4354 = vmatprep.mubr.f32.mxu0 0.0
  %4355 = vmatmul.mubr.f32.gmra.mrb[0].mxu0 %v4153
  %v4356 = vpop.f32.mrb[0].mxu0
  %v4357 = vadd.f32 0.0, %v4356
  %v4358 = vpop.f32.mrb[0].mxu0
  %4359 = vmatprep.mubr.f32.mxu0 0.0
  %4360 = vmatmul.mubr.f32.gmra.mrb[0].mxu0 %v4154
  %v4361 = vpop.f32.mrb[0].mxu0
  %v4362 = vadd.f32 0.0, %v4361
  %v4363 = vpop.f32.mrb[0].mxu0
  %4364 = vmatprep.mubr.f32.mxu0 0.0
  %4365 = vmatmul.mubr.f32.gmra.mrb[0].mxu0 %v4155
  %v4366 = vpop.f32.mrb[0].mxu0
  %v4367 = vadd.f32 0.0, %v4366
  %v4368 = vpop.f32.mrb[0].mxu0
  %4369 = vmatprep.mubr.f32.mxu0 0.0
  %4370 = vmatmul.mubr.f32.gmra.mrb[0].mxu0 %v4156
  %v4371 = vpop.f32.mrb[0].mxu0
  %v4372 = vadd.f32 0.0, %v4371
  %v4373 = vpop.f32.mrb[0].mxu0
  %4374 = vmatprep.mubr.f32.mxu0 0.0
  %4375 = vmatmul.mubr.f32.gmra.mrb[0].mxu0 %v4157
  %v4376 = vpop.f32.mrb[0].mxu0
  %v4377 = vadd.f32 0.0, %v4376
  %v4378 = vpop.f32.mrb[0].mxu0
  %4379 = vmatprep.mubr.f32.mxu0 0.0
  %4380 = vmatmul.mubr.f32.gmra.mrb[0].mxu0 %v4158
  %v4381 = vpop.f32.mrb[0].mxu0
  %v4382 = vadd.f32 0.0, %v4381
  %v4383 = vpop.f32.mrb[0].mxu0
  %4384 = vmatprep.mubr.f32.mxu0 0.0
  %4385 = vmatmul.mubr.f32.gmra.mrb[0].mxu0 %v4159
  %v4386 = vpop.f32.mrb[0].mxu0
  %v4387 = vadd.f32 0.0, %v4386
  %v4388 = vpop.f32.mrb[0].mxu0
  %4389 = vmatprep.mubr.f32.mxu0 0.0
  %4390 = vmatmul.mubr.f32.gmra.mrb[0].mxu0 %v4160
  %v4391 = vpop.f32.mrb[0].mxu0
  %v4392 = vadd.f32 0.0, %v4391
  %v4393 = vpop.f32.mrb[0].mxu0
  %4394 = vmatprep.mubr.f32.mxu0 0.0
  %4395 = vmatmul.mubr.f32.gmra.mrb[0].mxu0 %v4161
  %v4396 = vpop.f32.mrb[0].mxu0
  %v4397 = vadd.f32 0.0, %v4396
  %v4398 = vpop.f32.mrb[0].mxu0
  %4399 = vmatprep.mubr.f32.mxu0 0.0
  %4400 = vmatmul.mubr.f32.gmra.mrb[0].mxu0 %v4162
  %v4401 = vpop.f32.mrb[0].mxu0
  %v4402 = vadd.f32 0.0, %v4401
  %v4403 = vpop.f32.mrb[0].mxu0
  %4404 = vmatprep.mubr.f32.mxu0 0.0
  %4405 = vmatmul.mubr.f32.gmra.mrb[0].mxu0 %v4163
  %v4406 = vpop.f32.mrb[0].mxu0
  %v4407 = vadd.f32 0.0, %v4406
  %v4408 = vpop.f32.mrb[0].mxu0
  %4409 = vmatprep.mubr.f32.mxu0 0.0
  %4410 = vmatmul.mubr.f32.gmra.mrb[0].mxu0 %v4164
  %v4411 = vpop.f32.mrb[0].mxu0
  %v4412 = vadd.f32 0.0, %v4411
  %v4413 = vpop.f32.mrb[0].mxu0
  %4414 = vmatprep.mubr.f32.mxu0 0.0
  %4415 = vmatmul.mubr.f32.gmra.mrb[0].mxu0 %v4165
  %v4416 = vpop.f32.mrb[0].mxu0
  %v4417 = vadd.f32 0.0, %v4416
  %v4418 = vpop.f32.mrb[0].mxu0
  %4419 = vmatprep.mubr.f32.mxu0 0.0
  %4420 = vmatmul.mubr.f32.gmra.mrb[0].mxu0 %v4166
  %v4421 = vpop.f32.mrb[0].mxu0
  %v4422 = vadd.f32 0.0, %v4421
  %v4423 = vpop.f32.mrb[0].mxu0
  %4424 = vmatprep.mubr.f32.mxu0 0.0
  %4425 = vmatmul.mubr.f32.gmra.mrb[0].mxu0 %v4167
  %v4426 = vpop.f32.mrb[0].mxu0
  %v4427 = vadd.f32 0.0, %v4426
  %v4428 = vpop.f32.mrb[0].mxu0
  %4429 = vmatprep.mubr.f32.mxu0 0.0
  %4430 = vmatmul.mubr.f32.gmra.mrb[0].mxu0 %v4168
  %v4431 = vpop.f32.mrb[0].mxu0
  %v4432 = vadd.f32 0.0, %v4431
  %v4433 = vpop.f32.mrb[0].mxu0
  %4434 = vmatprep.mubr.f32.mxu0 0.0
  %4435 = vmatmul.mubr.f32.gmra.mrb[0].mxu0 %v4169
  %v4436 = vpop.f32.mrb[0].mxu0
  %v4437 = vadd.f32 0.0, %v4436
  %v4438 = vpop.f32.mrb[0].mxu0
  %4439 = vmatprep.mubr.f32.mxu0 0.0
  %4440 = vmatmul.mubr.f32.gmra.mrb[0].mxu0 %v4170
  %v4441 = vpop.f32.mrb[0].mxu0
  %v4442 = vadd.f32 0.0, %v4441
  %v4443 = vpop.f32.mrb[0].mxu0
  %4444 = vmatprep.mubr.f32.mxu0 0.0
  %4445 = vmatmul.mubr.f32.gmra.mrb[0].mxu0 %v4171
  %v4446 = vpop.f32.mrb[0].mxu0
  %v4447 = vadd.f32 0.0, %v4446
  %v4448 = vpop.f32.mrb[0].mxu0
  %4449 = vmatprep.mubr.f32.mxu0 0.0
  %4450 = vmatmul.mubr.f32.gmra.mrb[0].mxu0 %v4172
  %v4451 = vpop.f32.mrb[0].mxu0
  %v4452 = vadd.f32 0.0, %v4451
  %v4453 = vpop.f32.mrb[0].mxu0
  %4454 = vmatprep.mubr.f32.mxu0 0.0
  %4455 = vmatmul.mubr.f32.gmra.mrb[0].mxu0 %v4173
  %v4456 = vpop.f32.mrb[0].mxu0
  %v4457 = vadd.f32 0.0, %v4456
  %v4458 = vpop.f32.mrb[0].mxu0
  %4459 = vmatprep.mubr.f32.mxu0 0.0
  %4460 = vmatmul.mubr.f32.gmra.mrb[0].mxu0 %v4174
  %v4461 = vpop.f32.mrb[0].mxu0
  %v4462 = vadd.f32 0.0, %v4461
  %v4463 = vpop.f32.mrb[0].mxu0
  %4464 = vmatprep.mubr.f32.mxu0 0.0
  %4465 = vmatmul.mubr.f32.gmra.mrb[0].mxu0 %v4175
  %v4466 = vpop.f32.mrb[0].mxu0
  %v4467 = vadd.f32 0.0, %v4466
  %v4468 = vpop.f32.mrb[0].mxu0
  %4469 = vmatprep.mubr.f32.mxu0 0.0
  %4470 = vmatmul.mubr.f32.gmra.mrb[0].mxu0 %v4176
  %v4471 = vpop.f32.mrb[0].mxu0
  %v4472 = vadd.f32 0.0, %v4471
  %v4473 = vpop.f32.mrb[0].mxu0
  %4474 = vmatprep.mubr.f32.mxu0 0.0
  %4475 = vmatmul.mubr.f32.gmra.mrb[0].mxu0 %v4177
  %v4476 = vpop.f32.mrb[0].mxu0
  %v4477 = vadd.f32 0.0, %v4476
  %v4478 = vpop.f32.mrb[0].mxu0
  %4479 = vmatprep.mubr.f32.mxu0 0.0
  %4480 = vmatmul.mubr.f32.gmra.mrb[0].mxu0 %v4178
  %v4481 = vpop.f32.mrb[0].mxu0
  %v4482 = vadd.f32 0.0, %v4481
  %v4483 = vpop.f32.mrb[0].mxu0
  %4484 = vmatprep.mubr.f32.mxu0 0.0
  %4485 = vmatmul.mubr.f32.gmra.mrb[0].mxu0 %v4179
  %v4486 = vpop.f32.mrb[0].mxu0
  %v4487 = vadd.f32 0.0, %v4486
  %v4488 = vpop.f32.mrb[0].mxu0
  %4489 = vmatprep.mubr.f32.mxu0 0.0
  %4490 = vmatmul.mubr.f32.gmra.mrb[0].mxu0 %v4180
  %v4491 = vpop.f32.mrb[0].mxu0
  %v4492 = vadd.f32 0.0, %v4491
  %v4493 = vpop.f32.mrb[0].mxu0
  %4494 = vmatprep.mubr.f32.mxu0 0.0
  %4495 = vmatmul.mubr.f32.gmra.mrb[0].mxu0 %v4181
  %v4496 = vpop.f32.mrb[0].mxu0
  %v4497 = vadd.f32 0.0, %v4496
  %v4498 = vpop.f32.mrb[0].mxu0
  %4499 = vmatprep.mubr.f32.mxu0 0.0
  %4500 = vmatmul.mubr.f32.gmra.mrb[0].mxu0 %v4182
  %v4501 = vpop.f32.mrb[0].mxu0
  %v4502 = vadd.f32 0.0, %v4501
  %v4503 = vpop.f32.mrb[0].mxu0
  %4504 = vmatprep.mubr.f32.mxu0 0.0
  %4505 = vmatmul.mubr.f32.gmra.mrb[0].mxu0 %v4183
  %v4506 = vpop.f32.mrb[0].mxu0
  %v4507 = vadd.f32 0.0, %v4506
  %v4508 = vpop.f32.mrb[0].mxu0
  %4509 = vmatprep.mubr.f32.mxu0 0.0
  %4510 = vmatmul.mubr.f32.gmra.mrb[0].mxu0 %v4184
  %v4511 = vpop.f32.mrb[0].mxu0
  %v4512 = vadd.f32 0.0, %v4511
  %v4513 = vpop.f32.mrb[0].mxu0
  %4514 = vmatprep.mubr.f32.mxu0 0.0
  %4515 = vmatmul.mubr.f32.gmra.mrb[0].mxu0 %v4185
  %v4516 = vpop.f32.mrb[0].mxu0
  %v4517 = vadd.f32 0.0, %v4516
  %v4518 = vpop.f32.mrb[0].mxu0
  %4519 = vmatprep.mubr.f32.mxu0 0.0
  %4520 = vmatmul.mubr.f32.gmra.mrb[0].mxu0 %v4186
  %v4521 = vpop.f32.mrb[0].mxu0
  %v4522 = vadd.f32 0.0, %v4521
  %v4523 = vpop.f32.mrb[0].mxu0
  %4524 = vmatprep.mubr.f32.mxu0 0.0
  %4525 = vmatmul.mubr.f32.gmra.mrb[0].mxu0 %v4187
  %v4526 = vpop.f32.mrb[0].mxu0
  %v4527 = vadd.f32 0.0, %v4526
  %v4528 = vpop.f32.mrb[0].mxu0
  %4529 = vmatprep.mubr.f32.mxu0 0.0
  %4530 = vmatmul.mubr.f32.gmra.mrb[0].mxu0 %v4188
  %v4531 = vpop.f32.mrb[0].mxu0
  %v4532 = vadd.f32 0.0, %v4531
  %v4533 = vpop.f32.mrb[0].mxu0
  %4534 = vmatprep.mubr.f32.mxu0 0.0
  %4535 = vmatmul.mubr.f32.gmra.mrb[0].mxu0 %v4189
  %v4536 = vpop.f32.mrb[0].mxu0
  %v4537 = vadd.f32 0.0, %v4536
  %v4538 = vpop.f32.mrb[0].mxu0
  %4539 = vmatprep.mubr.f32.mxu0 0.0
  %4540 = vmatmul.mubr.f32.gmra.mrb[0].mxu0 %v4190
  %v4541 = vpop.f32.mrb[0].mxu0
  %v4542 = vadd.f32 0.0, %v4541
  %v4543 = vpop.f32.mrb[0].mxu0
  %4544 = vmatprep.mubr.f32.mxu0 0.0
  %4545 = vmatmul.mubr.f32.gmra.mrb[0].mxu0 %v4191
  %v4546 = vpop.f32.mrb[0].mxu0
  %v4547 = vadd.f32 0.0, %v4546
  %v4548 = vpop.f32.mrb[0].mxu0
  %4549 = vmatprep.mubr.f32.mxu0 0.0
  %4550 = vmatmul.mubr.f32.gmra.mrb[0].mxu0 %v4192
  %v4551 = vpop.f32.mrb[0].mxu0
  %v4552 = vadd.f32 0.0, %v4551
  %v4553 = vpop.f32.mrb[0].mxu0
  %4554 = vmatprep.mubr.f32.mxu0 0.0
  %4555 = vmatmul.mubr.f32.gmra.mrb[0].mxu0 %v4193
  %v4556 = vpop.f32.mrb[0].mxu0
  %v4557 = vadd.f32 0.0, %v4556
  %v4558 = vpop.f32.mrb[0].mxu0
  %4559 = vmatprep.mubr.f32.mxu0 0.0
  %4560 = vmatmul.mubr.f32.gmra.mrb[0].mxu0 %v4194
  %v4561 = vpop.f32.mrb[0].mxu0
  %v4562 = vadd.f32 0.0, %v4561
  %v4563 = vpop.f32.mrb[0].mxu0
  %4564 = vmatprep.mubr.f32.mxu0 0.0
  %4565 = vmatmul.mubr.f32.gmra.mrb[0].mxu0 %v4195
  %v4566 = vpop.f32.mrb[0].mxu0
  %v4567 = vadd.f32 0.0, %v4566
  %v4568 = vpop.f32.mrb[0].mxu0
  %4569 = vmatprep.mubr.f32.mxu0 0.0
  %4570 = vmatmul.mubr.f32.gmra.mrb[0].mxu0 %v4196
  %v4571 = vpop.f32.mrb[0].mxu0
  %v4572 = vadd.f32 0.0, %v4571
  %v4573 = vpop.f32.mrb[0].mxu0
  %4574 = vmatprep.mubr.f32.mxu0 0.0
  %4575 = vmatmul.mubr.f32.gmra.mrb[0].mxu0 %v4197
  %v4576 = vpop.f32.mrb[0].mxu0
  %v4577 = vadd.f32 0.0, %v4576
  %v4578 = vpop.f32.mrb[0].mxu0
  %4579 = vmatprep.mubr.f32.mxu0 0.0
  %4580 = vmatmul.mubr.f32.gmra.mrb[0].mxu0 %v4198
  %v4581 = vpop.f32.mrb[0].mxu0
  %v4582 = vadd.f32 0.0, %v4581
  %v4583 = vpop.f32.mrb[0].mxu0
  %4584 = vmatprep.mubr.f32.mxu0 0.0
  %4585 = vmatmul.mubr.f32.gmra.mrb[0].mxu0 %v4199
  %v4586 = vpop.f32.mrb[0].mxu0
  %v4587 = vadd.f32 0.0, %v4586
  %v4588 = vpop.f32.mrb[0].mxu0
  %4589 = vmatprep.mubr.f32.mxu0 0.0
  %4590 = vmatmul.mubr.f32.gmra.mrb[0].mxu0 %v4200
  %v4591 = vpop.f32.mrb[0].mxu0
  %v4592 = vadd.f32 0.0, %v4591
  %v4593 = vpop.f32.mrb[0].mxu0
  %4594 = vmatprep.mubr.f32.mxu0 0.0
  %4595 = vmatmul.mubr.f32.gmra.mrb[0].mxu0 %v4201
  %v4596 = vpop.f32.mrb[0].mxu0
  %v4597 = vadd.f32 0.0, %v4596
  %v4598 = vpop.f32.mrb[0].mxu0
  %4599 = vmatprep.mubr.f32.mxu0 0.0
  %4600 = vmatmul.mubr.f32.gmra.mrb[0].mxu0 %v4202
  %v4601 = vpop.f32.mrb[0].mxu0
  %v4602 = vadd.f32 0.0, %v4601
  %v4603 = vpop.f32.mrb[0].mxu0
  %4604 = vdwg.mxu0
  %v4605 = vadd.f32 %v4075, %v4287
  %v4606 = vadd.f32 %v4076, %v4292
  %v4607 = vadd.f32 %v4077, %v4297
  %v4608 = vadd.f32 %v4078, %v4302
  %v4609 = vadd.f32 %v4079, %v4307
  %v4610 = vadd.f32 %v4080, %v4312
  %v4611 = vadd.f32 %v4081, %v4317
  %v4612 = vadd.f32 %v4082, %v4322
  %v4613 = vadd.f32 %v4083, %v4327
  %v4614 = vadd.f32 %v4084, %v4332
  %v4615 = vadd.f32 %v4085, %v4337
  %v4616 = vadd.f32 %v4086, %v4342
  %v4617 = vadd.f32 %v4087, %v4347
  %v4618 = vadd.f32 %v4088, %v4352
  %v4619 = vadd.f32 %v4089, %v4357
  %v4620 = vadd.f32 %v4090, %v4362
  %v4621 = vadd.f32 %v4091, %v4367
  %v4622 = vadd.f32 %v4092, %v4372
  %v4623 = vadd.f32 %v4093, %v4377
  %v4624 = vadd.f32 %v4094, %v4382
  %v4625 = vadd.f32 %v4095, %v4387
  %v4626 = vadd.f32 %v4096, %v4392
  %v4627 = vadd.f32 %v4097, %v4397
  %v4628 = vadd.f32 %v4098, %v4402
  %v4629 = vadd.f32 %v4099, %v4407
  %v4630 = vadd.f32 %v4100, %v4412
  %v4631 = vadd.f32 %v4101, %v4417
  %v4632 = vadd.f32 %v4102, %v4422
  %v4633 = vadd.f32 %v4103, %v4427
  %v4634 = vadd.f32 %v4104, %v4432
  %v4635 = vadd.f32 %v4105, %v4437
  %v4636 = vadd.f32 %v4106, %v4442
  %v4637 = vadd.f32 %v4107, %v4447
  %v4638 = vadd.f32 %v4108, %v4452
  %v4639 = vadd.f32 %v4109, %v4457
  %v4640 = vadd.f32 %v4110, %v4462
  %v4641 = vadd.f32 %v4111, %v4467
  %v4642 = vadd.f32 %v4112, %v4472
  %v4643 = vadd.f32 %v4113, %v4477
  %v4644 = vadd.f32 %v4114, %v4482
  %v4645 = vadd.f32 %v4115, %v4487
  %v4646 = vadd.f32 %v4116, %v4492
  %v4647 = vadd.f32 %v4117, %v4497
  %v4648 = vadd.f32 %v4118, %v4502
  %v4649 = vadd.f32 %v4119, %v4507
  %v4650 = vadd.f32 %v4120, %v4512
  %v4651 = vadd.f32 %v4121, %v4517
  %v4652 = vadd.f32 %v4122, %v4522
  %v4653 = vadd.f32 %v4123, %v4527
  %v4654 = vadd.f32 %v4124, %v4532
  %v4655 = vadd.f32 %v4125, %v4537
  %v4656 = vadd.f32 %v4126, %v4542
  %v4657 = vadd.f32 %v4127, %v4547
  %v4658 = vadd.f32 %v4128, %v4552
  %v4659 = vadd.f32 %v4129, %v4557
  %v4660 = vadd.f32 %v4130, %v4562
  %v4661 = vadd.f32 %v4131, %v4567
  %v4662 = vadd.f32 %v4132, %v4572
  %v4663 = vadd.f32 %v4133, %v4577
  %v4664 = vadd.f32 %v4134, %v4582
  %v4665 = vadd.f32 %v4135, %v4587
  %v4666 = vadd.f32 %v4136, %v4592
  %v4667 = vadd.f32 %v4137, %v4597
  %v4668 = vadd.f32 %v4138, %v4602
  %v4669 = vld [vmem:[%s2] sm:$0x1]
  %v4671 = vlaneseq
  %v4672 = vshrl.u32 %v4671, 7
  %v4673 = vsub.s32 0, %v4672
  %v4674 = vrot.slane %v4669, %v4673
  %v4676 = vadd.f32 %v4605, %v4674
  %v4677 = vadd.f32 %v4606, %v4674
  %v4678 = vadd.f32 %v4607, %v4674
  %v4679 = vadd.f32 %v4608, %v4674
  %v4680 = vadd.f32 %v4609, %v4674
  %v4681 = vadd.f32 %v4610, %v4674
  %v4682 = vadd.f32 %v4611, %v4674
  %v4683 = vadd.f32 %v4612, %v4674
  %v4684 = vadd.f32 %v4613, %v4674
  %v4685 = vadd.f32 %v4614, %v4674
  %v4686 = vadd.f32 %v4615, %v4674
  %v4687 = vadd.f32 %v4616, %v4674
  %v4688 = vadd.f32 %v4617, %v4674
  %v4689 = vadd.f32 %v4618, %v4674
  %v4690 = vadd.f32 %v4619, %v4674
  %v4691 = vadd.f32 %v4620, %v4674
  %v4692 = vadd.f32 %v4621, %v4674
  %v4693 = vadd.f32 %v4622, %v4674
  %v4694 = vadd.f32 %v4623, %v4674
  %v4695 = vadd.f32 %v4624, %v4674
  %v4696 = vadd.f32 %v4625, %v4674
  %v4697 = vadd.f32 %v4626, %v4674
  %v4698 = vadd.f32 %v4627, %v4674
  %v4699 = vadd.f32 %v4628, %v4674
  %v4700 = vadd.f32 %v4629, %v4674
  %v4701 = vadd.f32 %v4630, %v4674
  %v4702 = vadd.f32 %v4631, %v4674
  %v4703 = vadd.f32 %v4632, %v4674
  %v4704 = vadd.f32 %v4633, %v4674
  %v4705 = vadd.f32 %v4634, %v4674
  %v4706 = vadd.f32 %v4635, %v4674
  %v4707 = vadd.f32 %v4636, %v4674
  %v4708 = vadd.f32 %v4637, %v4674
  %v4709 = vadd.f32 %v4638, %v4674
  %v4710 = vadd.f32 %v4639, %v4674
  %v4711 = vadd.f32 %v4640, %v4674
  %v4712 = vadd.f32 %v4641, %v4674
  %v4713 = vadd.f32 %v4642, %v4674
  %v4714 = vadd.f32 %v4643, %v4674
  %v4715 = vadd.f32 %v4644, %v4674
  %v4716 = vadd.f32 %v4645, %v4674
  %v4717 = vadd.f32 %v4646, %v4674
  %v4718 = vadd.f32 %v4647, %v4674
  %v4719 = vadd.f32 %v4648, %v4674
  %v4720 = vadd.f32 %v4649, %v4674
  %v4721 = vadd.f32 %v4650, %v4674
  %v4722 = vadd.f32 %v4651, %v4674
  %v4723 = vadd.f32 %v4652, %v4674
  %v4724 = vadd.f32 %v4653, %v4674
  %v4725 = vadd.f32 %v4654, %v4674
  %v4726 = vadd.f32 %v4655, %v4674
  %v4727 = vadd.f32 %v4656, %v4674
  %v4728 = vadd.f32 %v4657, %v4674
  %v4729 = vadd.f32 %v4658, %v4674
  %v4730 = vadd.f32 %v4659, %v4674
  %v4731 = vadd.f32 %v4660, %v4674
  %v4732 = vadd.f32 %v4661, %v4674
  %v4733 = vadd.f32 %v4662, %v4674
  %v4734 = vadd.f32 %v4663, %v4674
  %v4735 = vadd.f32 %v4664, %v4674
  %v4736 = vadd.f32 %v4665, %v4674
  %v4737 = vadd.f32 %v4666, %v4674
  %v4738 = vadd.f32 %v4667, %v4674
  %v4739 = vadd.f32 %v4668, %v4674
  %v4740 = vld [vmem:[%s3] sm:$0xff]
  %v4741 = vld [vmem:[%s3 + $0x8] sm:$0xff]
  %v4742 = vld [vmem:[%s3 + $0x10] sm:$0xff]
  %v4743 = vld [vmem:[%s3 + $0x18] sm:$0xff]
  %v4744 = vld [vmem:[%s3 + $0x20] sm:$0xff]
  %v4745 = vld [vmem:[%s3 + $0x28] sm:$0xff]
  %v4746 = vld [vmem:[%s3 + $0x30] sm:$0xff]
  %v4747 = vld [vmem:[%s3 + $0x38] sm:$0xff]
  %v4748 = vld [vmem:[%s3 + $0x40] sm:$0xff]
  %v4749 = vld [vmem:[%s3 + $0x48] sm:$0xff]
  %v4750 = vld [vmem:[%s3 + $0x50] sm:$0xff]
  %v4751 = vld [vmem:[%s3 + $0x58] sm:$0xff]
  %v4752 = vld [vmem:[%s3 + $0x60] sm:$0xff]
  %v4753 = vld [vmem:[%s3 + $0x68] sm:$0xff]
  %v4754 = vld [vmem:[%s3 + $0x70] sm:$0xff]
  %v4755 = vld [vmem:[%s3 + $0x78] sm:$0xff]
  %v4756 = vld [vmem:[%s3 + $0x80] sm:$0xff]
  %v4757 = vld [vmem:[%s3 + $0x88] sm:$0xff]
  %v4758 = vld [vmem:[%s3 + $0x90] sm:$0xff]
  %v4759 = vld [vmem:[%s3 + $0x98] sm:$0xff]
  %v4760 = vld [vmem:[%s3 + $0xa0] sm:$0xff]
  %v4761 = vld [vmem:[%s3 + $0xa8] sm:$0xff]
  %v4762 = vld [vmem:[%s3 + $0xb0] sm:$0xff]
  %v4763 = vld [vmem:[%s3 + $0xb8] sm:$0xff]
  %v4764 = vld [vmem:[%s3 + $0xc0] sm:$0xff]
  %v4765 = vld [vmem:[%s3 + $0xc8] sm:$0xff]
  %v4766 = vld [vmem:[%s3 + $0xd0] sm:$0xff]
  %v4767 = vld [vmem:[%s3 + $0xd8] sm:$0xff]
  %v4768 = vld [vmem:[%s3 + $0xe0] sm:$0xff]
  %v4769 = vld [vmem:[%s3 + $0xe8] sm:$0xff]
  %v4770 = vld [vmem:[%s3 + $0xf0] sm:$0xff]
  %v4771 = vld [vmem:[%s3 + $0xf8] sm:$0xff]
  %v4772 = vld [vmem:[%s3 + $0x100] sm:$0xff]
  %v4773 = vld [vmem:[%s3 + $0x108] sm:$0xff]
  %v4774 = vld [vmem:[%s3 + $0x110] sm:$0xff]
  %v4775 = vld [vmem:[%s3 + $0x118] sm:$0xff]
  %v4776 = vld [vmem:[%s3 + $0x120] sm:$0xff]
  %v4777 = vld [vmem:[%s3 + $0x128] sm:$0xff]
  %v4778 = vld [vmem:[%s3 + $0x130] sm:$0xff]
  %v4779 = vld [vmem:[%s3 + $0x138] sm:$0xff]
  %v4780 = vld [vmem:[%s3 + $0x140] sm:$0xff]
  %v4781 = vld [vmem:[%s3 + $0x148] sm:$0xff]
  %v4782 = vld [vmem:[%s3 + $0x150] sm:$0xff]
  %v4783 = vld [vmem:[%s3 + $0x158] sm:$0xff]
  %v4784 = vld [vmem:[%s3 + $0x160] sm:$0xff]
  %v4785 = vld [vmem:[%s3 + $0x168] sm:$0xff]
  %v4786 = vld [vmem:[%s3 + $0x170] sm:$0xff]
  %v4787 = vld [vmem:[%s3 + $0x178] sm:$0xff]
  %v4788 = vld [vmem:[%s3 + $0x180] sm:$0xff]
  %v4789 = vld [vmem:[%s3 + $0x188] sm:$0xff]
  %v4790 = vld [vmem:[%s3 + $0x190] sm:$0xff]
  %v4791 = vld [vmem:[%s3 + $0x198] sm:$0xff]
  %v4792 = vld [vmem:[%s3 + $0x1a0] sm:$0xff]
  %v4793 = vld [vmem:[%s3 + $0x1a8] sm:$0xff]
  %v4794 = vld [vmem:[%s3 + $0x1b0] sm:$0xff]
  %v4795 = vld [vmem:[%s3 + $0x1b8] sm:$0xff]
  %v4796 = vld [vmem:[%s3 + $0x1c0] sm:$0xff]
  %v4797 = vld [vmem:[%s3 + $0x1c8] sm:$0xff]
  %v4798 = vld [vmem:[%s3 + $0x1d0] sm:$0xff]
  %v4799 = vld [vmem:[%s3 + $0x1d8] sm:$0xff]
  %v4800 = vld [vmem:[%s3 + $0x1e0] sm:$0xff]
  %v4801 = vld [vmem:[%s3 + $0x1e8] sm:$0xff]
  %v4802 = vld [vmem:[%s3 + $0x1f0] sm:$0xff]
  %v4803 = vld [vmem:[%s3 + $0x1f8] sm:$0xff]
  %v4804 = vld [vmem:[%s4] sm:$0xff]
  %v4805 = vld [vmem:[%s4 + $0x8] sm:$0xff]
  %v4806 = vld [vmem:[%s4 + $0x10] sm:$0xff]
  %v4807 = vld [vmem:[%s4 + $0x18] sm:$0xff]
  %v4808 = vld [vmem:[%s4 + $0x20] sm:$0xff]
  %v4809 = vld [vmem:[%s4 + $0x28] sm:$0xff]
  %v4810 = vld [vmem:[%s4 + $0x30] sm:$0xff]
  %v4811 = vld [vmem:[%s4 + $0x38] sm:$0xff]
  %v4812 = vld [vmem:[%s4 + $0x40] sm:$0xff]
  %v4813 = vld [vmem:[%s4 + $0x48] sm:$0xff]
  %v4814 = vld [vmem:[%s4 + $0x50] sm:$0xff]
  %v4815 = vld [vmem:[%s4 + $0x58] sm:$0xff]
  %v4816 = vld [vmem:[%s4 + $0x60] sm:$0xff]
  %v4817 = vld [vmem:[%s4 + $0x68] sm:$0xff]
  %v4818 = vld [vmem:[%s4 + $0x70] sm:$0xff]
  %v4819 = vld [vmem:[%s4 + $0x78] sm:$0xff]
  %v4820 = vld [vmem:[%s5] sm:$0xff]
  %v4821 = vld [vmem:[%s6] sm:$0x1]
  %v4822 = vld [vmem:[%s6 + $0x1] sm:$0x1]
  %v4823 = vadd.f32 %v4676, %v4677
  %v4824 = vadd.f32 %v4823, %v4678
  %v4825 = vadd.f32 %v4824, %v4679
  %v4826 = vadd.f32 %v4825, %v4680
  %v4827 = vadd.f32 %v4826, %v4681
  %v4828 = vadd.f32 %v4827, %v4682
  %v4829 = vadd.f32 %v4828, %v4683
  %v4830 = vadd.f32 %v4829, %v4684
  %v4831 = vadd.f32 %v4830, %v4685
  %v4832 = vadd.f32 %v4831, %v4686
  %v4833 = vadd.f32 %v4832, %v4687
  %v4834 = vadd.f32 %v4833, %v4688
  %v4835 = vadd.f32 %v4834, %v4689
  %v4836 = vadd.f32 %v4835, %v4690
  %v4837 = vadd.f32 %v4836, %v4691
  %v4838 = vadd.f32 %v4837, %v4692
  %v4839 = vadd.f32 %v4838, %v4693
  %v4840 = vadd.f32 %v4839, %v4694
  %v4841 = vadd.f32 %v4840, %v4695
  %v4842 = vadd.f32 %v4841, %v4696
  %v4843 = vadd.f32 %v4842, %v4697
  %v4844 = vadd.f32 %v4843, %v4698
  %v4845 = vadd.f32 %v4844, %v4699
  %v4846 = vadd.f32 %v4845, %v4700
  %v4847 = vadd.f32 %v4846, %v4701
  %v4848 = vadd.f32 %v4847, %v4702
  %v4849 = vadd.f32 %v4848, %v4703
  %v4850 = vadd.f32 %v4849, %v4704
  %v4851 = vadd.f32 %v4850, %v4705
  %v4852 = vadd.f32 %v4851, %v4706
  %v4853 = vadd.f32 %v4852, %v4707
  %v4854 = vadd.f32 %v4853, %v4708
  %v4855 = vadd.f32 %v4854, %v4709
  %v4856 = vadd.f32 %v4855, %v4710
  %v4857 = vadd.f32 %v4856, %v4711
  %v4858 = vadd.f32 %v4857, %v4712
  %v4859 = vadd.f32 %v4858, %v4713
  %v4860 = vadd.f32 %v4859, %v4714
  %v4861 = vadd.f32 %v4860, %v4715
  %v4862 = vadd.f32 %v4861, %v4716
  %v4863 = vadd.f32 %v4862, %v4717
  %v4864 = vadd.f32 %v4863, %v4718
  %v4865 = vadd.f32 %v4864, %v4719
  %v4866 = vadd.f32 %v4865, %v4720
  %v4867 = vadd.f32 %v4866, %v4721
  %v4868 = vadd.f32 %v4867, %v4722
  %v4869 = vadd.f32 %v4868, %v4723
  %v4870 = vadd.f32 %v4869, %v4724
  %v4871 = vadd.f32 %v4870, %v4725
  %v4872 = vadd.f32 %v4871, %v4726
  %v4873 = vadd.f32 %v4872, %v4727
  %v4874 = vadd.f32 %v4873, %v4728
  %v4875 = vadd.f32 %v4874, %v4729
  %v4876 = vadd.f32 %v4875, %v4730
  %v4877 = vadd.f32 %v4876, %v4731
  %v4878 = vadd.f32 %v4877, %v4732
  %v4879 = vadd.f32 %v4878, %v4733
  %v4880 = vadd.f32 %v4879, %v4734
  %v4881 = vadd.f32 %v4880, %v4735
  %v4882 = vadd.f32 %v4881, %v4736
  %v4883 = vadd.f32 %v4882, %v4737
  %v4884 = vadd.f32 %v4883, %v4738
  %v4885 = vadd.f32 %v4884, %v4739
  %v4886 = vrot.slane %v4885, 4
  %v4887 = vadd.f32 %v4885, %v4886
  %v4888 = vrot.slane %v4887, 2
  %v4889 = vadd.f32 %v4887, %v4888
  %v4890 = vrot.slane %v4889, 1
  %v4891 = vadd.f32 %v4889, %v4890
  %4892 = vmatprep.subr.mxu0 0.0
  %4893 = vmatpush1.msra.mxu0 %v4804
  %4894 = vmatprep.subr.mxu0 0.0
  %4895 = vmatpush1.msra.mxu0 %v4805
  %4896 = vmatprep.subr.mxu0 0.0
  %4897 = vmatpush1.msra.mxu0 %v4806
  %4898 = vmatprep.subr.mxu0 0.0
  %4899 = vmatpush1.msra.mxu0 %v4807
  %4900 = vmatprep.subr.mxu0 0.0
  %4901 = vmatpush1.msra.mxu0 %v4808
  %4902 = vmatprep.subr.mxu0 0.0
  %4903 = vmatpush1.msra.mxu0 %v4809
  %4904 = vmatprep.subr.mxu0 0.0
  %4905 = vmatpush1.msra.mxu0 %v4810
  %4906 = vmatprep.subr.mxu0 0.0
  %4907 = vmatpush1.msra.mxu0 %v4811
  %4908 = vmatprep.subr.mxu0 0.0
  %4909 = vmatpush1.msra.mxu0 %v4812
  %4910 = vmatprep.subr.mxu0 0.0
  %4911 = vmatpush1.msra.mxu0 %v4813
  %4912 = vmatprep.subr.mxu0 0.0
  %4913 = vmatpush1.msra.mxu0 %v4814
  %4914 = vmatprep.subr.mxu0 0.0
  %4915 = vmatpush1.msra.mxu0 %v4815
  %4916 = vmatprep.subr.mxu0 0.0
  %4917 = vmatpush1.msra.mxu0 %v4816
  %4918 = vmatprep.subr.mxu0 0.0
  %4919 = vmatpush1.msra.mxu0 %v4817
  %4920 = vmatprep.subr.mxu0 0.0
  %4921 = vmatpush1.msra.mxu0 %v4818
  %4922 = vmatprep.subr.mxu0 0.0
  %4923 = vmatpush1.msra.mxu0 %v4819
  %4924 = vmatprep.subr.mxu0 0.0
  %4925 = vmatpush1.msra.mxu0 0.0
  %4926 = vmatprep.subr.mxu0 0.0
  %4927 = vmatpush1.msra.mxu0 0.0
  %4928 = vmatprep.subr.mxu0 0.0
  %4929 = vmatpush1.msra.mxu0 0.0
  %4930 = vmatprep.subr.mxu0 0.0
  %4931 = vmatpush1.msra.mxu0 0.0
  %4932 = vmatprep.subr.mxu0 0.0
  %4933 = vmatpush1.msra.mxu0 0.0
  %4934 = vmatprep.subr.mxu0 0.0
  %4935 = vmatpush1.msra.mxu0 0.0
  %4936 = vmatprep.subr.mxu0 0.0
  %4937 = vmatpush1.msra.mxu0 0.0
  %4938 = vmatprep.subr.mxu0 0.0
  %4939 = vmatpush1.msra.mxu0 0.0
  %4940 = vmatprep.subr.mxu0 0.0
  %4941 = vmatpush1.msra.mxu0 0.0
  %4942 = vmatprep.subr.mxu0 0.0
  %4943 = vmatpush1.msra.mxu0 0.0
  %4944 = vmatprep.subr.mxu0 0.0
  %4945 = vmatpush1.msra.mxu0 0.0
  %4946 = vmatprep.subr.mxu0 0.0
  %4947 = vmatpush1.msra.mxu0 0.0
  %4948 = vmatprep.subr.mxu0 0.0
  %4949 = vmatpush1.msra.mxu0 0.0
  %4950 = vmatprep.subr.mxu0 0.0
  %4951 = vmatpush1.msra.mxu0 0.0
  %4952 = vmatprep.subr.mxu0 0.0
  %4953 = vmatpush1.msra.mxu0 0.0
  %4954 = vmatprep.subr.mxu0 0.0
  %4955 = vmatpush1.msra.mxu0 0.0
  %4956 = vmatprep.mubr.f32.mxu0 0.0
  %4957 = vmatmul.mubr.f32.gmra.mrb[0].mxu0 %v4891
  %v4958 = vpop.f32.mrb[0].mxu0
  %v4959 = vadd.f32 0.0, %v4958
  %v4960 = vpop.f32.mrb[0].mxu0
  %4961 = vdwg.mxu0
  %v4962 = vmul.f32 %v4676, %v4676
  %v4963 = vmul.f32 %v4677, %v4677
  %v4964 = vmul.f32 %v4678, %v4678
  %v4965 = vmul.f32 %v4679, %v4679
  %v4966 = vmul.f32 %v4680, %v4680
  %v4967 = vmul.f32 %v4681, %v4681
  %v4968 = vmul.f32 %v4682, %v4682
  %v4969 = vmul.f32 %v4683, %v4683
  %v4970 = vmul.f32 %v4684, %v4684
  %v4971 = vmul.f32 %v4685, %v4685
  %v4972 = vmul.f32 %v4686, %v4686
  %v4973 = vmul.f32 %v4687, %v4687
  %v4974 = vmul.f32 %v4688, %v4688
  %v4975 = vmul.f32 %v4689, %v4689
  %v4976 = vmul.f32 %v4690, %v4690
  %v4977 = vmul.f32 %v4691, %v4691
  %v4978 = vmul.f32 %v4692, %v4692
  %v4979 = vmul.f32 %v4693, %v4693
  %v4980 = vmul.f32 %v4694, %v4694
  %v4981 = vmul.f32 %v4695, %v4695
  %v4982 = vmul.f32 %v4696, %v4696
  %v4983 = vmul.f32 %v4697, %v4697
  %v4984 = vmul.f32 %v4698, %v4698
  %v4985 = vmul.f32 %v4699, %v4699
  %v4986 = vmul.f32 %v4700, %v4700
  %v4987 = vmul.f32 %v4701, %v4701
  %v4988 = vmul.f32 %v4702, %v4702
  %v4989 = vmul.f32 %v4703, %v4703
  %v4990 = vmul.f32 %v4704, %v4704
  %v4991 = vmul.f32 %v4705, %v4705
  %v4992 = vmul.f32 %v4706, %v4706
  %v4993 = vmul.f32 %v4707, %v4707
  %v4994 = vmul.f32 %v4708, %v4708
  %v4995 = vmul.f32 %v4709, %v4709
  %v4996 = vmul.f32 %v4710, %v4710
  %v4997 = vmul.f32 %v4711, %v4711
  %v4998 = vmul.f32 %v4712, %v4712
  %v4999 = vmul.f32 %v4713, %v4713
  %v5000 = vmul.f32 %v4714, %v4714
  %v5001 = vmul.f32 %v4715, %v4715
  %v5002 = vmul.f32 %v4716, %v4716
  %v5003 = vmul.f32 %v4717, %v4717
  %v5004 = vmul.f32 %v4718, %v4718
  %v5005 = vmul.f32 %v4719, %v4719
  %v5006 = vmul.f32 %v4720, %v4720
  %v5007 = vmul.f32 %v4721, %v4721
  %v5008 = vmul.f32 %v4722, %v4722
  %v5009 = vmul.f32 %v4723, %v4723
  %v5010 = vmul.f32 %v4724, %v4724
  %v5011 = vmul.f32 %v4725, %v4725
  %v5012 = vmul.f32 %v4726, %v4726
  %v5013 = vmul.f32 %v4727, %v4727
  %v5014 = vmul.f32 %v4728, %v4728
  %v5015 = vmul.f32 %v4729, %v4729
  %v5016 = vmul.f32 %v4730, %v4730
  %v5017 = vmul.f32 %v4731, %v4731
  %v5018 = vmul.f32 %v4732, %v4732
  %v5019 = vmul.f32 %v4733, %v4733
  %v5020 = vmul.f32 %v4734, %v4734
  %v5021 = vmul.f32 %v4735, %v4735
  %v5022 = vmul.f32 %v4736, %v4736
  %v5023 = vmul.f32 %v4737, %v4737
  %v5024 = vmul.f32 %v4738, %v4738
  %v5025 = vmul.f32 %v4739, %v4739
  %v5026 = vadd.f32 %v4962, %v4963
  %v5027 = vadd.f32 %v5026, %v4964
  %v5028 = vadd.f32 %v5027, %v4965
  %v5029 = vadd.f32 %v5028, %v4966
  %v5030 = vadd.f32 %v5029, %v4967
  %v5031 = vadd.f32 %v5030, %v4968
  %v5032 = vadd.f32 %v5031, %v4969
  %v5033 = vadd.f32 %v5032, %v4970
  %v5034 = vadd.f32 %v5033, %v4971
  %v5035 = vadd.f32 %v5034, %v4972
  %v5036 = vadd.f32 %v5035, %v4973
  %v5037 = vadd.f32 %v5036, %v4974
  %v5038 = vadd.f32 %v5037, %v4975
  %v5039 = vadd.f32 %v5038, %v4976
  %v5040 = vadd.f32 %v5039, %v4977
  %v5041 = vadd.f32 %v5040, %v4978
  %v5042 = vadd.f32 %v5041, %v4979
  %v5043 = vadd.f32 %v5042, %v4980
  %v5044 = vadd.f32 %v5043, %v4981
  %v5045 = vadd.f32 %v5044, %v4982
  %v5046 = vadd.f32 %v5045, %v4983
  %v5047 = vadd.f32 %v5046, %v4984
  %v5048 = vadd.f32 %v5047, %v4985
  %v5049 = vadd.f32 %v5048, %v4986
  %v5050 = vadd.f32 %v5049, %v4987
  %v5051 = vadd.f32 %v5050, %v4988
  %v5052 = vadd.f32 %v5051, %v4989
  %v5053 = vadd.f32 %v5052, %v4990
  %v5054 = vadd.f32 %v5053, %v4991
  %v5055 = vadd.f32 %v5054, %v4992
  %v5056 = vadd.f32 %v5055, %v4993
  %v5057 = vadd.f32 %v5056, %v4994
  %v5058 = vadd.f32 %v5057, %v4995
  %v5059 = vadd.f32 %v5058, %v4996
  %v5060 = vadd.f32 %v5059, %v4997
  %v5061 = vadd.f32 %v5060, %v4998
  %v5062 = vadd.f32 %v5061, %v4999
  %v5063 = vadd.f32 %v5062, %v5000
  %v5064 = vadd.f32 %v5063, %v5001
  %v5065 = vadd.f32 %v5064, %v5002
  %v5066 = vadd.f32 %v5065, %v5003
  %v5067 = vadd.f32 %v5066, %v5004
  %v5068 = vadd.f32 %v5067, %v5005
  %v5069 = vadd.f32 %v5068, %v5006
  %v5070 = vadd.f32 %v5069, %v5007
  %v5071 = vadd.f32 %v5070, %v5008
  %v5072 = vadd.f32 %v5071, %v5009
  %v5073 = vadd.f32 %v5072, %v5010
  %v5074 = vadd.f32 %v5073, %v5011
  %v5075 = vadd.f32 %v5074, %v5012
  %v5076 = vadd.f32 %v5075, %v5013
  %v5077 = vadd.f32 %v5076, %v5014
  %v5078 = vadd.f32 %v5077, %v5015
  %v5079 = vadd.f32 %v5078, %v5016
  %v5080 = vadd.f32 %v5079, %v5017
  %v5081 = vadd.f32 %v5080, %v5018
  %v5082 = vadd.f32 %v5081, %v5019
  %v5083 = vadd.f32 %v5082, %v5020
  %v5084 = vadd.f32 %v5083, %v5021
  %v5085 = vadd.f32 %v5084, %v5022
  %v5086 = vadd.f32 %v5085, %v5023
  %v5087 = vadd.f32 %v5086, %v5024
  %v5088 = vadd.f32 %v5087, %v5025
  %v5089 = vrot.slane %v5088, 4
  %v5090 = vadd.f32 %v5088, %v5089
  %v5091 = vrot.slane %v5090, 2
  %v5092 = vadd.f32 %v5090, %v5091
  %v5093 = vrot.slane %v5092, 1
  %v5094 = vadd.f32 %v5092, %v5093
  %5095 = vmatprep.subr.mxu0 0.0
  %5096 = vmatpush1.msra.mxu0 %v4804
  %5097 = vmatprep.subr.mxu0 0.0
  %5098 = vmatpush1.msra.mxu0 %v4805
  %5099 = vmatprep.subr.mxu0 0.0
  %5100 = vmatpush1.msra.mxu0 %v4806
  %5101 = vmatprep.subr.mxu0 0.0
  %5102 = vmatpush1.msra.mxu0 %v4807
  %5103 = vmatprep.subr.mxu0 0.0
  %5104 = vmatpush1.msra.mxu0 %v4808
  %5105 = vmatprep.subr.mxu0 0.0
  %5106 = vmatpush1.msra.mxu0 %v4809
  %5107 = vmatprep.subr.mxu0 0.0
  %5108 = vmatpush1.msra.mxu0 %v4810
  %5109 = vmatprep.subr.mxu0 0.0
  %5110 = vmatpush1.msra.mxu0 %v4811
  %5111 = vmatprep.subr.mxu0 0.0
  %5112 = vmatpush1.msra.mxu0 %v4812
  %5113 = vmatprep.subr.mxu0 0.0
  %5114 = vmatpush1.msra.mxu0 %v4813
  %5115 = vmatprep.subr.mxu0 0.0
  %5116 = vmatpush1.msra.mxu0 %v4814
  %5117 = vmatprep.subr.mxu0 0.0
  %5118 = vmatpush1.msra.mxu0 %v4815
  %5119 = vmatprep.subr.mxu0 0.0
  %5120 = vmatpush1.msra.mxu0 %v4816
  %5121 = vmatprep.subr.mxu0 0.0
  %5122 = vmatpush1.msra.mxu0 %v4817
  %5123 = vmatprep.subr.mxu0 0.0
  %5124 = vmatpush1.msra.mxu0 %v4818
  %5125 = vmatprep.subr.mxu0 0.0
  %5126 = vmatpush1.msra.mxu0 %v4819
  %5127 = vmatprep.subr.mxu0 0.0
  %5128 = vmatpush1.msra.mxu0 0.0
  %5129 = vmatprep.subr.mxu0 0.0
  %5130 = vmatpush1.msra.mxu0 0.0
  %5131 = vmatprep.subr.mxu0 0.0
  %5132 = vmatpush1.msra.mxu0 0.0
  %5133 = vmatprep.subr.mxu0 0.0
  %5134 = vmatpush1.msra.mxu0 0.0
  %5135 = vmatprep.subr.mxu0 0.0
  %5136 = vmatpush1.msra.mxu0 0.0
  %5137 = vmatprep.subr.mxu0 0.0
  %5138 = vmatpush1.msra.mxu0 0.0
  %5139 = vmatprep.subr.mxu0 0.0
  %5140 = vmatpush1.msra.mxu0 0.0
  %5141 = vmatprep.subr.mxu0 0.0
  %5142 = vmatpush1.msra.mxu0 0.0
  %5143 = vmatprep.subr.mxu0 0.0
  %5144 = vmatpush1.msra.mxu0 0.0
  %5145 = vmatprep.subr.mxu0 0.0
  %5146 = vmatpush1.msra.mxu0 0.0
  %5147 = vmatprep.subr.mxu0 0.0
  %5148 = vmatpush1.msra.mxu0 0.0
  %5149 = vmatprep.subr.mxu0 0.0
  %5150 = vmatpush1.msra.mxu0 0.0
  %5151 = vmatprep.subr.mxu0 0.0
  %5152 = vmatpush1.msra.mxu0 0.0
  %5153 = vmatprep.subr.mxu0 0.0
  %5154 = vmatpush1.msra.mxu0 0.0
  %5155 = vmatprep.subr.mxu0 0.0
  %5156 = vmatpush1.msra.mxu0 0.0
  %5157 = vmatprep.subr.mxu0 0.0
  %5158 = vmatpush1.msra.mxu0 0.0
  %5159 = vmatprep.mubr.f32.mxu0 0.0
  %5160 = vmatmul.mubr.f32.gmra.mrb[0].mxu0 %v5094
  %v5161 = vpop.f32.mrb[0].mxu0
  %v5162 = vadd.f32 0.0, %v5161
  %v5163 = vpop.f32.mrb[0].mxu0
  %5164 = vdwg.mxu0
  %v5165 = vmul.f32 %v4959, 0.00012207031
  %v5166 = vmul.f32 %v5162, 0.00012207031
  %v5167 = vmul.f32 %v5165, %v5165
  %v5168 = vsub.f32 %v5166, %v5167
  %v5169 = vmax.f32 %v5168, 0.0
  %v5170 = vadd.f32 %v5169, 1e-05
  %v5171 = vrsqrt.pop %v5170
  %v5172 = vmul.f32 %v4821, %v5171
  %v5173 = vmul.f32 %v5165, %v5172
  %v5174 = vsub.f32 %v4822, %v5173
  %vm5175 = vcmask 64512
  %v5177 = vsel %vm5175, %v5172, 0
  %5179 = vmatprep.subr.mxu0 0.0
  %5180 = vmatpush1.msra.mxu0 %v4820
  %5181 = vmatprep.subr.mxu0 0.0
  %5182 = vmatpush1.msra.mxu0 0.0
  %5183 = vmatprep.subr.mxu0 0.0
  %5184 = vmatpush1.msra.mxu0 0.0
  %5185 = vmatprep.subr.mxu0 0.0
  %5186 = vmatpush1.msra.mxu0 0.0
  %5187 = vmatprep.subr.mxu0 0.0
  %5188 = vmatpush1.msra.mxu0 0.0
  %5189 = vmatprep.subr.mxu0 0.0
  %5190 = vmatpush1.msra.mxu0 0.0
  %5191 = vmatprep.subr.mxu0 0.0
  %5192 = vmatpush1.msra.mxu0 0.0
  %5193 = vmatprep.subr.mxu0 0.0
  %5194 = vmatpush1.msra.mxu0 0.0
  %5195 = vmatprep.subr.mxu0 0.0
  %5196 = vmatpush1.msra.mxu0 0.0
  %5197 = vmatprep.subr.mxu0 0.0
  %5198 = vmatpush1.msra.mxu0 0.0
  %5199 = vmatprep.subr.mxu0 0.0
  %5200 = vmatpush1.msra.mxu0 0.0
  %5201 = vmatprep.subr.mxu0 0.0
  %5202 = vmatpush1.msra.mxu0 0.0
  %5203 = vmatprep.subr.mxu0 0.0
  %5204 = vmatpush1.msra.mxu0 0.0
  %5205 = vmatprep.subr.mxu0 0.0
  %5206 = vmatpush1.msra.mxu0 0.0
  %5207 = vmatprep.subr.mxu0 0.0
  %5208 = vmatpush1.msra.mxu0 0.0
  %5209 = vmatprep.subr.mxu0 0.0
  %5210 = vmatpush1.msra.mxu0 0.0
  %5211 = vmatprep.subr.mxu0 0.0
  %5212 = vmatpush1.msra.mxu0 0.0
  %5213 = vmatprep.subr.mxu0 0.0
  %5214 = vmatpush1.msra.mxu0 0.0
  %5215 = vmatprep.subr.mxu0 0.0
  %5216 = vmatpush1.msra.mxu0 0.0
  %5217 = vmatprep.subr.mxu0 0.0
  %5218 = vmatpush1.msra.mxu0 0.0
  %5219 = vmatprep.subr.mxu0 0.0
  %5220 = vmatpush1.msra.mxu0 0.0
  %5221 = vmatprep.subr.mxu0 0.0
  %5222 = vmatpush1.msra.mxu0 0.0
  %5223 = vmatprep.subr.mxu0 0.0
  %5224 = vmatpush1.msra.mxu0 0.0
  %5225 = vmatprep.subr.mxu0 0.0
  %5226 = vmatpush1.msra.mxu0 0.0
  %5227 = vmatprep.subr.mxu0 0.0
  %5228 = vmatpush1.msra.mxu0 0.0
  %5229 = vmatprep.subr.mxu0 0.0
  %5230 = vmatpush1.msra.mxu0 0.0
  %5231 = vmatprep.subr.mxu0 0.0
  %5232 = vmatpush1.msra.mxu0 0.0
  %5233 = vmatprep.subr.mxu0 0.0
  %5234 = vmatpush1.msra.mxu0 0.0
  %5235 = vmatprep.subr.mxu0 0.0
  %5236 = vmatpush1.msra.mxu0 0.0
  %5237 = vmatprep.subr.mxu0 0.0
  %5238 = vmatpush1.msra.mxu0 0.0
  %5239 = vmatprep.subr.mxu0 0.0
  %5240 = vmatpush1.msra.mxu0 0.0
  %5241 = vmatprep.subr.mxu0 0.0
  %5242 = vmatpush1.msra.mxu0 0.0
  %5243 = vmatprep.mubr.f32.mxu0 0.0
  %5244 = vmatmul.mubr.f32.gmra.mrb[0].mxu0 %v5177
  %v5245 = vpop.f32.mrb[0].mxu0
  %v5246 = vadd.f32 0.0, %v5245
  %v5247 = vpop.f32.mrb[0].mxu0
  %5248 = vdwg.mxu0
  %v5249 = vld [vmem:[%s6 + $0x2] sm:$0x1]
  %v5250 = vld [vmem:[%s6 + $0x3] sm:$0x1]
  %v5251 = vadd.f32 %v4740, %v4741
  %v5252 = vadd.f32 %v5251, %v4742
  %v5253 = vadd.f32 %v5252, %v4743
  %v5254 = vadd.f32 %v5253, %v4744
  %v5255 = vadd.f32 %v5254, %v4745
  %v5256 = vadd.f32 %v5255, %v4746
  %v5257 = vadd.f32 %v5256, %v4747
  %v5258 = vadd.f32 %v5257, %v4748
  %v5259 = vadd.f32 %v5258, %v4749
  %v5260 = vadd.f32 %v5259, %v4750
  %v5261 = vadd.f32 %v5260, %v4751
  %v5262 = vadd.f32 %v5261, %v4752
  %v5263 = vadd.f32 %v5262, %v4753
  %v5264 = vadd.f32 %v5263, %v4754
  %v5265 = vadd.f32 %v5264, %v4755
  %v5266 = vadd.f32 %v5265, %v4756
  %v5267 = vadd.f32 %v5266, %v4757
  %v5268 = vadd.f32 %v5267, %v4758
  %v5269 = vadd.f32 %v5268, %v4759
  %v5270 = vadd.f32 %v5269, %v4760
  %v5271 = vadd.f32 %v5270, %v4761
  %v5272 = vadd.f32 %v5271, %v4762
  %v5273 = vadd.f32 %v5272, %v4763
  %v5274 = vadd.f32 %v5273, %v4764
  %v5275 = vadd.f32 %v5274, %v4765
  %v5276 = vadd.f32 %v5275, %v4766
  %v5277 = vadd.f32 %v5276, %v4767
  %v5278 = vadd.f32 %v5277, %v4768
  %v5279 = vadd.f32 %v5278, %v4769
  %v5280 = vadd.f32 %v5279, %v4770
  %v5281 = vadd.f32 %v5280, %v4771
  %v5282 = vadd.f32 %v5281, %v4772
  %v5283 = vadd.f32 %v5282, %v4773
  %v5284 = vadd.f32 %v5283, %v4774
  %v5285 = vadd.f32 %v5284, %v4775
  %v5286 = vadd.f32 %v5285, %v4776
  %v5287 = vadd.f32 %v5286, %v4777
  %v5288 = vadd.f32 %v5287, %v4778
  %v5289 = vadd.f32 %v5288, %v4779
  %v5290 = vadd.f32 %v5289, %v4780
  %v5291 = vadd.f32 %v5290, %v4781
  %v5292 = vadd.f32 %v5291, %v4782
  %v5293 = vadd.f32 %v5292, %v4783
  %v5294 = vadd.f32 %v5293, %v4784
  %v5295 = vadd.f32 %v5294, %v4785
  %v5296 = vadd.f32 %v5295, %v4786
  %v5297 = vadd.f32 %v5296, %v4787
  %v5298 = vadd.f32 %v5297, %v4788
  %v5299 = vadd.f32 %v5298, %v4789
  %v5300 = vadd.f32 %v5299, %v4790
  %v5301 = vadd.f32 %v5300, %v4791
  %v5302 = vadd.f32 %v5301, %v4792
  %v5303 = vadd.f32 %v5302, %v4793
  %v5304 = vadd.f32 %v5303, %v4794
  %v5305 = vadd.f32 %v5304, %v4795
  %v5306 = vadd.f32 %v5305, %v4796
  %v5307 = vadd.f32 %v5306, %v4797
  %v5308 = vadd.f32 %v5307, %v4798
  %v5309 = vadd.f32 %v5308, %v4799
  %v5310 = vadd.f32 %v5309, %v4800
  %v5311 = vadd.f32 %v5310, %v4801
  %v5312 = vadd.f32 %v5311, %v4802
  %v5313 = vadd.f32 %v5312, %v4803
  %v5314 = vrot.slane %v5313, 4
  %v5315 = vadd.f32 %v5313, %v5314
  %v5316 = vrot.slane %v5315, 2
  %v5317 = vadd.f32 %v5315, %v5316
  %v5318 = vrot.slane %v5317, 1
  %v5319 = vadd.f32 %v5317, %v5318
  %5320 = vmatprep.subr.mxu0 0.0
  %5321 = vmatpush1.msra.mxu0 %v4804
  %5322 = vmatprep.subr.mxu0 0.0
  %5323 = vmatpush1.msra.mxu0 %v4805
  %5324 = vmatprep.subr.mxu0 0.0
  %5325 = vmatpush1.msra.mxu0 %v4806
  %5326 = vmatprep.subr.mxu0 0.0
  %5327 = vmatpush1.msra.mxu0 %v4807
  %5328 = vmatprep.subr.mxu0 0.0
  %5329 = vmatpush1.msra.mxu0 %v4808
  %5330 = vmatprep.subr.mxu0 0.0
  %5331 = vmatpush1.msra.mxu0 %v4809
  %5332 = vmatprep.subr.mxu0 0.0
  %5333 = vmatpush1.msra.mxu0 %v4810
  %5334 = vmatprep.subr.mxu0 0.0
  %5335 = vmatpush1.msra.mxu0 %v4811
  %5336 = vmatprep.subr.mxu0 0.0
  %5337 = vmatpush1.msra.mxu0 %v4812
  %5338 = vmatprep.subr.mxu0 0.0
  %5339 = vmatpush1.msra.mxu0 %v4813
  %5340 = vmatprep.subr.mxu0 0.0
  %5341 = vmatpush1.msra.mxu0 %v4814
  %5342 = vmatprep.subr.mxu0 0.0
  %5343 = vmatpush1.msra.mxu0 %v4815
  %5344 = vmatprep.subr.mxu0 0.0
  %5345 = vmatpush1.msra.mxu0 %v4816
  %5346 = vmatprep.subr.mxu0 0.0
  %5347 = vmatpush1.msra.mxu0 %v4817
  %5348 = vmatprep.subr.mxu0 0.0
  %5349 = vmatpush1.msra.mxu0 %v4818
  %5350 = vmatprep.subr.mxu0 0.0
  %5351 = vmatpush1.msra.mxu0 %v4819
  %5352 = vmatprep.subr.mxu0 0.0
  %5353 = vmatpush1.msra.mxu0 0.0
  %5354 = vmatprep.subr.mxu0 0.0
  %5355 = vmatpush1.msra.mxu0 0.0
  %5356 = vmatprep.subr.mxu0 0.0
  %5357 = vmatpush1.msra.mxu0 0.0
  %5358 = vmatprep.subr.mxu0 0.0
  %5359 = vmatpush1.msra.mxu0 0.0
  %5360 = vmatprep.subr.mxu0 0.0
  %5361 = vmatpush1.msra.mxu0 0.0
  %5362 = vmatprep.subr.mxu0 0.0
  %5363 = vmatpush1.msra.mxu0 0.0
  %5364 = vmatprep.subr.mxu0 0.0
  %5365 = vmatpush1.msra.mxu0 0.0
  %5366 = vmatprep.subr.mxu0 0.0
  %5367 = vmatpush1.msra.mxu0 0.0
  %5368 = vmatprep.subr.mxu0 0.0
  %5369 = vmatpush1.msra.mxu0 0.0
  %5370 = vmatprep.subr.mxu0 0.0
  %5371 = vmatpush1.msra.mxu0 0.0
  %5372 = vmatprep.subr.mxu0 0.0
  %5373 = vmatpush1.msra.mxu0 0.0
  %5374 = vmatprep.subr.mxu0 0.0
  %5375 = vmatpush1.msra.mxu0 0.0
  %5376 = vmatprep.subr.mxu0 0.0
  %5377 = vmatpush1.msra.mxu0 0.0
  %5378 = vmatprep.subr.mxu0 0.0
  %5379 = vmatpush1.msra.mxu0 0.0
  %5380 = vmatprep.subr.mxu0 0.0
  %5381 = vmatpush1.msra.mxu0 0.0
  %5382 = vmatprep.subr.mxu0 0.0
  %5383 = vmatpush1.msra.mxu0 0.0
  %5384 = vmatprep.mubr.f32.mxu0 0.0
  %5385 = vmatmul.mubr.f32.gmra.mrb[0].mxu0 %v5319
  %v5386 = vpop.f32.mrb[0].mxu0
  %v5387 = vadd.f32 0.0, %v5386
  %v5388 = vpop.f32.mrb[0].mxu0
  %5389 = vdwg.mxu0
  %v5390 = vmul.f32 %v4740, %v4740
  %v5391 = vmul.f32 %v4741, %v4741
  %v5392 = vmul.f32 %v4742, %v4742
  %v5393 = vmul.f32 %v4743, %v4743
  %v5394 = vmul.f32 %v4744, %v4744
  %v5395 = vmul.f32 %v4745, %v4745
  %v5396 = vmul.f32 %v4746, %v4746
  %v5397 = vmul.f32 %v4747, %v4747
  %v5398 = vmul.f32 %v4748, %v4748
  %v5399 = vmul.f32 %v4749, %v4749
  %v5400 = vmul.f32 %v4750, %v4750
  %v5401 = vmul.f32 %v4751, %v4751
  %v5402 = vmul.f32 %v4752, %v4752
  %v5403 = vmul.f32 %v4753, %v4753
  %v5404 = vmul.f32 %v4754, %v4754
  %v5405 = vmul.f32 %v4755, %v4755
  %v5406 = vmul.f32 %v4756, %v4756
  %v5407 = vmul.f32 %v4757, %v4757
  %v5408 = vmul.f32 %v4758, %v4758
  %v5409 = vmul.f32 %v4759, %v4759
  %v5410 = vmul.f32 %v4760, %v4760
  %v5411 = vmul.f32 %v4761, %v4761
  %v5412 = vmul.f32 %v4762, %v4762
  %v5413 = vmul.f32 %v4763, %v4763
  %v5414 = vmul.f32 %v4764, %v4764
  %v5415 = vmul.f32 %v4765, %v4765
  %v5416 = vmul.f32 %v4766, %v4766
  %v5417 = vmul.f32 %v4767, %v4767
  %v5418 = vmul.f32 %v4768, %v4768
  %v5419 = vmul.f32 %v4769, %v4769
  %v5420 = vmul.f32 %v4770, %v4770
  %v5421 = vmul.f32 %v4771, %v4771
  %v5422 = vmul.f32 %v4772, %v4772
  %v5423 = vmul.f32 %v4773, %v4773
  %v5424 = vmul.f32 %v4774, %v4774
  %v5425 = vmul.f32 %v4775, %v4775
  %v5426 = vmul.f32 %v4776, %v4776
  %v5427 = vmul.f32 %v4777, %v4777
  %v5428 = vmul.f32 %v4778, %v4778
  %v5429 = vmul.f32 %v4779, %v4779
  %v5430 = vmul.f32 %v4780, %v4780
  %v5431 = vmul.f32 %v4781, %v4781
  %v5432 = vmul.f32 %v4782, %v4782
  %v5433 = vmul.f32 %v4783, %v4783
  %v5434 = vmul.f32 %v4784, %v4784
  %v5435 = vmul.f32 %v4785, %v4785
  %v5436 = vmul.f32 %v4786, %v4786
  %v5437 = vmul.f32 %v4787, %v4787
  %v5438 = vmul.f32 %v4788, %v4788
  %v5439 = vmul.f32 %v4789, %v4789
  %v5440 = vmul.f32 %v4790, %v4790
  %v5441 = vmul.f32 %v4791, %v4791
  %v5442 = vmul.f32 %v4792, %v4792
  %v5443 = vmul.f32 %v4793, %v4793
  %v5444 = vmul.f32 %v4794, %v4794
  %v5445 = vmul.f32 %v4795, %v4795
  %v5446 = vmul.f32 %v4796, %v4796
  %v5447 = vmul.f32 %v4797, %v4797
  %v5448 = vmul.f32 %v4798, %v4798
  %v5449 = vmul.f32 %v4799, %v4799
  %v5450 = vmul.f32 %v4800, %v4800
  %v5451 = vmul.f32 %v4801, %v4801
  %v5452 = vmul.f32 %v4802, %v4802
  %v5453 = vmul.f32 %v4803, %v4803
  %v5454 = vadd.f32 %v5390, %v5391
  %v5455 = vadd.f32 %v5454, %v5392
  %v5456 = vadd.f32 %v5455, %v5393
  %v5457 = vadd.f32 %v5456, %v5394
  %v5458 = vadd.f32 %v5457, %v5395
  %v5459 = vadd.f32 %v5458, %v5396
  %v5460 = vadd.f32 %v5459, %v5397
  %v5461 = vadd.f32 %v5460, %v5398
  %v5462 = vadd.f32 %v5461, %v5399
  %v5463 = vadd.f32 %v5462, %v5400
  %v5464 = vadd.f32 %v5463, %v5401
  %v5465 = vadd.f32 %v5464, %v5402
  %v5466 = vadd.f32 %v5465, %v5403
  %v5467 = vadd.f32 %v5466, %v5404
  %v5468 = vadd.f32 %v5467, %v5405
  %v5469 = vadd.f32 %v5468, %v5406
  %v5470 = vadd.f32 %v5469, %v5407
  %v5471 = vadd.f32 %v5470, %v5408
  %v5472 = vadd.f32 %v5471, %v5409
  %v5473 = vadd.f32 %v5472, %v5410
  %v5474 = vadd.f32 %v5473, %v5411
  %v5475 = vadd.f32 %v5474, %v5412
  %v5476 = vadd.f32 %v5475, %v5413
  %v5477 = vadd.f32 %v5476, %v5414
  %v5478 = vadd.f32 %v5477, %v5415
  %v5479 = vadd.f32 %v5478, %v5416
  %v5480 = vadd.f32 %v5479, %v5417
  %v5481 = vadd.f32 %v5480, %v5418
  %v5482 = vadd.f32 %v5481, %v5419
  %v5483 = vadd.f32 %v5482, %v5420
  %v5484 = vadd.f32 %v5483, %v5421
  %v5485 = vadd.f32 %v5484, %v5422
  %v5486 = vadd.f32 %v5485, %v5423
  %v5487 = vadd.f32 %v5486, %v5424
  %v5488 = vadd.f32 %v5487, %v5425
  %v5489 = vadd.f32 %v5488, %v5426
  %v5490 = vadd.f32 %v5489, %v5427
  %v5491 = vadd.f32 %v5490, %v5428
  %v5492 = vadd.f32 %v5491, %v5429
  %v5493 = vadd.f32 %v5492, %v5430
  %v5494 = vadd.f32 %v5493, %v5431
  %v5495 = vadd.f32 %v5494, %v5432
  %v5496 = vadd.f32 %v5495, %v5433
  %v5497 = vadd.f32 %v5496, %v5434
  %v5498 = vadd.f32 %v5497, %v5435
  %v5499 = vadd.f32 %v5498, %v5436
  %v5500 = vadd.f32 %v5499, %v5437
  %v5501 = vadd.f32 %v5500, %v5438
  %v5502 = vadd.f32 %v5501, %v5439
  %v5503 = vadd.f32 %v5502, %v5440
  %v5504 = vadd.f32 %v5503, %v5441
  %v5505 = vadd.f32 %v5504, %v5442
  %v5506 = vadd.f32 %v5505, %v5443
  %v5507 = vadd.f32 %v5506, %v5444
  %v5508 = vadd.f32 %v5507, %v5445
  %v5509 = vadd.f32 %v5508, %v5446
  %v5510 = vadd.f32 %v5509, %v5447
  %v5511 = vadd.f32 %v5510, %v5448
  %v5512 = vadd.f32 %v5511, %v5449
  %v5513 = vadd.f32 %v5512, %v5450
  %v5514 = vadd.f32 %v5513, %v5451
  %v5515 = vadd.f32 %v5514, %v5452
  %v5516 = vadd.f32 %v5515, %v5453
  %v5517 = vrot.slane %v5516, 4
  %v5518 = vadd.f32 %v5516, %v5517
  %v5519 = vrot.slane %v5518, 2
  %v5520 = vadd.f32 %v5518, %v5519
  %v5521 = vrot.slane %v5520, 1
  %v5522 = vadd.f32 %v5520, %v5521
  %5523 = vmatprep.subr.mxu0 0.0
  %5524 = vmatpush1.msra.mxu0 %v4804
  %5525 = vmatprep.subr.mxu0 0.0
  %5526 = vmatpush1.msra.mxu0 %v4805
  %5527 = vmatprep.subr.mxu0 0.0
  %5528 = vmatpush1.msra.mxu0 %v4806
  %5529 = vmatprep.subr.mxu0 0.0
  %5530 = vmatpush1.msra.mxu0 %v4807
  %5531 = vmatprep.subr.mxu0 0.0
  %5532 = vmatpush1.msra.mxu0 %v4808
  %5533 = vmatprep.subr.mxu0 0.0
  %5534 = vmatpush1.msra.mxu0 %v4809
  %5535 = vmatprep.subr.mxu0 0.0
  %5536 = vmatpush1.msra.mxu0 %v4810
  %5537 = vmatprep.subr.mxu0 0.0
  %5538 = vmatpush1.msra.mxu0 %v4811
  %5539 = vmatprep.subr.mxu0 0.0
  %5540 = vmatpush1.msra.mxu0 %v4812
  %5541 = vmatprep.subr.mxu0 0.0
  %5542 = vmatpush1.msra.mxu0 %v4813
  %5543 = vmatprep.subr.mxu0 0.0
  %5544 = vmatpush1.msra.mxu0 %v4814
  %5545 = vmatprep.subr.mxu0 0.0
  %5546 = vmatpush1.msra.mxu0 %v4815
  %5547 = vmatprep.subr.mxu0 0.0
  %5548 = vmatpush1.msra.mxu0 %v4816
  %5549 = vmatprep.subr.mxu0 0.0
  %5550 = vmatpush1.msra.mxu0 %v4817
  %5551 = vmatprep.subr.mxu0 0.0
  %5552 = vmatpush1.msra.mxu0 %v4818
  %5553 = vmatprep.subr.mxu0 0.0
  %5554 = vmatpush1.msra.mxu0 %v4819
  %5555 = vmatprep.subr.mxu0 0.0
  %5556 = vmatpush1.msra.mxu0 0.0
  %5557 = vmatprep.subr.mxu0 0.0
  %5558 = vmatpush1.msra.mxu0 0.0
  %5559 = vmatprep.subr.mxu0 0.0
  %5560 = vmatpush1.msra.mxu0 0.0
  %5561 = vmatprep.subr.mxu0 0.0
  %5562 = vmatpush1.msra.mxu0 0.0
  %5563 = vmatprep.subr.mxu0 0.0
  %5564 = vmatpush1.msra.mxu0 0.0
  %5565 = vmatprep.subr.mxu0 0.0
  %5566 = vmatpush1.msra.mxu0 0.0
  %5567 = vmatprep.subr.mxu0 0.0
  %5568 = vmatpush1.msra.mxu0 0.0
  %5569 = vmatprep.subr.mxu0 0.0
  %5570 = vmatpush1.msra.mxu0 0.0
  %5571 = vmatprep.subr.mxu0 0.0
  %5572 = vmatpush1.msra.mxu0 0.0
  %5573 = vmatprep.subr.mxu0 0.0
  %5574 = vmatpush1.msra.mxu0 0.0
  %5575 = vmatprep.subr.mxu0 0.0
  %5576 = vmatpush1.msra.mxu0 0.0
  %5577 = vmatprep.subr.mxu0 0.0
  %5578 = vmatpush1.msra.mxu0 0.0
  %5579 = vmatprep.subr.mxu0 0.0
  %5580 = vmatpush1.msra.mxu0 0.0
  %5581 = vmatprep.subr.mxu0 0.0
  %5582 = vmatpush1.msra.mxu0 0.0
  %5583 = vmatprep.subr.mxu0 0.0
  %5584 = vmatpush1.msra.mxu0 0.0
  %5585 = vmatprep.subr.mxu0 0.0
  %5586 = vmatpush1.msra.mxu0 0.0
  %5587 = vmatprep.mubr.f32.mxu0 0.0
  %5588 = vmatmul.mubr.f32.gmra.mrb[0].mxu0 %v5522
  %v5589 = vpop.f32.mrb[0].mxu0
  %v5590 = vadd.f32 0.0, %v5589
  %v5591 = vpop.f32.mrb[0].mxu0
  %5592 = vdwg.mxu0
  %v5593 = vmul.f32 %v5387, 0.00012207031
  %v5594 = vmul.f32 %v5590, 0.00012207031
  %v5595 = vmul.f32 %v5593, %v5593
  %v5596 = vsub.f32 %v5594, %v5595
  %v5597 = vmax.f32 %v5596, 0.0
  %v5598 = vadd.f32 %v5597, 1e-05
  %v5599 = vrsqrt.pop %v5598
  %v5600 = vmul.f32 %v5249, %v5599
  %v5601 = vmul.f32 %v5593, %v5600
  %v5602 = vsub.f32 %v5250, %v5601
  %v5604 = vsel %vm5175, %v5600, 0
  %5606 = vmatprep.subr.mxu0 0.0
  %5607 = vmatpush1.msra.mxu0 %v4820
  %5608 = vmatprep.subr.mxu0 0.0
  %5609 = vmatpush1.msra.mxu0 0.0
  %5610 = vmatprep.subr.mxu0 0.0
  %5611 = vmatpush1.msra.mxu0 0.0
  %5612 = vmatprep.subr.mxu0 0.0
  %5613 = vmatpush1.msra.mxu0 0.0
  %5614 = vmatprep.subr.mxu0 0.0
  %5615 = vmatpush1.msra.mxu0 0.0
  %5616 = vmatprep.subr.mxu0 0.0
  %5617 = vmatpush1.msra.mxu0 0.0
  %5618 = vmatprep.subr.mxu0 0.0
  %5619 = vmatpush1.msra.mxu0 0.0
  %5620 = vmatprep.subr.mxu0 0.0
  %5621 = vmatpush1.msra.mxu0 0.0
  %5622 = vmatprep.subr.mxu0 0.0
  %5623 = vmatpush1.msra.mxu0 0.0
  %5624 = vmatprep.subr.mxu0 0.0
  %5625 = vmatpush1.msra.mxu0 0.0
  %5626 = vmatprep.subr.mxu0 0.0
  %5627 = vmatpush1.msra.mxu0 0.0
  %5628 = vmatprep.subr.mxu0 0.0
  %5629 = vmatpush1.msra.mxu0 0.0
  %5630 = vmatprep.subr.mxu0 0.0
  %5631 = vmatpush1.msra.mxu0 0.0
  %5632 = vmatprep.subr.mxu0 0.0
  %5633 = vmatpush1.msra.mxu0 0.0
  %5634 = vmatprep.subr.mxu0 0.0
  %5635 = vmatpush1.msra.mxu0 0.0
  %5636 = vmatprep.subr.mxu0 0.0
  %5637 = vmatpush1.msra.mxu0 0.0
  %5638 = vmatprep.subr.mxu0 0.0
  %5639 = vmatpush1.msra.mxu0 0.0
  %5640 = vmatprep.subr.mxu0 0.0
  %5641 = vmatpush1.msra.mxu0 0.0
  %5642 = vmatprep.subr.mxu0 0.0
  %5643 = vmatpush1.msra.mxu0 0.0
  %5644 = vmatprep.subr.mxu0 0.0
  %5645 = vmatpush1.msra.mxu0 0.0
  %5646 = vmatprep.subr.mxu0 0.0
  %5647 = vmatpush1.msra.mxu0 0.0
  %5648 = vmatprep.subr.mxu0 0.0
  %5649 = vmatpush1.msra.mxu0 0.0
  %5650 = vmatprep.subr.mxu0 0.0
  %5651 = vmatpush1.msra.mxu0 0.0
  %5652 = vmatprep.subr.mxu0 0.0
  %5653 = vmatpush1.msra.mxu0 0.0
  %5654 = vmatprep.subr.mxu0 0.0
  %5655 = vmatpush1.msra.mxu0 0.0
  %5656 = vmatprep.subr.mxu0 0.0
  %5657 = vmatpush1.msra.mxu0 0.0
  %5658 = vmatprep.subr.mxu0 0.0
  %5659 = vmatpush1.msra.mxu0 0.0
  %5660 = vmatprep.subr.mxu0 0.0
  %5661 = vmatpush1.msra.mxu0 0.0
  %5662 = vmatprep.subr.mxu0 0.0
  %5663 = vmatpush1.msra.mxu0 0.0
  %5664 = vmatprep.subr.mxu0 0.0
  %5665 = vmatpush1.msra.mxu0 0.0
  %5666 = vmatprep.subr.mxu0 0.0
  %5667 = vmatpush1.msra.mxu0 0.0
  %5668 = vmatprep.subr.mxu0 0.0
  %5669 = vmatpush1.msra.mxu0 0.0
  %5670 = vmatprep.mubr.f32.mxu0 0.0
  %5671 = vmatmul.mubr.f32.gmra.mrb[0].mxu0 %v5604
  %v5672 = vpop.f32.mrb[0].mxu0
  %v5673 = vadd.f32 0.0, %v5672
  %v5674 = vpop.f32.mrb[0].mxu0
  %5675 = vdwg.mxu0
  %v5677 = vsel %vm5175, %v5602, 0
  %5679 = vmatprep.subr.mxu0 0.0
  %5680 = vmatpush1.msra.mxu0 %v4820
  %5681 = vmatprep.subr.mxu0 0.0
  %5682 = vmatpush1.msra.mxu0 0.0
  %5683 = vmatprep.subr.mxu0 0.0
  %5684 = vmatpush1.msra.mxu0 0.0
  %5685 = vmatprep.subr.mxu0 0.0
  %5686 = vmatpush1.msra.mxu0 0.0
  %5687 = vmatprep.subr.mxu0 0.0
  %5688 = vmatpush1.msra.mxu0 0.0
  %5689 = vmatprep.subr.mxu0 0.0
  %5690 = vmatpush1.msra.mxu0 0.0
  %5691 = vmatprep.subr.mxu0 0.0
  %5692 = vmatpush1.msra.mxu0 0.0
  %5693 = vmatprep.subr.mxu0 0.0
  %5694 = vmatpush1.msra.mxu0 0.0
  %5695 = vmatprep.subr.mxu0 0.0
  %5696 = vmatpush1.msra.mxu0 0.0
  %5697 = vmatprep.subr.mxu0 0.0
  %5698 = vmatpush1.msra.mxu0 0.0
  %5699 = vmatprep.subr.mxu0 0.0
  %5700 = vmatpush1.msra.mxu0 0.0
  %5701 = vmatprep.subr.mxu0 0.0
  %5702 = vmatpush1.msra.mxu0 0.0
  %5703 = vmatprep.subr.mxu0 0.0
  %5704 = vmatpush1.msra.mxu0 0.0
  %5705 = vmatprep.subr.mxu0 0.0
  %5706 = vmatpush1.msra.mxu0 0.0
  %5707 = vmatprep.subr.mxu0 0.0
  %5708 = vmatpush1.msra.mxu0 0.0
  %5709 = vmatprep.subr.mxu0 0.0
  %5710 = vmatpush1.msra.mxu0 0.0
  %5711 = vmatprep.subr.mxu0 0.0
  %5712 = vmatpush1.msra.mxu0 0.0
  %5713 = vmatprep.subr.mxu0 0.0
  %5714 = vmatpush1.msra.mxu0 0.0
  %5715 = vmatprep.subr.mxu0 0.0
  %5716 = vmatpush1.msra.mxu0 0.0
  %5717 = vmatprep.subr.mxu0 0.0
  %5718 = vmatpush1.msra.mxu0 0.0
  %5719 = vmatprep.subr.mxu0 0.0
  %5720 = vmatpush1.msra.mxu0 0.0
  %5721 = vmatprep.subr.mxu0 0.0
  %5722 = vmatpush1.msra.mxu0 0.0
  %5723 = vmatprep.subr.mxu0 0.0
  %5724 = vmatpush1.msra.mxu0 0.0
  %5725 = vmatprep.subr.mxu0 0.0
  %5726 = vmatpush1.msra.mxu0 0.0
  %5727 = vmatprep.subr.mxu0 0.0
  %5728 = vmatpush1.msra.mxu0 0.0
  %5729 = vmatprep.subr.mxu0 0.0
  %5730 = vmatpush1.msra.mxu0 0.0
  %5731 = vmatprep.subr.mxu0 0.0
  %5732 = vmatpush1.msra.mxu0 0.0
  %5733 = vmatprep.subr.mxu0 0.0
  %5734 = vmatpush1.msra.mxu0 0.0
  %5735 = vmatprep.subr.mxu0 0.0
  %5736 = vmatpush1.msra.mxu0 0.0
  %5737 = vmatprep.subr.mxu0 0.0
  %5738 = vmatpush1.msra.mxu0 0.0
  %5739 = vmatprep.subr.mxu0 0.0
  %5740 = vmatpush1.msra.mxu0 0.0
  %5741 = vmatprep.subr.mxu0 0.0
  %5742 = vmatpush1.msra.mxu0 0.0
  %5743 = vmatprep.mubr.f32.mxu0 0.0
  %5744 = vmatmul.mubr.f32.gmra.mrb[0].mxu0 %v5677
  %v5745 = vpop.f32.mrb[0].mxu0
  %v5746 = vadd.f32 0.0, %v5745
  %v5747 = vpop.f32.mrb[0].mxu0
  %5748 = vdwg.mxu0
  %v5749 = vlaneseq
  %v5750 = vshrl.u32 %v5749, 7
  %v5751 = vsub.s32 0, %v5750
  %v5752 = vrot.slane %v5246, %v5751
  %v5753 = vmul.f32 %v4676, %v5752
  %v5754 = vmul.f32 %v4677, %v5752
  %v5755 = vmul.f32 %v4678, %v5752
  %v5756 = vmul.f32 %v4679, %v5752
  %v5757 = vmul.f32 %v4680, %v5752
  %v5758 = vmul.f32 %v4681, %v5752
  %v5759 = vmul.f32 %v4682, %v5752
  %v5760 = vmul.f32 %v4683, %v5752
  %v5761 = vmul.f32 %v4684, %v5752
  %v5762 = vmul.f32 %v4685, %v5752
  %v5763 = vmul.f32 %v4686, %v5752
  %v5764 = vmul.f32 %v4687, %v5752
  %v5765 = vmul.f32 %v4688, %v5752
  %v5766 = vmul.f32 %v4689, %v5752
  %v5767 = vmul.f32 %v4690, %v5752
  %v5768 = vmul.f32 %v4691, %v5752
  %v5769 = vmul.f32 %v4692, %v5752
  %v5770 = vmul.f32 %v4693, %v5752
  %v5771 = vmul.f32 %v4694, %v5752
  %v5772 = vmul.f32 %v4695, %v5752
  %v5773 = vmul.f32 %v4696, %v5752
  %v5774 = vmul.f32 %v4697, %v5752
  %v5775 = vmul.f32 %v4698, %v5752
  %v5776 = vmul.f32 %v4699, %v5752
  %v5777 = vmul.f32 %v4700, %v5752
  %v5778 = vmul.f32 %v4701, %v5752
  %v5779 = vmul.f32 %v4702, %v5752
  %v5780 = vmul.f32 %v4703, %v5752
  %v5781 = vmul.f32 %v4704, %v5752
  %v5782 = vmul.f32 %v4705, %v5752
  %v5783 = vmul.f32 %v4706, %v5752
  %v5784 = vmul.f32 %v4707, %v5752
  %v5785 = vmul.f32 %v4708, %v5752
  %v5786 = vmul.f32 %v4709, %v5752
  %v5787 = vmul.f32 %v4710, %v5752
  %v5788 = vmul.f32 %v4711, %v5752
  %v5789 = vmul.f32 %v4712, %v5752
  %v5790 = vmul.f32 %v4713, %v5752
  %v5791 = vmul.f32 %v4714, %v5752
  %v5792 = vmul.f32 %v4715, %v5752
  %v5793 = vmul.f32 %v4716, %v5752
  %v5794 = vmul.f32 %v4717, %v5752
  %v5795 = vmul.f32 %v4718, %v5752
  %v5796 = vmul.f32 %v4719, %v5752
  %v5797 = vmul.f32 %v4720, %v5752
  %v5798 = vmul.f32 %v4721, %v5752
  %v5799 = vmul.f32 %v4722, %v5752
  %v5800 = vmul.f32 %v4723, %v5752
  %v5801 = vmul.f32 %v4724, %v5752
  %v5802 = vmul.f32 %v4725, %v5752
  %v5803 = vmul.f32 %v4726, %v5752
  %v5804 = vmul.f32 %v4727, %v5752
  %v5805 = vmul.f32 %v4728, %v5752
  %v5806 = vmul.f32 %v4729, %v5752
  %v5807 = vmul.f32 %v4730, %v5752
  %v5808 = vmul.f32 %v4731, %v5752
  %v5809 = vmul.f32 %v4732, %v5752
  %v5810 = vmul.f32 %v4733, %v5752
  %v5811 = vmul.f32 %v4734, %v5752
  %v5812 = vmul.f32 %v4735, %v5752
  %v5813 = vmul.f32 %v4736, %v5752
  %v5814 = vmul.f32 %v4737, %v5752
  %v5815 = vmul.f32 %v4738, %v5752
  %v5816 = vmul.f32 %v4739, %v5752
  %v5817 = vlaneseq
  %v5818 = vshrl.u32 %v5817, 7
  %v5819 = vsub.s32 0, %v5818
  %v5820 = vrot.slane %v5673, %v5819
  %v5821 = vmul.f32 %v4740, %v5820
  %v5822 = vmul.f32 %v4741, %v5820
  %v5823 = vmul.f32 %v4742, %v5820
  %v5824 = vmul.f32 %v4743, %v5820
  %v5825 = vmul.f32 %v4744, %v5820
  %v5826 = vmul.f32 %v4745, %v5820
  %v5827 = vmul.f32 %v4746, %v5820
  %v5828 = vmul.f32 %v4747, %v5820
  %v5829 = vmul.f32 %v4748, %v5820
  %v5830 = vmul.f32 %v4749, %v5820
  %v5831 = vmul.f32 %v4750, %v5820
  %v5832 = vmul.f32 %v4751, %v5820
  %v5833 = vmul.f32 %v4752, %v5820
  %v5834 = vmul.f32 %v4753, %v5820
  %v5835 = vmul.f32 %v4754, %v5820
  %v5836 = vmul.f32 %v4755, %v5820
  %v5837 = vmul.f32 %v4756, %v5820
  %v5838 = vmul.f32 %v4757, %v5820
  %v5839 = vmul.f32 %v4758, %v5820
  %v5840 = vmul.f32 %v4759, %v5820
  %v5841 = vmul.f32 %v4760, %v5820
  %v5842 = vmul.f32 %v4761, %v5820
  %v5843 = vmul.f32 %v4762, %v5820
  %v5844 = vmul.f32 %v4763, %v5820
  %v5845 = vmul.f32 %v4764, %v5820
  %v5846 = vmul.f32 %v4765, %v5820
  %v5847 = vmul.f32 %v4766, %v5820
  %v5848 = vmul.f32 %v4767, %v5820
  %v5849 = vmul.f32 %v4768, %v5820
  %v5850 = vmul.f32 %v4769, %v5820
  %v5851 = vmul.f32 %v4770, %v5820
  %v5852 = vmul.f32 %v4771, %v5820
  %v5853 = vmul.f32 %v4772, %v5820
  %v5854 = vmul.f32 %v4773, %v5820
  %v5855 = vmul.f32 %v4774, %v5820
  %v5856 = vmul.f32 %v4775, %v5820
  %v5857 = vmul.f32 %v4776, %v5820
  %v5858 = vmul.f32 %v4777, %v5820
  %v5859 = vmul.f32 %v4778, %v5820
  %v5860 = vmul.f32 %v4779, %v5820
  %v5861 = vmul.f32 %v4780, %v5820
  %v5862 = vmul.f32 %v4781, %v5820
  %v5863 = vmul.f32 %v4782, %v5820
  %v5864 = vmul.f32 %v4783, %v5820
  %v5865 = vmul.f32 %v4784, %v5820
  %v5866 = vmul.f32 %v4785, %v5820
  %v5867 = vmul.f32 %v4786, %v5820
  %v5868 = vmul.f32 %v4787, %v5820
  %v5869 = vmul.f32 %v4788, %v5820
  %v5870 = vmul.f32 %v4789, %v5820
  %v5871 = vmul.f32 %v4790, %v5820
  %v5872 = vmul.f32 %v4791, %v5820
  %v5873 = vmul.f32 %v4792, %v5820
  %v5874 = vmul.f32 %v4793, %v5820
  %v5875 = vmul.f32 %v4794, %v5820
  %v5876 = vmul.f32 %v4795, %v5820
  %v5877 = vmul.f32 %v4796, %v5820
  %v5878 = vmul.f32 %v4797, %v5820
  %v5879 = vmul.f32 %v4798, %v5820
  %v5880 = vmul.f32 %v4799, %v5820
  %v5881 = vmul.f32 %v4800, %v5820
  %v5882 = vmul.f32 %v4801, %v5820
  %v5883 = vmul.f32 %v4802, %v5820
  %v5884 = vmul.f32 %v4803, %v5820
  %v5885 = vadd.f32 %v5753, %v5821
  %v5886 = vadd.f32 %v5754, %v5822
  %v5887 = vadd.f32 %v5755, %v5823
  %v5888 = vadd.f32 %v5756, %v5824
  %v5889 = vadd.f32 %v5757, %v5825
  %v5890 = vadd.f32 %v5758, %v5826
  %v5891 = vadd.f32 %v5759, %v5827
  %v5892 = vadd.f32 %v5760, %v5828
  %v5893 = vadd.f32 %v5761, %v5829
  %v5894 = vadd.f32 %v5762, %v5830
  %v5895 = vadd.f32 %v5763, %v5831
  %v5896 = vadd.f32 %v5764, %v5832
  %v5897 = vadd.f32 %v5765, %v5833
  %v5898 = vadd.f32 %v5766, %v5834
  %v5899 = vadd.f32 %v5767, %v5835
  %v5900 = vadd.f32 %v5768, %v5836
  %v5901 = vadd.f32 %v5769, %v5837
  %v5902 = vadd.f32 %v5770, %v5838
  %v5903 = vadd.f32 %v5771, %v5839
  %v5904 = vadd.f32 %v5772, %v5840
  %v5905 = vadd.f32 %v5773, %v5841
  %v5906 = vadd.f32 %v5774, %v5842
  %v5907 = vadd.f32 %v5775, %v5843
  %v5908 = vadd.f32 %v5776, %v5844
  %v5909 = vadd.f32 %v5777, %v5845
  %v5910 = vadd.f32 %v5778, %v5846
  %v5911 = vadd.f32 %v5779, %v5847
  %v5912 = vadd.f32 %v5780, %v5848
  %v5913 = vadd.f32 %v5781, %v5849
  %v5914 = vadd.f32 %v5782, %v5850
  %v5915 = vadd.f32 %v5783, %v5851
  %v5916 = vadd.f32 %v5784, %v5852
  %v5917 = vadd.f32 %v5785, %v5853
  %v5918 = vadd.f32 %v5786, %v5854
  %v5919 = vadd.f32 %v5787, %v5855
  %v5920 = vadd.f32 %v5788, %v5856
  %v5921 = vadd.f32 %v5789, %v5857
  %v5922 = vadd.f32 %v5790, %v5858
  %v5923 = vadd.f32 %v5791, %v5859
  %v5924 = vadd.f32 %v5792, %v5860
  %v5925 = vadd.f32 %v5793, %v5861
  %v5926 = vadd.f32 %v5794, %v5862
  %v5927 = vadd.f32 %v5795, %v5863
  %v5928 = vadd.f32 %v5796, %v5864
  %v5929 = vadd.f32 %v5797, %v5865
  %v5930 = vadd.f32 %v5798, %v5866
  %v5931 = vadd.f32 %v5799, %v5867
  %v5932 = vadd.f32 %v5800, %v5868
  %v5933 = vadd.f32 %v5801, %v5869
  %v5934 = vadd.f32 %v5802, %v5870
  %v5935 = vadd.f32 %v5803, %v5871
  %v5936 = vadd.f32 %v5804, %v5872
  %v5937 = vadd.f32 %v5805, %v5873
  %v5938 = vadd.f32 %v5806, %v5874
  %v5939 = vadd.f32 %v5807, %v5875
  %v5940 = vadd.f32 %v5808, %v5876
  %v5941 = vadd.f32 %v5809, %v5877
  %v5942 = vadd.f32 %v5810, %v5878
  %v5943 = vadd.f32 %v5811, %v5879
  %v5944 = vadd.f32 %v5812, %v5880
  %v5945 = vadd.f32 %v5813, %v5881
  %v5946 = vadd.f32 %v5814, %v5882
  %v5947 = vadd.f32 %v5815, %v5883
  %v5948 = vadd.f32 %v5816, %v5884
  %v5950 = vsel %vm5175, %v5174, 0
  %5952 = vmatprep.subr.mxu0 0.0
  %5953 = vmatpush1.msra.mxu0 %v4820
  %5954 = vmatprep.subr.mxu0 0.0
  %5955 = vmatpush1.msra.mxu0 0.0
  %5956 = vmatprep.subr.mxu0 0.0
  %5957 = vmatpush1.msra.mxu0 0.0
  %5958 = vmatprep.subr.mxu0 0.0
  %5959 = vmatpush1.msra.mxu0 0.0
  %5960 = vmatprep.subr.mxu0 0.0
  %5961 = vmatpush1.msra.mxu0 0.0
  %5962 = vmatprep.subr.mxu0 0.0
  %5963 = vmatpush1.msra.mxu0 0.0
  %5964 = vmatprep.subr.mxu0 0.0
  %5965 = vmatpush1.msra.mxu0 0.0
  %5966 = vmatprep.subr.mxu0 0.0
  %5967 = vmatpush1.msra.mxu0 0.0
  %5968 = vmatprep.subr.mxu0 0.0
  %5969 = vmatpush1.msra.mxu0 0.0
  %5970 = vmatprep.subr.mxu0 0.0
  %5971 = vmatpush1.msra.mxu0 0.0
  %5972 = vmatprep.subr.mxu0 0.0
  %5973 = vmatpush1.msra.mxu0 0.0
  %5974 = vmatprep.subr.mxu0 0.0
  %5975 = vmatpush1.msra.mxu0 0.0
  %5976 = vmatprep.subr.mxu0 0.0
  %5977 = vmatpush1.msra.mxu0 0.0
  %5978 = vmatprep.subr.mxu0 0.0
  %5979 = vmatpush1.msra.mxu0 0.0
  %5980 = vmatprep.subr.mxu0 0.0
  %5981 = vmatpush1.msra.mxu0 0.0
  %5982 = vmatprep.subr.mxu0 0.0
  %5983 = vmatpush1.msra.mxu0 0.0
  %5984 = vmatprep.subr.mxu0 0.0
  %5985 = vmatpush1.msra.mxu0 0.0
  %5986 = vmatprep.subr.mxu0 0.0
  %5987 = vmatpush1.msra.mxu0 0.0
  %5988 = vmatprep.subr.mxu0 0.0
  %5989 = vmatpush1.msra.mxu0 0.0
  %5990 = vmatprep.subr.mxu0 0.0
  %5991 = vmatpush1.msra.mxu0 0.0
  %5992 = vmatprep.subr.mxu0 0.0
  %5993 = vmatpush1.msra.mxu0 0.0
  %5994 = vmatprep.subr.mxu0 0.0
  %5995 = vmatpush1.msra.mxu0 0.0
  %5996 = vmatprep.subr.mxu0 0.0
  %5997 = vmatpush1.msra.mxu0 0.0
  %5998 = vmatprep.subr.mxu0 0.0
  %5999 = vmatpush1.msra.mxu0 0.0
  %6000 = vmatprep.subr.mxu0 0.0
  %6001 = vmatpush1.msra.mxu0 0.0
  %6002 = vmatprep.subr.mxu0 0.0
  %6003 = vmatpush1.msra.mxu0 0.0
  %6004 = vmatprep.subr.mxu0 0.0
  %6005 = vmatpush1.msra.mxu0 0.0
  %6006 = vmatprep.subr.mxu0 0.0
  %6007 = vmatpush1.msra.mxu0 0.0
  %6008 = vmatprep.subr.mxu0 0.0
  %6009 = vmatpush1.msra.mxu0 0.0
  %6010 = vmatprep.subr.mxu0 0.0
  %6011 = vmatpush1.msra.mxu0 0.0
  %6012 = vmatprep.subr.mxu0 0.0
  %6013 = vmatpush1.msra.mxu0 0.0
  %6014 = vmatprep.subr.mxu0 0.0
  %6015 = vmatpush1.msra.mxu0 0.0
  %6016 = vmatprep.mubr.f32.mxu0 0.0
  %6017 = vmatmul.mubr.f32.gmra.mrb[0].mxu0 %v5950
  %v6018 = vpop.f32.mrb[0].mxu0
  %v6019 = vadd.f32 %v5746, %v6018
  %v6020 = vpop.f32.mrb[0].mxu0
  %6021 = vdwg.mxu0
  %v6022 = vlaneseq
  %v6023 = vshrl.u32 %v6022, 7
  %v6024 = vsub.s32 0, %v6023
  %v6025 = vrot.slane %v6019, %v6024
  %v6026 = vadd.f32 %v5885, %v6025
  %v6027 = vadd.f32 %v5886, %v6025
  %v6028 = vadd.f32 %v5887, %v6025
  %v6029 = vadd.f32 %v5888, %v6025
  %v6030 = vadd.f32 %v5889, %v6025
  %v6031 = vadd.f32 %v5890, %v6025
  %v6032 = vadd.f32 %v5891, %v6025
  %v6033 = vadd.f32 %v5892, %v6025
  %v6034 = vadd.f32 %v5893, %v6025
  %v6035 = vadd.f32 %v5894, %v6025
  %v6036 = vadd.f32 %v5895, %v6025
  %v6037 = vadd.f32 %v5896, %v6025
  %v6038 = vadd.f32 %v5897, %v6025
  %v6039 = vadd.f32 %v5898, %v6025
  %v6040 = vadd.f32 %v5899, %v6025
  %v6041 = vadd.f32 %v5900, %v6025
  %v6042 = vadd.f32 %v5901, %v6025
  %v6043 = vadd.f32 %v5902, %v6025
  %v6044 = vadd.f32 %v5903, %v6025
  %v6045 = vadd.f32 %v5904, %v6025
  %v6046 = vadd.f32 %v5905, %v6025
  %v6047 = vadd.f32 %v5906, %v6025
  %v6048 = vadd.f32 %v5907, %v6025
  %v6049 = vadd.f32 %v5908, %v6025
  %v6050 = vadd.f32 %v5909, %v6025
  %v6051 = vadd.f32 %v5910, %v6025
  %v6052 = vadd.f32 %v5911, %v6025
  %v6053 = vadd.f32 %v5912, %v6025
  %v6054 = vadd.f32 %v5913, %v6025
  %v6055 = vadd.f32 %v5914, %v6025
  %v6056 = vadd.f32 %v5915, %v6025
  %v6057 = vadd.f32 %v5916, %v6025
  %v6058 = vadd.f32 %v5917, %v6025
  %v6059 = vadd.f32 %v5918, %v6025
  %v6060 = vadd.f32 %v5919, %v6025
  %v6061 = vadd.f32 %v5920, %v6025
  %v6062 = vadd.f32 %v5921, %v6025
  %v6063 = vadd.f32 %v5922, %v6025
  %v6064 = vadd.f32 %v5923, %v6025
  %v6065 = vadd.f32 %v5924, %v6025
  %v6066 = vadd.f32 %v5925, %v6025
  %v6067 = vadd.f32 %v5926, %v6025
  %v6068 = vadd.f32 %v5927, %v6025
  %v6069 = vadd.f32 %v5928, %v6025
  %v6070 = vadd.f32 %v5929, %v6025
  %v6071 = vadd.f32 %v5930, %v6025
  %v6072 = vadd.f32 %v5931, %v6025
  %v6073 = vadd.f32 %v5932, %v6025
  %v6074 = vadd.f32 %v5933, %v6025
  %v6075 = vadd.f32 %v5934, %v6025
  %v6076 = vadd.f32 %v5935, %v6025
  %v6077 = vadd.f32 %v5936, %v6025
  %v6078 = vadd.f32 %v5937, %v6025
  %v6079 = vadd.f32 %v5938, %v6025
  %v6080 = vadd.f32 %v5939, %v6025
  %v6081 = vadd.f32 %v5940, %v6025
  %v6082 = vadd.f32 %v5941, %v6025
  %v6083 = vadd.f32 %v5942, %v6025
  %v6084 = vadd.f32 %v5943, %v6025
  %v6085 = vadd.f32 %v5944, %v6025
  %v6086 = vadd.f32 %v5945, %v6025
  %v6087 = vadd.f32 %v5946, %v6025
  %v6088 = vadd.f32 %v5947, %v6025
  %v6089 = vadd.f32 %v5948, %v6025
  %vm6090 = vcmp.gt.f32.partialorder %v6026, 0.0
  %vm6091 = vcmp.gt.f32.partialorder %v6027, 0.0
  %vm6092 = vcmp.gt.f32.partialorder %v6028, 0.0
  %vm6093 = vcmp.gt.f32.partialorder %v6029, 0.0
  %vm6094 = vcmp.gt.f32.partialorder %v6030, 0.0
  %vm6095 = vcmp.gt.f32.partialorder %v6031, 0.0
  %vm6096 = vcmp.gt.f32.partialorder %v6032, 0.0
  %vm6097 = vcmp.gt.f32.partialorder %v6033, 0.0
  %vm6098 = vcmp.gt.f32.partialorder %v6034, 0.0
  %vm6099 = vcmp.gt.f32.partialorder %v6035, 0.0
  %vm6100 = vcmp.gt.f32.partialorder %v6036, 0.0
  %vm6101 = vcmp.gt.f32.partialorder %v6037, 0.0
  %vm6102 = vcmp.gt.f32.partialorder %v6038, 0.0
  %vm6103 = vcmp.gt.f32.partialorder %v6039, 0.0
  %vm6104 = vcmp.gt.f32.partialorder %v6040, 0.0
  %vm6105 = vcmp.gt.f32.partialorder %v6041, 0.0
  %vm6106 = vcmp.gt.f32.partialorder %v6042, 0.0
  %vm6107 = vcmp.gt.f32.partialorder %v6043, 0.0
  %vm6108 = vcmp.gt.f32.partialorder %v6044, 0.0
  %vm6109 = vcmp.gt.f32.partialorder %v6045, 0.0
  %vm6110 = vcmp.gt.f32.partialorder %v6046, 0.0
  %vm6111 = vcmp.gt.f32.partialorder %v6047, 0.0
  %vm6112 = vcmp.gt.f32.partialorder %v6048, 0.0
  %vm6113 = vcmp.gt.f32.partialorder %v6049, 0.0
  %vm6114 = vcmp.gt.f32.partialorder %v6050, 0.0
  %vm6115 = vcmp.gt.f32.partialorder %v6051, 0.0
  %vm6116 = vcmp.gt.f32.partialorder %v6052, 0.0
  %vm6117 = vcmp.gt.f32.partialorder %v6053, 0.0
  %vm6118 = vcmp.gt.f32.partialorder %v6054, 0.0
  %vm6119 = vcmp.gt.f32.partialorder %v6055, 0.0
  %vm6120 = vcmp.gt.f32.partialorder %v6056, 0.0
  %vm6121 = vcmp.gt.f32.partialorder %v6057, 0.0
  %vm6122 = vcmp.gt.f32.partialorder %v6058, 0.0
  %vm6123 = vcmp.gt.f32.partialorder %v6059, 0.0
  %vm6124 = vcmp.gt.f32.partialorder %v6060, 0.0
  %vm6125 = vcmp.gt.f32.partialorder %v6061, 0.0
  %vm6126 = vcmp.gt.f32.partialorder %v6062, 0.0
  %vm6127 = vcmp.gt.f32.partialorder %v6063, 0.0
  %vm6128 = vcmp.gt.f32.partialorder %v6064, 0.0
  %vm6129 = vcmp.gt.f32.partialorder %v6065, 0.0
  %vm6130 = vcmp.gt.f32.partialorder %v6066, 0.0
  %vm6131 = vcmp.gt.f32.partialorder %v6067, 0.0
  %vm6132 = vcmp.gt.f32.partialorder %v6068, 0.0
  %vm6133 = vcmp.gt.f32.partialorder %v6069, 0.0
  %vm6134 = vcmp.gt.f32.partialorder %v6070, 0.0
  %vm6135 = vcmp.gt.f32.partialorder %v6071, 0.0
  %vm6136 = vcmp.gt.f32.partialorder %v6072, 0.0
  %vm6137 = vcmp.gt.f32.partialorder %v6073, 0.0
  %vm6138 = vcmp.gt.f32.partialorder %v6074, 0.0
  %vm6139 = vcmp.gt.f32.partialorder %v6075, 0.0
  %vm6140 = vcmp.gt.f32.partialorder %v6076, 0.0
  %vm6141 = vcmp.gt.f32.partialorder %v6077, 0.0
  %vm6142 = vcmp.gt.f32.partialorder %v6078, 0.0
  %vm6143 = vcmp.gt.f32.partialorder %v6079, 0.0
  %vm6144 = vcmp.gt.f32.partialorder %v6080, 0.0
  %vm6145 = vcmp.gt.f32.partialorder %v6081, 0.0
  %vm6146 = vcmp.gt.f32.partialorder %v6082, 0.0
  %vm6147 = vcmp.gt.f32.partialorder %v6083, 0.0
  %vm6148 = vcmp.gt.f32.partialorder %v6084, 0.0
  %vm6149 = vcmp.gt.f32.partialorder %v6085, 0.0
  %vm6150 = vcmp.gt.f32.partialorder %v6086, 0.0
  %vm6151 = vcmp.gt.f32.partialorder %v6087, 0.0
  %vm6152 = vcmp.gt.f32.partialorder %v6088, 0.0
  %vm6153 = vcmp.gt.f32.partialorder %v6089, 0.0
  %v6154 = vmul.f32 %v6026, 0.01
  %v6155 = vmul.f32 %v6027, 0.01
  %v6156 = vmul.f32 %v6028, 0.01
  %v6157 = vmul.f32 %v6029, 0.01
  %v6158 = vmul.f32 %v6030, 0.01
  %v6159 = vmul.f32 %v6031, 0.01
  %v6160 = vmul.f32 %v6032, 0.01
  %v6161 = vmul.f32 %v6033, 0.01
  %v6162 = vmul.f32 %v6034, 0.01
  %v6163 = vmul.f32 %v6035, 0.01
  %v6164 = vmul.f32 %v6036, 0.01
  %v6165 = vmul.f32 %v6037, 0.01
  %v6166 = vmul.f32 %v6038, 0.01
  %v6167 = vmul.f32 %v6039, 0.01
  %v6168 = vmul.f32 %v6040, 0.01
  %v6169 = vmul.f32 %v6041, 0.01
  %v6170 = vmul.f32 %v6042, 0.01
  %v6171 = vmul.f32 %v6043, 0.01
  %v6172 = vmul.f32 %v6044, 0.01
  %v6173 = vmul.f32 %v6045, 0.01
  %v6174 = vmul.f32 %v6046, 0.01
  %v6175 = vmul.f32 %v6047, 0.01
  %v6176 = vmul.f32 %v6048, 0.01
  %v6177 = vmul.f32 %v6049, 0.01
  %v6178 = vmul.f32 %v6050, 0.01
  %v6179 = vmul.f32 %v6051, 0.01
  %v6180 = vmul.f32 %v6052, 0.01
  %v6181 = vmul.f32 %v6053, 0.01
  %v6182 = vmul.f32 %v6054, 0.01
  %v6183 = vmul.f32 %v6055, 0.01
  %v6184 = vmul.f32 %v6056, 0.01
  %v6185 = vmul.f32 %v6057, 0.01
  %v6186 = vmul.f32 %v6058, 0.01
  %v6187 = vmul.f32 %v6059, 0.01
  %v6188 = vmul.f32 %v6060, 0.01
  %v6189 = vmul.f32 %v6061, 0.01
  %v6190 = vmul.f32 %v6062, 0.01
  %v6191 = vmul.f32 %v6063, 0.01
  %v6192 = vmul.f32 %v6064, 0.01
  %v6193 = vmul.f32 %v6065, 0.01
  %v6194 = vmul.f32 %v6066, 0.01
  %v6195 = vmul.f32 %v6067, 0.01
  %v6196 = vmul.f32 %v6068, 0.01
  %v6197 = vmul.f32 %v6069, 0.01
  %v6198 = vmul.f32 %v6070, 0.01
  %v6199 = vmul.f32 %v6071, 0.01
  %v6200 = vmul.f32 %v6072, 0.01
  %v6201 = vmul.f32 %v6073, 0.01
  %v6202 = vmul.f32 %v6074, 0.01
  %v6203 = vmul.f32 %v6075, 0.01
  %v6204 = vmul.f32 %v6076, 0.01
  %v6205 = vmul.f32 %v6077, 0.01
  %v6206 = vmul.f32 %v6078, 0.01
  %v6207 = vmul.f32 %v6079, 0.01
  %v6208 = vmul.f32 %v6080, 0.01
  %v6209 = vmul.f32 %v6081, 0.01
  %v6210 = vmul.f32 %v6082, 0.01
  %v6211 = vmul.f32 %v6083, 0.01
  %v6212 = vmul.f32 %v6084, 0.01
  %v6213 = vmul.f32 %v6085, 0.01
  %v6214 = vmul.f32 %v6086, 0.01
  %v6215 = vmul.f32 %v6087, 0.01
  %v6216 = vmul.f32 %v6088, 0.01
  %v6217 = vmul.f32 %v6089, 0.01
  %v6218 = vsel %vm6090, %v6026, %v6154
  %v6219 = vsel %vm6091, %v6027, %v6155
  %v6220 = vsel %vm6092, %v6028, %v6156
  %v6221 = vsel %vm6093, %v6029, %v6157
  %v6222 = vsel %vm6094, %v6030, %v6158
  %v6223 = vsel %vm6095, %v6031, %v6159
  %v6224 = vsel %vm6096, %v6032, %v6160
  %v6225 = vsel %vm6097, %v6033, %v6161
  %v6226 = vsel %vm6098, %v6034, %v6162
  %v6227 = vsel %vm6099, %v6035, %v6163
  %v6228 = vsel %vm6100, %v6036, %v6164
  %v6229 = vsel %vm6101, %v6037, %v6165
  %v6230 = vsel %vm6102, %v6038, %v6166
  %v6231 = vsel %vm6103, %v6039, %v6167
  %v6232 = vsel %vm6104, %v6040, %v6168
  %v6233 = vsel %vm6105, %v6041, %v6169
  %v6234 = vsel %vm6106, %v6042, %v6170
  %v6235 = vsel %vm6107, %v6043, %v6171
  %v6236 = vsel %vm6108, %v6044, %v6172
  %v6237 = vsel %vm6109, %v6045, %v6173
  %v6238 = vsel %vm6110, %v6046, %v6174
  %v6239 = vsel %vm6111, %v6047, %v6175
  %v6240 = vsel %vm6112, %v6048, %v6176
  %v6241 = vsel %vm6113, %v6049, %v6177
  %v6242 = vsel %vm6114, %v6050, %v6178
  %v6243 = vsel %vm6115, %v6051, %v6179
  %v6244 = vsel %vm6116, %v6052, %v6180
  %v6245 = vsel %vm6117, %v6053, %v6181
  %v6246 = vsel %vm6118, %v6054, %v6182
  %v6247 = vsel %vm6119, %v6055, %v6183
  %v6248 = vsel %vm6120, %v6056, %v6184
  %v6249 = vsel %vm6121, %v6057, %v6185
  %v6250 = vsel %vm6122, %v6058, %v6186
  %v6251 = vsel %vm6123, %v6059, %v6187
  %v6252 = vsel %vm6124, %v6060, %v6188
  %v6253 = vsel %vm6125, %v6061, %v6189
  %v6254 = vsel %vm6126, %v6062, %v6190
  %v6255 = vsel %vm6127, %v6063, %v6191
  %v6256 = vsel %vm6128, %v6064, %v6192
  %v6257 = vsel %vm6129, %v6065, %v6193
  %v6258 = vsel %vm6130, %v6066, %v6194
  %v6259 = vsel %vm6131, %v6067, %v6195
  %v6260 = vsel %vm6132, %v6068, %v6196
  %v6261 = vsel %vm6133, %v6069, %v6197
  %v6262 = vsel %vm6134, %v6070, %v6198
  %v6263 = vsel %vm6135, %v6071, %v6199
  %v6264 = vsel %vm6136, %v6072, %v6200
  %v6265 = vsel %vm6137, %v6073, %v6201
  %v6266 = vsel %vm6138, %v6074, %v6202
  %v6267 = vsel %vm6139, %v6075, %v6203
  %v6268 = vsel %vm6140, %v6076, %v6204
  %v6269 = vsel %vm6141, %v6077, %v6205
  %v6270 = vsel %vm6142, %v6078, %v6206
  %v6271 = vsel %vm6143, %v6079, %v6207
  %v6272 = vsel %vm6144, %v6080, %v6208
  %v6273 = vsel %vm6145, %v6081, %v6209
  %v6274 = vsel %vm6146, %v6082, %v6210
  %v6275 = vsel %vm6147, %v6083, %v6211
  %v6276 = vsel %vm6148, %v6084, %v6212
  %v6277 = vsel %vm6149, %v6085, %v6213
  %v6278 = vsel %vm6150, %v6086, %v6214
  %v6279 = vsel %vm6151, %v6087, %v6215
  %v6280 = vsel %vm6152, %v6088, %v6216
  %v6281 = vsel %vm6153, %v6089, %v6217
  %6282 = vst [vmem:[%s7] sm:$0xff] %v6218
  %6283 = vst [vmem:[%s7 + $0x8] sm:$0xff] %v6219
  %6284 = vst [vmem:[%s7 + $0x10] sm:$0xff] %v6220
  %6285 = vst [vmem:[%s7 + $0x18] sm:$0xff] %v6221
  %6286 = vst [vmem:[%s7 + $0x20] sm:$0xff] %v6222
  %6287 = vst [vmem:[%s7 + $0x28] sm:$0xff] %v6223
  %6288 = vst [vmem:[%s7 + $0x30] sm:$0xff] %v6224
  %6289 = vst [vmem:[%s7 + $0x38] sm:$0xff] %v6225
  %6290 = vst [vmem:[%s7 + $0x40] sm:$0xff] %v6226
  %6291 = vst [vmem:[%s7 + $0x48] sm:$0xff] %v6227
  %6292 = vst [vmem:[%s7 + $0x50] sm:$0xff] %v6228
  %6293 = vst [vmem:[%s7 + $0x58] sm:$0xff] %v6229
  %6294 = vst [vmem:[%s7 + $0x60] sm:$0xff] %v6230
  %6295 = vst [vmem:[%s7 + $0x68] sm:$0xff] %v6231
  %6296 = vst [vmem:[%s7 + $0x70] sm:$0xff] %v6232
  %6297 = vst [vmem:[%s7 + $0x78] sm:$0xff] %v6233
  %6298 = vst [vmem:[%s7 + $0x80] sm:$0xff] %v6234
  %6299 = vst [vmem:[%s7 + $0x88] sm:$0xff] %v6235
  %6300 = vst [vmem:[%s7 + $0x90] sm:$0xff] %v6236
  %6301 = vst [vmem:[%s7 + $0x98] sm:$0xff] %v6237
  %6302 = vst [vmem:[%s7 + $0xa0] sm:$0xff] %v6238
  %6303 = vst [vmem:[%s7 + $0xa8] sm:$0xff] %v6239
  %6304 = vst [vmem:[%s7 + $0xb0] sm:$0xff] %v6240
  %6305 = vst [vmem:[%s7 + $0xb8] sm:$0xff] %v6241
  %6306 = vst [vmem:[%s7 + $0xc0] sm:$0xff] %v6242
  %6307 = vst [vmem:[%s7 + $0xc8] sm:$0xff] %v6243
  %6308 = vst [vmem:[%s7 + $0xd0] sm:$0xff] %v6244
  %6309 = vst [vmem:[%s7 + $0xd8] sm:$0xff] %v6245
  %6310 = vst [vmem:[%s7 + $0xe0] sm:$0xff] %v6246
  %6311 = vst [vmem:[%s7 + $0xe8] sm:$0xff] %v6247
  %6312 = vst [vmem:[%s7 + $0xf0] sm:$0xff] %v6248
  %6313 = vst [vmem:[%s7 + $0xf8] sm:$0xff] %v6249
  %6314 = vst [vmem:[%s7 + $0x100] sm:$0xff] %v6250
  %6315 = vst [vmem:[%s7 + $0x108] sm:$0xff] %v6251
  %6316 = vst [vmem:[%s7 + $0x110] sm:$0xff] %v6252
  %6317 = vst [vmem:[%s7 + $0x118] sm:$0xff] %v6253
  %6318 = vst [vmem:[%s7 + $0x120] sm:$0xff] %v6254
  %6319 = vst [vmem:[%s7 + $0x128] sm:$0xff] %v6255
  %6320 = vst [vmem:[%s7 + $0x130] sm:$0xff] %v6256
  %6321 = vst [vmem:[%s7 + $0x138] sm:$0xff] %v6257
  %6322 = vst [vmem:[%s7 + $0x140] sm:$0xff] %v6258
  %6323 = vst [vmem:[%s7 + $0x148] sm:$0xff] %v6259
  %6324 = vst [vmem:[%s7 + $0x150] sm:$0xff] %v6260
  %6325 = vst [vmem:[%s7 + $0x158] sm:$0xff] %v6261
  %6326 = vst [vmem:[%s7 + $0x160] sm:$0xff] %v6262
  %6327 = vst [vmem:[%s7 + $0x168] sm:$0xff] %v6263
  %6328 = vst [vmem:[%s7 + $0x170] sm:$0xff] %v6264
  %6329 = vst [vmem:[%s7 + $0x178] sm:$0xff] %v6265
  %6330 = vst [vmem:[%s7 + $0x180] sm:$0xff] %v6266
  %6331 = vst [vmem:[%s7 + $0x188] sm:$0xff] %v6267
  %6332 = vst [vmem:[%s7 + $0x190] sm:$0xff] %v6268
  %6333 = vst [vmem:[%s7 + $0x198] sm:$0xff] %v6269
  %6334 = vst [vmem:[%s7 + $0x1a0] sm:$0xff] %v6270
  %6335 = vst [vmem:[%s7 + $0x1a8] sm:$0xff] %v6271
  %6336 = vst [vmem:[%s7 + $0x1b0] sm:$0xff] %v6272
  %6337 = vst [vmem:[%s7 + $0x1b8] sm:$0xff] %v6273
  %6338 = vst [vmem:[%s7 + $0x1c0] sm:$0xff] %v6274
  %6339 = vst [vmem:[%s7 + $0x1c8] sm:$0xff] %v6275
  %6340 = vst [vmem:[%s7 + $0x1d0] sm:$0xff] %v6276
  %6341 = vst [vmem:[%s7 + $0x1d8] sm:$0xff] %v6277
  %6342 = vst [vmem:[%s7 + $0x1e0] sm:$0xff] %v6278
  %6343 = vst [vmem:[%s7 + $0x1e8] sm:$0xff] %v6279
  %6344 = vst [vmem:[%s7 + $0x1f0] sm:$0xff] %v6280
  %6345 = vst [vmem:[%s7 + $0x1f8] sm:$0xff] %v6281
  // Predicated region
  $region30: #{deconv_res_block_forward.3} parent=0 // pred_check
    _
  $region31: #{deconv_res_block_forward.3} parent=0 // pred_check_branch
    %6347 = sbr.rel (0) target = $region33
  $region32: #{deconv_res_block_forward.3} parent=0 // pred_region
    _
  $region33: #{deconv_res_block_forward.3} parent=0 // pred_fallthru
    _
  // Predicated region
  $region34: #{deconv_res_block_forward.3} parent=0 // pred_check
    _
  $region35: #{deconv_res_block_forward.3} parent=0 // pred_check_branch
    %6349 = sbr.rel (0) target = $region37
  $region36: #{deconv_res_block_forward.3} parent=0 // pred_region
    _
  $region37: #{deconv_res_block_forward.3} parent=0 // pred_fallthru
    _

</llo_original>
